<compile_context>
chip_gen: v7x
topology: tpu7x:2x2x1
jax: 0.10.0
libtpu: 0.0.40
codegen_flags: <defaults>
</compile_context>

<pallas_src>
import jax
import jax.numpy as jnp
from jax.experimental import pallas as pl
from jax.experimental.pallas import tpu as pltpu

# Keep the pure-JAX reference's f32 matmuls full-precision so they match the
# kernel's f32 MXU path.
jax.config.update("jax_default_matmul_precision", "highest")


# --------------------------- fused forward kernel -----------------------------
def _make_fused_kernel(n_layers, T, Bp, H):
    def kernel(*refs):
        # inputs : x2d, h0, c0, (w_ih_t, w_hh_t, b) * n_layers, out_w_t, out_b
        # outputs: outs, h_n, c_n      scratch: act (T*Bp, H) f32
        x_ref, h0_ref, c0_ref = refs[0], refs[1], refs[2]
        layer_refs = refs[3:3 + 3 * n_layers]
        out_w_ref = refs[3 + 3 * n_layers]
        out_b_ref = refs[4 + 3 * n_layers]
        outs_ref, hN_ref, cN_ref = refs[5 + 3 * n_layers:8 + 3 * n_layers]
        act_ref = refs[8 + 3 * n_layers]

        for l in range(n_layers):                       # static layer loop
            wih = layer_refs[3 * l][...]                # (D_l, 4H)
            whh = layer_refs[3 * l + 1][...]            # (H, 4H)
            b = layer_refs[3 * l + 2][...]              # (1, 4H)

            layer_in = x_ref[...] if l == 0 else act_ref[...]   # (T*Bp, D_l)

            # Hoisted input projection: one big matmul off the serial path,
            # bias broadcast once per layer (not per timestep).
            xproj = jnp.dot(layer_in, wih,
                            preferred_element_type=jnp.float32) + b  # (T*Bp, 4H)

            h = h0_ref[l]                               # (Bp, H)  f32
            c = c0_ref[l]                               # (Bp, H)  f32

            # T is small and static -> fully unrolled time recurrence; every
            # step's h goes straight into the VMEM scratch (aligned (8, H)
            # static-slice store), so only h/c stay live across steps.
            # NOTE(perf): w_hh could be held resident in the MXU weight regs
            # (pltpu.matmul_push_rhs / matmul_acc_lhs) across the loop, and on
            # v7x the xproj add could be fused into the MRB accumulate; kept
            # on jnp.dot here for portability.
            for t in range(T):
                gates = (xproj[t * Bp:(t + 1) * Bp, :]
                         + jnp.dot(h, whh,
                                   preferred_element_type=jnp.float32))  # (Bp,4H)
                # Full-vreg transcendentals (2 EUP passes), then lane slices.
                sig = jax.nn.sigmoid(gates)
                tnh = jnp.tanh(gates)
                i_g = sig[:, 0 * H:1 * H]
                f_g = sig[:, 1 * H:2 * H]
                g_g = tnh[:, 2 * H:3 * H]
                o_g = sig[:, 3 * H:4 * H]
                c = f_g * c + i_g * g_g
                h = o_g * jnp.tanh(c)
                act_ref[t * Bp:(t + 1) * Bp, :] = h

            # Final states written once per layer (aliased onto h0/c0 buffers;
            # index l is only read before it is written, so aliasing is safe).
            hN_ref[l] = h.astype(hN_ref.dtype)
            cN_ref[l] = c.astype(cN_ref.dtype)

        # Fused final Linear on the lane-padded output: (T*Bp, H) @ (H, Op).
        outs_ref[...] = (jnp.dot(act_ref[...], out_w_ref[...],
                                 preferred_element_type=jnp.float32)
                         + out_b_ref[...]).astype(outs_ref.dtype)

    return kernel


# ------------------------------ Model forward ---------------------------------
@jax.jit
def lstm_model_forward(x, h_state, params):
    """Mirrors LSTMModel.forward: returns (outs, (h_n, c_n))."""
    h0, c0 = h_state
    T, B, D = x.shape
    L, _, H = h0.shape
    O = params["out_w_t"].shape[-1]

    # Pad batch to the sublane width and the Linear output to a lane-dense
    # width; padded rows/lanes are zeros and never mix with real data.
    Bp = ((B + 7) // 8) * 8
    Op = ((O + 127) // 128) * 128

    x_p = jnp.pad(x, ((0, 0), (0, Bp - B), (0, 0)))
    h0_p = jnp.pad(h0, ((0, 0), (0, Bp - B), (0, 0)))
    c0_p = jnp.pad(c0, ((0, 0), (0, Bp - B), (0, 0)))
    x2d = x_p.reshape(T * Bp, D)                       # (t, b) flattening

    out_w_p = jnp.pad(params["out_w_t"], ((0, 0), (0, Op - O)))   # (H, Op)
    out_b_p = jnp.pad(params["out_b"], (0, Op - O)).reshape(1, Op)

    inputs = [x2d, h0_p, c0_p]
    for lp in params["lstm"]:
        inputs += [lp["w_ih_t"], lp["w_hh_t"], lp["b"]]
    inputs += [out_w_p, out_b_p]

    out_shapes = (
        jax.ShapeDtypeStruct((T * Bp, Op), jnp.float32),   # outs (padded)
        jax.ShapeDtypeStruct((L, Bp, H), jnp.float32),     # h_n  (padded)
        jax.ShapeDtypeStruct((L, Bp, H), jnp.float32),     # c_n  (padded)
    )
    vmem_spec = pl.BlockSpec(memory_space=pltpu.MemorySpace.VMEM)

    outs_p, h_n_p, c_n_p = pl.pallas_call(
        _make_fused_kernel(L, T, Bp, H),
        out_shape=out_shapes,
        in_specs=[vmem_spec] * len(inputs),
        out_specs=tuple(vmem_spec for _ in out_shapes),
        scratch_shapes=[pltpu.VMEM((T * Bp, H), jnp.float32)],
        # h0_p -> h_n, c0_p -> c_n: state outputs reuse the padded state bufs.
        input_output_aliases={1: 1, 2: 2},
        compiler_params=pltpu.CompilerParams(
            vmem_limit_bytes=32 * 1024 * 1024),
    )(*inputs)

    outs = outs_p.reshape(T, Bp, Op)[:, :B, :O].reshape(T * B, O)
    h_n = h_n_p[:, :B, :]
    c_n = c_n_p[:, :B, :]
    return outs, (h_n, c_n)


# --------------------------- Params / reference -------------------------------
def init_params(key, i_size, h_size, n_layers, o_size):
    params = {"lstm": []}
    scale = 1.0 / jnp.sqrt(jnp.float32(h_size))
    for l in range(n_layers):
        d_in = i_size if l == 0 else h_size
        key, k1, k2, k3, k4 = jax.random.split(key, 5)
        w_ih = jax.random.uniform(k1, (4 * h_size, d_in), jnp.float32, -scale, scale)
        w_hh = jax.random.uniform(k2, (4 * h_size, h_size), jnp.float32, -scale, scale)
        b_ih = jax.random.uniform(k3, (4 * h_size,), jnp.float32, -scale, scale)
        b_hh = jax.random.uniform(k4, (4 * h_size,), jnp.float32, -scale, scale)
        params["lstm"].append({
            "w_ih_t": w_ih.T,                        # (d_in, 4H)
            "w_hh_t": w_hh.T,                        # (H, 4H)
            "b": (b_ih + b_hh).reshape(1, 4 * h_size),
        })
    key, k5, k6 = jax.random.split(key, 3)
    out_w = jax.random.uniform(k5, (o_size, h_size), jnp.float32, -scale, scale)
    out_b = jax.random.uniform(k6, (o_size,), jnp.float32, -scale, scale)
    params["out_w_t"] = out_w.T                      # (H, O)
    params["out_b"] = out_b                          # (O,)
    return params


def reference_forward(x, h_state, params):
    """Pure-JAX reference matching torch.nn.LSTM + Linear semantics."""
    h0, c0 = h_state
    layer_in = x
    h_fin, c_fin = [], []
    for l, lp in enumerate(params["lstm"]):
        H = lp["w_hh_t"].shape[0]
        h = h0[l]
        c = c0[l]
        outs = []
        for t in range(x.shape[0]):
            g = layer_in[t] @ lp["w_ih_t"] + h @ lp["w_hh_t"] + lp["b"][0]
            i = jax.nn.sigmoid(g[:, :H])
            f = jax.nn.sigmoid(g[:, H:2 * H])
            gg = jnp.tanh(g[:, 2 * H:3 * H])
            o = jax.nn.sigmoid(g[:, 3 * H:])
            c = f * c + i * gg
            h = o * jnp.tanh(c)
            outs.append(h)
        layer_in = jnp.stack(outs, 0)
        h_fin.append(h)
        c_fin.append(c)
    r = layer_in.reshape(-1, layer_in.shape[-1])
    outs = r @ params["out_w_t"] + params["out_b"]
    return outs, (jnp.stack(h_fin, 0), jnp.stack(c_fin, 0))


# ----------------------------------- main --------------------------------------
if __name__ == "__main__":
    i_size, h_size, n_layers, o_size = 8, 32, 2, 4
    seq_len, batch = 8, 2

    key = jax.random.PRNGKey(0)
    key, kx, kh, kc = jax.random.split(key, 4)
    x = jax.random.normal(kx, (seq_len, batch, i_size), jnp.float32)
    h0 = jax.random.normal(kh, (n_layers, batch, h_size), jnp.float32)
    c0 = jax.random.normal(kc, (n_layers, batch, h_size), jnp.float32)
    params = init_params(key, i_size, h_size, n_layers, o_size)

    outs, (h_n, c_n) = lstm_model_forward(x, (h0, c0), params)
    outs = jax.block_until_ready(outs)
    h_n = jax.block_until_ready(h_n)
    c_n = jax.block_until_ready(c_n)

    ref_outs, (ref_h, ref_c) = reference_forward(x, (h0, c0), params)
    assert outs.shape == (seq_len * batch, o_size)
    assert h_n.shape == (n_layers, batch, h_size)
    assert c_n.shape == (n_layers, batch, h_size)
    assert jnp.allclose(outs, ref_outs, rtol=1e-4, atol=1e-4)
    assert jnp.allclose(h_n, ref_h, rtol=1e-4, atol=1e-4)
    assert jnp.allclose(c_n, ref_c, rtol=1e-4, atol=1e-4)

    print("KERNEL_OK")
</pallas_src>

<mosaic_0001>
module attributes {stable_mosaic.version = 11 : i64} {
  func.func @kernel(%arg0: memref<64x8xf32, #tpu.memory_space<vmem>>, %arg1: memref<2x8x32xf32, #tpu.memory_space<vmem>>, %arg2: memref<2x8x32xf32, #tpu.memory_space<vmem>>, %arg3: memref<8x128xf32, #tpu.memory_space<vmem>>, %arg4: memref<32x128xf32, #tpu.memory_space<vmem>>, %arg5: memref<1x128xf32, #tpu.memory_space<vmem>>, %arg6: memref<32x128xf32, #tpu.memory_space<vmem>>, %arg7: memref<32x128xf32, #tpu.memory_space<vmem>>, %arg8: memref<1x128xf32, #tpu.memory_space<vmem>>, %arg9: memref<32x128xf32, #tpu.memory_space<vmem>>, %arg10: memref<1x128xf32, #tpu.memory_space<vmem>>, %arg11: memref<64x128xf32, #tpu.memory_space<vmem>>, %arg12: memref<2x8x32xf32, #tpu.memory_space<vmem>>, %arg13: memref<2x8x32xf32, #tpu.memory_space<vmem>>, %arg14: memref<64x32xf32, #tpu.memory_space<vmem>>) attributes {dimension_semantics = [], scalar_prefetch = 0 : i64, scratch_operands = 1 : i64, tpu.core_type = #tpu.core_type<tc>} {
    %c0 = arith.constant 0 : index
    %c0_0 = arith.constant 0 : index
    %0 = vector.load %arg3[%c0, %c0_0] : memref<8x128xf32, #tpu.memory_space<vmem>>, vector<8x128xf32>
    %c0_1 = arith.constant 0 : index
    %c0_2 = arith.constant 0 : index
    %1 = vector.load %arg4[%c0_1, %c0_2] : memref<32x128xf32, #tpu.memory_space<vmem>>, vector<32x128xf32>
    %c0_3 = arith.constant 0 : index
    %c0_4 = arith.constant 0 : index
    %2 = vector.load %arg5[%c0_3, %c0_4] : memref<1x128xf32, #tpu.memory_space<vmem>>, vector<1x128xf32>
    %c0_5 = arith.constant 0 : index
    %c0_6 = arith.constant 0 : index
    %3 = vector.load %arg0[%c0_5, %c0_6] : memref<64x8xf32, #tpu.memory_space<vmem>>, vector<64x8xf32>
    %cst = arith.constant dense<0.000000e+00> : vector<64x128xf32>
    %4 = tpu.matmul %3, %0, %cst {dimension_numbers = #tpu.dot_dimension_numbers<[1], [0], [0], [1], [0, 0, 1, 1], [], []>, precision = #tpu.contract_precision<fp32>} : vector<64x8xf32>, vector<8x128xf32>, vector<64x128xf32> -> vector<64x128xf32>
    %5 = vector.broadcast %2 : vector<1x128xf32> to vector<64x128xf32>
    %6 = arith.addf %4, %5 : vector<64x128xf32>
    %c0_7 = arith.constant 0 : index
    %c0_8 = arith.constant 0 : index
    %c0_9 = arith.constant 0 : index
    %7 = vector.load %arg1[%c0_7, %c0_8, %c0_9] : memref<2x8x32xf32, #tpu.memory_space<vmem>>, vector<1x8x32xf32>
    %8 = vector.shape_cast %7 : vector<1x8x32xf32> to vector<8x32xf32>
    %c0_10 = arith.constant 0 : index
    %c0_11 = arith.constant 0 : index
    %c0_12 = arith.constant 0 : index
    %9 = vector.load %arg2[%c0_10, %c0_11, %c0_12] : memref<2x8x32xf32, #tpu.memory_space<vmem>>, vector<1x8x32xf32>
    %10 = vector.shape_cast %9 : vector<1x8x32xf32> to vector<8x32xf32>
    %11 = vector.extract_strided_slice %6 {offsets = [0, 0], sizes = [8, 128], strides = [1, 1]} : vector<64x128xf32> to vector<8x128xf32>
    %cst_13 = arith.constant dense<0.000000e+00> : vector<8x128xf32>
    %12 = tpu.matmul %8, %1, %cst_13 {dimension_numbers = #tpu.dot_dimension_numbers<[1], [0], [0], [1], [0, 0, 1, 1], [], []>, precision = #tpu.contract_precision<fp32>} : vector<8x32xf32>, vector<32x128xf32>, vector<8x128xf32> -> vector<8x128xf32>
    %13 = arith.addf %11, %12 : vector<8x128xf32>
    %14 = arith.negf %13 : vector<8x128xf32>
    %15 = math.exp %14 : vector<8x128xf32>
    %cst_14 = arith.constant 1.000000e+00 : f32
    %16 = vector.broadcast %cst_14 : f32 to vector<8x128xf32>
    %17 = arith.addf %16, %15 : vector<8x128xf32>
    %18 = arith.divf %16, %17 : vector<8x128xf32>
    %19 = math.tanh %13 : vector<8x128xf32>
    %20 = vector.extract_strided_slice %18 {offsets = [0, 0], sizes = [8, 32], strides = [1, 1]} : vector<8x128xf32> to vector<8x32xf32>
    %21 = vector.extract_strided_slice %18 {offsets = [0, 32], sizes = [8, 32], strides = [1, 1]} : vector<8x128xf32> to vector<8x32xf32>
    %22 = vector.extract_strided_slice %19 {offsets = [0, 64], sizes = [8, 32], strides = [1, 1]} : vector<8x128xf32> to vector<8x32xf32>
    %23 = vector.extract_strided_slice %18 {offsets = [0, 96], sizes = [8, 32], strides = [1, 1]} : vector<8x128xf32> to vector<8x32xf32>
    %24 = arith.mulf %21, %10 : vector<8x32xf32>
    %25 = arith.mulf %20, %22 : vector<8x32xf32>
    %26 = arith.addf %24, %25 : vector<8x32xf32>
    %27 = math.tanh %26 : vector<8x32xf32>
    %28 = arith.mulf %23, %27 : vector<8x32xf32>
    %c0_15 = arith.constant 0 : index
    %c0_16 = arith.constant 0 : index
    %29 = vector.load %arg14[%c0_15, %c0_16] : memref<64x32xf32, #tpu.memory_space<vmem>>, vector<8x32xf32>
    tpu.vector_store %arg14[%c0_15, %c0_16], %28 {strides = array<i32>} : memref<64x32xf32, #tpu.memory_space<vmem>>, vector<8x32xf32>,
    %30 = vector.extract_strided_slice %6 {offsets = [8, 0], sizes = [8, 128], strides = [1, 1]} : vector<64x128xf32> to vector<8x128xf32>
    %cst_17 = arith.constant dense<0.000000e+00> : vector<8x128xf32>
    %31 = tpu.matmul %28, %1, %cst_17 {dimension_numbers = #tpu.dot_dimension_numbers<[1], [0], [0], [1], [0, 0, 1, 1], [], []>, precision = #tpu.contract_precision<fp32>} : vector<8x32xf32>, vector<32x128xf32>, vector<8x128xf32> -> vector<8x128xf32>
    %32 = arith.addf %30, %31 : vector<8x128xf32>
    %33 = arith.negf %32 : vector<8x128xf32>
    %34 = math.exp %33 : vector<8x128xf32>
    %cst_18 = arith.constant 1.000000e+00 : f32
    %35 = vector.broadcast %cst_18 : f32 to vector<8x128xf32>
    %36 = arith.addf %35, %34 : vector<8x128xf32>
    %37 = arith.divf %35, %36 : vector<8x128xf32>
    %38 = math.tanh %32 : vector<8x128xf32>
    %39 = vector.extract_strided_slice %37 {offsets = [0, 0], sizes = [8, 32], strides = [1, 1]} : vector<8x128xf32> to vector<8x32xf32>
    %40 = vector.extract_strided_slice %37 {offsets = [0, 32], sizes = [8, 32], strides = [1, 1]} : vector<8x128xf32> to vector<8x32xf32>
    %41 = vector.extract_strided_slice %38 {offsets = [0, 64], sizes = [8, 32], strides = [1, 1]} : vector<8x128xf32> to vector<8x32xf32>
    %42 = vector.extract_strided_slice %37 {offsets = [0, 96], sizes = [8, 32], strides = [1, 1]} : vector<8x128xf32> to vector<8x32xf32>
    %43 = arith.mulf %40, %26 : vector<8x32xf32>
    %44 = arith.mulf %39, %41 : vector<8x32xf32>
    %45 = arith.addf %43, %44 : vector<8x32xf32>
    %46 = math.tanh %45 : vector<8x32xf32>
    %47 = arith.mulf %42, %46 : vector<8x32xf32>
    %c8 = arith.constant 8 : index
    %c0_19 = arith.constant 0 : index
    %48 = vector.load %arg14[%c8, %c0_19] : memref<64x32xf32, #tpu.memory_space<vmem>>, vector<8x32xf32>
    tpu.vector_store %arg14[%c8, %c0_19], %47 {strides = array<i32>} : memref<64x32xf32, #tpu.memory_space<vmem>>, vector<8x32xf32>,
    %49 = vector.extract_strided_slice %6 {offsets = [16, 0], sizes = [8, 128], strides = [1, 1]} : vector<64x128xf32> to vector<8x128xf32>
    %cst_20 = arith.constant dense<0.000000e+00> : vector<8x128xf32>
    %50 = tpu.matmul %47, %1, %cst_20 {dimension_numbers = #tpu.dot_dimension_numbers<[1], [0], [0], [1], [0, 0, 1, 1], [], []>, precision = #tpu.contract_precision<fp32>} : vector<8x32xf32>, vector<32x128xf32>, vector<8x128xf32> -> vector<8x128xf32>
    %51 = arith.addf %49, %50 : vector<8x128xf32>
    %52 = arith.negf %51 : vector<8x128xf32>
    %53 = math.exp %52 : vector<8x128xf32>
    %cst_21 = arith.constant 1.000000e+00 : f32
    %54 = vector.broadcast %cst_21 : f32 to vector<8x128xf32>
    %55 = arith.addf %54, %53 : vector<8x128xf32>
    %56 = arith.divf %54, %55 : vector<8x128xf32>
    %57 = math.tanh %51 : vector<8x128xf32>
    %58 = vector.extract_strided_slice %56 {offsets = [0, 0], sizes = [8, 32], strides = [1, 1]} : vector<8x128xf32> to vector<8x32xf32>
    %59 = vector.extract_strided_slice %56 {offsets = [0, 32], sizes = [8, 32], strides = [1, 1]} : vector<8x128xf32> to vector<8x32xf32>
    %60 = vector.extract_strided_slice %57 {offsets = [0, 64], sizes = [8, 32], strides = [1, 1]} : vector<8x128xf32> to vector<8x32xf32>
    %61 = vector.extract_strided_slice %56 {offsets = [0, 96], sizes = [8, 32], strides = [1, 1]} : vector<8x128xf32> to vector<8x32xf32>
    %62 = arith.mulf %59, %45 : vector<8x32xf32>
    %63 = arith.mulf %58, %60 : vector<8x32xf32>
    %64 = arith.addf %62, %63 : vector<8x32xf32>
    %65 = math.tanh %64 : vector<8x32xf32>
    %66 = arith.mulf %61, %65 : vector<8x32xf32>
    %c16 = arith.constant 16 : index
    %c0_22 = arith.constant 0 : index
    %67 = vector.load %arg14[%c16, %c0_22] : memref<64x32xf32, #tpu.memory_space<vmem>>, vector<8x32xf32>
    tpu.vector_store %arg14[%c16, %c0_22], %66 {strides = array<i32>} : memref<64x32xf32, #tpu.memory_space<vmem>>, vector<8x32xf32>,
    %68 = vector.extract_strided_slice %6 {offsets = [24, 0], sizes = [8, 128], strides = [1, 1]} : vector<64x128xf32> to vector<8x128xf32>
    %cst_23 = arith.constant dense<0.000000e+00> : vector<8x128xf32>
    %69 = tpu.matmul %66, %1, %cst_23 {dimension_numbers = #tpu.dot_dimension_numbers<[1], [0], [0], [1], [0, 0, 1, 1], [], []>, precision = #tpu.contract_precision<fp32>} : vector<8x32xf32>, vector<32x128xf32>, vector<8x128xf32> -> vector<8x128xf32>
    %70 = arith.addf %68, %69 : vector<8x128xf32>
    %71 = arith.negf %70 : vector<8x128xf32>
    %72 = math.exp %71 : vector<8x128xf32>
    %cst_24 = arith.constant 1.000000e+00 : f32
    %73 = vector.broadcast %cst_24 : f32 to vector<8x128xf32>
    %74 = arith.addf %73, %72 : vector<8x128xf32>
    %75 = arith.divf %73, %74 : vector<8x128xf32>
    %76 = math.tanh %70 : vector<8x128xf32>
    %77 = vector.extract_strided_slice %75 {offsets = [0, 0], sizes = [8, 32], strides = [1, 1]} : vector<8x128xf32> to vector<8x32xf32>
    %78 = vector.extract_strided_slice %75 {offsets = [0, 32], sizes = [8, 32], strides = [1, 1]} : vector<8x128xf32> to vector<8x32xf32>
    %79 = vector.extract_strided_slice %76 {offsets = [0, 64], sizes = [8, 32], strides = [1, 1]} : vector<8x128xf32> to vector<8x32xf32>
    %80 = vector.extract_strided_slice %75 {offsets = [0, 96], sizes = [8, 32], strides = [1, 1]} : vector<8x128xf32> to vector<8x32xf32>
    %81 = arith.mulf %78, %64 : vector<8x32xf32>
    %82 = arith.mulf %77, %79 : vector<8x32xf32>
    %83 = arith.addf %81, %82 : vector<8x32xf32>
    %84 = math.tanh %83 : vector<8x32xf32>
    %85 = arith.mulf %80, %84 : vector<8x32xf32>
    %c24 = arith.constant 24 : index
    %c0_25 = arith.constant 0 : index
    %86 = vector.load %arg14[%c24, %c0_25] : memref<64x32xf32, #tpu.memory_space<vmem>>, vector<8x32xf32>
    tpu.vector_store %arg14[%c24, %c0_25], %85 {strides = array<i32>} : memref<64x32xf32, #tpu.memory_space<vmem>>, vector<8x32xf32>,
    %87 = vector.extract_strided_slice %6 {offsets = [32, 0], sizes = [8, 128], strides = [1, 1]} : vector<64x128xf32> to vector<8x128xf32>
    %cst_26 = arith.constant dense<0.000000e+00> : vector<8x128xf32>
    %88 = tpu.matmul %85, %1, %cst_26 {dimension_numbers = #tpu.dot_dimension_numbers<[1], [0], [0], [1], [0, 0, 1, 1], [], []>, precision = #tpu.contract_precision<fp32>} : vector<8x32xf32>, vector<32x128xf32>, vector<8x128xf32> -> vector<8x128xf32>
    %89 = arith.addf %87, %88 : vector<8x128xf32>
    %90 = arith.negf %89 : vector<8x128xf32>
    %91 = math.exp %90 : vector<8x128xf32>
    %cst_27 = arith.constant 1.000000e+00 : f32
    %92 = vector.broadcast %cst_27 : f32 to vector<8x128xf32>
    %93 = arith.addf %92, %91 : vector<8x128xf32>
    %94 = arith.divf %92, %93 : vector<8x128xf32>
    %95 = math.tanh %89 : vector<8x128xf32>
    %96 = vector.extract_strided_slice %94 {offsets = [0, 0], sizes = [8, 32], strides = [1, 1]} : vector<8x128xf32> to vector<8x32xf32>
    %97 = vector.extract_strided_slice %94 {offsets = [0, 32], sizes = [8, 32], strides = [1, 1]} : vector<8x128xf32> to vector<8x32xf32>
    %98 = vector.extract_strided_slice %95 {offsets = [0, 64], sizes = [8, 32], strides = [1, 1]} : vector<8x128xf32> to vector<8x32xf32>
    %99 = vector.extract_strided_slice %94 {offsets = [0, 96], sizes = [8, 32], strides = [1, 1]} : vector<8x128xf32> to vector<8x32xf32>
    %100 = arith.mulf %97, %83 : vector<8x32xf32>
    %101 = arith.mulf %96, %98 : vector<8x32xf32>
    %102 = arith.addf %100, %101 : vector<8x32xf32>
    %103 = math.tanh %102 : vector<8x32xf32>
    %104 = arith.mulf %99, %103 : vector<8x32xf32>
    %c32 = arith.constant 32 : index
    %c0_28 = arith.constant 0 : index
    %105 = vector.load %arg14[%c32, %c0_28] : memref<64x32xf32, #tpu.memory_space<vmem>>, vector<8x32xf32>
    tpu.vector_store %arg14[%c32, %c0_28], %104 {strides = array<i32>} : memref<64x32xf32, #tpu.memory_space<vmem>>, vector<8x32xf32>,
    %106 = vector.extract_strided_slice %6 {offsets = [40, 0], sizes = [8, 128], strides = [1, 1]} : vector<64x128xf32> to vector<8x128xf32>
    %cst_29 = arith.constant dense<0.000000e+00> : vector<8x128xf32>
    %107 = tpu.matmul %104, %1, %cst_29 {dimension_numbers = #tpu.dot_dimension_numbers<[1], [0], [0], [1], [0, 0, 1, 1], [], []>, precision = #tpu.contract_precision<fp32>} : vector<8x32xf32>, vector<32x128xf32>, vector<8x128xf32> -> vector<8x128xf32>
    %108 = arith.addf %106, %107 : vector<8x128xf32>
    %109 = arith.negf %108 : vector<8x128xf32>
    %110 = math.exp %109 : vector<8x128xf32>
    %cst_30 = arith.constant 1.000000e+00 : f32
    %111 = vector.broadcast %cst_30 : f32 to vector<8x128xf32>
    %112 = arith.addf %111, %110 : vector<8x128xf32>
    %113 = arith.divf %111, %112 : vector<8x128xf32>
    %114 = math.tanh %108 : vector<8x128xf32>
    %115 = vector.extract_strided_slice %113 {offsets = [0, 0], sizes = [8, 32], strides = [1, 1]} : vector<8x128xf32> to vector<8x32xf32>
    %116 = vector.extract_strided_slice %113 {offsets = [0, 32], sizes = [8, 32], strides = [1, 1]} : vector<8x128xf32> to vector<8x32xf32>
    %117 = vector.extract_strided_slice %114 {offsets = [0, 64], sizes = [8, 32], strides = [1, 1]} : vector<8x128xf32> to vector<8x32xf32>
    %118 = vector.extract_strided_slice %113 {offsets = [0, 96], sizes = [8, 32], strides = [1, 1]} : vector<8x128xf32> to vector<8x32xf32>
    %119 = arith.mulf %116, %102 : vector<8x32xf32>
    %120 = arith.mulf %115, %117 : vector<8x32xf32>
    %121 = arith.addf %119, %120 : vector<8x32xf32>
    %122 = math.tanh %121 : vector<8x32xf32>
    %123 = arith.mulf %118, %122 : vector<8x32xf32>
    %c40 = arith.constant 40 : index
    %c0_31 = arith.constant 0 : index
    %124 = vector.load %arg14[%c40, %c0_31] : memref<64x32xf32, #tpu.memory_space<vmem>>, vector<8x32xf32>
    tpu.vector_store %arg14[%c40, %c0_31], %123 {strides = array<i32>} : memref<64x32xf32, #tpu.memory_space<vmem>>, vector<8x32xf32>,
    %125 = vector.extract_strided_slice %6 {offsets = [48, 0], sizes = [8, 128], strides = [1, 1]} : vector<64x128xf32> to vector<8x128xf32>
    %cst_32 = arith.constant dense<0.000000e+00> : vector<8x128xf32>
    %126 = tpu.matmul %123, %1, %cst_32 {dimension_numbers = #tpu.dot_dimension_numbers<[1], [0], [0], [1], [0, 0, 1, 1], [], []>, precision = #tpu.contract_precision<fp32>} : vector<8x32xf32>, vector<32x128xf32>, vector<8x128xf32> -> vector<8x128xf32>
    %127 = arith.addf %125, %126 : vector<8x128xf32>
    %128 = arith.negf %127 : vector<8x128xf32>
    %129 = math.exp %128 : vector<8x128xf32>
    %cst_33 = arith.constant 1.000000e+00 : f32
    %130 = vector.broadcast %cst_33 : f32 to vector<8x128xf32>
    %131 = arith.addf %130, %129 : vector<8x128xf32>
    %132 = arith.divf %130, %131 : vector<8x128xf32>
    %133 = math.tanh %127 : vector<8x128xf32>
    %134 = vector.extract_strided_slice %132 {offsets = [0, 0], sizes = [8, 32], strides = [1, 1]} : vector<8x128xf32> to vector<8x32xf32>
    %135 = vector.extract_strided_slice %132 {offsets = [0, 32], sizes = [8, 32], strides = [1, 1]} : vector<8x128xf32> to vector<8x32xf32>
    %136 = vector.extract_strided_slice %133 {offsets = [0, 64], sizes = [8, 32], strides = [1, 1]} : vector<8x128xf32> to vector<8x32xf32>
    %137 = vector.extract_strided_slice %132 {offsets = [0, 96], sizes = [8, 32], strides = [1, 1]} : vector<8x128xf32> to vector<8x32xf32>
    %138 = arith.mulf %135, %121 : vector<8x32xf32>
    %139 = arith.mulf %134, %136 : vector<8x32xf32>
    %140 = arith.addf %138, %139 : vector<8x32xf32>
    %141 = math.tanh %140 : vector<8x32xf32>
    %142 = arith.mulf %137, %141 : vector<8x32xf32>
    %c48 = arith.constant 48 : index
    %c0_34 = arith.constant 0 : index
    %143 = vector.load %arg14[%c48, %c0_34] : memref<64x32xf32, #tpu.memory_space<vmem>>, vector<8x32xf32>
    tpu.vector_store %arg14[%c48, %c0_34], %142 {strides = array<i32>} : memref<64x32xf32, #tpu.memory_space<vmem>>, vector<8x32xf32>,
    %144 = vector.extract_strided_slice %6 {offsets = [56, 0], sizes = [8, 128], strides = [1, 1]} : vector<64x128xf32> to vector<8x128xf32>
    %cst_35 = arith.constant dense<0.000000e+00> : vector<8x128xf32>
    %145 = tpu.matmul %142, %1, %cst_35 {dimension_numbers = #tpu.dot_dimension_numbers<[1], [0], [0], [1], [0, 0, 1, 1], [], []>, precision = #tpu.contract_precision<fp32>} : vector<8x32xf32>, vector<32x128xf32>, vector<8x128xf32> -> vector<8x128xf32>
    %146 = arith.addf %144, %145 : vector<8x128xf32>
    %147 = arith.negf %146 : vector<8x128xf32>
    %148 = math.exp %147 : vector<8x128xf32>
    %cst_36 = arith.constant 1.000000e+00 : f32
    %149 = vector.broadcast %cst_36 : f32 to vector<8x128xf32>
    %150 = arith.addf %149, %148 : vector<8x128xf32>
    %151 = arith.divf %149, %150 : vector<8x128xf32>
    %152 = math.tanh %146 : vector<8x128xf32>
    %153 = vector.extract_strided_slice %151 {offsets = [0, 0], sizes = [8, 32], strides = [1, 1]} : vector<8x128xf32> to vector<8x32xf32>
    %154 = vector.extract_strided_slice %151 {offsets = [0, 32], sizes = [8, 32], strides = [1, 1]} : vector<8x128xf32> to vector<8x32xf32>
    %155 = vector.extract_strided_slice %152 {offsets = [0, 64], sizes = [8, 32], strides = [1, 1]} : vector<8x128xf32> to vector<8x32xf32>
    %156 = vector.extract_strided_slice %151 {offsets = [0, 96], sizes = [8, 32], strides = [1, 1]} : vector<8x128xf32> to vector<8x32xf32>
    %157 = arith.mulf %154, %140 : vector<8x32xf32>
    %158 = arith.mulf %153, %155 : vector<8x32xf32>
    %159 = arith.addf %157, %158 : vector<8x32xf32>
    %160 = math.tanh %159 : vector<8x32xf32>
    %161 = arith.mulf %156, %160 : vector<8x32xf32>
    %c56 = arith.constant 56 : index
    %c0_37 = arith.constant 0 : index
    %162 = vector.load %arg14[%c56, %c0_37] : memref<64x32xf32, #tpu.memory_space<vmem>>, vector<8x32xf32>
    tpu.vector_store %arg14[%c56, %c0_37], %161 {strides = array<i32>} : memref<64x32xf32, #tpu.memory_space<vmem>>, vector<8x32xf32>,
    %c0_38 = arith.constant 0 : index
    %c0_39 = arith.constant 0 : index
    %c0_40 = arith.constant 0 : index
    %163 = vector.load %arg12[%c0_38, %c0_39, %c0_40] : memref<2x8x32xf32, #tpu.memory_space<vmem>>, vector<1x8x32xf32>
    %164 = vector.shape_cast %163 : vector<1x8x32xf32> to vector<8x32xf32>
    %165 = vector.shape_cast %161 : vector<8x32xf32> to vector<1x8x32xf32>
    tpu.vector_store %arg12[%c0_38, %c0_39, %c0_40], %165 {strides = array<i32>} : memref<2x8x32xf32, #tpu.memory_space<vmem>>, vector<1x8x32xf32>,
    %c0_41 = arith.constant 0 : index
    %c0_42 = arith.constant 0 : index
    %c0_43 = arith.constant 0 : index
    %166 = vector.load %arg13[%c0_41, %c0_42, %c0_43] : memref<2x8x32xf32, #tpu.memory_space<vmem>>, vector<1x8x32xf32>
    %167 = vector.shape_cast %166 : vector<1x8x32xf32> to vector<8x32xf32>
    %168 = vector.shape_cast %159 : vector<8x32xf32> to vector<1x8x32xf32>
    tpu.vector_store %arg13[%c0_41, %c0_42, %c0_43], %168 {strides = array<i32>} : memref<2x8x32xf32, #tpu.memory_space<vmem>>, vector<1x8x32xf32>,
    %c0_44 = arith.constant 0 : index
    %c0_45 = arith.constant 0 : index
    %169 = vector.load %arg6[%c0_44, %c0_45] : memref<32x128xf32, #tpu.memory_space<vmem>>, vector<32x128xf32>
    %c0_46 = arith.constant 0 : index
    %c0_47 = arith.constant 0 : index
    %170 = vector.load %arg7[%c0_46, %c0_47] : memref<32x128xf32, #tpu.memory_space<vmem>>, vector<32x128xf32>
    %c0_48 = arith.constant 0 : index
    %c0_49 = arith.constant 0 : index
    %171 = vector.load %arg8[%c0_48, %c0_49] : memref<1x128xf32, #tpu.memory_space<vmem>>, vector<1x128xf32>
    %c0_50 = arith.constant 0 : index
    %c0_51 = arith.constant 0 : index
    %172 = vector.load %arg14[%c0_50, %c0_51] : memref<64x32xf32, #tpu.memory_space<vmem>>, vector<64x32xf32>
    %cst_52 = arith.constant dense<0.000000e+00> : vector<64x128xf32>
    %173 = tpu.matmul %172, %169, %cst_52 {dimension_numbers = #tpu.dot_dimension_numbers<[1], [0], [0], [1], [0, 0, 1, 1], [], []>, precision = #tpu.contract_precision<fp32>} : vector<64x32xf32>, vector<32x128xf32>, vector<64x128xf32> -> vector<64x128xf32>
    %174 = vector.broadcast %171 : vector<1x128xf32> to vector<64x128xf32>
    %175 = arith.addf %173, %174 : vector<64x128xf32>
    %c1 = arith.constant 1 : index
    %c0_53 = arith.constant 0 : index
    %c0_54 = arith.constant 0 : index
    %176 = vector.load %arg1[%c1, %c0_53, %c0_54] : memref<2x8x32xf32, #tpu.memory_space<vmem>>, vector<1x8x32xf32>
    %177 = vector.shape_cast %176 : vector<1x8x32xf32> to vector<8x32xf32>
    %c1_55 = arith.constant 1 : index
    %c0_56 = arith.constant 0 : index
    %c0_57 = arith.constant 0 : index
    %178 = vector.load %arg2[%c1_55, %c0_56, %c0_57] : memref<2x8x32xf32, #tpu.memory_space<vmem>>, vector<1x8x32xf32>
    %179 = vector.shape_cast %178 : vector<1x8x32xf32> to vector<8x32xf32>
    %180 = vector.extract_strided_slice %175 {offsets = [0, 0], sizes = [8, 128], strides = [1, 1]} : vector<64x128xf32> to vector<8x128xf32>
    %cst_58 = arith.constant dense<0.000000e+00> : vector<8x128xf32>
    %181 = tpu.matmul %177, %170, %cst_58 {dimension_numbers = #tpu.dot_dimension_numbers<[1], [0], [0], [1], [0, 0, 1, 1], [], []>, precision = #tpu.contract_precision<fp32>} : vector<8x32xf32>, vector<32x128xf32>, vector<8x128xf32> -> vector<8x128xf32>
    %182 = arith.addf %180, %181 : vector<8x128xf32>
    %183 = arith.negf %182 : vector<8x128xf32>
    %184 = math.exp %183 : vector<8x128xf32>
    %cst_59 = arith.constant 1.000000e+00 : f32
    %185 = vector.broadcast %cst_59 : f32 to vector<8x128xf32>
    %186 = arith.addf %185, %184 : vector<8x128xf32>
    %187 = arith.divf %185, %186 : vector<8x128xf32>
    %188 = math.tanh %182 : vector<8x128xf32>
    %189 = vector.extract_strided_slice %187 {offsets = [0, 0], sizes = [8, 32], strides = [1, 1]} : vector<8x128xf32> to vector<8x32xf32>
    %190 = vector.extract_strided_slice %187 {offsets = [0, 32], sizes = [8, 32], strides = [1, 1]} : vector<8x128xf32> to vector<8x32xf32>
    %191 = vector.extract_strided_slice %188 {offsets = [0, 64], sizes = [8, 32], strides = [1, 1]} : vector<8x128xf32> to vector<8x32xf32>
    %192 = vector.extract_strided_slice %187 {offsets = [0, 96], sizes = [8, 32], strides = [1, 1]} : vector<8x128xf32> to vector<8x32xf32>
    %193 = arith.mulf %190, %179 : vector<8x32xf32>
    %194 = arith.mulf %189, %191 : vector<8x32xf32>
    %195 = arith.addf %193, %194 : vector<8x32xf32>
    %196 = math.tanh %195 : vector<8x32xf32>
    %197 = arith.mulf %192, %196 : vector<8x32xf32>
    %c0_60 = arith.constant 0 : index
    %c0_61 = arith.constant 0 : index
    %198 = vector.load %arg14[%c0_60, %c0_61] : memref<64x32xf32, #tpu.memory_space<vmem>>, vector<8x32xf32>
    tpu.vector_store %arg14[%c0_60, %c0_61], %197 {strides = array<i32>} : memref<64x32xf32, #tpu.memory_space<vmem>>, vector<8x32xf32>,
    %199 = vector.extract_strided_slice %175 {offsets = [8, 0], sizes = [8, 128], strides = [1, 1]} : vector<64x128xf32> to vector<8x128xf32>
    %cst_62 = arith.constant dense<0.000000e+00> : vector<8x128xf32>
    %200 = tpu.matmul %197, %170, %cst_62 {dimension_numbers = #tpu.dot_dimension_numbers<[1], [0], [0], [1], [0, 0, 1, 1], [], []>, precision = #tpu.contract_precision<fp32>} : vector<8x32xf32>, vector<32x128xf32>, vector<8x128xf32> -> vector<8x128xf32>
    %201 = arith.addf %199, %200 : vector<8x128xf32>
    %202 = arith.negf %201 : vector<8x128xf32>
    %203 = math.exp %202 : vector<8x128xf32>
    %cst_63 = arith.constant 1.000000e+00 : f32
    %204 = vector.broadcast %cst_63 : f32 to vector<8x128xf32>
    %205 = arith.addf %204, %203 : vector<8x128xf32>
    %206 = arith.divf %204, %205 : vector<8x128xf32>
    %207 = math.tanh %201 : vector<8x128xf32>
    %208 = vector.extract_strided_slice %206 {offsets = [0, 0], sizes = [8, 32], strides = [1, 1]} : vector<8x128xf32> to vector<8x32xf32>
    %209 = vector.extract_strided_slice %206 {offsets = [0, 32], sizes = [8, 32], strides = [1, 1]} : vector<8x128xf32> to vector<8x32xf32>
    %210 = vector.extract_strided_slice %207 {offsets = [0, 64], sizes = [8, 32], strides = [1, 1]} : vector<8x128xf32> to vector<8x32xf32>
    %211 = vector.extract_strided_slice %206 {offsets = [0, 96], sizes = [8, 32], strides = [1, 1]} : vector<8x128xf32> to vector<8x32xf32>
    %212 = arith.mulf %209, %195 : vector<8x32xf32>
    %213 = arith.mulf %208, %210 : vector<8x32xf32>
    %214 = arith.addf %212, %213 : vector<8x32xf32>
    %215 = math.tanh %214 : vector<8x32xf32>
    %216 = arith.mulf %211, %215 : vector<8x32xf32>
    %c8_64 = arith.constant 8 : index
    %c0_65 = arith.constant 0 : index
    %217 = vector.load %arg14[%c8_64, %c0_65] : memref<64x32xf32, #tpu.memory_space<vmem>>, vector<8x32xf32>
    tpu.vector_store %arg14[%c8_64, %c0_65], %216 {strides = array<i32>} : memref<64x32xf32, #tpu.memory_space<vmem>>, vector<8x32xf32>,
    %218 = vector.extract_strided_slice %175 {offsets = [16, 0], sizes = [8, 128], strides = [1, 1]} : vector<64x128xf32> to vector<8x128xf32>
    %cst_66 = arith.constant dense<0.000000e+00> : vector<8x128xf32>
    %219 = tpu.matmul %216, %170, %cst_66 {dimension_numbers = #tpu.dot_dimension_numbers<[1], [0], [0], [1], [0, 0, 1, 1], [], []>, precision = #tpu.contract_precision<fp32>} : vector<8x32xf32>, vector<32x128xf32>, vector<8x128xf32> -> vector<8x128xf32>
    %220 = arith.addf %218, %219 : vector<8x128xf32>
    %221 = arith.negf %220 : vector<8x128xf32>
    %222 = math.exp %221 : vector<8x128xf32>
    %cst_67 = arith.constant 1.000000e+00 : f32
    %223 = vector.broadcast %cst_67 : f32 to vector<8x128xf32>
    %224 = arith.addf %223, %222 : vector<8x128xf32>
    %225 = arith.divf %223, %224 : vector<8x128xf32>
    %226 = math.tanh %220 : vector<8x128xf32>
    %227 = vector.extract_strided_slice %225 {offsets = [0, 0], sizes = [8, 32], strides = [1, 1]} : vector<8x128xf32> to vector<8x32xf32>
    %228 = vector.extract_strided_slice %225 {offsets = [0, 32], sizes = [8, 32], strides = [1, 1]} : vector<8x128xf32> to vector<8x32xf32>
    %229 = vector.extract_strided_slice %226 {offsets = [0, 64], sizes = [8, 32], strides = [1, 1]} : vector<8x128xf32> to vector<8x32xf32>
    %230 = vector.extract_strided_slice %225 {offsets = [0, 96], sizes = [8, 32], strides = [1, 1]} : vector<8x128xf32> to vector<8x32xf32>
    %231 = arith.mulf %228, %214 : vector<8x32xf32>
    %232 = arith.mulf %227, %229 : vector<8x32xf32>
    %233 = arith.addf %231, %232 : vector<8x32xf32>
    %234 = math.tanh %233 : vector<8x32xf32>
    %235 = arith.mulf %230, %234 : vector<8x32xf32>
    %c16_68 = arith.constant 16 : index
    %c0_69 = arith.constant 0 : index
    %236 = vector.load %arg14[%c16_68, %c0_69] : memref<64x32xf32, #tpu.memory_space<vmem>>, vector<8x32xf32>
    tpu.vector_store %arg14[%c16_68, %c0_69], %235 {strides = array<i32>} : memref<64x32xf32, #tpu.memory_space<vmem>>, vector<8x32xf32>,
    %237 = vector.extract_strided_slice %175 {offsets = [24, 0], sizes = [8, 128], strides = [1, 1]} : vector<64x128xf32> to vector<8x128xf32>
    %cst_70 = arith.constant dense<0.000000e+00> : vector<8x128xf32>
    %238 = tpu.matmul %235, %170, %cst_70 {dimension_numbers = #tpu.dot_dimension_numbers<[1], [0], [0], [1], [0, 0, 1, 1], [], []>, precision = #tpu.contract_precision<fp32>} : vector<8x32xf32>, vector<32x128xf32>, vector<8x128xf32> -> vector<8x128xf32>
    %239 = arith.addf %237, %238 : vector<8x128xf32>
    %240 = arith.negf %239 : vector<8x128xf32>
    %241 = math.exp %240 : vector<8x128xf32>
    %cst_71 = arith.constant 1.000000e+00 : f32
    %242 = vector.broadcast %cst_71 : f32 to vector<8x128xf32>
    %243 = arith.addf %242, %241 : vector<8x128xf32>
    %244 = arith.divf %242, %243 : vector<8x128xf32>
    %245 = math.tanh %239 : vector<8x128xf32>
    %246 = vector.extract_strided_slice %244 {offsets = [0, 0], sizes = [8, 32], strides = [1, 1]} : vector<8x128xf32> to vector<8x32xf32>
    %247 = vector.extract_strided_slice %244 {offsets = [0, 32], sizes = [8, 32], strides = [1, 1]} : vector<8x128xf32> to vector<8x32xf32>
    %248 = vector.extract_strided_slice %245 {offsets = [0, 64], sizes = [8, 32], strides = [1, 1]} : vector<8x128xf32> to vector<8x32xf32>
    %249 = vector.extract_strided_slice %244 {offsets = [0, 96], sizes = [8, 32], strides = [1, 1]} : vector<8x128xf32> to vector<8x32xf32>
    %250 = arith.mulf %247, %233 : vector<8x32xf32>
    %251 = arith.mulf %246, %248 : vector<8x32xf32>
    %252 = arith.addf %250, %251 : vector<8x32xf32>
    %253 = math.tanh %252 : vector<8x32xf32>
    %254 = arith.mulf %249, %253 : vector<8x32xf32>
    %c24_72 = arith.constant 24 : index
    %c0_73 = arith.constant 0 : index
    %255 = vector.load %arg14[%c24_72, %c0_73] : memref<64x32xf32, #tpu.memory_space<vmem>>, vector<8x32xf32>
    tpu.vector_store %arg14[%c24_72, %c0_73], %254 {strides = array<i32>} : memref<64x32xf32, #tpu.memory_space<vmem>>, vector<8x32xf32>,
    %256 = vector.extract_strided_slice %175 {offsets = [32, 0], sizes = [8, 128], strides = [1, 1]} : vector<64x128xf32> to vector<8x128xf32>
    %cst_74 = arith.constant dense<0.000000e+00> : vector<8x128xf32>
    %257 = tpu.matmul %254, %170, %cst_74 {dimension_numbers = #tpu.dot_dimension_numbers<[1], [0], [0], [1], [0, 0, 1, 1], [], []>, precision = #tpu.contract_precision<fp32>} : vector<8x32xf32>, vector<32x128xf32>, vector<8x128xf32> -> vector<8x128xf32>
    %258 = arith.addf %256, %257 : vector<8x128xf32>
    %259 = arith.negf %258 : vector<8x128xf32>
    %260 = math.exp %259 : vector<8x128xf32>
    %cst_75 = arith.constant 1.000000e+00 : f32
    %261 = vector.broadcast %cst_75 : f32 to vector<8x128xf32>
    %262 = arith.addf %261, %260 : vector<8x128xf32>
    %263 = arith.divf %261, %262 : vector<8x128xf32>
    %264 = math.tanh %258 : vector<8x128xf32>
    %265 = vector.extract_strided_slice %263 {offsets = [0, 0], sizes = [8, 32], strides = [1, 1]} : vector<8x128xf32> to vector<8x32xf32>
    %266 = vector.extract_strided_slice %263 {offsets = [0, 32], sizes = [8, 32], strides = [1, 1]} : vector<8x128xf32> to vector<8x32xf32>
    %267 = vector.extract_strided_slice %264 {offsets = [0, 64], sizes = [8, 32], strides = [1, 1]} : vector<8x128xf32> to vector<8x32xf32>
    %268 = vector.extract_strided_slice %263 {offsets = [0, 96], sizes = [8, 32], strides = [1, 1]} : vector<8x128xf32> to vector<8x32xf32>
    %269 = arith.mulf %266, %252 : vector<8x32xf32>
    %270 = arith.mulf %265, %267 : vector<8x32xf32>
    %271 = arith.addf %269, %270 : vector<8x32xf32>
    %272 = math.tanh %271 : vector<8x32xf32>
    %273 = arith.mulf %268, %272 : vector<8x32xf32>
    %c32_76 = arith.constant 32 : index
    %c0_77 = arith.constant 0 : index
    %274 = vector.load %arg14[%c32_76, %c0_77] : memref<64x32xf32, #tpu.memory_space<vmem>>, vector<8x32xf32>
    tpu.vector_store %arg14[%c32_76, %c0_77], %273 {strides = array<i32>} : memref<64x32xf32, #tpu.memory_space<vmem>>, vector<8x32xf32>,
    %275 = vector.extract_strided_slice %175 {offsets = [40, 0], sizes = [8, 128], strides = [1, 1]} : vector<64x128xf32> to vector<8x128xf32>
    %cst_78 = arith.constant dense<0.000000e+00> : vector<8x128xf32>
    %276 = tpu.matmul %273, %170, %cst_78 {dimension_numbers = #tpu.dot_dimension_numbers<[1], [0], [0], [1], [0, 0, 1, 1], [], []>, precision = #tpu.contract_precision<fp32>} : vector<8x32xf32>, vector<32x128xf32>, vector<8x128xf32> -> vector<8x128xf32>
    %277 = arith.addf %275, %276 : vector<8x128xf32>
    %278 = arith.negf %277 : vector<8x128xf32>
    %279 = math.exp %278 : vector<8x128xf32>
    %cst_79 = arith.constant 1.000000e+00 : f32
    %280 = vector.broadcast %cst_79 : f32 to vector<8x128xf32>
    %281 = arith.addf %280, %279 : vector<8x128xf32>
    %282 = arith.divf %280, %281 : vector<8x128xf32>
    %283 = math.tanh %277 : vector<8x128xf32>
    %284 = vector.extract_strided_slice %282 {offsets = [0, 0], sizes = [8, 32], strides = [1, 1]} : vector<8x128xf32> to vector<8x32xf32>
    %285 = vector.extract_strided_slice %282 {offsets = [0, 32], sizes = [8, 32], strides = [1, 1]} : vector<8x128xf32> to vector<8x32xf32>
    %286 = vector.extract_strided_slice %283 {offsets = [0, 64], sizes = [8, 32], strides = [1, 1]} : vector<8x128xf32> to vector<8x32xf32>
    %287 = vector.extract_strided_slice %282 {offsets = [0, 96], sizes = [8, 32], strides = [1, 1]} : vector<8x128xf32> to vector<8x32xf32>
    %288 = arith.mulf %285, %271 : vector<8x32xf32>
    %289 = arith.mulf %284, %286 : vector<8x32xf32>
    %290 = arith.addf %288, %289 : vector<8x32xf32>
    %291 = math.tanh %290 : vector<8x32xf32>
    %292 = arith.mulf %287, %291 : vector<8x32xf32>
    %c40_80 = arith.constant 40 : index
    %c0_81 = arith.constant 0 : index
    %293 = vector.load %arg14[%c40_80, %c0_81] : memref<64x32xf32, #tpu.memory_space<vmem>>, vector<8x32xf32>
    tpu.vector_store %arg14[%c40_80, %c0_81], %292 {strides = array<i32>} : memref<64x32xf32, #tpu.memory_space<vmem>>, vector<8x32xf32>,
    %294 = vector.extract_strided_slice %175 {offsets = [48, 0], sizes = [8, 128], strides = [1, 1]} : vector<64x128xf32> to vector<8x128xf32>
    %cst_82 = arith.constant dense<0.000000e+00> : vector<8x128xf32>
    %295 = tpu.matmul %292, %170, %cst_82 {dimension_numbers = #tpu.dot_dimension_numbers<[1], [0], [0], [1], [0, 0, 1, 1], [], []>, precision = #tpu.contract_precision<fp32>} : vector<8x32xf32>, vector<32x128xf32>, vector<8x128xf32> -> vector<8x128xf32>
    %296 = arith.addf %294, %295 : vector<8x128xf32>
    %297 = arith.negf %296 : vector<8x128xf32>
    %298 = math.exp %297 : vector<8x128xf32>
    %cst_83 = arith.constant 1.000000e+00 : f32
    %299 = vector.broadcast %cst_83 : f32 to vector<8x128xf32>
    %300 = arith.addf %299, %298 : vector<8x128xf32>
    %301 = arith.divf %299, %300 : vector<8x128xf32>
    %302 = math.tanh %296 : vector<8x128xf32>
    %303 = vector.extract_strided_slice %301 {offsets = [0, 0], sizes = [8, 32], strides = [1, 1]} : vector<8x128xf32> to vector<8x32xf32>
    %304 = vector.extract_strided_slice %301 {offsets = [0, 32], sizes = [8, 32], strides = [1, 1]} : vector<8x128xf32> to vector<8x32xf32>
    %305 = vector.extract_strided_slice %302 {offsets = [0, 64], sizes = [8, 32], strides = [1, 1]} : vector<8x128xf32> to vector<8x32xf32>
    %306 = vector.extract_strided_slice %301 {offsets = [0, 96], sizes = [8, 32], strides = [1, 1]} : vector<8x128xf32> to vector<8x32xf32>
    %307 = arith.mulf %304, %290 : vector<8x32xf32>
    %308 = arith.mulf %303, %305 : vector<8x32xf32>
    %309 = arith.addf %307, %308 : vector<8x32xf32>
    %310 = math.tanh %309 : vector<8x32xf32>
    %311 = arith.mulf %306, %310 : vector<8x32xf32>
    %c48_84 = arith.constant 48 : index
    %c0_85 = arith.constant 0 : index
    %312 = vector.load %arg14[%c48_84, %c0_85] : memref<64x32xf32, #tpu.memory_space<vmem>>, vector<8x32xf32>
    tpu.vector_store %arg14[%c48_84, %c0_85], %311 {strides = array<i32>} : memref<64x32xf32, #tpu.memory_space<vmem>>, vector<8x32xf32>,
    %313 = vector.extract_strided_slice %175 {offsets = [56, 0], sizes = [8, 128], strides = [1, 1]} : vector<64x128xf32> to vector<8x128xf32>
    %cst_86 = arith.constant dense<0.000000e+00> : vector<8x128xf32>
    %314 = tpu.matmul %311, %170, %cst_86 {dimension_numbers = #tpu.dot_dimension_numbers<[1], [0], [0], [1], [0, 0, 1, 1], [], []>, precision = #tpu.contract_precision<fp32>} : vector<8x32xf32>, vector<32x128xf32>, vector<8x128xf32> -> vector<8x128xf32>
    %315 = arith.addf %313, %314 : vector<8x128xf32>
    %316 = arith.negf %315 : vector<8x128xf32>
    %317 = math.exp %316 : vector<8x128xf32>
    %cst_87 = arith.constant 1.000000e+00 : f32
    %318 = vector.broadcast %cst_87 : f32 to vector<8x128xf32>
    %319 = arith.addf %318, %317 : vector<8x128xf32>
    %320 = arith.divf %318, %319 : vector<8x128xf32>
    %321 = math.tanh %315 : vector<8x128xf32>
    %322 = vector.extract_strided_slice %320 {offsets = [0, 0], sizes = [8, 32], strides = [1, 1]} : vector<8x128xf32> to vector<8x32xf32>
    %323 = vector.extract_strided_slice %320 {offsets = [0, 32], sizes = [8, 32], strides = [1, 1]} : vector<8x128xf32> to vector<8x32xf32>
    %324 = vector.extract_strided_slice %321 {offsets = [0, 64], sizes = [8, 32], strides = [1, 1]} : vector<8x128xf32> to vector<8x32xf32>
    %325 = vector.extract_strided_slice %320 {offsets = [0, 96], sizes = [8, 32], strides = [1, 1]} : vector<8x128xf32> to vector<8x32xf32>
    %326 = arith.mulf %323, %309 : vector<8x32xf32>
    %327 = arith.mulf %322, %324 : vector<8x32xf32>
    %328 = arith.addf %326, %327 : vector<8x32xf32>
    %329 = math.tanh %328 : vector<8x32xf32>
    %330 = arith.mulf %325, %329 : vector<8x32xf32>
    %c56_88 = arith.constant 56 : index
    %c0_89 = arith.constant 0 : index
    %331 = vector.load %arg14[%c56_88, %c0_89] : memref<64x32xf32, #tpu.memory_space<vmem>>, vector<8x32xf32>
    tpu.vector_store %arg14[%c56_88, %c0_89], %330 {strides = array<i32>} : memref<64x32xf32, #tpu.memory_space<vmem>>, vector<8x32xf32>,
    %c1_90 = arith.constant 1 : index
    %c0_91 = arith.constant 0 : index
    %c0_92 = arith.constant 0 : index
    %332 = vector.load %arg12[%c1_90, %c0_91, %c0_92] : memref<2x8x32xf32, #tpu.memory_space<vmem>>, vector<1x8x32xf32>
    %333 = vector.shape_cast %332 : vector<1x8x32xf32> to vector<8x32xf32>
    %334 = vector.shape_cast %330 : vector<8x32xf32> to vector<1x8x32xf32>
    tpu.vector_store %arg12[%c1_90, %c0_91, %c0_92], %334 {strides = array<i32>} : memref<2x8x32xf32, #tpu.memory_space<vmem>>, vector<1x8x32xf32>,
    %c1_93 = arith.constant 1 : index
    %c0_94 = arith.constant 0 : index
    %c0_95 = arith.constant 0 : index
    %335 = vector.load %arg13[%c1_93, %c0_94, %c0_95] : memref<2x8x32xf32, #tpu.memory_space<vmem>>, vector<1x8x32xf32>
    %336 = vector.shape_cast %335 : vector<1x8x32xf32> to vector<8x32xf32>
    %337 = vector.shape_cast %328 : vector<8x32xf32> to vector<1x8x32xf32>
    tpu.vector_store %arg13[%c1_93, %c0_94, %c0_95], %337 {strides = array<i32>} : memref<2x8x32xf32, #tpu.memory_space<vmem>>, vector<1x8x32xf32>,
    %c0_96 = arith.constant 0 : index
    %c0_97 = arith.constant 0 : index
    %338 = vector.load %arg14[%c0_96, %c0_97] : memref<64x32xf32, #tpu.memory_space<vmem>>, vector<64x32xf32>
    %c0_98 = arith.constant 0 : index
    %c0_99 = arith.constant 0 : index
    %339 = vector.load %arg9[%c0_98, %c0_99] : memref<32x128xf32, #tpu.memory_space<vmem>>, vector<32x128xf32>
    %cst_100 = arith.constant dense<0.000000e+00> : vector<64x128xf32>
    %340 = tpu.matmul %338, %339, %cst_100 {dimension_numbers = #tpu.dot_dimension_numbers<[1], [0], [0], [1], [0, 0, 1, 1], [], []>, precision = #tpu.contract_precision<fp32>} : vector<64x32xf32>, vector<32x128xf32>, vector<64x128xf32> -> vector<64x128xf32>
    %c0_101 = arith.constant 0 : index
    %c0_102 = arith.constant 0 : index
    %341 = vector.load %arg10[%c0_101, %c0_102] : memref<1x128xf32, #tpu.memory_space<vmem>>, vector<1x128xf32>
    %342 = vector.broadcast %341 : vector<1x128xf32> to vector<64x128xf32>
    %343 = arith.addf %340, %342 : vector<64x128xf32>
    %c0_103 = arith.constant 0 : index
    %c0_104 = arith.constant 0 : index
    %344 = vector.load %arg11[%c0_103, %c0_104] : memref<64x128xf32, #tpu.memory_space<vmem>>, vector<64x128xf32>
    tpu.vector_store %arg11[%c0_103, %c0_104], %343 {strides = array<i32>} : memref<64x128xf32, #tpu.memory_space<vmem>>, vector<64x128xf32>,
    return
  }
}

</mosaic_0001>

<llo_original>
// kernel: lstm_model_forward.1
$region0: #{lstm_model_forward.1}
  #allocation0 [shape = 'u32[]', space=smem, size = 0x4, offset = 0x4, fixed_abs, tag = 'smem constant byte address 0x4 - core index']
  #allocation1 [shape = 'u32[144,128]{1,0:T(1,128)}', space=vmem, size = 0x12000, scoped, tag = 'internal scratch']
  #allocation2 [shape = 'f32[64,32]{1,0:T(8,128)}', space=vmem, size = 0x8000, scoped, tag = 'scratch operand']
  %s0 = inlined_call_operand.vmem [shape: f32[64,8], index: 0, kind: input, shape index: {}]
  %s1 = inlined_call_operand.vmem [shape: f32[2,8,32], index: 1, kind: input, shape index: {}, may-alias: {1,12}]
  %s2 = inlined_call_operand.vmem [shape: f32[2,8,32], index: 2, kind: input, shape index: {}, may-alias: {2,13}]
  %s3 = inlined_call_operand.vmem [shape: f32[8,128], index: 3, kind: input, shape index: {}]
  %s4 = inlined_call_operand.vmem [shape: f32[32,128], index: 4, kind: input, shape index: {}]
  %s5 = inlined_call_operand.vmem [shape: f32[1,128], index: 5, kind: input, shape index: {}]
  %s6 = inlined_call_operand.vmem [shape: f32[32,128], index: 6, kind: input, shape index: {}]
  %s7 = inlined_call_operand.vmem [shape: f32[32,128], index: 7, kind: input, shape index: {}]
  %s8 = inlined_call_operand.vmem [shape: f32[1,128], index: 8, kind: input, shape index: {}]
  %s9 = inlined_call_operand.vmem [shape: f32[32,128], index: 9, kind: input, shape index: {}]
  %s10 = inlined_call_operand.vmem [shape: f32[1,128], index: 10, kind: input, shape index: {}]
  %s11 = inlined_call_operand.vmem [shape: f32[64,128], index: 11, kind: output, shape index: {0}]
  %s12 = inlined_call_operand.vmem [shape: f32[2,8,32], index: 12, kind: output, shape index: {1}, may-alias: {1,12}]
  %s13 = inlined_call_operand.vmem [shape: f32[2,8,32], index: 13, kind: output, shape index: {2}, may-alias: {2,13}]
  %14 = xla_tuple %s11, %s12, %s13
  %s15 = sld [smem:[#allocation0]]
  $region70: #{lstm_model_forward.1} parent=0
    _
  %s17 = ssub.s32 1, %s15
  %s18 = scalar_select 0, %s17, %s15
  // Predicated region
  $region2: #{lstm_model_forward.1} parent=0 // pred_check
    _
  $region3: #{lstm_model_forward.1} parent=0 // pred_check_branch
    %20 = sbr.rel (0) target = $region5
  $region4: #{lstm_model_forward.1} parent=0 // pred_region
    _
  $region5: #{lstm_model_forward.1} parent=0 // pred_fallthru
    _
  // Predicated region
  $region6: #{lstm_model_forward.1} parent=0 // pred_check
    _
  $region7: #{lstm_model_forward.1} parent=0 // pred_check_branch
    %22 = sbr.rel (0) target = $region9
  $region8: #{lstm_model_forward.1} parent=0 // pred_region
    _
  $region9: #{lstm_model_forward.1} parent=0 // pred_fallthru
    _
  // Predicated region
  $region10: #{lstm_model_forward.1} parent=0 // pred_check
    _
  $region11: #{lstm_model_forward.1} parent=0 // pred_check_branch
    %24 = sbr.rel (0) target = $region13
  $region12: #{lstm_model_forward.1} parent=0 // pred_region
    _
  $region13: #{lstm_model_forward.1} parent=0 // pred_fallthru
    _
  // Predicated region
  $region14: #{lstm_model_forward.1} parent=0 // pred_check
    _
  $region15: #{lstm_model_forward.1} parent=0 // pred_check_branch
    %26 = sbr.rel (0) target = $region17
  $region16: #{lstm_model_forward.1} parent=0 // pred_region
    _
  $region17: #{lstm_model_forward.1} parent=0 // pred_fallthru
    _
  // Predicated region
  $region18: #{lstm_model_forward.1} parent=0 // pred_check
    _
  $region19: #{lstm_model_forward.1} parent=0 // pred_check_branch
    %28 = sbr.rel (0) target = $region21
  $region20: #{lstm_model_forward.1} parent=0 // pred_region
    _
  $region21: #{lstm_model_forward.1} parent=0 // pred_fallthru
    _
  // Predicated region
  $region22: #{lstm_model_forward.1} parent=0 // pred_check
    _
  $region23: #{lstm_model_forward.1} parent=0 // pred_check_branch
    %30 = sbr.rel (0) target = $region25
  $region24: #{lstm_model_forward.1} parent=0 // pred_region
    _
  $region25: #{lstm_model_forward.1} parent=0 // pred_fallthru
    _
  // Predicated region
  $region26: #{lstm_model_forward.1} parent=0 // pred_check
    _
  $region27: #{lstm_model_forward.1} parent=0 // pred_check_branch
    %32 = sbr.rel (0) target = $region29
  $region28: #{lstm_model_forward.1} parent=0 // pred_region
    _
  $region29: #{lstm_model_forward.1} parent=0 // pred_fallthru
    _
  // Predicated region
  $region30: #{lstm_model_forward.1} parent=0 // pred_check
    _
  $region31: #{lstm_model_forward.1} parent=0 // pred_check_branch
    %34 = sbr.rel (0) target = $region33
  $region32: #{lstm_model_forward.1} parent=0 // pred_region
    _
  $region33: #{lstm_model_forward.1} parent=0 // pred_fallthru
    _
  // Predicated region
  $region34: #{lstm_model_forward.1} parent=0 // pred_check
    _
  $region35: #{lstm_model_forward.1} parent=0 // pred_check_branch
    %36 = sbr.rel (0) target = $region37
  $region36: #{lstm_model_forward.1} parent=0 // pred_region
    _
  $region37: #{lstm_model_forward.1} parent=0 // pred_fallthru
    _
  // Predicated region
  $region38: #{lstm_model_forward.1} parent=0 // pred_check
    _
  $region39: #{lstm_model_forward.1} parent=0 // pred_check_branch
    %38 = sbr.rel (0) target = $region41
  $region40: #{lstm_model_forward.1} parent=0 // pred_region
    _
  $region41: #{lstm_model_forward.1} parent=0 // pred_fallthru
    _
  // Predicated region
  $region42: #{lstm_model_forward.1} parent=0 // pred_check
    _
  $region43: #{lstm_model_forward.1} parent=0 // pred_check_branch
    %40 = sbr.rel (0) target = $region45
  $region44: #{lstm_model_forward.1} parent=0 // pred_region
    _
  $region45: #{lstm_model_forward.1} parent=0 // pred_fallthru
    _
  %v41 = vld [vmem:[%s3] sm:$0xff]
  %v42 = vld [vmem:[%s4] sm:$0xff]
  %v43 = vld [vmem:[%s4 + $0x8] sm:$0xff]
  %v44 = vld [vmem:[%s4 + $0x10] sm:$0xff]
  %v45 = vld [vmem:[%s4 + $0x18] sm:$0xff]
  %v46 = vld [vmem:[%s5] sm:$0x1]
  %v47 = vld [vmem:[%s0] sm:$0xff]
  %v48 = vld [vmem:[%s0 + $0x8] sm:$0xff]
  %v49 = vld [vmem:[%s0 + $0x10] sm:$0xff]
  %v50 = vld [vmem:[%s0 + $0x18] sm:$0xff]
  %v51 = vld [vmem:[%s0 + $0x20] sm:$0xff]
  %v52 = vld [vmem:[%s0 + $0x28] sm:$0xff]
  %v53 = vld [vmem:[%s0 + $0x30] sm:$0xff]
  %v54 = vld [vmem:[%s0 + $0x38] sm:$0xff]
  %v56 = vlaneseq
  %v57 = vshrl.u32 %v56, 7
  %v58 = vsub.s32 0, %v57
  %v59 = vrot.slane %v46, %v58
  %vm61 = vcmask 64512
  %v63 = vsel %vm61, %v47, 0
  %v66 = vsel %vm61, %v48, 0
  %v69 = vsel %vm61, %v49, 0
  %v72 = vsel %vm61, %v50, 0
  %v75 = vsel %vm61, %v51, 0
  %v78 = vsel %vm61, %v52, 0
  %v81 = vsel %vm61, %v53, 0
  %v84 = vsel %vm61, %v54, 0
  %86 = vmatprep.subr.mxu0 0.0
  %v87 = vand.u32 %v41, 4294901760
  %88 = vmatpush1.msra.mxu0 %v87
  %89 = vmatprep.subr.mxu0 0.0
  %90 = vmatpush1.msra.mxu0 0.0
  %91 = vmatprep.subr.mxu0 0.0
  %92 = vmatpush1.msra.mxu0 0.0
  %93 = vmatprep.subr.mxu0 0.0
  %94 = vmatpush1.msra.mxu0 0.0
  %95 = vmatprep.subr.mxu0 0.0
  %96 = vmatpush1.msra.mxu0 0.0
  %97 = vmatprep.subr.mxu0 0.0
  %98 = vmatpush1.msra.mxu0 0.0
  %99 = vmatprep.subr.mxu0 0.0
  %100 = vmatpush1.msra.mxu0 0.0
  %101 = vmatprep.subr.mxu0 0.0
  %102 = vmatpush1.msra.mxu0 0.0
  %103 = vmatprep.subr.mxu0 0.0
  %104 = vmatpush1.msra.mxu0 0.0
  %105 = vmatprep.subr.mxu0 0.0
  %106 = vmatpush1.msra.mxu0 0.0
  %107 = vmatprep.subr.mxu0 0.0
  %108 = vmatpush1.msra.mxu0 0.0
  %109 = vmatprep.subr.mxu0 0.0
  %110 = vmatpush1.msra.mxu0 0.0
  %111 = vmatprep.subr.mxu0 0.0
  %112 = vmatpush1.msra.mxu0 0.0
  %113 = vmatprep.subr.mxu0 0.0
  %114 = vmatpush1.msra.mxu0 0.0
  %115 = vmatprep.subr.mxu0 0.0
  %116 = vmatpush1.msra.mxu0 0.0
  %117 = vmatprep.subr.mxu0 0.0
  %118 = vmatpush1.msra.mxu0 0.0
  %119 = vmatprep.subr.mxu0 0.0
  %120 = vmatpush1.msra.mxu0 0.0
  %121 = vmatprep.subr.mxu0 0.0
  %122 = vmatpush1.msra.mxu0 0.0
  %123 = vmatprep.subr.mxu0 0.0
  %124 = vmatpush1.msra.mxu0 0.0
  %125 = vmatprep.subr.mxu0 0.0
  %126 = vmatpush1.msra.mxu0 0.0
  %127 = vmatprep.subr.mxu0 0.0
  %128 = vmatpush1.msra.mxu0 0.0
  %129 = vmatprep.subr.mxu0 0.0
  %130 = vmatpush1.msra.mxu0 0.0
  %131 = vmatprep.subr.mxu0 0.0
  %132 = vmatpush1.msra.mxu0 0.0
  %133 = vmatprep.subr.mxu0 0.0
  %134 = vmatpush1.msra.mxu0 0.0
  %135 = vmatprep.subr.mxu0 0.0
  %136 = vmatpush1.msra.mxu0 0.0
  %137 = vmatprep.subr.mxu0 0.0
  %138 = vmatpush1.msra.mxu0 0.0
  %139 = vmatprep.subr.mxu0 0.0
  %140 = vmatpush1.msra.mxu0 0.0
  %141 = vmatprep.subr.mxu0 0.0
  %142 = vmatpush1.msra.mxu0 0.0
  %143 = vmatprep.subr.mxu0 0.0
  %144 = vmatpush1.msra.mxu0 0.0
  %145 = vmatprep.subr.mxu0 0.0
  %146 = vmatpush1.msra.mxu0 0.0
  %147 = vmatprep.subr.mxu0 0.0
  %148 = vmatpush1.msra.mxu0 0.0
  %149 = vmatprep.subr.mxu0 0.0
  %150 = vmatpush1.msra.mxu0 0.0
  %151 = vmatprep.mubr.f32.mxu0 0.0
  %v152 = vand.u32 %v63, 4294901760
  %v153 = vsub.f32 %v63, %v152
  %v154 = vand.u32 %v153, 4294901760
  %v155 = vsub.f32 %v153, %v154
  %v156 = vand.u32 %v155, 4294901760
  %157 = vmatmul.mubr.f32.gmra.mrb[0].mxu0 %v156
  %v158 = vpop.f32.mrb[0].mxu0
  %v159 = vadd.f32 %v59, %v158
  %v160 = vpop.f32.mrb[0].mxu0
  %161 = vmatprep.mubr.f32.mxu0 0.0
  %v162 = vand.u32 %v66, 4294901760
  %v163 = vsub.f32 %v66, %v162
  %v164 = vand.u32 %v163, 4294901760
  %v165 = vsub.f32 %v163, %v164
  %v166 = vand.u32 %v165, 4294901760
  %167 = vmatmul.mubr.f32.gmra.mrb[0].mxu0 %v166
  %v168 = vpop.f32.mrb[0].mxu0
  %v169 = vadd.f32 %v59, %v168
  %v170 = vpop.f32.mrb[0].mxu0
  %171 = vmatprep.mubr.f32.mxu0 0.0
  %v172 = vand.u32 %v69, 4294901760
  %v173 = vsub.f32 %v69, %v172
  %v174 = vand.u32 %v173, 4294901760
  %v175 = vsub.f32 %v173, %v174
  %v176 = vand.u32 %v175, 4294901760
  %177 = vmatmul.mubr.f32.gmra.mrb[0].mxu0 %v176
  %v178 = vpop.f32.mrb[0].mxu0
  %v179 = vadd.f32 %v59, %v178
  %v180 = vpop.f32.mrb[0].mxu0
  %181 = vmatprep.mubr.f32.mxu0 0.0
  %v182 = vand.u32 %v72, 4294901760
  %v183 = vsub.f32 %v72, %v182
  %v184 = vand.u32 %v183, 4294901760
  %v185 = vsub.f32 %v183, %v184
  %v186 = vand.u32 %v185, 4294901760
  %187 = vmatmul.mubr.f32.gmra.mrb[0].mxu0 %v186
  %v188 = vpop.f32.mrb[0].mxu0
  %v189 = vadd.f32 %v59, %v188
  %v190 = vpop.f32.mrb[0].mxu0
  %191 = vmatprep.mubr.f32.mxu0 0.0
  %v192 = vand.u32 %v75, 4294901760
  %v193 = vsub.f32 %v75, %v192
  %v194 = vand.u32 %v193, 4294901760
  %v195 = vsub.f32 %v193, %v194
  %v196 = vand.u32 %v195, 4294901760
  %197 = vmatmul.mubr.f32.gmra.mrb[0].mxu0 %v196
  %v198 = vpop.f32.mrb[0].mxu0
  %v199 = vadd.f32 %v59, %v198
  %v200 = vpop.f32.mrb[0].mxu0
  %201 = vmatprep.mubr.f32.mxu0 0.0
  %v202 = vand.u32 %v78, 4294901760
  %v203 = vsub.f32 %v78, %v202
  %v204 = vand.u32 %v203, 4294901760
  %v205 = vsub.f32 %v203, %v204
  %v206 = vand.u32 %v205, 4294901760
  %207 = vmatmul.mubr.f32.gmra.mrb[0].mxu0 %v206
  %v208 = vpop.f32.mrb[0].mxu0
  %v209 = vadd.f32 %v59, %v208
  %v210 = vpop.f32.mrb[0].mxu0
  %211 = vmatprep.mubr.f32.mxu0 0.0
  %v212 = vand.u32 %v81, 4294901760
  %v213 = vsub.f32 %v81, %v212
  %v214 = vand.u32 %v213, 4294901760
  %v215 = vsub.f32 %v213, %v214
  %v216 = vand.u32 %v215, 4294901760
  %217 = vmatmul.mubr.f32.gmra.mrb[0].mxu0 %v216
  %v218 = vpop.f32.mrb[0].mxu0
  %v219 = vadd.f32 %v59, %v218
  %v220 = vpop.f32.mrb[0].mxu0
  %221 = vmatprep.mubr.f32.mxu0 0.0
  %v222 = vand.u32 %v84, 4294901760
  %v223 = vsub.f32 %v84, %v222
  %v224 = vand.u32 %v223, 4294901760
  %v225 = vsub.f32 %v223, %v224
  %v226 = vand.u32 %v225, 4294901760
  %227 = vmatmul.mubr.f32.gmra.mrb[0].mxu0 %v226
  %v228 = vpop.f32.mrb[0].mxu0
  %v229 = vadd.f32 %v59, %v228
  %v230 = vpop.f32.mrb[0].mxu0
  %231 = vdwg.mxu0
  %232 = vmatprep.subr.mxu0 0.0
  %v233 = vand.u32 %v41, 4294901760
  %v234 = vsub.f32 %v41, %v233
  %v235 = vand.u32 %v234, 4294901760
  %v236 = vsub.f32 %v234, %v235
  %v237 = vand.u32 %v236, 4294901760
  %238 = vmatpush1.msra.mxu0 %v237
  %239 = vmatprep.subr.mxu0 0.0
  %240 = vmatpush1.msra.mxu0 0.0
  %241 = vmatprep.subr.mxu0 0.0
  %242 = vmatpush1.msra.mxu0 0.0
  %243 = vmatprep.subr.mxu0 0.0
  %244 = vmatpush1.msra.mxu0 0.0
  %245 = vmatprep.subr.mxu0 0.0
  %246 = vmatpush1.msra.mxu0 0.0
  %247 = vmatprep.subr.mxu0 0.0
  %248 = vmatpush1.msra.mxu0 0.0
  %249 = vmatprep.subr.mxu0 0.0
  %250 = vmatpush1.msra.mxu0 0.0
  %251 = vmatprep.subr.mxu0 0.0
  %252 = vmatpush1.msra.mxu0 0.0
  %253 = vmatprep.subr.mxu0 0.0
  %254 = vmatpush1.msra.mxu0 0.0
  %255 = vmatprep.subr.mxu0 0.0
  %256 = vmatpush1.msra.mxu0 0.0
  %257 = vmatprep.subr.mxu0 0.0
  %258 = vmatpush1.msra.mxu0 0.0
  %259 = vmatprep.subr.mxu0 0.0
  %260 = vmatpush1.msra.mxu0 0.0
  %261 = vmatprep.subr.mxu0 0.0
  %262 = vmatpush1.msra.mxu0 0.0
  %263 = vmatprep.subr.mxu0 0.0
  %264 = vmatpush1.msra.mxu0 0.0
  %265 = vmatprep.subr.mxu0 0.0
  %266 = vmatpush1.msra.mxu0 0.0
  %267 = vmatprep.subr.mxu0 0.0
  %268 = vmatpush1.msra.mxu0 0.0
  %269 = vmatprep.subr.mxu0 0.0
  %270 = vmatpush1.msra.mxu0 0.0
  %271 = vmatprep.subr.mxu0 0.0
  %272 = vmatpush1.msra.mxu0 0.0
  %273 = vmatprep.subr.mxu0 0.0
  %274 = vmatpush1.msra.mxu0 0.0
  %275 = vmatprep.subr.mxu0 0.0
  %276 = vmatpush1.msra.mxu0 0.0
  %277 = vmatprep.subr.mxu0 0.0
  %278 = vmatpush1.msra.mxu0 0.0
  %279 = vmatprep.subr.mxu0 0.0
  %280 = vmatpush1.msra.mxu0 0.0
  %281 = vmatprep.subr.mxu0 0.0
  %282 = vmatpush1.msra.mxu0 0.0
  %283 = vmatprep.subr.mxu0 0.0
  %284 = vmatpush1.msra.mxu0 0.0
  %285 = vmatprep.subr.mxu0 0.0
  %286 = vmatpush1.msra.mxu0 0.0
  %287 = vmatprep.subr.mxu0 0.0
  %288 = vmatpush1.msra.mxu0 0.0
  %289 = vmatprep.subr.mxu0 0.0
  %290 = vmatpush1.msra.mxu0 0.0
  %291 = vmatprep.subr.mxu0 0.0
  %292 = vmatpush1.msra.mxu0 0.0
  %293 = vmatprep.subr.mxu0 0.0
  %294 = vmatpush1.msra.mxu0 0.0
  %295 = vmatprep.subr.mxu0 0.0
  %296 = vmatpush1.msra.mxu0 0.0
  %297 = vmatprep.subr.mxu0 0.0
  %298 = vmatpush1.msra.mxu0 0.0
  %299 = vmatprep.subr.mxu0 0.0
  %300 = vmatpush1.msra.mxu0 0.0
  %301 = vmatprep.mubr.f32.mxu0 0.0
  %v302 = vand.u32 %v63, 4294901760
  %303 = vmatmul.mubr.f32.gmra.mrb[0].mxu0 %v302
  %v304 = vpop.f32.mrb[0].mxu0
  %v305 = vadd.f32 %v159, %v304
  %v306 = vpop.f32.mrb[0].mxu0
  %307 = vmatprep.mubr.f32.mxu0 0.0
  %v308 = vand.u32 %v66, 4294901760
  %309 = vmatmul.mubr.f32.gmra.mrb[0].mxu0 %v308
  %v310 = vpop.f32.mrb[0].mxu0
  %v311 = vadd.f32 %v169, %v310
  %v312 = vpop.f32.mrb[0].mxu0
  %313 = vmatprep.mubr.f32.mxu0 0.0
  %v314 = vand.u32 %v69, 4294901760
  %315 = vmatmul.mubr.f32.gmra.mrb[0].mxu0 %v314
  %v316 = vpop.f32.mrb[0].mxu0
  %v317 = vadd.f32 %v179, %v316
  %v318 = vpop.f32.mrb[0].mxu0
  %319 = vmatprep.mubr.f32.mxu0 0.0
  %v320 = vand.u32 %v72, 4294901760
  %321 = vmatmul.mubr.f32.gmra.mrb[0].mxu0 %v320
  %v322 = vpop.f32.mrb[0].mxu0
  %v323 = vadd.f32 %v189, %v322
  %v324 = vpop.f32.mrb[0].mxu0
  %325 = vmatprep.mubr.f32.mxu0 0.0
  %v326 = vand.u32 %v75, 4294901760
  %327 = vmatmul.mubr.f32.gmra.mrb[0].mxu0 %v326
  %v328 = vpop.f32.mrb[0].mxu0
  %v329 = vadd.f32 %v199, %v328
  %v330 = vpop.f32.mrb[0].mxu0
  %331 = vmatprep.mubr.f32.mxu0 0.0
  %v332 = vand.u32 %v78, 4294901760
  %333 = vmatmul.mubr.f32.gmra.mrb[0].mxu0 %v332
  %v334 = vpop.f32.mrb[0].mxu0
  %v335 = vadd.f32 %v209, %v334
  %v336 = vpop.f32.mrb[0].mxu0
  %337 = vmatprep.mubr.f32.mxu0 0.0
  %v338 = vand.u32 %v81, 4294901760
  %339 = vmatmul.mubr.f32.gmra.mrb[0].mxu0 %v338
  %v340 = vpop.f32.mrb[0].mxu0
  %v341 = vadd.f32 %v219, %v340
  %v342 = vpop.f32.mrb[0].mxu0
  %343 = vmatprep.mubr.f32.mxu0 0.0
  %v344 = vand.u32 %v84, 4294901760
  %345 = vmatmul.mubr.f32.gmra.mrb[0].mxu0 %v344
  %v346 = vpop.f32.mrb[0].mxu0
  %v347 = vadd.f32 %v229, %v346
  %v348 = vpop.f32.mrb[0].mxu0
  %349 = vdwg.mxu0
  %350 = vmatprep.subr.mxu0 0.0
  %v351 = vand.u32 %v41, 4294901760
  %v352 = vsub.f32 %v41, %v351
  %353 = vmatpush1.msra.mxu0 %v352
  %354 = vmatprep.subr.mxu0 0.0
  %355 = vmatpush1.msra.mxu0 0.0
  %356 = vmatprep.subr.mxu0 0.0
  %357 = vmatpush1.msra.mxu0 0.0
  %358 = vmatprep.subr.mxu0 0.0
  %359 = vmatpush1.msra.mxu0 0.0
  %360 = vmatprep.subr.mxu0 0.0
  %361 = vmatpush1.msra.mxu0 0.0
  %362 = vmatprep.subr.mxu0 0.0
  %363 = vmatpush1.msra.mxu0 0.0
  %364 = vmatprep.subr.mxu0 0.0
  %365 = vmatpush1.msra.mxu0 0.0
  %366 = vmatprep.subr.mxu0 0.0
  %367 = vmatpush1.msra.mxu0 0.0
  %368 = vmatprep.subr.mxu0 0.0
  %369 = vmatpush1.msra.mxu0 0.0
  %370 = vmatprep.subr.mxu0 0.0
  %371 = vmatpush1.msra.mxu0 0.0
  %372 = vmatprep.subr.mxu0 0.0
  %373 = vmatpush1.msra.mxu0 0.0
  %374 = vmatprep.subr.mxu0 0.0
  %375 = vmatpush1.msra.mxu0 0.0
  %376 = vmatprep.subr.mxu0 0.0
  %377 = vmatpush1.msra.mxu0 0.0
  %378 = vmatprep.subr.mxu0 0.0
  %379 = vmatpush1.msra.mxu0 0.0
  %380 = vmatprep.subr.mxu0 0.0
  %381 = vmatpush1.msra.mxu0 0.0
  %382 = vmatprep.subr.mxu0 0.0
  %383 = vmatpush1.msra.mxu0 0.0
  %384 = vmatprep.subr.mxu0 0.0
  %385 = vmatpush1.msra.mxu0 0.0
  %386 = vmatprep.subr.mxu0 0.0
  %387 = vmatpush1.msra.mxu0 0.0
  %388 = vmatprep.subr.mxu0 0.0
  %389 = vmatpush1.msra.mxu0 0.0
  %390 = vmatprep.subr.mxu0 0.0
  %391 = vmatpush1.msra.mxu0 0.0
  %392 = vmatprep.subr.mxu0 0.0
  %393 = vmatpush1.msra.mxu0 0.0
  %394 = vmatprep.subr.mxu0 0.0
  %395 = vmatpush1.msra.mxu0 0.0
  %396 = vmatprep.subr.mxu0 0.0
  %397 = vmatpush1.msra.mxu0 0.0
  %398 = vmatprep.subr.mxu0 0.0
  %399 = vmatpush1.msra.mxu0 0.0
  %400 = vmatprep.subr.mxu0 0.0
  %401 = vmatpush1.msra.mxu0 0.0
  %402 = vmatprep.subr.mxu0 0.0
  %403 = vmatpush1.msra.mxu0 0.0
  %404 = vmatprep.subr.mxu0 0.0
  %405 = vmatpush1.msra.mxu0 0.0
  %406 = vmatprep.subr.mxu0 0.0
  %407 = vmatpush1.msra.mxu0 0.0
  %408 = vmatprep.subr.mxu0 0.0
  %409 = vmatpush1.msra.mxu0 0.0
  %410 = vmatprep.subr.mxu0 0.0
  %411 = vmatpush1.msra.mxu0 0.0
  %412 = vmatprep.subr.mxu0 0.0
  %413 = vmatpush1.msra.mxu0 0.0
  %414 = vmatprep.subr.mxu0 0.0
  %415 = vmatpush1.msra.mxu0 0.0
  %416 = vmatprep.mubr.f32.mxu0 0.0
  %v417 = vand.u32 %v63, 4294901760
  %v418 = vsub.f32 %v63, %v417
  %419 = vmatmul.mubr.f32.gmra.mrb[0].mxu0 %v418
  %v420 = vpop.f32.mrb[0].mxu0
  %v421 = vadd.f32 %v305, %v420
  %v422 = vpop.f32.mrb[0].mxu0
  %423 = vmatprep.mubr.f32.mxu0 0.0
  %v424 = vand.u32 %v66, 4294901760
  %v425 = vsub.f32 %v66, %v424
  %426 = vmatmul.mubr.f32.gmra.mrb[0].mxu0 %v425
  %v427 = vpop.f32.mrb[0].mxu0
  %v428 = vadd.f32 %v311, %v427
  %v429 = vpop.f32.mrb[0].mxu0
  %430 = vmatprep.mubr.f32.mxu0 0.0
  %v431 = vand.u32 %v69, 4294901760
  %v432 = vsub.f32 %v69, %v431
  %433 = vmatmul.mubr.f32.gmra.mrb[0].mxu0 %v432
  %v434 = vpop.f32.mrb[0].mxu0
  %v435 = vadd.f32 %v317, %v434
  %v436 = vpop.f32.mrb[0].mxu0
  %437 = vmatprep.mubr.f32.mxu0 0.0
  %v438 = vand.u32 %v72, 4294901760
  %v439 = vsub.f32 %v72, %v438
  %440 = vmatmul.mubr.f32.gmra.mrb[0].mxu0 %v439
  %v441 = vpop.f32.mrb[0].mxu0
  %v442 = vadd.f32 %v323, %v441
  %v443 = vpop.f32.mrb[0].mxu0
  %444 = vmatprep.mubr.f32.mxu0 0.0
  %v445 = vand.u32 %v75, 4294901760
  %v446 = vsub.f32 %v75, %v445
  %447 = vmatmul.mubr.f32.gmra.mrb[0].mxu0 %v446
  %v448 = vpop.f32.mrb[0].mxu0
  %v449 = vadd.f32 %v329, %v448
  %v450 = vpop.f32.mrb[0].mxu0
  %451 = vmatprep.mubr.f32.mxu0 0.0
  %v452 = vand.u32 %v78, 4294901760
  %v453 = vsub.f32 %v78, %v452
  %454 = vmatmul.mubr.f32.gmra.mrb[0].mxu0 %v453
  %v455 = vpop.f32.mrb[0].mxu0
  %v456 = vadd.f32 %v335, %v455
  %v457 = vpop.f32.mrb[0].mxu0
  %458 = vmatprep.mubr.f32.mxu0 0.0
  %v459 = vand.u32 %v81, 4294901760
  %v460 = vsub.f32 %v81, %v459
  %461 = vmatmul.mubr.f32.gmra.mrb[0].mxu0 %v460
  %v462 = vpop.f32.mrb[0].mxu0
  %v463 = vadd.f32 %v341, %v462
  %v464 = vpop.f32.mrb[0].mxu0
  %465 = vmatprep.mubr.f32.mxu0 0.0
  %v466 = vand.u32 %v84, 4294901760
  %v467 = vsub.f32 %v84, %v466
  %468 = vmatmul.mubr.f32.gmra.mrb[0].mxu0 %v467
  %v469 = vpop.f32.mrb[0].mxu0
  %v470 = vadd.f32 %v347, %v469
  %v471 = vpop.f32.mrb[0].mxu0
  %472 = vdwg.mxu0
  %473 = vmatprep.subr.mxu0 0.0
  %v474 = vand.u32 %v41, 4294901760
  %475 = vmatpush1.msra.mxu0 %v474
  %476 = vmatprep.subr.mxu0 0.0
  %477 = vmatpush1.msra.mxu0 0.0
  %478 = vmatprep.subr.mxu0 0.0
  %479 = vmatpush1.msra.mxu0 0.0
  %480 = vmatprep.subr.mxu0 0.0
  %481 = vmatpush1.msra.mxu0 0.0
  %482 = vmatprep.subr.mxu0 0.0
  %483 = vmatpush1.msra.mxu0 0.0
  %484 = vmatprep.subr.mxu0 0.0
  %485 = vmatpush1.msra.mxu0 0.0
  %486 = vmatprep.subr.mxu0 0.0
  %487 = vmatpush1.msra.mxu0 0.0
  %488 = vmatprep.subr.mxu0 0.0
  %489 = vmatpush1.msra.mxu0 0.0
  %490 = vmatprep.subr.mxu0 0.0
  %491 = vmatpush1.msra.mxu0 0.0
  %492 = vmatprep.subr.mxu0 0.0
  %493 = vmatpush1.msra.mxu0 0.0
  %494 = vmatprep.subr.mxu0 0.0
  %495 = vmatpush1.msra.mxu0 0.0
  %496 = vmatprep.subr.mxu0 0.0
  %497 = vmatpush1.msra.mxu0 0.0
  %498 = vmatprep.subr.mxu0 0.0
  %499 = vmatpush1.msra.mxu0 0.0
  %500 = vmatprep.subr.mxu0 0.0
  %501 = vmatpush1.msra.mxu0 0.0
  %502 = vmatprep.subr.mxu0 0.0
  %503 = vmatpush1.msra.mxu0 0.0
  %504 = vmatprep.subr.mxu0 0.0
  %505 = vmatpush1.msra.mxu0 0.0
  %506 = vmatprep.subr.mxu0 0.0
  %507 = vmatpush1.msra.mxu0 0.0
  %508 = vmatprep.subr.mxu0 0.0
  %509 = vmatpush1.msra.mxu0 0.0
  %510 = vmatprep.subr.mxu0 0.0
  %511 = vmatpush1.msra.mxu0 0.0
  %512 = vmatprep.subr.mxu0 0.0
  %513 = vmatpush1.msra.mxu0 0.0
  %514 = vmatprep.subr.mxu0 0.0
  %515 = vmatpush1.msra.mxu0 0.0
  %516 = vmatprep.subr.mxu0 0.0
  %517 = vmatpush1.msra.mxu0 0.0
  %518 = vmatprep.subr.mxu0 0.0
  %519 = vmatpush1.msra.mxu0 0.0
  %520 = vmatprep.subr.mxu0 0.0
  %521 = vmatpush1.msra.mxu0 0.0
  %522 = vmatprep.subr.mxu0 0.0
  %523 = vmatpush1.msra.mxu0 0.0
  %524 = vmatprep.subr.mxu0 0.0
  %525 = vmatpush1.msra.mxu0 0.0
  %526 = vmatprep.subr.mxu0 0.0
  %527 = vmatpush1.msra.mxu0 0.0
  %528 = vmatprep.subr.mxu0 0.0
  %529 = vmatpush1.msra.mxu0 0.0
  %530 = vmatprep.subr.mxu0 0.0
  %531 = vmatpush1.msra.mxu0 0.0
  %532 = vmatprep.subr.mxu0 0.0
  %533 = vmatpush1.msra.mxu0 0.0
  %534 = vmatprep.subr.mxu0 0.0
  %535 = vmatpush1.msra.mxu0 0.0
  %536 = vmatprep.subr.mxu0 0.0
  %537 = vmatpush1.msra.mxu0 0.0
  %538 = vmatprep.mubr.f32.mxu0 0.0
  %v539 = vand.u32 %v63, 4294901760
  %v540 = vsub.f32 %v63, %v539
  %v541 = vand.u32 %v540, 4294901760
  %542 = vmatmul.mubr.f32.gmra.mrb[0].mxu0 %v541
  %v543 = vpop.f32.mrb[0].mxu0
  %v544 = vadd.f32 %v421, %v543
  %v545 = vpop.f32.mrb[0].mxu0
  %546 = vmatprep.mubr.f32.mxu0 0.0
  %v547 = vand.u32 %v66, 4294901760
  %v548 = vsub.f32 %v66, %v547
  %v549 = vand.u32 %v548, 4294901760
  %550 = vmatmul.mubr.f32.gmra.mrb[0].mxu0 %v549
  %v551 = vpop.f32.mrb[0].mxu0
  %v552 = vadd.f32 %v428, %v551
  %v553 = vpop.f32.mrb[0].mxu0
  %554 = vmatprep.mubr.f32.mxu0 0.0
  %v555 = vand.u32 %v69, 4294901760
  %v556 = vsub.f32 %v69, %v555
  %v557 = vand.u32 %v556, 4294901760
  %558 = vmatmul.mubr.f32.gmra.mrb[0].mxu0 %v557
  %v559 = vpop.f32.mrb[0].mxu0
  %v560 = vadd.f32 %v435, %v559
  %v561 = vpop.f32.mrb[0].mxu0
  %562 = vmatprep.mubr.f32.mxu0 0.0
  %v563 = vand.u32 %v72, 4294901760
  %v564 = vsub.f32 %v72, %v563
  %v565 = vand.u32 %v564, 4294901760
  %566 = vmatmul.mubr.f32.gmra.mrb[0].mxu0 %v565
  %v567 = vpop.f32.mrb[0].mxu0
  %v568 = vadd.f32 %v442, %v567
  %v569 = vpop.f32.mrb[0].mxu0
  %570 = vmatprep.mubr.f32.mxu0 0.0
  %v571 = vand.u32 %v75, 4294901760
  %v572 = vsub.f32 %v75, %v571
  %v573 = vand.u32 %v572, 4294901760
  %574 = vmatmul.mubr.f32.gmra.mrb[0].mxu0 %v573
  %v575 = vpop.f32.mrb[0].mxu0
  %v576 = vadd.f32 %v449, %v575
  %v577 = vpop.f32.mrb[0].mxu0
  %578 = vmatprep.mubr.f32.mxu0 0.0
  %v579 = vand.u32 %v78, 4294901760
  %v580 = vsub.f32 %v78, %v579
  %v581 = vand.u32 %v580, 4294901760
  %582 = vmatmul.mubr.f32.gmra.mrb[0].mxu0 %v581
  %v583 = vpop.f32.mrb[0].mxu0
  %v584 = vadd.f32 %v456, %v583
  %v585 = vpop.f32.mrb[0].mxu0
  %586 = vmatprep.mubr.f32.mxu0 0.0
  %v587 = vand.u32 %v81, 4294901760
  %v588 = vsub.f32 %v81, %v587
  %v589 = vand.u32 %v588, 4294901760
  %590 = vmatmul.mubr.f32.gmra.mrb[0].mxu0 %v589
  %v591 = vpop.f32.mrb[0].mxu0
  %v592 = vadd.f32 %v463, %v591
  %v593 = vpop.f32.mrb[0].mxu0
  %594 = vmatprep.mubr.f32.mxu0 0.0
  %v595 = vand.u32 %v84, 4294901760
  %v596 = vsub.f32 %v84, %v595
  %v597 = vand.u32 %v596, 4294901760
  %598 = vmatmul.mubr.f32.gmra.mrb[0].mxu0 %v597
  %v599 = vpop.f32.mrb[0].mxu0
  %v600 = vadd.f32 %v470, %v599
  %v601 = vpop.f32.mrb[0].mxu0
  %602 = vdwg.mxu0
  %603 = vmatprep.subr.mxu0 0.0
  %v604 = vand.u32 %v41, 4294901760
  %v605 = vsub.f32 %v41, %v604
  %v606 = vand.u32 %v605, 4294901760
  %607 = vmatpush1.msra.mxu0 %v606
  %608 = vmatprep.subr.mxu0 0.0
  %609 = vmatpush1.msra.mxu0 0.0
  %610 = vmatprep.subr.mxu0 0.0
  %611 = vmatpush1.msra.mxu0 0.0
  %612 = vmatprep.subr.mxu0 0.0
  %613 = vmatpush1.msra.mxu0 0.0
  %614 = vmatprep.subr.mxu0 0.0
  %615 = vmatpush1.msra.mxu0 0.0
  %616 = vmatprep.subr.mxu0 0.0
  %617 = vmatpush1.msra.mxu0 0.0
  %618 = vmatprep.subr.mxu0 0.0
  %619 = vmatpush1.msra.mxu0 0.0
  %620 = vmatprep.subr.mxu0 0.0
  %621 = vmatpush1.msra.mxu0 0.0
  %622 = vmatprep.subr.mxu0 0.0
  %623 = vmatpush1.msra.mxu0 0.0
  %624 = vmatprep.subr.mxu0 0.0
  %625 = vmatpush1.msra.mxu0 0.0
  %626 = vmatprep.subr.mxu0 0.0
  %627 = vmatpush1.msra.mxu0 0.0
  %628 = vmatprep.subr.mxu0 0.0
  %629 = vmatpush1.msra.mxu0 0.0
  %630 = vmatprep.subr.mxu0 0.0
  %631 = vmatpush1.msra.mxu0 0.0
  %632 = vmatprep.subr.mxu0 0.0
  %633 = vmatpush1.msra.mxu0 0.0
  %634 = vmatprep.subr.mxu0 0.0
  %635 = vmatpush1.msra.mxu0 0.0
  %636 = vmatprep.subr.mxu0 0.0
  %637 = vmatpush1.msra.mxu0 0.0
  %638 = vmatprep.subr.mxu0 0.0
  %639 = vmatpush1.msra.mxu0 0.0
  %640 = vmatprep.subr.mxu0 0.0
  %641 = vmatpush1.msra.mxu0 0.0
  %642 = vmatprep.subr.mxu0 0.0
  %643 = vmatpush1.msra.mxu0 0.0
  %644 = vmatprep.subr.mxu0 0.0
  %645 = vmatpush1.msra.mxu0 0.0
  %646 = vmatprep.subr.mxu0 0.0
  %647 = vmatpush1.msra.mxu0 0.0
  %648 = vmatprep.subr.mxu0 0.0
  %649 = vmatpush1.msra.mxu0 0.0
  %650 = vmatprep.subr.mxu0 0.0
  %651 = vmatpush1.msra.mxu0 0.0
  %652 = vmatprep.subr.mxu0 0.0
  %653 = vmatpush1.msra.mxu0 0.0
  %654 = vmatprep.subr.mxu0 0.0
  %655 = vmatpush1.msra.mxu0 0.0
  %656 = vmatprep.subr.mxu0 0.0
  %657 = vmatpush1.msra.mxu0 0.0
  %658 = vmatprep.subr.mxu0 0.0
  %659 = vmatpush1.msra.mxu0 0.0
  %660 = vmatprep.subr.mxu0 0.0
  %661 = vmatpush1.msra.mxu0 0.0
  %662 = vmatprep.subr.mxu0 0.0
  %663 = vmatpush1.msra.mxu0 0.0
  %664 = vmatprep.subr.mxu0 0.0
  %665 = vmatpush1.msra.mxu0 0.0
  %666 = vmatprep.subr.mxu0 0.0
  %667 = vmatpush1.msra.mxu0 0.0
  %668 = vmatprep.subr.mxu0 0.0
  %669 = vmatpush1.msra.mxu0 0.0
  %670 = vmatprep.mubr.f32.mxu0 0.0
  %v671 = vand.u32 %v63, 4294901760
  %672 = vmatmul.mubr.f32.gmra.mrb[0].mxu0 %v671
  %v673 = vpop.f32.mrb[0].mxu0
  %v674 = vadd.f32 %v544, %v673
  %v675 = vpop.f32.mrb[0].mxu0
  %676 = vmatprep.mubr.f32.mxu0 0.0
  %v677 = vand.u32 %v66, 4294901760
  %678 = vmatmul.mubr.f32.gmra.mrb[0].mxu0 %v677
  %v679 = vpop.f32.mrb[0].mxu0
  %v680 = vadd.f32 %v552, %v679
  %v681 = vpop.f32.mrb[0].mxu0
  %682 = vmatprep.mubr.f32.mxu0 0.0
  %v683 = vand.u32 %v69, 4294901760
  %684 = vmatmul.mubr.f32.gmra.mrb[0].mxu0 %v683
  %v685 = vpop.f32.mrb[0].mxu0
  %v686 = vadd.f32 %v560, %v685
  %v687 = vpop.f32.mrb[0].mxu0
  %688 = vmatprep.mubr.f32.mxu0 0.0
  %v689 = vand.u32 %v72, 4294901760
  %690 = vmatmul.mubr.f32.gmra.mrb[0].mxu0 %v689
  %v691 = vpop.f32.mrb[0].mxu0
  %v692 = vadd.f32 %v568, %v691
  %v693 = vpop.f32.mrb[0].mxu0
  %694 = vmatprep.mubr.f32.mxu0 0.0
  %v695 = vand.u32 %v75, 4294901760
  %696 = vmatmul.mubr.f32.gmra.mrb[0].mxu0 %v695
  %v697 = vpop.f32.mrb[0].mxu0
  %v698 = vadd.f32 %v576, %v697
  %v699 = vpop.f32.mrb[0].mxu0
  %700 = vmatprep.mubr.f32.mxu0 0.0
  %v701 = vand.u32 %v78, 4294901760
  %702 = vmatmul.mubr.f32.gmra.mrb[0].mxu0 %v701
  %v703 = vpop.f32.mrb[0].mxu0
  %v704 = vadd.f32 %v584, %v703
  %v705 = vpop.f32.mrb[0].mxu0
  %706 = vmatprep.mubr.f32.mxu0 0.0
  %v707 = vand.u32 %v81, 4294901760
  %708 = vmatmul.mubr.f32.gmra.mrb[0].mxu0 %v707
  %v709 = vpop.f32.mrb[0].mxu0
  %v710 = vadd.f32 %v592, %v709
  %v711 = vpop.f32.mrb[0].mxu0
  %712 = vmatprep.mubr.f32.mxu0 0.0
  %v713 = vand.u32 %v84, 4294901760
  %714 = vmatmul.mubr.f32.gmra.mrb[0].mxu0 %v713
  %v715 = vpop.f32.mrb[0].mxu0
  %v716 = vadd.f32 %v600, %v715
  %v717 = vpop.f32.mrb[0].mxu0
  %718 = vdwg.mxu0
  %719 = vmatprep.subr.mxu0 0.0
  %v720 = vand.u32 %v41, 4294901760
  %721 = vmatpush1.msra.mxu0 %v720
  %722 = vmatprep.subr.mxu0 0.0
  %723 = vmatpush1.msra.mxu0 0.0
  %724 = vmatprep.subr.mxu0 0.0
  %725 = vmatpush1.msra.mxu0 0.0
  %726 = vmatprep.subr.mxu0 0.0
  %727 = vmatpush1.msra.mxu0 0.0
  %728 = vmatprep.subr.mxu0 0.0
  %729 = vmatpush1.msra.mxu0 0.0
  %730 = vmatprep.subr.mxu0 0.0
  %731 = vmatpush1.msra.mxu0 0.0
  %732 = vmatprep.subr.mxu0 0.0
  %733 = vmatpush1.msra.mxu0 0.0
  %734 = vmatprep.subr.mxu0 0.0
  %735 = vmatpush1.msra.mxu0 0.0
  %736 = vmatprep.subr.mxu0 0.0
  %737 = vmatpush1.msra.mxu0 0.0
  %738 = vmatprep.subr.mxu0 0.0
  %739 = vmatpush1.msra.mxu0 0.0
  %740 = vmatprep.subr.mxu0 0.0
  %741 = vmatpush1.msra.mxu0 0.0
  %742 = vmatprep.subr.mxu0 0.0
  %743 = vmatpush1.msra.mxu0 0.0
  %744 = vmatprep.subr.mxu0 0.0
  %745 = vmatpush1.msra.mxu0 0.0
  %746 = vmatprep.subr.mxu0 0.0
  %747 = vmatpush1.msra.mxu0 0.0
  %748 = vmatprep.subr.mxu0 0.0
  %749 = vmatpush1.msra.mxu0 0.0
  %750 = vmatprep.subr.mxu0 0.0
  %751 = vmatpush1.msra.mxu0 0.0
  %752 = vmatprep.subr.mxu0 0.0
  %753 = vmatpush1.msra.mxu0 0.0
  %754 = vmatprep.subr.mxu0 0.0
  %755 = vmatpush1.msra.mxu0 0.0
  %756 = vmatprep.subr.mxu0 0.0
  %757 = vmatpush1.msra.mxu0 0.0
  %758 = vmatprep.subr.mxu0 0.0
  %759 = vmatpush1.msra.mxu0 0.0
  %760 = vmatprep.subr.mxu0 0.0
  %761 = vmatpush1.msra.mxu0 0.0
  %762 = vmatprep.subr.mxu0 0.0
  %763 = vmatpush1.msra.mxu0 0.0
  %764 = vmatprep.subr.mxu0 0.0
  %765 = vmatpush1.msra.mxu0 0.0
  %766 = vmatprep.subr.mxu0 0.0
  %767 = vmatpush1.msra.mxu0 0.0
  %768 = vmatprep.subr.mxu0 0.0
  %769 = vmatpush1.msra.mxu0 0.0
  %770 = vmatprep.subr.mxu0 0.0
  %771 = vmatpush1.msra.mxu0 0.0
  %772 = vmatprep.subr.mxu0 0.0
  %773 = vmatpush1.msra.mxu0 0.0
  %774 = vmatprep.subr.mxu0 0.0
  %775 = vmatpush1.msra.mxu0 0.0
  %776 = vmatprep.subr.mxu0 0.0
  %777 = vmatpush1.msra.mxu0 0.0
  %778 = vmatprep.subr.mxu0 0.0
  %779 = vmatpush1.msra.mxu0 0.0
  %780 = vmatprep.subr.mxu0 0.0
  %781 = vmatpush1.msra.mxu0 0.0
  %782 = vmatprep.subr.mxu0 0.0
  %783 = vmatpush1.msra.mxu0 0.0
  %784 = vmatprep.mubr.f32.mxu0 0.0
  %v785 = vand.u32 %v63, 4294901760
  %786 = vmatmul.mubr.f32.gmra.mrb[0].mxu0 %v785
  %v787 = vpop.f32.mrb[0].mxu0
  %v788 = vadd.f32 %v674, %v787
  %v789 = vpop.f32.mrb[0].mxu0
  %790 = vmatprep.mubr.f32.mxu0 0.0
  %v791 = vand.u32 %v66, 4294901760
  %792 = vmatmul.mubr.f32.gmra.mrb[0].mxu0 %v791
  %v793 = vpop.f32.mrb[0].mxu0
  %v794 = vadd.f32 %v680, %v793
  %v795 = vpop.f32.mrb[0].mxu0
  %796 = vmatprep.mubr.f32.mxu0 0.0
  %v797 = vand.u32 %v69, 4294901760
  %798 = vmatmul.mubr.f32.gmra.mrb[0].mxu0 %v797
  %v799 = vpop.f32.mrb[0].mxu0
  %v800 = vadd.f32 %v686, %v799
  %v801 = vpop.f32.mrb[0].mxu0
  %802 = vmatprep.mubr.f32.mxu0 0.0
  %v803 = vand.u32 %v72, 4294901760
  %804 = vmatmul.mubr.f32.gmra.mrb[0].mxu0 %v803
  %v805 = vpop.f32.mrb[0].mxu0
  %v806 = vadd.f32 %v692, %v805
  %v807 = vpop.f32.mrb[0].mxu0
  %808 = vmatprep.mubr.f32.mxu0 0.0
  %v809 = vand.u32 %v75, 4294901760
  %810 = vmatmul.mubr.f32.gmra.mrb[0].mxu0 %v809
  %v811 = vpop.f32.mrb[0].mxu0
  %v812 = vadd.f32 %v698, %v811
  %v813 = vpop.f32.mrb[0].mxu0
  %814 = vmatprep.mubr.f32.mxu0 0.0
  %v815 = vand.u32 %v78, 4294901760
  %816 = vmatmul.mubr.f32.gmra.mrb[0].mxu0 %v815
  %v817 = vpop.f32.mrb[0].mxu0
  %v818 = vadd.f32 %v704, %v817
  %v819 = vpop.f32.mrb[0].mxu0
  %820 = vmatprep.mubr.f32.mxu0 0.0
  %v821 = vand.u32 %v81, 4294901760
  %822 = vmatmul.mubr.f32.gmra.mrb[0].mxu0 %v821
  %v823 = vpop.f32.mrb[0].mxu0
  %v824 = vadd.f32 %v710, %v823
  %v825 = vpop.f32.mrb[0].mxu0
  %826 = vmatprep.mubr.f32.mxu0 0.0
  %v827 = vand.u32 %v84, 4294901760
  %828 = vmatmul.mubr.f32.gmra.mrb[0].mxu0 %v827
  %v829 = vpop.f32.mrb[0].mxu0
  %v830 = vadd.f32 %v716, %v829
  %v831 = vpop.f32.mrb[0].mxu0
  %832 = vdwg.mxu0
  %v833 = vld [vmem:[%s1] sm:$0xff]
  %v834 = vld [vmem:[%s2] sm:$0xff]
  %vm835 = vcmask 261120
  %v837 = vsel %vm835, %v833, 0
  %839 = vmatprep.subr.mxu0 0.0
  %v840 = vand.u32 %v42, 4294901760
  %841 = vmatpush1.msra.mxu0 %v840
  %842 = vmatprep.subr.mxu0 0.0
  %v843 = vand.u32 %v43, 4294901760
  %844 = vmatpush1.msra.mxu0 %v843
  %845 = vmatprep.subr.mxu0 0.0
  %v846 = vand.u32 %v44, 4294901760
  %847 = vmatpush1.msra.mxu0 %v846
  %848 = vmatprep.subr.mxu0 0.0
  %v849 = vand.u32 %v45, 4294901760
  %850 = vmatpush1.msra.mxu0 %v849
  %851 = vmatprep.subr.mxu0 0.0
  %852 = vmatpush1.msra.mxu0 0.0
  %853 = vmatprep.subr.mxu0 0.0
  %854 = vmatpush1.msra.mxu0 0.0
  %855 = vmatprep.subr.mxu0 0.0
  %856 = vmatpush1.msra.mxu0 0.0
  %857 = vmatprep.subr.mxu0 0.0
  %858 = vmatpush1.msra.mxu0 0.0
  %859 = vmatprep.subr.mxu0 0.0
  %860 = vmatpush1.msra.mxu0 0.0
  %861 = vmatprep.subr.mxu0 0.0
  %862 = vmatpush1.msra.mxu0 0.0
  %863 = vmatprep.subr.mxu0 0.0
  %864 = vmatpush1.msra.mxu0 0.0
  %865 = vmatprep.subr.mxu0 0.0
  %866 = vmatpush1.msra.mxu0 0.0
  %867 = vmatprep.subr.mxu0 0.0
  %868 = vmatpush1.msra.mxu0 0.0
  %869 = vmatprep.subr.mxu0 0.0
  %870 = vmatpush1.msra.mxu0 0.0
  %871 = vmatprep.subr.mxu0 0.0
  %872 = vmatpush1.msra.mxu0 0.0
  %873 = vmatprep.subr.mxu0 0.0
  %874 = vmatpush1.msra.mxu0 0.0
  %875 = vmatprep.subr.mxu0 0.0
  %876 = vmatpush1.msra.mxu0 0.0
  %877 = vmatprep.subr.mxu0 0.0
  %878 = vmatpush1.msra.mxu0 0.0
  %879 = vmatprep.subr.mxu0 0.0
  %880 = vmatpush1.msra.mxu0 0.0
  %881 = vmatprep.subr.mxu0 0.0
  %882 = vmatpush1.msra.mxu0 0.0
  %883 = vmatprep.subr.mxu0 0.0
  %884 = vmatpush1.msra.mxu0 0.0
  %885 = vmatprep.subr.mxu0 0.0
  %886 = vmatpush1.msra.mxu0 0.0
  %887 = vmatprep.subr.mxu0 0.0
  %888 = vmatpush1.msra.mxu0 0.0
  %889 = vmatprep.subr.mxu0 0.0
  %890 = vmatpush1.msra.mxu0 0.0
  %891 = vmatprep.subr.mxu0 0.0
  %892 = vmatpush1.msra.mxu0 0.0
  %893 = vmatprep.subr.mxu0 0.0
  %894 = vmatpush1.msra.mxu0 0.0
  %895 = vmatprep.subr.mxu0 0.0
  %896 = vmatpush1.msra.mxu0 0.0
  %897 = vmatprep.subr.mxu0 0.0
  %898 = vmatpush1.msra.mxu0 0.0
  %899 = vmatprep.subr.mxu0 0.0
  %900 = vmatpush1.msra.mxu0 0.0
  %901 = vmatprep.subr.mxu0 0.0
  %902 = vmatpush1.msra.mxu0 0.0
  %903 = vmatprep.subr.mxu0 0.0
  %904 = vmatpush1.msra.mxu0 0.0
  %905 = vmatprep.subr.mxu0 0.0
  %906 = vmatpush1.msra.mxu0 0.0
  %907 = vmatprep.mubr.f32.mxu0 0.0
  %v908 = vand.u32 %v837, 4294901760
  %v909 = vsub.f32 %v837, %v908
  %v910 = vand.u32 %v909, 4294901760
  %v911 = vsub.f32 %v909, %v910
  %v912 = vand.u32 %v911, 4294901760
  %913 = vmatmul.mubr.f32.gmra.mrb[0].mxu0 %v912
  %v914 = vpop.f32.mrb[0].mxu0
  %v915 = vadd.f32 0.0, %v914
  %v916 = vpop.f32.mrb[0].mxu0
  %917 = vdwg.mxu0
  %918 = vmatprep.subr.mxu0 0.0
  %v919 = vand.u32 %v42, 4294901760
  %v920 = vsub.f32 %v42, %v919
  %v921 = vand.u32 %v920, 4294901760
  %v922 = vsub.f32 %v920, %v921
  %v923 = vand.u32 %v922, 4294901760
  %924 = vmatpush1.msra.mxu0 %v923
  %925 = vmatprep.subr.mxu0 0.0
  %v926 = vand.u32 %v43, 4294901760
  %v927 = vsub.f32 %v43, %v926
  %v928 = vand.u32 %v927, 4294901760
  %v929 = vsub.f32 %v927, %v928
  %v930 = vand.u32 %v929, 4294901760
  %931 = vmatpush1.msra.mxu0 %v930
  %932 = vmatprep.subr.mxu0 0.0
  %v933 = vand.u32 %v44, 4294901760
  %v934 = vsub.f32 %v44, %v933
  %v935 = vand.u32 %v934, 4294901760
  %v936 = vsub.f32 %v934, %v935
  %v937 = vand.u32 %v936, 4294901760
  %938 = vmatpush1.msra.mxu0 %v937
  %939 = vmatprep.subr.mxu0 0.0
  %v940 = vand.u32 %v45, 4294901760
  %v941 = vsub.f32 %v45, %v940
  %v942 = vand.u32 %v941, 4294901760
  %v943 = vsub.f32 %v941, %v942
  %v944 = vand.u32 %v943, 4294901760
  %945 = vmatpush1.msra.mxu0 %v944
  %946 = vmatprep.subr.mxu0 0.0
  %947 = vmatpush1.msra.mxu0 0.0
  %948 = vmatprep.subr.mxu0 0.0
  %949 = vmatpush1.msra.mxu0 0.0
  %950 = vmatprep.subr.mxu0 0.0
  %951 = vmatpush1.msra.mxu0 0.0
  %952 = vmatprep.subr.mxu0 0.0
  %953 = vmatpush1.msra.mxu0 0.0
  %954 = vmatprep.subr.mxu0 0.0
  %955 = vmatpush1.msra.mxu0 0.0
  %956 = vmatprep.subr.mxu0 0.0
  %957 = vmatpush1.msra.mxu0 0.0
  %958 = vmatprep.subr.mxu0 0.0
  %959 = vmatpush1.msra.mxu0 0.0
  %960 = vmatprep.subr.mxu0 0.0
  %961 = vmatpush1.msra.mxu0 0.0
  %962 = vmatprep.subr.mxu0 0.0
  %963 = vmatpush1.msra.mxu0 0.0
  %964 = vmatprep.subr.mxu0 0.0
  %965 = vmatpush1.msra.mxu0 0.0
  %966 = vmatprep.subr.mxu0 0.0
  %967 = vmatpush1.msra.mxu0 0.0
  %968 = vmatprep.subr.mxu0 0.0
  %969 = vmatpush1.msra.mxu0 0.0
  %970 = vmatprep.subr.mxu0 0.0
  %971 = vmatpush1.msra.mxu0 0.0
  %972 = vmatprep.subr.mxu0 0.0
  %973 = vmatpush1.msra.mxu0 0.0
  %974 = vmatprep.subr.mxu0 0.0
  %975 = vmatpush1.msra.mxu0 0.0
  %976 = vmatprep.subr.mxu0 0.0
  %977 = vmatpush1.msra.mxu0 0.0
  %978 = vmatprep.subr.mxu0 0.0
  %979 = vmatpush1.msra.mxu0 0.0
  %980 = vmatprep.subr.mxu0 0.0
  %981 = vmatpush1.msra.mxu0 0.0
  %982 = vmatprep.subr.mxu0 0.0
  %983 = vmatpush1.msra.mxu0 0.0
  %984 = vmatprep.subr.mxu0 0.0
  %985 = vmatpush1.msra.mxu0 0.0
  %986 = vmatprep.subr.mxu0 0.0
  %987 = vmatpush1.msra.mxu0 0.0
  %988 = vmatprep.subr.mxu0 0.0
  %989 = vmatpush1.msra.mxu0 0.0
  %990 = vmatprep.subr.mxu0 0.0
  %991 = vmatpush1.msra.mxu0 0.0
  %992 = vmatprep.subr.mxu0 0.0
  %993 = vmatpush1.msra.mxu0 0.0
  %994 = vmatprep.subr.mxu0 0.0
  %995 = vmatpush1.msra.mxu0 0.0
  %996 = vmatprep.subr.mxu0 0.0
  %997 = vmatpush1.msra.mxu0 0.0
  %998 = vmatprep.subr.mxu0 0.0
  %999 = vmatpush1.msra.mxu0 0.0
  %1000 = vmatprep.subr.mxu0 0.0
  %1001 = vmatpush1.msra.mxu0 0.0
  %1002 = vmatprep.mubr.f32.mxu0 0.0
  %v1003 = vand.u32 %v837, 4294901760
  %1004 = vmatmul.mubr.f32.gmra.mrb[0].mxu0 %v1003
  %v1005 = vpop.f32.mrb[0].mxu0
  %v1006 = vadd.f32 %v915, %v1005
  %v1007 = vpop.f32.mrb[0].mxu0
  %1008 = vdwg.mxu0
  %1009 = vmatprep.subr.mxu0 0.0
  %v1010 = vand.u32 %v42, 4294901760
  %v1011 = vsub.f32 %v42, %v1010
  %1012 = vmatpush1.msra.mxu0 %v1011
  %1013 = vmatprep.subr.mxu0 0.0
  %v1014 = vand.u32 %v43, 4294901760
  %v1015 = vsub.f32 %v43, %v1014
  %1016 = vmatpush1.msra.mxu0 %v1015
  %1017 = vmatprep.subr.mxu0 0.0
  %v1018 = vand.u32 %v44, 4294901760
  %v1019 = vsub.f32 %v44, %v1018
  %1020 = vmatpush1.msra.mxu0 %v1019
  %1021 = vmatprep.subr.mxu0 0.0
  %v1022 = vand.u32 %v45, 4294901760
  %v1023 = vsub.f32 %v45, %v1022
  %1024 = vmatpush1.msra.mxu0 %v1023
  %1025 = vmatprep.subr.mxu0 0.0
  %1026 = vmatpush1.msra.mxu0 0.0
  %1027 = vmatprep.subr.mxu0 0.0
  %1028 = vmatpush1.msra.mxu0 0.0
  %1029 = vmatprep.subr.mxu0 0.0
  %1030 = vmatpush1.msra.mxu0 0.0
  %1031 = vmatprep.subr.mxu0 0.0
  %1032 = vmatpush1.msra.mxu0 0.0
  %1033 = vmatprep.subr.mxu0 0.0
  %1034 = vmatpush1.msra.mxu0 0.0
  %1035 = vmatprep.subr.mxu0 0.0
  %1036 = vmatpush1.msra.mxu0 0.0
  %1037 = vmatprep.subr.mxu0 0.0
  %1038 = vmatpush1.msra.mxu0 0.0
  %1039 = vmatprep.subr.mxu0 0.0
  %1040 = vmatpush1.msra.mxu0 0.0
  %1041 = vmatprep.subr.mxu0 0.0
  %1042 = vmatpush1.msra.mxu0 0.0
  %1043 = vmatprep.subr.mxu0 0.0
  %1044 = vmatpush1.msra.mxu0 0.0
  %1045 = vmatprep.subr.mxu0 0.0
  %1046 = vmatpush1.msra.mxu0 0.0
  %1047 = vmatprep.subr.mxu0 0.0
  %1048 = vmatpush1.msra.mxu0 0.0
  %1049 = vmatprep.subr.mxu0 0.0
  %1050 = vmatpush1.msra.mxu0 0.0
  %1051 = vmatprep.subr.mxu0 0.0
  %1052 = vmatpush1.msra.mxu0 0.0
  %1053 = vmatprep.subr.mxu0 0.0
  %1054 = vmatpush1.msra.mxu0 0.0
  %1055 = vmatprep.subr.mxu0 0.0
  %1056 = vmatpush1.msra.mxu0 0.0
  %1057 = vmatprep.subr.mxu0 0.0
  %1058 = vmatpush1.msra.mxu0 0.0
  %1059 = vmatprep.subr.mxu0 0.0
  %1060 = vmatpush1.msra.mxu0 0.0
  %1061 = vmatprep.subr.mxu0 0.0
  %1062 = vmatpush1.msra.mxu0 0.0
  %1063 = vmatprep.subr.mxu0 0.0
  %1064 = vmatpush1.msra.mxu0 0.0
  %1065 = vmatprep.subr.mxu0 0.0
  %1066 = vmatpush1.msra.mxu0 0.0
  %1067 = vmatprep.subr.mxu0 0.0
  %1068 = vmatpush1.msra.mxu0 0.0
  %1069 = vmatprep.subr.mxu0 0.0
  %1070 = vmatpush1.msra.mxu0 0.0
  %1071 = vmatprep.subr.mxu0 0.0
  %1072 = vmatpush1.msra.mxu0 0.0
  %1073 = vmatprep.subr.mxu0 0.0
  %1074 = vmatpush1.msra.mxu0 0.0
  %1075 = vmatprep.subr.mxu0 0.0
  %1076 = vmatpush1.msra.mxu0 0.0
  %1077 = vmatprep.subr.mxu0 0.0
  %1078 = vmatpush1.msra.mxu0 0.0
  %1079 = vmatprep.subr.mxu0 0.0
  %1080 = vmatpush1.msra.mxu0 0.0
  %1081 = vmatprep.mubr.f32.mxu0 0.0
  %v1082 = vand.u32 %v837, 4294901760
  %v1083 = vsub.f32 %v837, %v1082
  %1084 = vmatmul.mubr.f32.gmra.mrb[0].mxu0 %v1083
  %v1085 = vpop.f32.mrb[0].mxu0
  %v1086 = vadd.f32 %v1006, %v1085
  %v1087 = vpop.f32.mrb[0].mxu0
  %1088 = vdwg.mxu0
  %1089 = vmatprep.subr.mxu0 0.0
  %v1090 = vand.u32 %v42, 4294901760
  %1091 = vmatpush1.msra.mxu0 %v1090
  %1092 = vmatprep.subr.mxu0 0.0
  %v1093 = vand.u32 %v43, 4294901760
  %1094 = vmatpush1.msra.mxu0 %v1093
  %1095 = vmatprep.subr.mxu0 0.0
  %v1096 = vand.u32 %v44, 4294901760
  %1097 = vmatpush1.msra.mxu0 %v1096
  %1098 = vmatprep.subr.mxu0 0.0
  %v1099 = vand.u32 %v45, 4294901760
  %1100 = vmatpush1.msra.mxu0 %v1099
  %1101 = vmatprep.subr.mxu0 0.0
  %1102 = vmatpush1.msra.mxu0 0.0
  %1103 = vmatprep.subr.mxu0 0.0
  %1104 = vmatpush1.msra.mxu0 0.0
  %1105 = vmatprep.subr.mxu0 0.0
  %1106 = vmatpush1.msra.mxu0 0.0
  %1107 = vmatprep.subr.mxu0 0.0
  %1108 = vmatpush1.msra.mxu0 0.0
  %1109 = vmatprep.subr.mxu0 0.0
  %1110 = vmatpush1.msra.mxu0 0.0
  %1111 = vmatprep.subr.mxu0 0.0
  %1112 = vmatpush1.msra.mxu0 0.0
  %1113 = vmatprep.subr.mxu0 0.0
  %1114 = vmatpush1.msra.mxu0 0.0
  %1115 = vmatprep.subr.mxu0 0.0
  %1116 = vmatpush1.msra.mxu0 0.0
  %1117 = vmatprep.subr.mxu0 0.0
  %1118 = vmatpush1.msra.mxu0 0.0
  %1119 = vmatprep.subr.mxu0 0.0
  %1120 = vmatpush1.msra.mxu0 0.0
  %1121 = vmatprep.subr.mxu0 0.0
  %1122 = vmatpush1.msra.mxu0 0.0
  %1123 = vmatprep.subr.mxu0 0.0
  %1124 = vmatpush1.msra.mxu0 0.0
  %1125 = vmatprep.subr.mxu0 0.0
  %1126 = vmatpush1.msra.mxu0 0.0
  %1127 = vmatprep.subr.mxu0 0.0
  %1128 = vmatpush1.msra.mxu0 0.0
  %1129 = vmatprep.subr.mxu0 0.0
  %1130 = vmatpush1.msra.mxu0 0.0
  %1131 = vmatprep.subr.mxu0 0.0
  %1132 = vmatpush1.msra.mxu0 0.0
  %1133 = vmatprep.subr.mxu0 0.0
  %1134 = vmatpush1.msra.mxu0 0.0
  %1135 = vmatprep.subr.mxu0 0.0
  %1136 = vmatpush1.msra.mxu0 0.0
  %1137 = vmatprep.subr.mxu0 0.0
  %1138 = vmatpush1.msra.mxu0 0.0
  %1139 = vmatprep.subr.mxu0 0.0
  %1140 = vmatpush1.msra.mxu0 0.0
  %1141 = vmatprep.subr.mxu0 0.0
  %1142 = vmatpush1.msra.mxu0 0.0
  %1143 = vmatprep.subr.mxu0 0.0
  %1144 = vmatpush1.msra.mxu0 0.0
  %1145 = vmatprep.subr.mxu0 0.0
  %1146 = vmatpush1.msra.mxu0 0.0
  %1147 = vmatprep.subr.mxu0 0.0
  %1148 = vmatpush1.msra.mxu0 0.0
  %1149 = vmatprep.subr.mxu0 0.0
  %1150 = vmatpush1.msra.mxu0 0.0
  %1151 = vmatprep.subr.mxu0 0.0
  %1152 = vmatpush1.msra.mxu0 0.0
  %1153 = vmatprep.subr.mxu0 0.0
  %1154 = vmatpush1.msra.mxu0 0.0
  %1155 = vmatprep.subr.mxu0 0.0
  %1156 = vmatpush1.msra.mxu0 0.0
  %1157 = vmatprep.mubr.f32.mxu0 0.0
  %v1158 = vand.u32 %v837, 4294901760
  %v1159 = vsub.f32 %v837, %v1158
  %v1160 = vand.u32 %v1159, 4294901760
  %1161 = vmatmul.mubr.f32.gmra.mrb[0].mxu0 %v1160
  %v1162 = vpop.f32.mrb[0].mxu0
  %v1163 = vadd.f32 %v1086, %v1162
  %v1164 = vpop.f32.mrb[0].mxu0
  %1165 = vdwg.mxu0
  %1166 = vmatprep.subr.mxu0 0.0
  %v1167 = vand.u32 %v42, 4294901760
  %v1168 = vsub.f32 %v42, %v1167
  %v1169 = vand.u32 %v1168, 4294901760
  %1170 = vmatpush1.msra.mxu0 %v1169
  %1171 = vmatprep.subr.mxu0 0.0
  %v1172 = vand.u32 %v43, 4294901760
  %v1173 = vsub.f32 %v43, %v1172
  %v1174 = vand.u32 %v1173, 4294901760
  %1175 = vmatpush1.msra.mxu0 %v1174
  %1176 = vmatprep.subr.mxu0 0.0
  %v1177 = vand.u32 %v44, 4294901760
  %v1178 = vsub.f32 %v44, %v1177
  %v1179 = vand.u32 %v1178, 4294901760
  %1180 = vmatpush1.msra.mxu0 %v1179
  %1181 = vmatprep.subr.mxu0 0.0
  %v1182 = vand.u32 %v45, 4294901760
  %v1183 = vsub.f32 %v45, %v1182
  %v1184 = vand.u32 %v1183, 4294901760
  %1185 = vmatpush1.msra.mxu0 %v1184
  %1186 = vmatprep.subr.mxu0 0.0
  %1187 = vmatpush1.msra.mxu0 0.0
  %1188 = vmatprep.subr.mxu0 0.0
  %1189 = vmatpush1.msra.mxu0 0.0
  %1190 = vmatprep.subr.mxu0 0.0
  %1191 = vmatpush1.msra.mxu0 0.0
  %1192 = vmatprep.subr.mxu0 0.0
  %1193 = vmatpush1.msra.mxu0 0.0
  %1194 = vmatprep.subr.mxu0 0.0
  %1195 = vmatpush1.msra.mxu0 0.0
  %1196 = vmatprep.subr.mxu0 0.0
  %1197 = vmatpush1.msra.mxu0 0.0
  %1198 = vmatprep.subr.mxu0 0.0
  %1199 = vmatpush1.msra.mxu0 0.0
  %1200 = vmatprep.subr.mxu0 0.0
  %1201 = vmatpush1.msra.mxu0 0.0
  %1202 = vmatprep.subr.mxu0 0.0
  %1203 = vmatpush1.msra.mxu0 0.0
  %1204 = vmatprep.subr.mxu0 0.0
  %1205 = vmatpush1.msra.mxu0 0.0
  %1206 = vmatprep.subr.mxu0 0.0
  %1207 = vmatpush1.msra.mxu0 0.0
  %1208 = vmatprep.subr.mxu0 0.0
  %1209 = vmatpush1.msra.mxu0 0.0
  %1210 = vmatprep.subr.mxu0 0.0
  %1211 = vmatpush1.msra.mxu0 0.0
  %1212 = vmatprep.subr.mxu0 0.0
  %1213 = vmatpush1.msra.mxu0 0.0
  %1214 = vmatprep.subr.mxu0 0.0
  %1215 = vmatpush1.msra.mxu0 0.0
  %1216 = vmatprep.subr.mxu0 0.0
  %1217 = vmatpush1.msra.mxu0 0.0
  %1218 = vmatprep.subr.mxu0 0.0
  %1219 = vmatpush1.msra.mxu0 0.0
  %1220 = vmatprep.subr.mxu0 0.0
  %1221 = vmatpush1.msra.mxu0 0.0
  %1222 = vmatprep.subr.mxu0 0.0
  %1223 = vmatpush1.msra.mxu0 0.0
  %1224 = vmatprep.subr.mxu0 0.0
  %1225 = vmatpush1.msra.mxu0 0.0
  %1226 = vmatprep.subr.mxu0 0.0
  %1227 = vmatpush1.msra.mxu0 0.0
  %1228 = vmatprep.subr.mxu0 0.0
  %1229 = vmatpush1.msra.mxu0 0.0
  %1230 = vmatprep.subr.mxu0 0.0
  %1231 = vmatpush1.msra.mxu0 0.0
  %1232 = vmatprep.subr.mxu0 0.0
  %1233 = vmatpush1.msra.mxu0 0.0
  %1234 = vmatprep.subr.mxu0 0.0
  %1235 = vmatpush1.msra.mxu0 0.0
  %1236 = vmatprep.subr.mxu0 0.0
  %1237 = vmatpush1.msra.mxu0 0.0
  %1238 = vmatprep.subr.mxu0 0.0
  %1239 = vmatpush1.msra.mxu0 0.0
  %1240 = vmatprep.subr.mxu0 0.0
  %1241 = vmatpush1.msra.mxu0 0.0
  %1242 = vmatprep.mubr.f32.mxu0 0.0
  %v1243 = vand.u32 %v837, 4294901760
  %1244 = vmatmul.mubr.f32.gmra.mrb[0].mxu0 %v1243
  %v1245 = vpop.f32.mrb[0].mxu0
  %v1246 = vadd.f32 %v1163, %v1245
  %v1247 = vpop.f32.mrb[0].mxu0
  %1248 = vdwg.mxu0
  %1249 = vmatprep.subr.mxu0 0.0
  %v1250 = vand.u32 %v42, 4294901760
  %1251 = vmatpush1.msra.mxu0 %v1250
  %1252 = vmatprep.subr.mxu0 0.0
  %v1253 = vand.u32 %v43, 4294901760
  %1254 = vmatpush1.msra.mxu0 %v1253
  %1255 = vmatprep.subr.mxu0 0.0
  %v1256 = vand.u32 %v44, 4294901760
  %1257 = vmatpush1.msra.mxu0 %v1256
  %1258 = vmatprep.subr.mxu0 0.0
  %v1259 = vand.u32 %v45, 4294901760
  %1260 = vmatpush1.msra.mxu0 %v1259
  %1261 = vmatprep.subr.mxu0 0.0
  %1262 = vmatpush1.msra.mxu0 0.0
  %1263 = vmatprep.subr.mxu0 0.0
  %1264 = vmatpush1.msra.mxu0 0.0
  %1265 = vmatprep.subr.mxu0 0.0
  %1266 = vmatpush1.msra.mxu0 0.0
  %1267 = vmatprep.subr.mxu0 0.0
  %1268 = vmatpush1.msra.mxu0 0.0
  %1269 = vmatprep.subr.mxu0 0.0
  %1270 = vmatpush1.msra.mxu0 0.0
  %1271 = vmatprep.subr.mxu0 0.0
  %1272 = vmatpush1.msra.mxu0 0.0
  %1273 = vmatprep.subr.mxu0 0.0
  %1274 = vmatpush1.msra.mxu0 0.0
  %1275 = vmatprep.subr.mxu0 0.0
  %1276 = vmatpush1.msra.mxu0 0.0
  %1277 = vmatprep.subr.mxu0 0.0
  %1278 = vmatpush1.msra.mxu0 0.0
  %1279 = vmatprep.subr.mxu0 0.0
  %1280 = vmatpush1.msra.mxu0 0.0
  %1281 = vmatprep.subr.mxu0 0.0
  %1282 = vmatpush1.msra.mxu0 0.0
  %1283 = vmatprep.subr.mxu0 0.0
  %1284 = vmatpush1.msra.mxu0 0.0
  %1285 = vmatprep.subr.mxu0 0.0
  %1286 = vmatpush1.msra.mxu0 0.0
  %1287 = vmatprep.subr.mxu0 0.0
  %1288 = vmatpush1.msra.mxu0 0.0
  %1289 = vmatprep.subr.mxu0 0.0
  %1290 = vmatpush1.msra.mxu0 0.0
  %1291 = vmatprep.subr.mxu0 0.0
  %1292 = vmatpush1.msra.mxu0 0.0
  %1293 = vmatprep.subr.mxu0 0.0
  %1294 = vmatpush1.msra.mxu0 0.0
  %1295 = vmatprep.subr.mxu0 0.0
  %1296 = vmatpush1.msra.mxu0 0.0
  %1297 = vmatprep.subr.mxu0 0.0
  %1298 = vmatpush1.msra.mxu0 0.0
  %1299 = vmatprep.subr.mxu0 0.0
  %1300 = vmatpush1.msra.mxu0 0.0
  %1301 = vmatprep.subr.mxu0 0.0
  %1302 = vmatpush1.msra.mxu0 0.0
  %1303 = vmatprep.subr.mxu0 0.0
  %1304 = vmatpush1.msra.mxu0 0.0
  %1305 = vmatprep.subr.mxu0 0.0
  %1306 = vmatpush1.msra.mxu0 0.0
  %1307 = vmatprep.subr.mxu0 0.0
  %1308 = vmatpush1.msra.mxu0 0.0
  %1309 = vmatprep.subr.mxu0 0.0
  %1310 = vmatpush1.msra.mxu0 0.0
  %1311 = vmatprep.subr.mxu0 0.0
  %1312 = vmatpush1.msra.mxu0 0.0
  %1313 = vmatprep.subr.mxu0 0.0
  %1314 = vmatpush1.msra.mxu0 0.0
  %1315 = vmatprep.subr.mxu0 0.0
  %1316 = vmatpush1.msra.mxu0 0.0
  %1317 = vmatprep.mubr.f32.mxu0 0.0
  %v1318 = vand.u32 %v837, 4294901760
  %1319 = vmatmul.mubr.f32.gmra.mrb[0].mxu0 %v1318
  %v1320 = vpop.f32.mrb[0].mxu0
  %v1321 = vadd.f32 %v1246, %v1320
  %v1322 = vpop.f32.mrb[0].mxu0
  %1323 = vdwg.mxu0
  %v1324 = vadd.f32 %v788, %v1321
  %v1325 = vxor.u32 %v1324, 2147483648
  %v1326 = vmul.f32 %v1325, 1.442695
  %v1327 = vpow.pop %v1326
  %v1328 = vadd.f32 %v1327, 1.0
  %v1329 = vrcp.pop %v1328
  %v1330 = vmul.f32 1.0, %v1329
  %v1331 = vtanh.pop %v1324
  %1333 = vrot.lane.b32.xlu0 %v834, 32
  %v1334 = vpop.permute.xlu0 %1333
  %v1336 = vmul.f32 %v1330, %v1334
  %1338 = vrot.lane.b32.xlu0 %v1331, 64
  %v1339 = vpop.permute.xlu0 %1338
  %v1341 = vmul.f32 %v1330, %v1339
  %1343 = vrot.lane.b32.xlu0 %v1341, 32
  %v1344 = vpop.permute.xlu0 %1343
  %v1346 = vadd.f32 %v1336, %v1344
  %v1347 = vtanh.pop %v1346
  %1349 = vrot.lane.b32.xlu0 %v1347, 64
  %v1350 = vpop.permute.xlu0 %1349
  %v1352 = vmul.f32 %v1330, %v1350
  %1354 = vrot.lane.b32.xlu0 %v1352, 32
  %v1355 = vpop.permute.xlu0 %1354
  %1357 = vst.msk [vmem:[#allocation2] sm:$0xff] %vm835, %v1355
  %v1358 = vsel %vm835, %v1355, 0
  %1360 = vmatprep.subr.mxu0 0.0
  %v1361 = vand.u32 %v42, 4294901760
  %1362 = vmatpush1.msra.mxu0 %v1361
  %1363 = vmatprep.subr.mxu0 0.0
  %v1364 = vand.u32 %v43, 4294901760
  %1365 = vmatpush1.msra.mxu0 %v1364
  %1366 = vmatprep.subr.mxu0 0.0
  %v1367 = vand.u32 %v44, 4294901760
  %1368 = vmatpush1.msra.mxu0 %v1367
  %1369 = vmatprep.subr.mxu0 0.0
  %v1370 = vand.u32 %v45, 4294901760
  %1371 = vmatpush1.msra.mxu0 %v1370
  %1372 = vmatprep.subr.mxu0 0.0
  %1373 = vmatpush1.msra.mxu0 0.0
  %1374 = vmatprep.subr.mxu0 0.0
  %1375 = vmatpush1.msra.mxu0 0.0
  %1376 = vmatprep.subr.mxu0 0.0
  %1377 = vmatpush1.msra.mxu0 0.0
  %1378 = vmatprep.subr.mxu0 0.0
  %1379 = vmatpush1.msra.mxu0 0.0
  %1380 = vmatprep.subr.mxu0 0.0
  %1381 = vmatpush1.msra.mxu0 0.0
  %1382 = vmatprep.subr.mxu0 0.0
  %1383 = vmatpush1.msra.mxu0 0.0
  %1384 = vmatprep.subr.mxu0 0.0
  %1385 = vmatpush1.msra.mxu0 0.0
  %1386 = vmatprep.subr.mxu0 0.0
  %1387 = vmatpush1.msra.mxu0 0.0
  %1388 = vmatprep.subr.mxu0 0.0
  %1389 = vmatpush1.msra.mxu0 0.0
  %1390 = vmatprep.subr.mxu0 0.0
  %1391 = vmatpush1.msra.mxu0 0.0
  %1392 = vmatprep.subr.mxu0 0.0
  %1393 = vmatpush1.msra.mxu0 0.0
  %1394 = vmatprep.subr.mxu0 0.0
  %1395 = vmatpush1.msra.mxu0 0.0
  %1396 = vmatprep.subr.mxu0 0.0
  %1397 = vmatpush1.msra.mxu0 0.0
  %1398 = vmatprep.subr.mxu0 0.0
  %1399 = vmatpush1.msra.mxu0 0.0
  %1400 = vmatprep.subr.mxu0 0.0
  %1401 = vmatpush1.msra.mxu0 0.0
  %1402 = vmatprep.subr.mxu0 0.0
  %1403 = vmatpush1.msra.mxu0 0.0
  %1404 = vmatprep.subr.mxu0 0.0
  %1405 = vmatpush1.msra.mxu0 0.0
  %1406 = vmatprep.subr.mxu0 0.0
  %1407 = vmatpush1.msra.mxu0 0.0
  %1408 = vmatprep.subr.mxu0 0.0
  %1409 = vmatpush1.msra.mxu0 0.0
  %1410 = vmatprep.subr.mxu0 0.0
  %1411 = vmatpush1.msra.mxu0 0.0
  %1412 = vmatprep.subr.mxu0 0.0
  %1413 = vmatpush1.msra.mxu0 0.0
  %1414 = vmatprep.subr.mxu0 0.0
  %1415 = vmatpush1.msra.mxu0 0.0
  %1416 = vmatprep.subr.mxu0 0.0
  %1417 = vmatpush1.msra.mxu0 0.0
  %1418 = vmatprep.subr.mxu0 0.0
  %1419 = vmatpush1.msra.mxu0 0.0
  %1420 = vmatprep.subr.mxu0 0.0
  %1421 = vmatpush1.msra.mxu0 0.0
  %1422 = vmatprep.subr.mxu0 0.0
  %1423 = vmatpush1.msra.mxu0 0.0
  %1424 = vmatprep.subr.mxu0 0.0
  %1425 = vmatpush1.msra.mxu0 0.0
  %1426 = vmatprep.subr.mxu0 0.0
  %1427 = vmatpush1.msra.mxu0 0.0
  %1428 = vmatprep.mubr.f32.mxu0 0.0
  %v1429 = vand.u32 %v1358, 4294901760
  %v1430 = vsub.f32 %v1358, %v1429
  %v1431 = vand.u32 %v1430, 4294901760
  %v1432 = vsub.f32 %v1430, %v1431
  %v1433 = vand.u32 %v1432, 4294901760
  %1434 = vmatmul.mubr.f32.gmra.mrb[0].mxu0 %v1433
  %v1435 = vpop.f32.mrb[0].mxu0
  %v1436 = vadd.f32 0.0, %v1435
  %v1437 = vpop.f32.mrb[0].mxu0
  %1438 = vdwg.mxu0
  %1439 = vmatprep.subr.mxu0 0.0
  %v1440 = vand.u32 %v42, 4294901760
  %v1441 = vsub.f32 %v42, %v1440
  %v1442 = vand.u32 %v1441, 4294901760
  %v1443 = vsub.f32 %v1441, %v1442
  %v1444 = vand.u32 %v1443, 4294901760
  %1445 = vmatpush1.msra.mxu0 %v1444
  %1446 = vmatprep.subr.mxu0 0.0
  %v1447 = vand.u32 %v43, 4294901760
  %v1448 = vsub.f32 %v43, %v1447
  %v1449 = vand.u32 %v1448, 4294901760
  %v1450 = vsub.f32 %v1448, %v1449
  %v1451 = vand.u32 %v1450, 4294901760
  %1452 = vmatpush1.msra.mxu0 %v1451
  %1453 = vmatprep.subr.mxu0 0.0
  %v1454 = vand.u32 %v44, 4294901760
  %v1455 = vsub.f32 %v44, %v1454
  %v1456 = vand.u32 %v1455, 4294901760
  %v1457 = vsub.f32 %v1455, %v1456
  %v1458 = vand.u32 %v1457, 4294901760
  %1459 = vmatpush1.msra.mxu0 %v1458
  %1460 = vmatprep.subr.mxu0 0.0
  %v1461 = vand.u32 %v45, 4294901760
  %v1462 = vsub.f32 %v45, %v1461
  %v1463 = vand.u32 %v1462, 4294901760
  %v1464 = vsub.f32 %v1462, %v1463
  %v1465 = vand.u32 %v1464, 4294901760
  %1466 = vmatpush1.msra.mxu0 %v1465
  %1467 = vmatprep.subr.mxu0 0.0
  %1468 = vmatpush1.msra.mxu0 0.0
  %1469 = vmatprep.subr.mxu0 0.0
  %1470 = vmatpush1.msra.mxu0 0.0
  %1471 = vmatprep.subr.mxu0 0.0
  %1472 = vmatpush1.msra.mxu0 0.0
  %1473 = vmatprep.subr.mxu0 0.0
  %1474 = vmatpush1.msra.mxu0 0.0
  %1475 = vmatprep.subr.mxu0 0.0
  %1476 = vmatpush1.msra.mxu0 0.0
  %1477 = vmatprep.subr.mxu0 0.0
  %1478 = vmatpush1.msra.mxu0 0.0
  %1479 = vmatprep.subr.mxu0 0.0
  %1480 = vmatpush1.msra.mxu0 0.0
  %1481 = vmatprep.subr.mxu0 0.0
  %1482 = vmatpush1.msra.mxu0 0.0
  %1483 = vmatprep.subr.mxu0 0.0
  %1484 = vmatpush1.msra.mxu0 0.0
  %1485 = vmatprep.subr.mxu0 0.0
  %1486 = vmatpush1.msra.mxu0 0.0
  %1487 = vmatprep.subr.mxu0 0.0
  %1488 = vmatpush1.msra.mxu0 0.0
  %1489 = vmatprep.subr.mxu0 0.0
  %1490 = vmatpush1.msra.mxu0 0.0
  %1491 = vmatprep.subr.mxu0 0.0
  %1492 = vmatpush1.msra.mxu0 0.0
  %1493 = vmatprep.subr.mxu0 0.0
  %1494 = vmatpush1.msra.mxu0 0.0
  %1495 = vmatprep.subr.mxu0 0.0
  %1496 = vmatpush1.msra.mxu0 0.0
  %1497 = vmatprep.subr.mxu0 0.0
  %1498 = vmatpush1.msra.mxu0 0.0
  %1499 = vmatprep.subr.mxu0 0.0
  %1500 = vmatpush1.msra.mxu0 0.0
  %1501 = vmatprep.subr.mxu0 0.0
  %1502 = vmatpush1.msra.mxu0 0.0
  %1503 = vmatprep.subr.mxu0 0.0
  %1504 = vmatpush1.msra.mxu0 0.0
  %1505 = vmatprep.subr.mxu0 0.0
  %1506 = vmatpush1.msra.mxu0 0.0
  %1507 = vmatprep.subr.mxu0 0.0
  %1508 = vmatpush1.msra.mxu0 0.0
  %1509 = vmatprep.subr.mxu0 0.0
  %1510 = vmatpush1.msra.mxu0 0.0
  %1511 = vmatprep.subr.mxu0 0.0
  %1512 = vmatpush1.msra.mxu0 0.0
  %1513 = vmatprep.subr.mxu0 0.0
  %1514 = vmatpush1.msra.mxu0 0.0
  %1515 = vmatprep.subr.mxu0 0.0
  %1516 = vmatpush1.msra.mxu0 0.0
  %1517 = vmatprep.subr.mxu0 0.0
  %1518 = vmatpush1.msra.mxu0 0.0
  %1519 = vmatprep.subr.mxu0 0.0
  %1520 = vmatpush1.msra.mxu0 0.0
  %1521 = vmatprep.subr.mxu0 0.0
  %1522 = vmatpush1.msra.mxu0 0.0
  %1523 = vmatprep.mubr.f32.mxu0 0.0
  %v1524 = vand.u32 %v1358, 4294901760
  %1525 = vmatmul.mubr.f32.gmra.mrb[0].mxu0 %v1524
  %v1526 = vpop.f32.mrb[0].mxu0
  %v1527 = vadd.f32 %v1436, %v1526
  %v1528 = vpop.f32.mrb[0].mxu0
  %1529 = vdwg.mxu0
  %1530 = vmatprep.subr.mxu0 0.0
  %v1531 = vand.u32 %v42, 4294901760
  %v1532 = vsub.f32 %v42, %v1531
  %1533 = vmatpush1.msra.mxu0 %v1532
  %1534 = vmatprep.subr.mxu0 0.0
  %v1535 = vand.u32 %v43, 4294901760
  %v1536 = vsub.f32 %v43, %v1535
  %1537 = vmatpush1.msra.mxu0 %v1536
  %1538 = vmatprep.subr.mxu0 0.0
  %v1539 = vand.u32 %v44, 4294901760
  %v1540 = vsub.f32 %v44, %v1539
  %1541 = vmatpush1.msra.mxu0 %v1540
  %1542 = vmatprep.subr.mxu0 0.0
  %v1543 = vand.u32 %v45, 4294901760
  %v1544 = vsub.f32 %v45, %v1543
  %1545 = vmatpush1.msra.mxu0 %v1544
  %1546 = vmatprep.subr.mxu0 0.0
  %1547 = vmatpush1.msra.mxu0 0.0
  %1548 = vmatprep.subr.mxu0 0.0
  %1549 = vmatpush1.msra.mxu0 0.0
  %1550 = vmatprep.subr.mxu0 0.0
  %1551 = vmatpush1.msra.mxu0 0.0
  %1552 = vmatprep.subr.mxu0 0.0
  %1553 = vmatpush1.msra.mxu0 0.0
  %1554 = vmatprep.subr.mxu0 0.0
  %1555 = vmatpush1.msra.mxu0 0.0
  %1556 = vmatprep.subr.mxu0 0.0
  %1557 = vmatpush1.msra.mxu0 0.0
  %1558 = vmatprep.subr.mxu0 0.0
  %1559 = vmatpush1.msra.mxu0 0.0
  %1560 = vmatprep.subr.mxu0 0.0
  %1561 = vmatpush1.msra.mxu0 0.0
  %1562 = vmatprep.subr.mxu0 0.0
  %1563 = vmatpush1.msra.mxu0 0.0
  %1564 = vmatprep.subr.mxu0 0.0
  %1565 = vmatpush1.msra.mxu0 0.0
  %1566 = vmatprep.subr.mxu0 0.0
  %1567 = vmatpush1.msra.mxu0 0.0
  %1568 = vmatprep.subr.mxu0 0.0
  %1569 = vmatpush1.msra.mxu0 0.0
  %1570 = vmatprep.subr.mxu0 0.0
  %1571 = vmatpush1.msra.mxu0 0.0
  %1572 = vmatprep.subr.mxu0 0.0
  %1573 = vmatpush1.msra.mxu0 0.0
  %1574 = vmatprep.subr.mxu0 0.0
  %1575 = vmatpush1.msra.mxu0 0.0
  %1576 = vmatprep.subr.mxu0 0.0
  %1577 = vmatpush1.msra.mxu0 0.0
  %1578 = vmatprep.subr.mxu0 0.0
  %1579 = vmatpush1.msra.mxu0 0.0
  %1580 = vmatprep.subr.mxu0 0.0
  %1581 = vmatpush1.msra.mxu0 0.0
  %1582 = vmatprep.subr.mxu0 0.0
  %1583 = vmatpush1.msra.mxu0 0.0
  %1584 = vmatprep.subr.mxu0 0.0
  %1585 = vmatpush1.msra.mxu0 0.0
  %1586 = vmatprep.subr.mxu0 0.0
  %1587 = vmatpush1.msra.mxu0 0.0
  %1588 = vmatprep.subr.mxu0 0.0
  %1589 = vmatpush1.msra.mxu0 0.0
  %1590 = vmatprep.subr.mxu0 0.0
  %1591 = vmatpush1.msra.mxu0 0.0
  %1592 = vmatprep.subr.mxu0 0.0
  %1593 = vmatpush1.msra.mxu0 0.0
  %1594 = vmatprep.subr.mxu0 0.0
  %1595 = vmatpush1.msra.mxu0 0.0
  %1596 = vmatprep.subr.mxu0 0.0
  %1597 = vmatpush1.msra.mxu0 0.0
  %1598 = vmatprep.subr.mxu0 0.0
  %1599 = vmatpush1.msra.mxu0 0.0
  %1600 = vmatprep.subr.mxu0 0.0
  %1601 = vmatpush1.msra.mxu0 0.0
  %1602 = vmatprep.mubr.f32.mxu0 0.0
  %v1603 = vand.u32 %v1358, 4294901760
  %v1604 = vsub.f32 %v1358, %v1603
  %1605 = vmatmul.mubr.f32.gmra.mrb[0].mxu0 %v1604
  %v1606 = vpop.f32.mrb[0].mxu0
  %v1607 = vadd.f32 %v1527, %v1606
  %v1608 = vpop.f32.mrb[0].mxu0
  %1609 = vdwg.mxu0
  %1610 = vmatprep.subr.mxu0 0.0
  %v1611 = vand.u32 %v42, 4294901760
  %1612 = vmatpush1.msra.mxu0 %v1611
  %1613 = vmatprep.subr.mxu0 0.0
  %v1614 = vand.u32 %v43, 4294901760
  %1615 = vmatpush1.msra.mxu0 %v1614
  %1616 = vmatprep.subr.mxu0 0.0
  %v1617 = vand.u32 %v44, 4294901760
  %1618 = vmatpush1.msra.mxu0 %v1617
  %1619 = vmatprep.subr.mxu0 0.0
  %v1620 = vand.u32 %v45, 4294901760
  %1621 = vmatpush1.msra.mxu0 %v1620
  %1622 = vmatprep.subr.mxu0 0.0
  %1623 = vmatpush1.msra.mxu0 0.0
  %1624 = vmatprep.subr.mxu0 0.0
  %1625 = vmatpush1.msra.mxu0 0.0
  %1626 = vmatprep.subr.mxu0 0.0
  %1627 = vmatpush1.msra.mxu0 0.0
  %1628 = vmatprep.subr.mxu0 0.0
  %1629 = vmatpush1.msra.mxu0 0.0
  %1630 = vmatprep.subr.mxu0 0.0
  %1631 = vmatpush1.msra.mxu0 0.0
  %1632 = vmatprep.subr.mxu0 0.0
  %1633 = vmatpush1.msra.mxu0 0.0
  %1634 = vmatprep.subr.mxu0 0.0
  %1635 = vmatpush1.msra.mxu0 0.0
  %1636 = vmatprep.subr.mxu0 0.0
  %1637 = vmatpush1.msra.mxu0 0.0
  %1638 = vmatprep.subr.mxu0 0.0
  %1639 = vmatpush1.msra.mxu0 0.0
  %1640 = vmatprep.subr.mxu0 0.0
  %1641 = vmatpush1.msra.mxu0 0.0
  %1642 = vmatprep.subr.mxu0 0.0
  %1643 = vmatpush1.msra.mxu0 0.0
  %1644 = vmatprep.subr.mxu0 0.0
  %1645 = vmatpush1.msra.mxu0 0.0
  %1646 = vmatprep.subr.mxu0 0.0
  %1647 = vmatpush1.msra.mxu0 0.0
  %1648 = vmatprep.subr.mxu0 0.0
  %1649 = vmatpush1.msra.mxu0 0.0
  %1650 = vmatprep.subr.mxu0 0.0
  %1651 = vmatpush1.msra.mxu0 0.0
  %1652 = vmatprep.subr.mxu0 0.0
  %1653 = vmatpush1.msra.mxu0 0.0
  %1654 = vmatprep.subr.mxu0 0.0
  %1655 = vmatpush1.msra.mxu0 0.0
  %1656 = vmatprep.subr.mxu0 0.0
  %1657 = vmatpush1.msra.mxu0 0.0
  %1658 = vmatprep.subr.mxu0 0.0
  %1659 = vmatpush1.msra.mxu0 0.0
  %1660 = vmatprep.subr.mxu0 0.0
  %1661 = vmatpush1.msra.mxu0 0.0
  %1662 = vmatprep.subr.mxu0 0.0
  %1663 = vmatpush1.msra.mxu0 0.0
  %1664 = vmatprep.subr.mxu0 0.0
  %1665 = vmatpush1.msra.mxu0 0.0
  %1666 = vmatprep.subr.mxu0 0.0
  %1667 = vmatpush1.msra.mxu0 0.0
  %1668 = vmatprep.subr.mxu0 0.0
  %1669 = vmatpush1.msra.mxu0 0.0
  %1670 = vmatprep.subr.mxu0 0.0
  %1671 = vmatpush1.msra.mxu0 0.0
  %1672 = vmatprep.subr.mxu0 0.0
  %1673 = vmatpush1.msra.mxu0 0.0
  %1674 = vmatprep.subr.mxu0 0.0
  %1675 = vmatpush1.msra.mxu0 0.0
  %1676 = vmatprep.subr.mxu0 0.0
  %1677 = vmatpush1.msra.mxu0 0.0
  %1678 = vmatprep.mubr.f32.mxu0 0.0
  %v1679 = vand.u32 %v1358, 4294901760
  %v1680 = vsub.f32 %v1358, %v1679
  %v1681 = vand.u32 %v1680, 4294901760
  %1682 = vmatmul.mubr.f32.gmra.mrb[0].mxu0 %v1681
  %v1683 = vpop.f32.mrb[0].mxu0
  %v1684 = vadd.f32 %v1607, %v1683
  %v1685 = vpop.f32.mrb[0].mxu0
  %1686 = vdwg.mxu0
  %1687 = vmatprep.subr.mxu0 0.0
  %v1688 = vand.u32 %v42, 4294901760
  %v1689 = vsub.f32 %v42, %v1688
  %v1690 = vand.u32 %v1689, 4294901760
  %1691 = vmatpush1.msra.mxu0 %v1690
  %1692 = vmatprep.subr.mxu0 0.0
  %v1693 = vand.u32 %v43, 4294901760
  %v1694 = vsub.f32 %v43, %v1693
  %v1695 = vand.u32 %v1694, 4294901760
  %1696 = vmatpush1.msra.mxu0 %v1695
  %1697 = vmatprep.subr.mxu0 0.0
  %v1698 = vand.u32 %v44, 4294901760
  %v1699 = vsub.f32 %v44, %v1698
  %v1700 = vand.u32 %v1699, 4294901760
  %1701 = vmatpush1.msra.mxu0 %v1700
  %1702 = vmatprep.subr.mxu0 0.0
  %v1703 = vand.u32 %v45, 4294901760
  %v1704 = vsub.f32 %v45, %v1703
  %v1705 = vand.u32 %v1704, 4294901760
  %1706 = vmatpush1.msra.mxu0 %v1705
  %1707 = vmatprep.subr.mxu0 0.0
  %1708 = vmatpush1.msra.mxu0 0.0
  %1709 = vmatprep.subr.mxu0 0.0
  %1710 = vmatpush1.msra.mxu0 0.0
  %1711 = vmatprep.subr.mxu0 0.0
  %1712 = vmatpush1.msra.mxu0 0.0
  %1713 = vmatprep.subr.mxu0 0.0
  %1714 = vmatpush1.msra.mxu0 0.0
  %1715 = vmatprep.subr.mxu0 0.0
  %1716 = vmatpush1.msra.mxu0 0.0
  %1717 = vmatprep.subr.mxu0 0.0
  %1718 = vmatpush1.msra.mxu0 0.0
  %1719 = vmatprep.subr.mxu0 0.0
  %1720 = vmatpush1.msra.mxu0 0.0
  %1721 = vmatprep.subr.mxu0 0.0
  %1722 = vmatpush1.msra.mxu0 0.0
  %1723 = vmatprep.subr.mxu0 0.0
  %1724 = vmatpush1.msra.mxu0 0.0
  %1725 = vmatprep.subr.mxu0 0.0
  %1726 = vmatpush1.msra.mxu0 0.0
  %1727 = vmatprep.subr.mxu0 0.0
  %1728 = vmatpush1.msra.mxu0 0.0
  %1729 = vmatprep.subr.mxu0 0.0
  %1730 = vmatpush1.msra.mxu0 0.0
  %1731 = vmatprep.subr.mxu0 0.0
  %1732 = vmatpush1.msra.mxu0 0.0
  %1733 = vmatprep.subr.mxu0 0.0
  %1734 = vmatpush1.msra.mxu0 0.0
  %1735 = vmatprep.subr.mxu0 0.0
  %1736 = vmatpush1.msra.mxu0 0.0
  %1737 = vmatprep.subr.mxu0 0.0
  %1738 = vmatpush1.msra.mxu0 0.0
  %1739 = vmatprep.subr.mxu0 0.0
  %1740 = vmatpush1.msra.mxu0 0.0
  %1741 = vmatprep.subr.mxu0 0.0
  %1742 = vmatpush1.msra.mxu0 0.0
  %1743 = vmatprep.subr.mxu0 0.0
  %1744 = vmatpush1.msra.mxu0 0.0
  %1745 = vmatprep.subr.mxu0 0.0
  %1746 = vmatpush1.msra.mxu0 0.0
  %1747 = vmatprep.subr.mxu0 0.0
  %1748 = vmatpush1.msra.mxu0 0.0
  %1749 = vmatprep.subr.mxu0 0.0
  %1750 = vmatpush1.msra.mxu0 0.0
  %1751 = vmatprep.subr.mxu0 0.0
  %1752 = vmatpush1.msra.mxu0 0.0
  %1753 = vmatprep.subr.mxu0 0.0
  %1754 = vmatpush1.msra.mxu0 0.0
  %1755 = vmatprep.subr.mxu0 0.0
  %1756 = vmatpush1.msra.mxu0 0.0
  %1757 = vmatprep.subr.mxu0 0.0
  %1758 = vmatpush1.msra.mxu0 0.0
  %1759 = vmatprep.subr.mxu0 0.0
  %1760 = vmatpush1.msra.mxu0 0.0
  %1761 = vmatprep.subr.mxu0 0.0
  %1762 = vmatpush1.msra.mxu0 0.0
  %1763 = vmatprep.mubr.f32.mxu0 0.0
  %v1764 = vand.u32 %v1358, 4294901760
  %1765 = vmatmul.mubr.f32.gmra.mrb[0].mxu0 %v1764
  %v1766 = vpop.f32.mrb[0].mxu0
  %v1767 = vadd.f32 %v1684, %v1766
  %v1768 = vpop.f32.mrb[0].mxu0
  %1769 = vdwg.mxu0
  %1770 = vmatprep.subr.mxu0 0.0
  %v1771 = vand.u32 %v42, 4294901760
  %1772 = vmatpush1.msra.mxu0 %v1771
  %1773 = vmatprep.subr.mxu0 0.0
  %v1774 = vand.u32 %v43, 4294901760
  %1775 = vmatpush1.msra.mxu0 %v1774
  %1776 = vmatprep.subr.mxu0 0.0
  %v1777 = vand.u32 %v44, 4294901760
  %1778 = vmatpush1.msra.mxu0 %v1777
  %1779 = vmatprep.subr.mxu0 0.0
  %v1780 = vand.u32 %v45, 4294901760
  %1781 = vmatpush1.msra.mxu0 %v1780
  %1782 = vmatprep.subr.mxu0 0.0
  %1783 = vmatpush1.msra.mxu0 0.0
  %1784 = vmatprep.subr.mxu0 0.0
  %1785 = vmatpush1.msra.mxu0 0.0
  %1786 = vmatprep.subr.mxu0 0.0
  %1787 = vmatpush1.msra.mxu0 0.0
  %1788 = vmatprep.subr.mxu0 0.0
  %1789 = vmatpush1.msra.mxu0 0.0
  %1790 = vmatprep.subr.mxu0 0.0
  %1791 = vmatpush1.msra.mxu0 0.0
  %1792 = vmatprep.subr.mxu0 0.0
  %1793 = vmatpush1.msra.mxu0 0.0
  %1794 = vmatprep.subr.mxu0 0.0
  %1795 = vmatpush1.msra.mxu0 0.0
  %1796 = vmatprep.subr.mxu0 0.0
  %1797 = vmatpush1.msra.mxu0 0.0
  %1798 = vmatprep.subr.mxu0 0.0
  %1799 = vmatpush1.msra.mxu0 0.0
  %1800 = vmatprep.subr.mxu0 0.0
  %1801 = vmatpush1.msra.mxu0 0.0
  %1802 = vmatprep.subr.mxu0 0.0
  %1803 = vmatpush1.msra.mxu0 0.0
  %1804 = vmatprep.subr.mxu0 0.0
  %1805 = vmatpush1.msra.mxu0 0.0
  %1806 = vmatprep.subr.mxu0 0.0
  %1807 = vmatpush1.msra.mxu0 0.0
  %1808 = vmatprep.subr.mxu0 0.0
  %1809 = vmatpush1.msra.mxu0 0.0
  %1810 = vmatprep.subr.mxu0 0.0
  %1811 = vmatpush1.msra.mxu0 0.0
  %1812 = vmatprep.subr.mxu0 0.0
  %1813 = vmatpush1.msra.mxu0 0.0
  %1814 = vmatprep.subr.mxu0 0.0
  %1815 = vmatpush1.msra.mxu0 0.0
  %1816 = vmatprep.subr.mxu0 0.0
  %1817 = vmatpush1.msra.mxu0 0.0
  %1818 = vmatprep.subr.mxu0 0.0
  %1819 = vmatpush1.msra.mxu0 0.0
  %1820 = vmatprep.subr.mxu0 0.0
  %1821 = vmatpush1.msra.mxu0 0.0
  %1822 = vmatprep.subr.mxu0 0.0
  %1823 = vmatpush1.msra.mxu0 0.0
  %1824 = vmatprep.subr.mxu0 0.0
  %1825 = vmatpush1.msra.mxu0 0.0
  %1826 = vmatprep.subr.mxu0 0.0
  %1827 = vmatpush1.msra.mxu0 0.0
  %1828 = vmatprep.subr.mxu0 0.0
  %1829 = vmatpush1.msra.mxu0 0.0
  %1830 = vmatprep.subr.mxu0 0.0
  %1831 = vmatpush1.msra.mxu0 0.0
  %1832 = vmatprep.subr.mxu0 0.0
  %1833 = vmatpush1.msra.mxu0 0.0
  %1834 = vmatprep.subr.mxu0 0.0
  %1835 = vmatpush1.msra.mxu0 0.0
  %1836 = vmatprep.subr.mxu0 0.0
  %1837 = vmatpush1.msra.mxu0 0.0
  %1838 = vmatprep.mubr.f32.mxu0 0.0
  %v1839 = vand.u32 %v1358, 4294901760
  %1840 = vmatmul.mubr.f32.gmra.mrb[0].mxu0 %v1839
  %v1841 = vpop.f32.mrb[0].mxu0
  %v1842 = vadd.f32 %v1767, %v1841
  %v1843 = vpop.f32.mrb[0].mxu0
  %1844 = vdwg.mxu0
  %v1845 = vadd.f32 %v794, %v1842
  %v1846 = vxor.u32 %v1845, 2147483648
  %v1847 = vmul.f32 %v1846, 1.442695
  %v1848 = vpow.pop %v1847
  %v1849 = vadd.f32 %v1848, 1.0
  %v1850 = vrcp.pop %v1849
  %v1851 = vmul.f32 1.0, %v1850
  %v1852 = vtanh.pop %v1845
  %v1853 = vmul.f32 %v1851, %v1346
  %1855 = vrot.lane.b32.xlu0 %v1852, 64
  %v1856 = vpop.permute.xlu0 %1855
  %v1858 = vmul.f32 %v1851, %v1856
  %1860 = vrot.lane.b32.xlu0 %v1858, 32
  %v1861 = vpop.permute.xlu0 %1860
  %v1863 = vadd.f32 %v1853, %v1861
  %v1864 = vtanh.pop %v1863
  %1866 = vrot.lane.b32.xlu0 %v1864, 64
  %v1867 = vpop.permute.xlu0 %1866
  %v1869 = vmul.f32 %v1851, %v1867
  %1871 = vrot.lane.b32.xlu0 %v1869, 32
  %v1872 = vpop.permute.xlu0 %1871
  %1874 = vst.msk [vmem:[#allocation2 + $0x8] sm:$0xff] %vm835, %v1872
  %v1875 = vsel %vm835, %v1872, 0
  %1877 = vmatprep.subr.mxu0 0.0
  %v1878 = vand.u32 %v42, 4294901760
  %1879 = vmatpush1.msra.mxu0 %v1878
  %1880 = vmatprep.subr.mxu0 0.0
  %v1881 = vand.u32 %v43, 4294901760
  %1882 = vmatpush1.msra.mxu0 %v1881
  %1883 = vmatprep.subr.mxu0 0.0
  %v1884 = vand.u32 %v44, 4294901760
  %1885 = vmatpush1.msra.mxu0 %v1884
  %1886 = vmatprep.subr.mxu0 0.0
  %v1887 = vand.u32 %v45, 4294901760
  %1888 = vmatpush1.msra.mxu0 %v1887
  %1889 = vmatprep.subr.mxu0 0.0
  %1890 = vmatpush1.msra.mxu0 0.0
  %1891 = vmatprep.subr.mxu0 0.0
  %1892 = vmatpush1.msra.mxu0 0.0
  %1893 = vmatprep.subr.mxu0 0.0
  %1894 = vmatpush1.msra.mxu0 0.0
  %1895 = vmatprep.subr.mxu0 0.0
  %1896 = vmatpush1.msra.mxu0 0.0
  %1897 = vmatprep.subr.mxu0 0.0
  %1898 = vmatpush1.msra.mxu0 0.0
  %1899 = vmatprep.subr.mxu0 0.0
  %1900 = vmatpush1.msra.mxu0 0.0
  %1901 = vmatprep.subr.mxu0 0.0
  %1902 = vmatpush1.msra.mxu0 0.0
  %1903 = vmatprep.subr.mxu0 0.0
  %1904 = vmatpush1.msra.mxu0 0.0
  %1905 = vmatprep.subr.mxu0 0.0
  %1906 = vmatpush1.msra.mxu0 0.0
  %1907 = vmatprep.subr.mxu0 0.0
  %1908 = vmatpush1.msra.mxu0 0.0
  %1909 = vmatprep.subr.mxu0 0.0
  %1910 = vmatpush1.msra.mxu0 0.0
  %1911 = vmatprep.subr.mxu0 0.0
  %1912 = vmatpush1.msra.mxu0 0.0
  %1913 = vmatprep.subr.mxu0 0.0
  %1914 = vmatpush1.msra.mxu0 0.0
  %1915 = vmatprep.subr.mxu0 0.0
  %1916 = vmatpush1.msra.mxu0 0.0
  %1917 = vmatprep.subr.mxu0 0.0
  %1918 = vmatpush1.msra.mxu0 0.0
  %1919 = vmatprep.subr.mxu0 0.0
  %1920 = vmatpush1.msra.mxu0 0.0
  %1921 = vmatprep.subr.mxu0 0.0
  %1922 = vmatpush1.msra.mxu0 0.0
  %1923 = vmatprep.subr.mxu0 0.0
  %1924 = vmatpush1.msra.mxu0 0.0
  %1925 = vmatprep.subr.mxu0 0.0
  %1926 = vmatpush1.msra.mxu0 0.0
  %1927 = vmatprep.subr.mxu0 0.0
  %1928 = vmatpush1.msra.mxu0 0.0
  %1929 = vmatprep.subr.mxu0 0.0
  %1930 = vmatpush1.msra.mxu0 0.0
  %1931 = vmatprep.subr.mxu0 0.0
  %1932 = vmatpush1.msra.mxu0 0.0
  %1933 = vmatprep.subr.mxu0 0.0
  %1934 = vmatpush1.msra.mxu0 0.0
  %1935 = vmatprep.subr.mxu0 0.0
  %1936 = vmatpush1.msra.mxu0 0.0
  %1937 = vmatprep.subr.mxu0 0.0
  %1938 = vmatpush1.msra.mxu0 0.0
  %1939 = vmatprep.subr.mxu0 0.0
  %1940 = vmatpush1.msra.mxu0 0.0
  %1941 = vmatprep.subr.mxu0 0.0
  %1942 = vmatpush1.msra.mxu0 0.0
  %1943 = vmatprep.subr.mxu0 0.0
  %1944 = vmatpush1.msra.mxu0 0.0
  %1945 = vmatprep.mubr.f32.mxu0 0.0
  %v1946 = vand.u32 %v1875, 4294901760
  %v1947 = vsub.f32 %v1875, %v1946
  %v1948 = vand.u32 %v1947, 4294901760
  %v1949 = vsub.f32 %v1947, %v1948
  %v1950 = vand.u32 %v1949, 4294901760
  %1951 = vmatmul.mubr.f32.gmra.mrb[0].mxu0 %v1950
  %v1952 = vpop.f32.mrb[0].mxu0
  %v1953 = vadd.f32 0.0, %v1952
  %v1954 = vpop.f32.mrb[0].mxu0
  %1955 = vdwg.mxu0
  %1956 = vmatprep.subr.mxu0 0.0
  %v1957 = vand.u32 %v42, 4294901760
  %v1958 = vsub.f32 %v42, %v1957
  %v1959 = vand.u32 %v1958, 4294901760
  %v1960 = vsub.f32 %v1958, %v1959
  %v1961 = vand.u32 %v1960, 4294901760
  %1962 = vmatpush1.msra.mxu0 %v1961
  %1963 = vmatprep.subr.mxu0 0.0
  %v1964 = vand.u32 %v43, 4294901760
  %v1965 = vsub.f32 %v43, %v1964
  %v1966 = vand.u32 %v1965, 4294901760
  %v1967 = vsub.f32 %v1965, %v1966
  %v1968 = vand.u32 %v1967, 4294901760
  %1969 = vmatpush1.msra.mxu0 %v1968
  %1970 = vmatprep.subr.mxu0 0.0
  %v1971 = vand.u32 %v44, 4294901760
  %v1972 = vsub.f32 %v44, %v1971
  %v1973 = vand.u32 %v1972, 4294901760
  %v1974 = vsub.f32 %v1972, %v1973
  %v1975 = vand.u32 %v1974, 4294901760
  %1976 = vmatpush1.msra.mxu0 %v1975
  %1977 = vmatprep.subr.mxu0 0.0
  %v1978 = vand.u32 %v45, 4294901760
  %v1979 = vsub.f32 %v45, %v1978
  %v1980 = vand.u32 %v1979, 4294901760
  %v1981 = vsub.f32 %v1979, %v1980
  %v1982 = vand.u32 %v1981, 4294901760
  %1983 = vmatpush1.msra.mxu0 %v1982
  %1984 = vmatprep.subr.mxu0 0.0
  %1985 = vmatpush1.msra.mxu0 0.0
  %1986 = vmatprep.subr.mxu0 0.0
  %1987 = vmatpush1.msra.mxu0 0.0
  %1988 = vmatprep.subr.mxu0 0.0
  %1989 = vmatpush1.msra.mxu0 0.0
  %1990 = vmatprep.subr.mxu0 0.0
  %1991 = vmatpush1.msra.mxu0 0.0
  %1992 = vmatprep.subr.mxu0 0.0
  %1993 = vmatpush1.msra.mxu0 0.0
  %1994 = vmatprep.subr.mxu0 0.0
  %1995 = vmatpush1.msra.mxu0 0.0
  %1996 = vmatprep.subr.mxu0 0.0
  %1997 = vmatpush1.msra.mxu0 0.0
  %1998 = vmatprep.subr.mxu0 0.0
  %1999 = vmatpush1.msra.mxu0 0.0
  %2000 = vmatprep.subr.mxu0 0.0
  %2001 = vmatpush1.msra.mxu0 0.0
  %2002 = vmatprep.subr.mxu0 0.0
  %2003 = vmatpush1.msra.mxu0 0.0
  %2004 = vmatprep.subr.mxu0 0.0
  %2005 = vmatpush1.msra.mxu0 0.0
  %2006 = vmatprep.subr.mxu0 0.0
  %2007 = vmatpush1.msra.mxu0 0.0
  %2008 = vmatprep.subr.mxu0 0.0
  %2009 = vmatpush1.msra.mxu0 0.0
  %2010 = vmatprep.subr.mxu0 0.0
  %2011 = vmatpush1.msra.mxu0 0.0
  %2012 = vmatprep.subr.mxu0 0.0
  %2013 = vmatpush1.msra.mxu0 0.0
  %2014 = vmatprep.subr.mxu0 0.0
  %2015 = vmatpush1.msra.mxu0 0.0
  %2016 = vmatprep.subr.mxu0 0.0
  %2017 = vmatpush1.msra.mxu0 0.0
  %2018 = vmatprep.subr.mxu0 0.0
  %2019 = vmatpush1.msra.mxu0 0.0
  %2020 = vmatprep.subr.mxu0 0.0
  %2021 = vmatpush1.msra.mxu0 0.0
  %2022 = vmatprep.subr.mxu0 0.0
  %2023 = vmatpush1.msra.mxu0 0.0
  %2024 = vmatprep.subr.mxu0 0.0
  %2025 = vmatpush1.msra.mxu0 0.0
  %2026 = vmatprep.subr.mxu0 0.0
  %2027 = vmatpush1.msra.mxu0 0.0
  %2028 = vmatprep.subr.mxu0 0.0
  %2029 = vmatpush1.msra.mxu0 0.0
  %2030 = vmatprep.subr.mxu0 0.0
  %2031 = vmatpush1.msra.mxu0 0.0
  %2032 = vmatprep.subr.mxu0 0.0
  %2033 = vmatpush1.msra.mxu0 0.0
  %2034 = vmatprep.subr.mxu0 0.0
  %2035 = vmatpush1.msra.mxu0 0.0
  %2036 = vmatprep.subr.mxu0 0.0
  %2037 = vmatpush1.msra.mxu0 0.0
  %2038 = vmatprep.subr.mxu0 0.0
  %2039 = vmatpush1.msra.mxu0 0.0
  %2040 = vmatprep.mubr.f32.mxu0 0.0
  %v2041 = vand.u32 %v1875, 4294901760
  %2042 = vmatmul.mubr.f32.gmra.mrb[0].mxu0 %v2041
  %v2043 = vpop.f32.mrb[0].mxu0
  %v2044 = vadd.f32 %v1953, %v2043
  %v2045 = vpop.f32.mrb[0].mxu0
  %2046 = vdwg.mxu0
  %2047 = vmatprep.subr.mxu0 0.0
  %v2048 = vand.u32 %v42, 4294901760
  %v2049 = vsub.f32 %v42, %v2048
  %2050 = vmatpush1.msra.mxu0 %v2049
  %2051 = vmatprep.subr.mxu0 0.0
  %v2052 = vand.u32 %v43, 4294901760
  %v2053 = vsub.f32 %v43, %v2052
  %2054 = vmatpush1.msra.mxu0 %v2053
  %2055 = vmatprep.subr.mxu0 0.0
  %v2056 = vand.u32 %v44, 4294901760
  %v2057 = vsub.f32 %v44, %v2056
  %2058 = vmatpush1.msra.mxu0 %v2057
  %2059 = vmatprep.subr.mxu0 0.0
  %v2060 = vand.u32 %v45, 4294901760
  %v2061 = vsub.f32 %v45, %v2060
  %2062 = vmatpush1.msra.mxu0 %v2061
  %2063 = vmatprep.subr.mxu0 0.0
  %2064 = vmatpush1.msra.mxu0 0.0
  %2065 = vmatprep.subr.mxu0 0.0
  %2066 = vmatpush1.msra.mxu0 0.0
  %2067 = vmatprep.subr.mxu0 0.0
  %2068 = vmatpush1.msra.mxu0 0.0
  %2069 = vmatprep.subr.mxu0 0.0
  %2070 = vmatpush1.msra.mxu0 0.0
  %2071 = vmatprep.subr.mxu0 0.0
  %2072 = vmatpush1.msra.mxu0 0.0
  %2073 = vmatprep.subr.mxu0 0.0
  %2074 = vmatpush1.msra.mxu0 0.0
  %2075 = vmatprep.subr.mxu0 0.0
  %2076 = vmatpush1.msra.mxu0 0.0
  %2077 = vmatprep.subr.mxu0 0.0
  %2078 = vmatpush1.msra.mxu0 0.0
  %2079 = vmatprep.subr.mxu0 0.0
  %2080 = vmatpush1.msra.mxu0 0.0
  %2081 = vmatprep.subr.mxu0 0.0
  %2082 = vmatpush1.msra.mxu0 0.0
  %2083 = vmatprep.subr.mxu0 0.0
  %2084 = vmatpush1.msra.mxu0 0.0
  %2085 = vmatprep.subr.mxu0 0.0
  %2086 = vmatpush1.msra.mxu0 0.0
  %2087 = vmatprep.subr.mxu0 0.0
  %2088 = vmatpush1.msra.mxu0 0.0
  %2089 = vmatprep.subr.mxu0 0.0
  %2090 = vmatpush1.msra.mxu0 0.0
  %2091 = vmatprep.subr.mxu0 0.0
  %2092 = vmatpush1.msra.mxu0 0.0
  %2093 = vmatprep.subr.mxu0 0.0
  %2094 = vmatpush1.msra.mxu0 0.0
  %2095 = vmatprep.subr.mxu0 0.0
  %2096 = vmatpush1.msra.mxu0 0.0
  %2097 = vmatprep.subr.mxu0 0.0
  %2098 = vmatpush1.msra.mxu0 0.0
  %2099 = vmatprep.subr.mxu0 0.0
  %2100 = vmatpush1.msra.mxu0 0.0
  %2101 = vmatprep.subr.mxu0 0.0
  %2102 = vmatpush1.msra.mxu0 0.0
  %2103 = vmatprep.subr.mxu0 0.0
  %2104 = vmatpush1.msra.mxu0 0.0
  %2105 = vmatprep.subr.mxu0 0.0
  %2106 = vmatpush1.msra.mxu0 0.0
  %2107 = vmatprep.subr.mxu0 0.0
  %2108 = vmatpush1.msra.mxu0 0.0
  %2109 = vmatprep.subr.mxu0 0.0
  %2110 = vmatpush1.msra.mxu0 0.0
  %2111 = vmatprep.subr.mxu0 0.0
  %2112 = vmatpush1.msra.mxu0 0.0
  %2113 = vmatprep.subr.mxu0 0.0
  %2114 = vmatpush1.msra.mxu0 0.0
  %2115 = vmatprep.subr.mxu0 0.0
  %2116 = vmatpush1.msra.mxu0 0.0
  %2117 = vmatprep.subr.mxu0 0.0
  %2118 = vmatpush1.msra.mxu0 0.0
  %2119 = vmatprep.mubr.f32.mxu0 0.0
  %v2120 = vand.u32 %v1875, 4294901760
  %v2121 = vsub.f32 %v1875, %v2120
  %2122 = vmatmul.mubr.f32.gmra.mrb[0].mxu0 %v2121
  %v2123 = vpop.f32.mrb[0].mxu0
  %v2124 = vadd.f32 %v2044, %v2123
  %v2125 = vpop.f32.mrb[0].mxu0
  %2126 = vdwg.mxu0
  %2127 = vmatprep.subr.mxu0 0.0
  %v2128 = vand.u32 %v42, 4294901760
  %2129 = vmatpush1.msra.mxu0 %v2128
  %2130 = vmatprep.subr.mxu0 0.0
  %v2131 = vand.u32 %v43, 4294901760
  %2132 = vmatpush1.msra.mxu0 %v2131
  %2133 = vmatprep.subr.mxu0 0.0
  %v2134 = vand.u32 %v44, 4294901760
  %2135 = vmatpush1.msra.mxu0 %v2134
  %2136 = vmatprep.subr.mxu0 0.0
  %v2137 = vand.u32 %v45, 4294901760
  %2138 = vmatpush1.msra.mxu0 %v2137
  %2139 = vmatprep.subr.mxu0 0.0
  %2140 = vmatpush1.msra.mxu0 0.0
  %2141 = vmatprep.subr.mxu0 0.0
  %2142 = vmatpush1.msra.mxu0 0.0
  %2143 = vmatprep.subr.mxu0 0.0
  %2144 = vmatpush1.msra.mxu0 0.0
  %2145 = vmatprep.subr.mxu0 0.0
  %2146 = vmatpush1.msra.mxu0 0.0
  %2147 = vmatprep.subr.mxu0 0.0
  %2148 = vmatpush1.msra.mxu0 0.0
  %2149 = vmatprep.subr.mxu0 0.0
  %2150 = vmatpush1.msra.mxu0 0.0
  %2151 = vmatprep.subr.mxu0 0.0
  %2152 = vmatpush1.msra.mxu0 0.0
  %2153 = vmatprep.subr.mxu0 0.0
  %2154 = vmatpush1.msra.mxu0 0.0
  %2155 = vmatprep.subr.mxu0 0.0
  %2156 = vmatpush1.msra.mxu0 0.0
  %2157 = vmatprep.subr.mxu0 0.0
  %2158 = vmatpush1.msra.mxu0 0.0
  %2159 = vmatprep.subr.mxu0 0.0
  %2160 = vmatpush1.msra.mxu0 0.0
  %2161 = vmatprep.subr.mxu0 0.0
  %2162 = vmatpush1.msra.mxu0 0.0
  %2163 = vmatprep.subr.mxu0 0.0
  %2164 = vmatpush1.msra.mxu0 0.0
  %2165 = vmatprep.subr.mxu0 0.0
  %2166 = vmatpush1.msra.mxu0 0.0
  %2167 = vmatprep.subr.mxu0 0.0
  %2168 = vmatpush1.msra.mxu0 0.0
  %2169 = vmatprep.subr.mxu0 0.0
  %2170 = vmatpush1.msra.mxu0 0.0
  %2171 = vmatprep.subr.mxu0 0.0
  %2172 = vmatpush1.msra.mxu0 0.0
  %2173 = vmatprep.subr.mxu0 0.0
  %2174 = vmatpush1.msra.mxu0 0.0
  %2175 = vmatprep.subr.mxu0 0.0
  %2176 = vmatpush1.msra.mxu0 0.0
  %2177 = vmatprep.subr.mxu0 0.0
  %2178 = vmatpush1.msra.mxu0 0.0
  %2179 = vmatprep.subr.mxu0 0.0
  %2180 = vmatpush1.msra.mxu0 0.0
  %2181 = vmatprep.subr.mxu0 0.0
  %2182 = vmatpush1.msra.mxu0 0.0
  %2183 = vmatprep.subr.mxu0 0.0
  %2184 = vmatpush1.msra.mxu0 0.0
  %2185 = vmatprep.subr.mxu0 0.0
  %2186 = vmatpush1.msra.mxu0 0.0
  %2187 = vmatprep.subr.mxu0 0.0
  %2188 = vmatpush1.msra.mxu0 0.0
  %2189 = vmatprep.subr.mxu0 0.0
  %2190 = vmatpush1.msra.mxu0 0.0
  %2191 = vmatprep.subr.mxu0 0.0
  %2192 = vmatpush1.msra.mxu0 0.0
  %2193 = vmatprep.subr.mxu0 0.0
  %2194 = vmatpush1.msra.mxu0 0.0
  %2195 = vmatprep.mubr.f32.mxu0 0.0
  %v2196 = vand.u32 %v1875, 4294901760
  %v2197 = vsub.f32 %v1875, %v2196
  %v2198 = vand.u32 %v2197, 4294901760
  %2199 = vmatmul.mubr.f32.gmra.mrb[0].mxu0 %v2198
  %v2200 = vpop.f32.mrb[0].mxu0
  %v2201 = vadd.f32 %v2124, %v2200
  %v2202 = vpop.f32.mrb[0].mxu0
  %2203 = vdwg.mxu0
  %2204 = vmatprep.subr.mxu0 0.0
  %v2205 = vand.u32 %v42, 4294901760
  %v2206 = vsub.f32 %v42, %v2205
  %v2207 = vand.u32 %v2206, 4294901760
  %2208 = vmatpush1.msra.mxu0 %v2207
  %2209 = vmatprep.subr.mxu0 0.0
  %v2210 = vand.u32 %v43, 4294901760
  %v2211 = vsub.f32 %v43, %v2210
  %v2212 = vand.u32 %v2211, 4294901760
  %2213 = vmatpush1.msra.mxu0 %v2212
  %2214 = vmatprep.subr.mxu0 0.0
  %v2215 = vand.u32 %v44, 4294901760
  %v2216 = vsub.f32 %v44, %v2215
  %v2217 = vand.u32 %v2216, 4294901760
  %2218 = vmatpush1.msra.mxu0 %v2217
  %2219 = vmatprep.subr.mxu0 0.0
  %v2220 = vand.u32 %v45, 4294901760
  %v2221 = vsub.f32 %v45, %v2220
  %v2222 = vand.u32 %v2221, 4294901760
  %2223 = vmatpush1.msra.mxu0 %v2222
  %2224 = vmatprep.subr.mxu0 0.0
  %2225 = vmatpush1.msra.mxu0 0.0
  %2226 = vmatprep.subr.mxu0 0.0
  %2227 = vmatpush1.msra.mxu0 0.0
  %2228 = vmatprep.subr.mxu0 0.0
  %2229 = vmatpush1.msra.mxu0 0.0
  %2230 = vmatprep.subr.mxu0 0.0
  %2231 = vmatpush1.msra.mxu0 0.0
  %2232 = vmatprep.subr.mxu0 0.0
  %2233 = vmatpush1.msra.mxu0 0.0
  %2234 = vmatprep.subr.mxu0 0.0
  %2235 = vmatpush1.msra.mxu0 0.0
  %2236 = vmatprep.subr.mxu0 0.0
  %2237 = vmatpush1.msra.mxu0 0.0
  %2238 = vmatprep.subr.mxu0 0.0
  %2239 = vmatpush1.msra.mxu0 0.0
  %2240 = vmatprep.subr.mxu0 0.0
  %2241 = vmatpush1.msra.mxu0 0.0
  %2242 = vmatprep.subr.mxu0 0.0
  %2243 = vmatpush1.msra.mxu0 0.0
  %2244 = vmatprep.subr.mxu0 0.0
  %2245 = vmatpush1.msra.mxu0 0.0
  %2246 = vmatprep.subr.mxu0 0.0
  %2247 = vmatpush1.msra.mxu0 0.0
  %2248 = vmatprep.subr.mxu0 0.0
  %2249 = vmatpush1.msra.mxu0 0.0
  %2250 = vmatprep.subr.mxu0 0.0
  %2251 = vmatpush1.msra.mxu0 0.0
  %2252 = vmatprep.subr.mxu0 0.0
  %2253 = vmatpush1.msra.mxu0 0.0
  %2254 = vmatprep.subr.mxu0 0.0
  %2255 = vmatpush1.msra.mxu0 0.0
  %2256 = vmatprep.subr.mxu0 0.0
  %2257 = vmatpush1.msra.mxu0 0.0
  %2258 = vmatprep.subr.mxu0 0.0
  %2259 = vmatpush1.msra.mxu0 0.0
  %2260 = vmatprep.subr.mxu0 0.0
  %2261 = vmatpush1.msra.mxu0 0.0
  %2262 = vmatprep.subr.mxu0 0.0
  %2263 = vmatpush1.msra.mxu0 0.0
  %2264 = vmatprep.subr.mxu0 0.0
  %2265 = vmatpush1.msra.mxu0 0.0
  %2266 = vmatprep.subr.mxu0 0.0
  %2267 = vmatpush1.msra.mxu0 0.0
  %2268 = vmatprep.subr.mxu0 0.0
  %2269 = vmatpush1.msra.mxu0 0.0
  %2270 = vmatprep.subr.mxu0 0.0
  %2271 = vmatpush1.msra.mxu0 0.0
  %2272 = vmatprep.subr.mxu0 0.0
  %2273 = vmatpush1.msra.mxu0 0.0
  %2274 = vmatprep.subr.mxu0 0.0
  %2275 = vmatpush1.msra.mxu0 0.0
  %2276 = vmatprep.subr.mxu0 0.0
  %2277 = vmatpush1.msra.mxu0 0.0
  %2278 = vmatprep.subr.mxu0 0.0
  %2279 = vmatpush1.msra.mxu0 0.0
  %2280 = vmatprep.mubr.f32.mxu0 0.0
  %v2281 = vand.u32 %v1875, 4294901760
  %2282 = vmatmul.mubr.f32.gmra.mrb[0].mxu0 %v2281
  %v2283 = vpop.f32.mrb[0].mxu0
  %v2284 = vadd.f32 %v2201, %v2283
  %v2285 = vpop.f32.mrb[0].mxu0
  %2286 = vdwg.mxu0
  %2287 = vmatprep.subr.mxu0 0.0
  %v2288 = vand.u32 %v42, 4294901760
  %2289 = vmatpush1.msra.mxu0 %v2288
  %2290 = vmatprep.subr.mxu0 0.0
  %v2291 = vand.u32 %v43, 4294901760
  %2292 = vmatpush1.msra.mxu0 %v2291
  %2293 = vmatprep.subr.mxu0 0.0
  %v2294 = vand.u32 %v44, 4294901760
  %2295 = vmatpush1.msra.mxu0 %v2294
  %2296 = vmatprep.subr.mxu0 0.0
  %v2297 = vand.u32 %v45, 4294901760
  %2298 = vmatpush1.msra.mxu0 %v2297
  %2299 = vmatprep.subr.mxu0 0.0
  %2300 = vmatpush1.msra.mxu0 0.0
  %2301 = vmatprep.subr.mxu0 0.0
  %2302 = vmatpush1.msra.mxu0 0.0
  %2303 = vmatprep.subr.mxu0 0.0
  %2304 = vmatpush1.msra.mxu0 0.0
  %2305 = vmatprep.subr.mxu0 0.0
  %2306 = vmatpush1.msra.mxu0 0.0
  %2307 = vmatprep.subr.mxu0 0.0
  %2308 = vmatpush1.msra.mxu0 0.0
  %2309 = vmatprep.subr.mxu0 0.0
  %2310 = vmatpush1.msra.mxu0 0.0
  %2311 = vmatprep.subr.mxu0 0.0
  %2312 = vmatpush1.msra.mxu0 0.0
  %2313 = vmatprep.subr.mxu0 0.0
  %2314 = vmatpush1.msra.mxu0 0.0
  %2315 = vmatprep.subr.mxu0 0.0
  %2316 = vmatpush1.msra.mxu0 0.0
  %2317 = vmatprep.subr.mxu0 0.0
  %2318 = vmatpush1.msra.mxu0 0.0
  %2319 = vmatprep.subr.mxu0 0.0
  %2320 = vmatpush1.msra.mxu0 0.0
  %2321 = vmatprep.subr.mxu0 0.0
  %2322 = vmatpush1.msra.mxu0 0.0
  %2323 = vmatprep.subr.mxu0 0.0
  %2324 = vmatpush1.msra.mxu0 0.0
  %2325 = vmatprep.subr.mxu0 0.0
  %2326 = vmatpush1.msra.mxu0 0.0
  %2327 = vmatprep.subr.mxu0 0.0
  %2328 = vmatpush1.msra.mxu0 0.0
  %2329 = vmatprep.subr.mxu0 0.0
  %2330 = vmatpush1.msra.mxu0 0.0
  %2331 = vmatprep.subr.mxu0 0.0
  %2332 = vmatpush1.msra.mxu0 0.0
  %2333 = vmatprep.subr.mxu0 0.0
  %2334 = vmatpush1.msra.mxu0 0.0
  %2335 = vmatprep.subr.mxu0 0.0
  %2336 = vmatpush1.msra.mxu0 0.0
  %2337 = vmatprep.subr.mxu0 0.0
  %2338 = vmatpush1.msra.mxu0 0.0
  %2339 = vmatprep.subr.mxu0 0.0
  %2340 = vmatpush1.msra.mxu0 0.0
  %2341 = vmatprep.subr.mxu0 0.0
  %2342 = vmatpush1.msra.mxu0 0.0
  %2343 = vmatprep.subr.mxu0 0.0
  %2344 = vmatpush1.msra.mxu0 0.0
  %2345 = vmatprep.subr.mxu0 0.0
  %2346 = vmatpush1.msra.mxu0 0.0
  %2347 = vmatprep.subr.mxu0 0.0
  %2348 = vmatpush1.msra.mxu0 0.0
  %2349 = vmatprep.subr.mxu0 0.0
  %2350 = vmatpush1.msra.mxu0 0.0
  %2351 = vmatprep.subr.mxu0 0.0
  %2352 = vmatpush1.msra.mxu0 0.0
  %2353 = vmatprep.subr.mxu0 0.0
  %2354 = vmatpush1.msra.mxu0 0.0
  %2355 = vmatprep.mubr.f32.mxu0 0.0
  %v2356 = vand.u32 %v1875, 4294901760
  %2357 = vmatmul.mubr.f32.gmra.mrb[0].mxu0 %v2356
  %v2358 = vpop.f32.mrb[0].mxu0
  %v2359 = vadd.f32 %v2284, %v2358
  %v2360 = vpop.f32.mrb[0].mxu0
  %2361 = vdwg.mxu0
  %v2362 = vadd.f32 %v800, %v2359
  %v2363 = vxor.u32 %v2362, 2147483648
  %v2364 = vmul.f32 %v2363, 1.442695
  %v2365 = vpow.pop %v2364
  %v2366 = vadd.f32 %v2365, 1.0
  %v2367 = vrcp.pop %v2366
  %v2368 = vmul.f32 1.0, %v2367
  %v2369 = vtanh.pop %v2362
  %v2370 = vmul.f32 %v2368, %v1863
  %2372 = vrot.lane.b32.xlu0 %v2369, 64
  %v2373 = vpop.permute.xlu0 %2372
  %v2375 = vmul.f32 %v2368, %v2373
  %2377 = vrot.lane.b32.xlu0 %v2375, 32
  %v2378 = vpop.permute.xlu0 %2377
  %v2380 = vadd.f32 %v2370, %v2378
  %v2381 = vtanh.pop %v2380
  %2383 = vrot.lane.b32.xlu0 %v2381, 64
  %v2384 = vpop.permute.xlu0 %2383
  %v2386 = vmul.f32 %v2368, %v2384
  %2388 = vrot.lane.b32.xlu0 %v2386, 32
  %v2389 = vpop.permute.xlu0 %2388
  %2391 = vst.msk [vmem:[#allocation2 + $0x10] sm:$0xff] %vm835, %v2389
  %v2392 = vsel %vm835, %v2389, 0
  %2394 = vmatprep.subr.mxu0 0.0
  %v2395 = vand.u32 %v42, 4294901760
  %2396 = vmatpush1.msra.mxu0 %v2395
  %2397 = vmatprep.subr.mxu0 0.0
  %v2398 = vand.u32 %v43, 4294901760
  %2399 = vmatpush1.msra.mxu0 %v2398
  %2400 = vmatprep.subr.mxu0 0.0
  %v2401 = vand.u32 %v44, 4294901760
  %2402 = vmatpush1.msra.mxu0 %v2401
  %2403 = vmatprep.subr.mxu0 0.0
  %v2404 = vand.u32 %v45, 4294901760
  %2405 = vmatpush1.msra.mxu0 %v2404
  %2406 = vmatprep.subr.mxu0 0.0
  %2407 = vmatpush1.msra.mxu0 0.0
  %2408 = vmatprep.subr.mxu0 0.0
  %2409 = vmatpush1.msra.mxu0 0.0
  %2410 = vmatprep.subr.mxu0 0.0
  %2411 = vmatpush1.msra.mxu0 0.0
  %2412 = vmatprep.subr.mxu0 0.0
  %2413 = vmatpush1.msra.mxu0 0.0
  %2414 = vmatprep.subr.mxu0 0.0
  %2415 = vmatpush1.msra.mxu0 0.0
  %2416 = vmatprep.subr.mxu0 0.0
  %2417 = vmatpush1.msra.mxu0 0.0
  %2418 = vmatprep.subr.mxu0 0.0
  %2419 = vmatpush1.msra.mxu0 0.0
  %2420 = vmatprep.subr.mxu0 0.0
  %2421 = vmatpush1.msra.mxu0 0.0
  %2422 = vmatprep.subr.mxu0 0.0
  %2423 = vmatpush1.msra.mxu0 0.0
  %2424 = vmatprep.subr.mxu0 0.0
  %2425 = vmatpush1.msra.mxu0 0.0
  %2426 = vmatprep.subr.mxu0 0.0
  %2427 = vmatpush1.msra.mxu0 0.0
  %2428 = vmatprep.subr.mxu0 0.0
  %2429 = vmatpush1.msra.mxu0 0.0
  %2430 = vmatprep.subr.mxu0 0.0
  %2431 = vmatpush1.msra.mxu0 0.0
  %2432 = vmatprep.subr.mxu0 0.0
  %2433 = vmatpush1.msra.mxu0 0.0
  %2434 = vmatprep.subr.mxu0 0.0
  %2435 = vmatpush1.msra.mxu0 0.0
  %2436 = vmatprep.subr.mxu0 0.0
  %2437 = vmatpush1.msra.mxu0 0.0
  %2438 = vmatprep.subr.mxu0 0.0
  %2439 = vmatpush1.msra.mxu0 0.0
  %2440 = vmatprep.subr.mxu0 0.0
  %2441 = vmatpush1.msra.mxu0 0.0
  %2442 = vmatprep.subr.mxu0 0.0
  %2443 = vmatpush1.msra.mxu0 0.0
  %2444 = vmatprep.subr.mxu0 0.0
  %2445 = vmatpush1.msra.mxu0 0.0
  %2446 = vmatprep.subr.mxu0 0.0
  %2447 = vmatpush1.msra.mxu0 0.0
  %2448 = vmatprep.subr.mxu0 0.0
  %2449 = vmatpush1.msra.mxu0 0.0
  %2450 = vmatprep.subr.mxu0 0.0
  %2451 = vmatpush1.msra.mxu0 0.0
  %2452 = vmatprep.subr.mxu0 0.0
  %2453 = vmatpush1.msra.mxu0 0.0
  %2454 = vmatprep.subr.mxu0 0.0
  %2455 = vmatpush1.msra.mxu0 0.0
  %2456 = vmatprep.subr.mxu0 0.0
  %2457 = vmatpush1.msra.mxu0 0.0
  %2458 = vmatprep.subr.mxu0 0.0
  %2459 = vmatpush1.msra.mxu0 0.0
  %2460 = vmatprep.subr.mxu0 0.0
  %2461 = vmatpush1.msra.mxu0 0.0
  %2462 = vmatprep.mubr.f32.mxu0 0.0
  %v2463 = vand.u32 %v2392, 4294901760
  %v2464 = vsub.f32 %v2392, %v2463
  %v2465 = vand.u32 %v2464, 4294901760
  %v2466 = vsub.f32 %v2464, %v2465
  %v2467 = vand.u32 %v2466, 4294901760
  %2468 = vmatmul.mubr.f32.gmra.mrb[0].mxu0 %v2467
  %v2469 = vpop.f32.mrb[0].mxu0
  %v2470 = vadd.f32 0.0, %v2469
  %v2471 = vpop.f32.mrb[0].mxu0
  %2472 = vdwg.mxu0
  %2473 = vmatprep.subr.mxu0 0.0
  %v2474 = vand.u32 %v42, 4294901760
  %v2475 = vsub.f32 %v42, %v2474
  %v2476 = vand.u32 %v2475, 4294901760
  %v2477 = vsub.f32 %v2475, %v2476
  %v2478 = vand.u32 %v2477, 4294901760
  %2479 = vmatpush1.msra.mxu0 %v2478
  %2480 = vmatprep.subr.mxu0 0.0
  %v2481 = vand.u32 %v43, 4294901760
  %v2482 = vsub.f32 %v43, %v2481
  %v2483 = vand.u32 %v2482, 4294901760
  %v2484 = vsub.f32 %v2482, %v2483
  %v2485 = vand.u32 %v2484, 4294901760
  %2486 = vmatpush1.msra.mxu0 %v2485
  %2487 = vmatprep.subr.mxu0 0.0
  %v2488 = vand.u32 %v44, 4294901760
  %v2489 = vsub.f32 %v44, %v2488
  %v2490 = vand.u32 %v2489, 4294901760
  %v2491 = vsub.f32 %v2489, %v2490
  %v2492 = vand.u32 %v2491, 4294901760
  %2493 = vmatpush1.msra.mxu0 %v2492
  %2494 = vmatprep.subr.mxu0 0.0
  %v2495 = vand.u32 %v45, 4294901760
  %v2496 = vsub.f32 %v45, %v2495
  %v2497 = vand.u32 %v2496, 4294901760
  %v2498 = vsub.f32 %v2496, %v2497
  %v2499 = vand.u32 %v2498, 4294901760
  %2500 = vmatpush1.msra.mxu0 %v2499
  %2501 = vmatprep.subr.mxu0 0.0
  %2502 = vmatpush1.msra.mxu0 0.0
  %2503 = vmatprep.subr.mxu0 0.0
  %2504 = vmatpush1.msra.mxu0 0.0
  %2505 = vmatprep.subr.mxu0 0.0
  %2506 = vmatpush1.msra.mxu0 0.0
  %2507 = vmatprep.subr.mxu0 0.0
  %2508 = vmatpush1.msra.mxu0 0.0
  %2509 = vmatprep.subr.mxu0 0.0
  %2510 = vmatpush1.msra.mxu0 0.0
  %2511 = vmatprep.subr.mxu0 0.0
  %2512 = vmatpush1.msra.mxu0 0.0
  %2513 = vmatprep.subr.mxu0 0.0
  %2514 = vmatpush1.msra.mxu0 0.0
  %2515 = vmatprep.subr.mxu0 0.0
  %2516 = vmatpush1.msra.mxu0 0.0
  %2517 = vmatprep.subr.mxu0 0.0
  %2518 = vmatpush1.msra.mxu0 0.0
  %2519 = vmatprep.subr.mxu0 0.0
  %2520 = vmatpush1.msra.mxu0 0.0
  %2521 = vmatprep.subr.mxu0 0.0
  %2522 = vmatpush1.msra.mxu0 0.0
  %2523 = vmatprep.subr.mxu0 0.0
  %2524 = vmatpush1.msra.mxu0 0.0
  %2525 = vmatprep.subr.mxu0 0.0
  %2526 = vmatpush1.msra.mxu0 0.0
  %2527 = vmatprep.subr.mxu0 0.0
  %2528 = vmatpush1.msra.mxu0 0.0
  %2529 = vmatprep.subr.mxu0 0.0
  %2530 = vmatpush1.msra.mxu0 0.0
  %2531 = vmatprep.subr.mxu0 0.0
  %2532 = vmatpush1.msra.mxu0 0.0
  %2533 = vmatprep.subr.mxu0 0.0
  %2534 = vmatpush1.msra.mxu0 0.0
  %2535 = vmatprep.subr.mxu0 0.0
  %2536 = vmatpush1.msra.mxu0 0.0
  %2537 = vmatprep.subr.mxu0 0.0
  %2538 = vmatpush1.msra.mxu0 0.0
  %2539 = vmatprep.subr.mxu0 0.0
  %2540 = vmatpush1.msra.mxu0 0.0
  %2541 = vmatprep.subr.mxu0 0.0
  %2542 = vmatpush1.msra.mxu0 0.0
  %2543 = vmatprep.subr.mxu0 0.0
  %2544 = vmatpush1.msra.mxu0 0.0
  %2545 = vmatprep.subr.mxu0 0.0
  %2546 = vmatpush1.msra.mxu0 0.0
  %2547 = vmatprep.subr.mxu0 0.0
  %2548 = vmatpush1.msra.mxu0 0.0
  %2549 = vmatprep.subr.mxu0 0.0
  %2550 = vmatpush1.msra.mxu0 0.0
  %2551 = vmatprep.subr.mxu0 0.0
  %2552 = vmatpush1.msra.mxu0 0.0
  %2553 = vmatprep.subr.mxu0 0.0
  %2554 = vmatpush1.msra.mxu0 0.0
  %2555 = vmatprep.subr.mxu0 0.0
  %2556 = vmatpush1.msra.mxu0 0.0
  %2557 = vmatprep.mubr.f32.mxu0 0.0
  %v2558 = vand.u32 %v2392, 4294901760
  %2559 = vmatmul.mubr.f32.gmra.mrb[0].mxu0 %v2558
  %v2560 = vpop.f32.mrb[0].mxu0
  %v2561 = vadd.f32 %v2470, %v2560
  %v2562 = vpop.f32.mrb[0].mxu0
  %2563 = vdwg.mxu0
  %2564 = vmatprep.subr.mxu0 0.0
  %v2565 = vand.u32 %v42, 4294901760
  %v2566 = vsub.f32 %v42, %v2565
  %2567 = vmatpush1.msra.mxu0 %v2566
  %2568 = vmatprep.subr.mxu0 0.0
  %v2569 = vand.u32 %v43, 4294901760
  %v2570 = vsub.f32 %v43, %v2569
  %2571 = vmatpush1.msra.mxu0 %v2570
  %2572 = vmatprep.subr.mxu0 0.0
  %v2573 = vand.u32 %v44, 4294901760
  %v2574 = vsub.f32 %v44, %v2573
  %2575 = vmatpush1.msra.mxu0 %v2574
  %2576 = vmatprep.subr.mxu0 0.0
  %v2577 = vand.u32 %v45, 4294901760
  %v2578 = vsub.f32 %v45, %v2577
  %2579 = vmatpush1.msra.mxu0 %v2578
  %2580 = vmatprep.subr.mxu0 0.0
  %2581 = vmatpush1.msra.mxu0 0.0
  %2582 = vmatprep.subr.mxu0 0.0
  %2583 = vmatpush1.msra.mxu0 0.0
  %2584 = vmatprep.subr.mxu0 0.0
  %2585 = vmatpush1.msra.mxu0 0.0
  %2586 = vmatprep.subr.mxu0 0.0
  %2587 = vmatpush1.msra.mxu0 0.0
  %2588 = vmatprep.subr.mxu0 0.0
  %2589 = vmatpush1.msra.mxu0 0.0
  %2590 = vmatprep.subr.mxu0 0.0
  %2591 = vmatpush1.msra.mxu0 0.0
  %2592 = vmatprep.subr.mxu0 0.0
  %2593 = vmatpush1.msra.mxu0 0.0
  %2594 = vmatprep.subr.mxu0 0.0
  %2595 = vmatpush1.msra.mxu0 0.0
  %2596 = vmatprep.subr.mxu0 0.0
  %2597 = vmatpush1.msra.mxu0 0.0
  %2598 = vmatprep.subr.mxu0 0.0
  %2599 = vmatpush1.msra.mxu0 0.0
  %2600 = vmatprep.subr.mxu0 0.0
  %2601 = vmatpush1.msra.mxu0 0.0
  %2602 = vmatprep.subr.mxu0 0.0
  %2603 = vmatpush1.msra.mxu0 0.0
  %2604 = vmatprep.subr.mxu0 0.0
  %2605 = vmatpush1.msra.mxu0 0.0
  %2606 = vmatprep.subr.mxu0 0.0
  %2607 = vmatpush1.msra.mxu0 0.0
  %2608 = vmatprep.subr.mxu0 0.0
  %2609 = vmatpush1.msra.mxu0 0.0
  %2610 = vmatprep.subr.mxu0 0.0
  %2611 = vmatpush1.msra.mxu0 0.0
  %2612 = vmatprep.subr.mxu0 0.0
  %2613 = vmatpush1.msra.mxu0 0.0
  %2614 = vmatprep.subr.mxu0 0.0
  %2615 = vmatpush1.msra.mxu0 0.0
  %2616 = vmatprep.subr.mxu0 0.0
  %2617 = vmatpush1.msra.mxu0 0.0
  %2618 = vmatprep.subr.mxu0 0.0
  %2619 = vmatpush1.msra.mxu0 0.0
  %2620 = vmatprep.subr.mxu0 0.0
  %2621 = vmatpush1.msra.mxu0 0.0
  %2622 = vmatprep.subr.mxu0 0.0
  %2623 = vmatpush1.msra.mxu0 0.0
  %2624 = vmatprep.subr.mxu0 0.0
  %2625 = vmatpush1.msra.mxu0 0.0
  %2626 = vmatprep.subr.mxu0 0.0
  %2627 = vmatpush1.msra.mxu0 0.0
  %2628 = vmatprep.subr.mxu0 0.0
  %2629 = vmatpush1.msra.mxu0 0.0
  %2630 = vmatprep.subr.mxu0 0.0
  %2631 = vmatpush1.msra.mxu0 0.0
  %2632 = vmatprep.subr.mxu0 0.0
  %2633 = vmatpush1.msra.mxu0 0.0
  %2634 = vmatprep.subr.mxu0 0.0
  %2635 = vmatpush1.msra.mxu0 0.0
  %2636 = vmatprep.mubr.f32.mxu0 0.0
  %v2637 = vand.u32 %v2392, 4294901760
  %v2638 = vsub.f32 %v2392, %v2637
  %2639 = vmatmul.mubr.f32.gmra.mrb[0].mxu0 %v2638
  %v2640 = vpop.f32.mrb[0].mxu0
  %v2641 = vadd.f32 %v2561, %v2640
  %v2642 = vpop.f32.mrb[0].mxu0
  %2643 = vdwg.mxu0
  %2644 = vmatprep.subr.mxu0 0.0
  %v2645 = vand.u32 %v42, 4294901760
  %2646 = vmatpush1.msra.mxu0 %v2645
  %2647 = vmatprep.subr.mxu0 0.0
  %v2648 = vand.u32 %v43, 4294901760
  %2649 = vmatpush1.msra.mxu0 %v2648
  %2650 = vmatprep.subr.mxu0 0.0
  %v2651 = vand.u32 %v44, 4294901760
  %2652 = vmatpush1.msra.mxu0 %v2651
  %2653 = vmatprep.subr.mxu0 0.0
  %v2654 = vand.u32 %v45, 4294901760
  %2655 = vmatpush1.msra.mxu0 %v2654
  %2656 = vmatprep.subr.mxu0 0.0
  %2657 = vmatpush1.msra.mxu0 0.0
  %2658 = vmatprep.subr.mxu0 0.0
  %2659 = vmatpush1.msra.mxu0 0.0
  %2660 = vmatprep.subr.mxu0 0.0
  %2661 = vmatpush1.msra.mxu0 0.0
  %2662 = vmatprep.subr.mxu0 0.0
  %2663 = vmatpush1.msra.mxu0 0.0
  %2664 = vmatprep.subr.mxu0 0.0
  %2665 = vmatpush1.msra.mxu0 0.0
  %2666 = vmatprep.subr.mxu0 0.0
  %2667 = vmatpush1.msra.mxu0 0.0
  %2668 = vmatprep.subr.mxu0 0.0
  %2669 = vmatpush1.msra.mxu0 0.0
  %2670 = vmatprep.subr.mxu0 0.0
  %2671 = vmatpush1.msra.mxu0 0.0
  %2672 = vmatprep.subr.mxu0 0.0
  %2673 = vmatpush1.msra.mxu0 0.0
  %2674 = vmatprep.subr.mxu0 0.0
  %2675 = vmatpush1.msra.mxu0 0.0
  %2676 = vmatprep.subr.mxu0 0.0
  %2677 = vmatpush1.msra.mxu0 0.0
  %2678 = vmatprep.subr.mxu0 0.0
  %2679 = vmatpush1.msra.mxu0 0.0
  %2680 = vmatprep.subr.mxu0 0.0
  %2681 = vmatpush1.msra.mxu0 0.0
  %2682 = vmatprep.subr.mxu0 0.0
  %2683 = vmatpush1.msra.mxu0 0.0
  %2684 = vmatprep.subr.mxu0 0.0
  %2685 = vmatpush1.msra.mxu0 0.0
  %2686 = vmatprep.subr.mxu0 0.0
  %2687 = vmatpush1.msra.mxu0 0.0
  %2688 = vmatprep.subr.mxu0 0.0
  %2689 = vmatpush1.msra.mxu0 0.0
  %2690 = vmatprep.subr.mxu0 0.0
  %2691 = vmatpush1.msra.mxu0 0.0
  %2692 = vmatprep.subr.mxu0 0.0
  %2693 = vmatpush1.msra.mxu0 0.0
  %2694 = vmatprep.subr.mxu0 0.0
  %2695 = vmatpush1.msra.mxu0 0.0
  %2696 = vmatprep.subr.mxu0 0.0
  %2697 = vmatpush1.msra.mxu0 0.0
  %2698 = vmatprep.subr.mxu0 0.0
  %2699 = vmatpush1.msra.mxu0 0.0
  %2700 = vmatprep.subr.mxu0 0.0
  %2701 = vmatpush1.msra.mxu0 0.0
  %2702 = vmatprep.subr.mxu0 0.0
  %2703 = vmatpush1.msra.mxu0 0.0
  %2704 = vmatprep.subr.mxu0 0.0
  %2705 = vmatpush1.msra.mxu0 0.0
  %2706 = vmatprep.subr.mxu0 0.0
  %2707 = vmatpush1.msra.mxu0 0.0
  %2708 = vmatprep.subr.mxu0 0.0
  %2709 = vmatpush1.msra.mxu0 0.0
  %2710 = vmatprep.subr.mxu0 0.0
  %2711 = vmatpush1.msra.mxu0 0.0
  %2712 = vmatprep.mubr.f32.mxu0 0.0
  %v2713 = vand.u32 %v2392, 4294901760
  %v2714 = vsub.f32 %v2392, %v2713
  %v2715 = vand.u32 %v2714, 4294901760
  %2716 = vmatmul.mubr.f32.gmra.mrb[0].mxu0 %v2715
  %v2717 = vpop.f32.mrb[0].mxu0
  %v2718 = vadd.f32 %v2641, %v2717
  %v2719 = vpop.f32.mrb[0].mxu0
  %2720 = vdwg.mxu0
  %2721 = vmatprep.subr.mxu0 0.0
  %v2722 = vand.u32 %v42, 4294901760
  %v2723 = vsub.f32 %v42, %v2722
  %v2724 = vand.u32 %v2723, 4294901760
  %2725 = vmatpush1.msra.mxu0 %v2724
  %2726 = vmatprep.subr.mxu0 0.0
  %v2727 = vand.u32 %v43, 4294901760
  %v2728 = vsub.f32 %v43, %v2727
  %v2729 = vand.u32 %v2728, 4294901760
  %2730 = vmatpush1.msra.mxu0 %v2729
  %2731 = vmatprep.subr.mxu0 0.0
  %v2732 = vand.u32 %v44, 4294901760
  %v2733 = vsub.f32 %v44, %v2732
  %v2734 = vand.u32 %v2733, 4294901760
  %2735 = vmatpush1.msra.mxu0 %v2734
  %2736 = vmatprep.subr.mxu0 0.0
  %v2737 = vand.u32 %v45, 4294901760
  %v2738 = vsub.f32 %v45, %v2737
  %v2739 = vand.u32 %v2738, 4294901760
  %2740 = vmatpush1.msra.mxu0 %v2739
  %2741 = vmatprep.subr.mxu0 0.0
  %2742 = vmatpush1.msra.mxu0 0.0
  %2743 = vmatprep.subr.mxu0 0.0
  %2744 = vmatpush1.msra.mxu0 0.0
  %2745 = vmatprep.subr.mxu0 0.0
  %2746 = vmatpush1.msra.mxu0 0.0
  %2747 = vmatprep.subr.mxu0 0.0
  %2748 = vmatpush1.msra.mxu0 0.0
  %2749 = vmatprep.subr.mxu0 0.0
  %2750 = vmatpush1.msra.mxu0 0.0
  %2751 = vmatprep.subr.mxu0 0.0
  %2752 = vmatpush1.msra.mxu0 0.0
  %2753 = vmatprep.subr.mxu0 0.0
  %2754 = vmatpush1.msra.mxu0 0.0
  %2755 = vmatprep.subr.mxu0 0.0
  %2756 = vmatpush1.msra.mxu0 0.0
  %2757 = vmatprep.subr.mxu0 0.0
  %2758 = vmatpush1.msra.mxu0 0.0
  %2759 = vmatprep.subr.mxu0 0.0
  %2760 = vmatpush1.msra.mxu0 0.0
  %2761 = vmatprep.subr.mxu0 0.0
  %2762 = vmatpush1.msra.mxu0 0.0
  %2763 = vmatprep.subr.mxu0 0.0
  %2764 = vmatpush1.msra.mxu0 0.0
  %2765 = vmatprep.subr.mxu0 0.0
  %2766 = vmatpush1.msra.mxu0 0.0
  %2767 = vmatprep.subr.mxu0 0.0
  %2768 = vmatpush1.msra.mxu0 0.0
  %2769 = vmatprep.subr.mxu0 0.0
  %2770 = vmatpush1.msra.mxu0 0.0
  %2771 = vmatprep.subr.mxu0 0.0
  %2772 = vmatpush1.msra.mxu0 0.0
  %2773 = vmatprep.subr.mxu0 0.0
  %2774 = vmatpush1.msra.mxu0 0.0
  %2775 = vmatprep.subr.mxu0 0.0
  %2776 = vmatpush1.msra.mxu0 0.0
  %2777 = vmatprep.subr.mxu0 0.0
  %2778 = vmatpush1.msra.mxu0 0.0
  %2779 = vmatprep.subr.mxu0 0.0
  %2780 = vmatpush1.msra.mxu0 0.0
  %2781 = vmatprep.subr.mxu0 0.0
  %2782 = vmatpush1.msra.mxu0 0.0
  %2783 = vmatprep.subr.mxu0 0.0
  %2784 = vmatpush1.msra.mxu0 0.0
  %2785 = vmatprep.subr.mxu0 0.0
  %2786 = vmatpush1.msra.mxu0 0.0
  %2787 = vmatprep.subr.mxu0 0.0
  %2788 = vmatpush1.msra.mxu0 0.0
  %2789 = vmatprep.subr.mxu0 0.0
  %2790 = vmatpush1.msra.mxu0 0.0
  %2791 = vmatprep.subr.mxu0 0.0
  %2792 = vmatpush1.msra.mxu0 0.0
  %2793 = vmatprep.subr.mxu0 0.0
  %2794 = vmatpush1.msra.mxu0 0.0
  %2795 = vmatprep.subr.mxu0 0.0
  %2796 = vmatpush1.msra.mxu0 0.0
  %2797 = vmatprep.mubr.f32.mxu0 0.0
  %v2798 = vand.u32 %v2392, 4294901760
  %2799 = vmatmul.mubr.f32.gmra.mrb[0].mxu0 %v2798
  %v2800 = vpop.f32.mrb[0].mxu0
  %v2801 = vadd.f32 %v2718, %v2800
  %v2802 = vpop.f32.mrb[0].mxu0
  %2803 = vdwg.mxu0
  %2804 = vmatprep.subr.mxu0 0.0
  %v2805 = vand.u32 %v42, 4294901760
  %2806 = vmatpush1.msra.mxu0 %v2805
  %2807 = vmatprep.subr.mxu0 0.0
  %v2808 = vand.u32 %v43, 4294901760
  %2809 = vmatpush1.msra.mxu0 %v2808
  %2810 = vmatprep.subr.mxu0 0.0
  %v2811 = vand.u32 %v44, 4294901760
  %2812 = vmatpush1.msra.mxu0 %v2811
  %2813 = vmatprep.subr.mxu0 0.0
  %v2814 = vand.u32 %v45, 4294901760
  %2815 = vmatpush1.msra.mxu0 %v2814
  %2816 = vmatprep.subr.mxu0 0.0
  %2817 = vmatpush1.msra.mxu0 0.0
  %2818 = vmatprep.subr.mxu0 0.0
  %2819 = vmatpush1.msra.mxu0 0.0
  %2820 = vmatprep.subr.mxu0 0.0
  %2821 = vmatpush1.msra.mxu0 0.0
  %2822 = vmatprep.subr.mxu0 0.0
  %2823 = vmatpush1.msra.mxu0 0.0
  %2824 = vmatprep.subr.mxu0 0.0
  %2825 = vmatpush1.msra.mxu0 0.0
  %2826 = vmatprep.subr.mxu0 0.0
  %2827 = vmatpush1.msra.mxu0 0.0
  %2828 = vmatprep.subr.mxu0 0.0
  %2829 = vmatpush1.msra.mxu0 0.0
  %2830 = vmatprep.subr.mxu0 0.0
  %2831 = vmatpush1.msra.mxu0 0.0
  %2832 = vmatprep.subr.mxu0 0.0
  %2833 = vmatpush1.msra.mxu0 0.0
  %2834 = vmatprep.subr.mxu0 0.0
  %2835 = vmatpush1.msra.mxu0 0.0
  %2836 = vmatprep.subr.mxu0 0.0
  %2837 = vmatpush1.msra.mxu0 0.0
  %2838 = vmatprep.subr.mxu0 0.0
  %2839 = vmatpush1.msra.mxu0 0.0
  %2840 = vmatprep.subr.mxu0 0.0
  %2841 = vmatpush1.msra.mxu0 0.0
  %2842 = vmatprep.subr.mxu0 0.0
  %2843 = vmatpush1.msra.mxu0 0.0
  %2844 = vmatprep.subr.mxu0 0.0
  %2845 = vmatpush1.msra.mxu0 0.0
  %2846 = vmatprep.subr.mxu0 0.0
  %2847 = vmatpush1.msra.mxu0 0.0
  %2848 = vmatprep.subr.mxu0 0.0
  %2849 = vmatpush1.msra.mxu0 0.0
  %2850 = vmatprep.subr.mxu0 0.0
  %2851 = vmatpush1.msra.mxu0 0.0
  %2852 = vmatprep.subr.mxu0 0.0
  %2853 = vmatpush1.msra.mxu0 0.0
  %2854 = vmatprep.subr.mxu0 0.0
  %2855 = vmatpush1.msra.mxu0 0.0
  %2856 = vmatprep.subr.mxu0 0.0
  %2857 = vmatpush1.msra.mxu0 0.0
  %2858 = vmatprep.subr.mxu0 0.0
  %2859 = vmatpush1.msra.mxu0 0.0
  %2860 = vmatprep.subr.mxu0 0.0
  %2861 = vmatpush1.msra.mxu0 0.0
  %2862 = vmatprep.subr.mxu0 0.0
  %2863 = vmatpush1.msra.mxu0 0.0
  %2864 = vmatprep.subr.mxu0 0.0
  %2865 = vmatpush1.msra.mxu0 0.0
  %2866 = vmatprep.subr.mxu0 0.0
  %2867 = vmatpush1.msra.mxu0 0.0
  %2868 = vmatprep.subr.mxu0 0.0
  %2869 = vmatpush1.msra.mxu0 0.0
  %2870 = vmatprep.subr.mxu0 0.0
  %2871 = vmatpush1.msra.mxu0 0.0
  %2872 = vmatprep.mubr.f32.mxu0 0.0
  %v2873 = vand.u32 %v2392, 4294901760
  %2874 = vmatmul.mubr.f32.gmra.mrb[0].mxu0 %v2873
  %v2875 = vpop.f32.mrb[0].mxu0
  %v2876 = vadd.f32 %v2801, %v2875
  %v2877 = vpop.f32.mrb[0].mxu0
  %2878 = vdwg.mxu0
  %v2879 = vadd.f32 %v806, %v2876
  %v2880 = vxor.u32 %v2879, 2147483648
  %v2881 = vmul.f32 %v2880, 1.442695
  %v2882 = vpow.pop %v2881
  %v2883 = vadd.f32 %v2882, 1.0
  %v2884 = vrcp.pop %v2883
  %v2885 = vmul.f32 1.0, %v2884
  %v2886 = vtanh.pop %v2879
  %v2887 = vmul.f32 %v2885, %v2380
  %2889 = vrot.lane.b32.xlu0 %v2886, 64
  %v2890 = vpop.permute.xlu0 %2889
  %v2892 = vmul.f32 %v2885, %v2890
  %2894 = vrot.lane.b32.xlu0 %v2892, 32
  %v2895 = vpop.permute.xlu0 %2894
  %v2897 = vadd.f32 %v2887, %v2895
  %v2898 = vtanh.pop %v2897
  %2900 = vrot.lane.b32.xlu0 %v2898, 64
  %v2901 = vpop.permute.xlu0 %2900
  %v2903 = vmul.f32 %v2885, %v2901
  %2905 = vrot.lane.b32.xlu0 %v2903, 32
  %v2906 = vpop.permute.xlu0 %2905
  %2908 = vst.msk [vmem:[#allocation2 + $0x18] sm:$0xff] %vm835, %v2906
  %v2909 = vsel %vm835, %v2906, 0
  %2911 = vmatprep.subr.mxu0 0.0
  %v2912 = vand.u32 %v42, 4294901760
  %2913 = vmatpush1.msra.mxu0 %v2912
  %2914 = vmatprep.subr.mxu0 0.0
  %v2915 = vand.u32 %v43, 4294901760
  %2916 = vmatpush1.msra.mxu0 %v2915
  %2917 = vmatprep.subr.mxu0 0.0
  %v2918 = vand.u32 %v44, 4294901760
  %2919 = vmatpush1.msra.mxu0 %v2918
  %2920 = vmatprep.subr.mxu0 0.0
  %v2921 = vand.u32 %v45, 4294901760
  %2922 = vmatpush1.msra.mxu0 %v2921
  %2923 = vmatprep.subr.mxu0 0.0
  %2924 = vmatpush1.msra.mxu0 0.0
  %2925 = vmatprep.subr.mxu0 0.0
  %2926 = vmatpush1.msra.mxu0 0.0
  %2927 = vmatprep.subr.mxu0 0.0
  %2928 = vmatpush1.msra.mxu0 0.0
  %2929 = vmatprep.subr.mxu0 0.0
  %2930 = vmatpush1.msra.mxu0 0.0
  %2931 = vmatprep.subr.mxu0 0.0
  %2932 = vmatpush1.msra.mxu0 0.0
  %2933 = vmatprep.subr.mxu0 0.0
  %2934 = vmatpush1.msra.mxu0 0.0
  %2935 = vmatprep.subr.mxu0 0.0
  %2936 = vmatpush1.msra.mxu0 0.0
  %2937 = vmatprep.subr.mxu0 0.0
  %2938 = vmatpush1.msra.mxu0 0.0
  %2939 = vmatprep.subr.mxu0 0.0
  %2940 = vmatpush1.msra.mxu0 0.0
  %2941 = vmatprep.subr.mxu0 0.0
  %2942 = vmatpush1.msra.mxu0 0.0
  %2943 = vmatprep.subr.mxu0 0.0
  %2944 = vmatpush1.msra.mxu0 0.0
  %2945 = vmatprep.subr.mxu0 0.0
  %2946 = vmatpush1.msra.mxu0 0.0
  %2947 = vmatprep.subr.mxu0 0.0
  %2948 = vmatpush1.msra.mxu0 0.0
  %2949 = vmatprep.subr.mxu0 0.0
  %2950 = vmatpush1.msra.mxu0 0.0
  %2951 = vmatprep.subr.mxu0 0.0
  %2952 = vmatpush1.msra.mxu0 0.0
  %2953 = vmatprep.subr.mxu0 0.0
  %2954 = vmatpush1.msra.mxu0 0.0
  %2955 = vmatprep.subr.mxu0 0.0
  %2956 = vmatpush1.msra.mxu0 0.0
  %2957 = vmatprep.subr.mxu0 0.0
  %2958 = vmatpush1.msra.mxu0 0.0
  %2959 = vmatprep.subr.mxu0 0.0
  %2960 = vmatpush1.msra.mxu0 0.0
  %2961 = vmatprep.subr.mxu0 0.0
  %2962 = vmatpush1.msra.mxu0 0.0
  %2963 = vmatprep.subr.mxu0 0.0
  %2964 = vmatpush1.msra.mxu0 0.0
  %2965 = vmatprep.subr.mxu0 0.0
  %2966 = vmatpush1.msra.mxu0 0.0
  %2967 = vmatprep.subr.mxu0 0.0
  %2968 = vmatpush1.msra.mxu0 0.0
  %2969 = vmatprep.subr.mxu0 0.0
  %2970 = vmatpush1.msra.mxu0 0.0
  %2971 = vmatprep.subr.mxu0 0.0
  %2972 = vmatpush1.msra.mxu0 0.0
  %2973 = vmatprep.subr.mxu0 0.0
  %2974 = vmatpush1.msra.mxu0 0.0
  %2975 = vmatprep.subr.mxu0 0.0
  %2976 = vmatpush1.msra.mxu0 0.0
  %2977 = vmatprep.subr.mxu0 0.0
  %2978 = vmatpush1.msra.mxu0 0.0
  %2979 = vmatprep.mubr.f32.mxu0 0.0
  %v2980 = vand.u32 %v2909, 4294901760
  %v2981 = vsub.f32 %v2909, %v2980
  %v2982 = vand.u32 %v2981, 4294901760
  %v2983 = vsub.f32 %v2981, %v2982
  %v2984 = vand.u32 %v2983, 4294901760
  %2985 = vmatmul.mubr.f32.gmra.mrb[0].mxu0 %v2984
  %v2986 = vpop.f32.mrb[0].mxu0
  %v2987 = vadd.f32 0.0, %v2986
  %v2988 = vpop.f32.mrb[0].mxu0
  %2989 = vdwg.mxu0
  %2990 = vmatprep.subr.mxu0 0.0
  %v2991 = vand.u32 %v42, 4294901760
  %v2992 = vsub.f32 %v42, %v2991
  %v2993 = vand.u32 %v2992, 4294901760
  %v2994 = vsub.f32 %v2992, %v2993
  %v2995 = vand.u32 %v2994, 4294901760
  %2996 = vmatpush1.msra.mxu0 %v2995
  %2997 = vmatprep.subr.mxu0 0.0
  %v2998 = vand.u32 %v43, 4294901760
  %v2999 = vsub.f32 %v43, %v2998
  %v3000 = vand.u32 %v2999, 4294901760
  %v3001 = vsub.f32 %v2999, %v3000
  %v3002 = vand.u32 %v3001, 4294901760
  %3003 = vmatpush1.msra.mxu0 %v3002
  %3004 = vmatprep.subr.mxu0 0.0
  %v3005 = vand.u32 %v44, 4294901760
  %v3006 = vsub.f32 %v44, %v3005
  %v3007 = vand.u32 %v3006, 4294901760
  %v3008 = vsub.f32 %v3006, %v3007
  %v3009 = vand.u32 %v3008, 4294901760
  %3010 = vmatpush1.msra.mxu0 %v3009
  %3011 = vmatprep.subr.mxu0 0.0
  %v3012 = vand.u32 %v45, 4294901760
  %v3013 = vsub.f32 %v45, %v3012
  %v3014 = vand.u32 %v3013, 4294901760
  %v3015 = vsub.f32 %v3013, %v3014
  %v3016 = vand.u32 %v3015, 4294901760
  %3017 = vmatpush1.msra.mxu0 %v3016
  %3018 = vmatprep.subr.mxu0 0.0
  %3019 = vmatpush1.msra.mxu0 0.0
  %3020 = vmatprep.subr.mxu0 0.0
  %3021 = vmatpush1.msra.mxu0 0.0
  %3022 = vmatprep.subr.mxu0 0.0
  %3023 = vmatpush1.msra.mxu0 0.0
  %3024 = vmatprep.subr.mxu0 0.0
  %3025 = vmatpush1.msra.mxu0 0.0
  %3026 = vmatprep.subr.mxu0 0.0
  %3027 = vmatpush1.msra.mxu0 0.0
  %3028 = vmatprep.subr.mxu0 0.0
  %3029 = vmatpush1.msra.mxu0 0.0
  %3030 = vmatprep.subr.mxu0 0.0
  %3031 = vmatpush1.msra.mxu0 0.0
  %3032 = vmatprep.subr.mxu0 0.0
  %3033 = vmatpush1.msra.mxu0 0.0
  %3034 = vmatprep.subr.mxu0 0.0
  %3035 = vmatpush1.msra.mxu0 0.0
  %3036 = vmatprep.subr.mxu0 0.0
  %3037 = vmatpush1.msra.mxu0 0.0
  %3038 = vmatprep.subr.mxu0 0.0
  %3039 = vmatpush1.msra.mxu0 0.0
  %3040 = vmatprep.subr.mxu0 0.0
  %3041 = vmatpush1.msra.mxu0 0.0
  %3042 = vmatprep.subr.mxu0 0.0
  %3043 = vmatpush1.msra.mxu0 0.0
  %3044 = vmatprep.subr.mxu0 0.0
  %3045 = vmatpush1.msra.mxu0 0.0
  %3046 = vmatprep.subr.mxu0 0.0
  %3047 = vmatpush1.msra.mxu0 0.0
  %3048 = vmatprep.subr.mxu0 0.0
  %3049 = vmatpush1.msra.mxu0 0.0
  %3050 = vmatprep.subr.mxu0 0.0
  %3051 = vmatpush1.msra.mxu0 0.0
  %3052 = vmatprep.subr.mxu0 0.0
  %3053 = vmatpush1.msra.mxu0 0.0
  %3054 = vmatprep.subr.mxu0 0.0
  %3055 = vmatpush1.msra.mxu0 0.0
  %3056 = vmatprep.subr.mxu0 0.0
  %3057 = vmatpush1.msra.mxu0 0.0
  %3058 = vmatprep.subr.mxu0 0.0
  %3059 = vmatpush1.msra.mxu0 0.0
  %3060 = vmatprep.subr.mxu0 0.0
  %3061 = vmatpush1.msra.mxu0 0.0
  %3062 = vmatprep.subr.mxu0 0.0
  %3063 = vmatpush1.msra.mxu0 0.0
  %3064 = vmatprep.subr.mxu0 0.0
  %3065 = vmatpush1.msra.mxu0 0.0
  %3066 = vmatprep.subr.mxu0 0.0
  %3067 = vmatpush1.msra.mxu0 0.0
  %3068 = vmatprep.subr.mxu0 0.0
  %3069 = vmatpush1.msra.mxu0 0.0
  %3070 = vmatprep.subr.mxu0 0.0
  %3071 = vmatpush1.msra.mxu0 0.0
  %3072 = vmatprep.subr.mxu0 0.0
  %3073 = vmatpush1.msra.mxu0 0.0
  %3074 = vmatprep.mubr.f32.mxu0 0.0
  %v3075 = vand.u32 %v2909, 4294901760
  %3076 = vmatmul.mubr.f32.gmra.mrb[0].mxu0 %v3075
  %v3077 = vpop.f32.mrb[0].mxu0
  %v3078 = vadd.f32 %v2987, %v3077
  %v3079 = vpop.f32.mrb[0].mxu0
  %3080 = vdwg.mxu0
  %3081 = vmatprep.subr.mxu0 0.0
  %v3082 = vand.u32 %v42, 4294901760
  %v3083 = vsub.f32 %v42, %v3082
  %3084 = vmatpush1.msra.mxu0 %v3083
  %3085 = vmatprep.subr.mxu0 0.0
  %v3086 = vand.u32 %v43, 4294901760
  %v3087 = vsub.f32 %v43, %v3086
  %3088 = vmatpush1.msra.mxu0 %v3087
  %3089 = vmatprep.subr.mxu0 0.0
  %v3090 = vand.u32 %v44, 4294901760
  %v3091 = vsub.f32 %v44, %v3090
  %3092 = vmatpush1.msra.mxu0 %v3091
  %3093 = vmatprep.subr.mxu0 0.0
  %v3094 = vand.u32 %v45, 4294901760
  %v3095 = vsub.f32 %v45, %v3094
  %3096 = vmatpush1.msra.mxu0 %v3095
  %3097 = vmatprep.subr.mxu0 0.0
  %3098 = vmatpush1.msra.mxu0 0.0
  %3099 = vmatprep.subr.mxu0 0.0
  %3100 = vmatpush1.msra.mxu0 0.0
  %3101 = vmatprep.subr.mxu0 0.0
  %3102 = vmatpush1.msra.mxu0 0.0
  %3103 = vmatprep.subr.mxu0 0.0
  %3104 = vmatpush1.msra.mxu0 0.0
  %3105 = vmatprep.subr.mxu0 0.0
  %3106 = vmatpush1.msra.mxu0 0.0
  %3107 = vmatprep.subr.mxu0 0.0
  %3108 = vmatpush1.msra.mxu0 0.0
  %3109 = vmatprep.subr.mxu0 0.0
  %3110 = vmatpush1.msra.mxu0 0.0
  %3111 = vmatprep.subr.mxu0 0.0
  %3112 = vmatpush1.msra.mxu0 0.0
  %3113 = vmatprep.subr.mxu0 0.0
  %3114 = vmatpush1.msra.mxu0 0.0
  %3115 = vmatprep.subr.mxu0 0.0
  %3116 = vmatpush1.msra.mxu0 0.0
  %3117 = vmatprep.subr.mxu0 0.0
  %3118 = vmatpush1.msra.mxu0 0.0
  %3119 = vmatprep.subr.mxu0 0.0
  %3120 = vmatpush1.msra.mxu0 0.0
  %3121 = vmatprep.subr.mxu0 0.0
  %3122 = vmatpush1.msra.mxu0 0.0
  %3123 = vmatprep.subr.mxu0 0.0
  %3124 = vmatpush1.msra.mxu0 0.0
  %3125 = vmatprep.subr.mxu0 0.0
  %3126 = vmatpush1.msra.mxu0 0.0
  %3127 = vmatprep.subr.mxu0 0.0
  %3128 = vmatpush1.msra.mxu0 0.0
  %3129 = vmatprep.subr.mxu0 0.0
  %3130 = vmatpush1.msra.mxu0 0.0
  %3131 = vmatprep.subr.mxu0 0.0
  %3132 = vmatpush1.msra.mxu0 0.0
  %3133 = vmatprep.subr.mxu0 0.0
  %3134 = vmatpush1.msra.mxu0 0.0
  %3135 = vmatprep.subr.mxu0 0.0
  %3136 = vmatpush1.msra.mxu0 0.0
  %3137 = vmatprep.subr.mxu0 0.0
  %3138 = vmatpush1.msra.mxu0 0.0
  %3139 = vmatprep.subr.mxu0 0.0
  %3140 = vmatpush1.msra.mxu0 0.0
  %3141 = vmatprep.subr.mxu0 0.0
  %3142 = vmatpush1.msra.mxu0 0.0
  %3143 = vmatprep.subr.mxu0 0.0
  %3144 = vmatpush1.msra.mxu0 0.0
  %3145 = vmatprep.subr.mxu0 0.0
  %3146 = vmatpush1.msra.mxu0 0.0
  %3147 = vmatprep.subr.mxu0 0.0
  %3148 = vmatpush1.msra.mxu0 0.0
  %3149 = vmatprep.subr.mxu0 0.0
  %3150 = vmatpush1.msra.mxu0 0.0
  %3151 = vmatprep.subr.mxu0 0.0
  %3152 = vmatpush1.msra.mxu0 0.0
  %3153 = vmatprep.mubr.f32.mxu0 0.0
  %v3154 = vand.u32 %v2909, 4294901760
  %v3155 = vsub.f32 %v2909, %v3154
  %3156 = vmatmul.mubr.f32.gmra.mrb[0].mxu0 %v3155
  %v3157 = vpop.f32.mrb[0].mxu0
  %v3158 = vadd.f32 %v3078, %v3157
  %v3159 = vpop.f32.mrb[0].mxu0
  %3160 = vdwg.mxu0
  %3161 = vmatprep.subr.mxu0 0.0
  %v3162 = vand.u32 %v42, 4294901760
  %3163 = vmatpush1.msra.mxu0 %v3162
  %3164 = vmatprep.subr.mxu0 0.0
  %v3165 = vand.u32 %v43, 4294901760
  %3166 = vmatpush1.msra.mxu0 %v3165
  %3167 = vmatprep.subr.mxu0 0.0
  %v3168 = vand.u32 %v44, 4294901760
  %3169 = vmatpush1.msra.mxu0 %v3168
  %3170 = vmatprep.subr.mxu0 0.0
  %v3171 = vand.u32 %v45, 4294901760
  %3172 = vmatpush1.msra.mxu0 %v3171
  %3173 = vmatprep.subr.mxu0 0.0
  %3174 = vmatpush1.msra.mxu0 0.0
  %3175 = vmatprep.subr.mxu0 0.0
  %3176 = vmatpush1.msra.mxu0 0.0
  %3177 = vmatprep.subr.mxu0 0.0
  %3178 = vmatpush1.msra.mxu0 0.0
  %3179 = vmatprep.subr.mxu0 0.0
  %3180 = vmatpush1.msra.mxu0 0.0
  %3181 = vmatprep.subr.mxu0 0.0
  %3182 = vmatpush1.msra.mxu0 0.0
  %3183 = vmatprep.subr.mxu0 0.0
  %3184 = vmatpush1.msra.mxu0 0.0
  %3185 = vmatprep.subr.mxu0 0.0
  %3186 = vmatpush1.msra.mxu0 0.0
  %3187 = vmatprep.subr.mxu0 0.0
  %3188 = vmatpush1.msra.mxu0 0.0
  %3189 = vmatprep.subr.mxu0 0.0
  %3190 = vmatpush1.msra.mxu0 0.0
  %3191 = vmatprep.subr.mxu0 0.0
  %3192 = vmatpush1.msra.mxu0 0.0
  %3193 = vmatprep.subr.mxu0 0.0
  %3194 = vmatpush1.msra.mxu0 0.0
  %3195 = vmatprep.subr.mxu0 0.0
  %3196 = vmatpush1.msra.mxu0 0.0
  %3197 = vmatprep.subr.mxu0 0.0
  %3198 = vmatpush1.msra.mxu0 0.0
  %3199 = vmatprep.subr.mxu0 0.0
  %3200 = vmatpush1.msra.mxu0 0.0
  %3201 = vmatprep.subr.mxu0 0.0
  %3202 = vmatpush1.msra.mxu0 0.0
  %3203 = vmatprep.subr.mxu0 0.0
  %3204 = vmatpush1.msra.mxu0 0.0
  %3205 = vmatprep.subr.mxu0 0.0
  %3206 = vmatpush1.msra.mxu0 0.0
  %3207 = vmatprep.subr.mxu0 0.0
  %3208 = vmatpush1.msra.mxu0 0.0
  %3209 = vmatprep.subr.mxu0 0.0
  %3210 = vmatpush1.msra.mxu0 0.0
  %3211 = vmatprep.subr.mxu0 0.0
  %3212 = vmatpush1.msra.mxu0 0.0
  %3213 = vmatprep.subr.mxu0 0.0
  %3214 = vmatpush1.msra.mxu0 0.0
  %3215 = vmatprep.subr.mxu0 0.0
  %3216 = vmatpush1.msra.mxu0 0.0
  %3217 = vmatprep.subr.mxu0 0.0
  %3218 = vmatpush1.msra.mxu0 0.0
  %3219 = vmatprep.subr.mxu0 0.0
  %3220 = vmatpush1.msra.mxu0 0.0
  %3221 = vmatprep.subr.mxu0 0.0
  %3222 = vmatpush1.msra.mxu0 0.0
  %3223 = vmatprep.subr.mxu0 0.0
  %3224 = vmatpush1.msra.mxu0 0.0
  %3225 = vmatprep.subr.mxu0 0.0
  %3226 = vmatpush1.msra.mxu0 0.0
  %3227 = vmatprep.subr.mxu0 0.0
  %3228 = vmatpush1.msra.mxu0 0.0
  %3229 = vmatprep.mubr.f32.mxu0 0.0
  %v3230 = vand.u32 %v2909, 4294901760
  %v3231 = vsub.f32 %v2909, %v3230
  %v3232 = vand.u32 %v3231, 4294901760
  %3233 = vmatmul.mubr.f32.gmra.mrb[0].mxu0 %v3232
  %v3234 = vpop.f32.mrb[0].mxu0
  %v3235 = vadd.f32 %v3158, %v3234
  %v3236 = vpop.f32.mrb[0].mxu0
  %3237 = vdwg.mxu0
  %3238 = vmatprep.subr.mxu0 0.0
  %v3239 = vand.u32 %v42, 4294901760
  %v3240 = vsub.f32 %v42, %v3239
  %v3241 = vand.u32 %v3240, 4294901760
  %3242 = vmatpush1.msra.mxu0 %v3241
  %3243 = vmatprep.subr.mxu0 0.0
  %v3244 = vand.u32 %v43, 4294901760
  %v3245 = vsub.f32 %v43, %v3244
  %v3246 = vand.u32 %v3245, 4294901760
  %3247 = vmatpush1.msra.mxu0 %v3246
  %3248 = vmatprep.subr.mxu0 0.0
  %v3249 = vand.u32 %v44, 4294901760
  %v3250 = vsub.f32 %v44, %v3249
  %v3251 = vand.u32 %v3250, 4294901760
  %3252 = vmatpush1.msra.mxu0 %v3251
  %3253 = vmatprep.subr.mxu0 0.0
  %v3254 = vand.u32 %v45, 4294901760
  %v3255 = vsub.f32 %v45, %v3254
  %v3256 = vand.u32 %v3255, 4294901760
  %3257 = vmatpush1.msra.mxu0 %v3256
  %3258 = vmatprep.subr.mxu0 0.0
  %3259 = vmatpush1.msra.mxu0 0.0
  %3260 = vmatprep.subr.mxu0 0.0
  %3261 = vmatpush1.msra.mxu0 0.0
  %3262 = vmatprep.subr.mxu0 0.0
  %3263 = vmatpush1.msra.mxu0 0.0
  %3264 = vmatprep.subr.mxu0 0.0
  %3265 = vmatpush1.msra.mxu0 0.0
  %3266 = vmatprep.subr.mxu0 0.0
  %3267 = vmatpush1.msra.mxu0 0.0
  %3268 = vmatprep.subr.mxu0 0.0
  %3269 = vmatpush1.msra.mxu0 0.0
  %3270 = vmatprep.subr.mxu0 0.0
  %3271 = vmatpush1.msra.mxu0 0.0
  %3272 = vmatprep.subr.mxu0 0.0
  %3273 = vmatpush1.msra.mxu0 0.0
  %3274 = vmatprep.subr.mxu0 0.0
  %3275 = vmatpush1.msra.mxu0 0.0
  %3276 = vmatprep.subr.mxu0 0.0
  %3277 = vmatpush1.msra.mxu0 0.0
  %3278 = vmatprep.subr.mxu0 0.0
  %3279 = vmatpush1.msra.mxu0 0.0
  %3280 = vmatprep.subr.mxu0 0.0
  %3281 = vmatpush1.msra.mxu0 0.0
  %3282 = vmatprep.subr.mxu0 0.0
  %3283 = vmatpush1.msra.mxu0 0.0
  %3284 = vmatprep.subr.mxu0 0.0
  %3285 = vmatpush1.msra.mxu0 0.0
  %3286 = vmatprep.subr.mxu0 0.0
  %3287 = vmatpush1.msra.mxu0 0.0
  %3288 = vmatprep.subr.mxu0 0.0
  %3289 = vmatpush1.msra.mxu0 0.0
  %3290 = vmatprep.subr.mxu0 0.0
  %3291 = vmatpush1.msra.mxu0 0.0
  %3292 = vmatprep.subr.mxu0 0.0
  %3293 = vmatpush1.msra.mxu0 0.0
  %3294 = vmatprep.subr.mxu0 0.0
  %3295 = vmatpush1.msra.mxu0 0.0
  %3296 = vmatprep.subr.mxu0 0.0
  %3297 = vmatpush1.msra.mxu0 0.0
  %3298 = vmatprep.subr.mxu0 0.0
  %3299 = vmatpush1.msra.mxu0 0.0
  %3300 = vmatprep.subr.mxu0 0.0
  %3301 = vmatpush1.msra.mxu0 0.0
  %3302 = vmatprep.subr.mxu0 0.0
  %3303 = vmatpush1.msra.mxu0 0.0
  %3304 = vmatprep.subr.mxu0 0.0
  %3305 = vmatpush1.msra.mxu0 0.0
  %3306 = vmatprep.subr.mxu0 0.0
  %3307 = vmatpush1.msra.mxu0 0.0
  %3308 = vmatprep.subr.mxu0 0.0
  %3309 = vmatpush1.msra.mxu0 0.0
  %3310 = vmatprep.subr.mxu0 0.0
  %3311 = vmatpush1.msra.mxu0 0.0
  %3312 = vmatprep.subr.mxu0 0.0
  %3313 = vmatpush1.msra.mxu0 0.0
  %3314 = vmatprep.mubr.f32.mxu0 0.0
  %v3315 = vand.u32 %v2909, 4294901760
  %3316 = vmatmul.mubr.f32.gmra.mrb[0].mxu0 %v3315
  %v3317 = vpop.f32.mrb[0].mxu0
  %v3318 = vadd.f32 %v3235, %v3317
  %v3319 = vpop.f32.mrb[0].mxu0
  %3320 = vdwg.mxu0
  %3321 = vmatprep.subr.mxu0 0.0
  %v3322 = vand.u32 %v42, 4294901760
  %3323 = vmatpush1.msra.mxu0 %v3322
  %3324 = vmatprep.subr.mxu0 0.0
  %v3325 = vand.u32 %v43, 4294901760
  %3326 = vmatpush1.msra.mxu0 %v3325
  %3327 = vmatprep.subr.mxu0 0.0
  %v3328 = vand.u32 %v44, 4294901760
  %3329 = vmatpush1.msra.mxu0 %v3328
  %3330 = vmatprep.subr.mxu0 0.0
  %v3331 = vand.u32 %v45, 4294901760
  %3332 = vmatpush1.msra.mxu0 %v3331
  %3333 = vmatprep.subr.mxu0 0.0
  %3334 = vmatpush1.msra.mxu0 0.0
  %3335 = vmatprep.subr.mxu0 0.0
  %3336 = vmatpush1.msra.mxu0 0.0
  %3337 = vmatprep.subr.mxu0 0.0
  %3338 = vmatpush1.msra.mxu0 0.0
  %3339 = vmatprep.subr.mxu0 0.0
  %3340 = vmatpush1.msra.mxu0 0.0
  %3341 = vmatprep.subr.mxu0 0.0
  %3342 = vmatpush1.msra.mxu0 0.0
  %3343 = vmatprep.subr.mxu0 0.0
  %3344 = vmatpush1.msra.mxu0 0.0
  %3345 = vmatprep.subr.mxu0 0.0
  %3346 = vmatpush1.msra.mxu0 0.0
  %3347 = vmatprep.subr.mxu0 0.0
  %3348 = vmatpush1.msra.mxu0 0.0
  %3349 = vmatprep.subr.mxu0 0.0
  %3350 = vmatpush1.msra.mxu0 0.0
  %3351 = vmatprep.subr.mxu0 0.0
  %3352 = vmatpush1.msra.mxu0 0.0
  %3353 = vmatprep.subr.mxu0 0.0
  %3354 = vmatpush1.msra.mxu0 0.0
  %3355 = vmatprep.subr.mxu0 0.0
  %3356 = vmatpush1.msra.mxu0 0.0
  %3357 = vmatprep.subr.mxu0 0.0
  %3358 = vmatpush1.msra.mxu0 0.0
  %3359 = vmatprep.subr.mxu0 0.0
  %3360 = vmatpush1.msra.mxu0 0.0
  %3361 = vmatprep.subr.mxu0 0.0
  %3362 = vmatpush1.msra.mxu0 0.0
  %3363 = vmatprep.subr.mxu0 0.0
  %3364 = vmatpush1.msra.mxu0 0.0
  %3365 = vmatprep.subr.mxu0 0.0
  %3366 = vmatpush1.msra.mxu0 0.0
  %3367 = vmatprep.subr.mxu0 0.0
  %3368 = vmatpush1.msra.mxu0 0.0
  %3369 = vmatprep.subr.mxu0 0.0
  %3370 = vmatpush1.msra.mxu0 0.0
  %3371 = vmatprep.subr.mxu0 0.0
  %3372 = vmatpush1.msra.mxu0 0.0
  %3373 = vmatprep.subr.mxu0 0.0
  %3374 = vmatpush1.msra.mxu0 0.0
  %3375 = vmatprep.subr.mxu0 0.0
  %3376 = vmatpush1.msra.mxu0 0.0
  %3377 = vmatprep.subr.mxu0 0.0
  %3378 = vmatpush1.msra.mxu0 0.0
  %3379 = vmatprep.subr.mxu0 0.0
  %3380 = vmatpush1.msra.mxu0 0.0
  %3381 = vmatprep.subr.mxu0 0.0
  %3382 = vmatpush1.msra.mxu0 0.0
  %3383 = vmatprep.subr.mxu0 0.0
  %3384 = vmatpush1.msra.mxu0 0.0
  %3385 = vmatprep.subr.mxu0 0.0
  %3386 = vmatpush1.msra.mxu0 0.0
  %3387 = vmatprep.subr.mxu0 0.0
  %3388 = vmatpush1.msra.mxu0 0.0
  %3389 = vmatprep.mubr.f32.mxu0 0.0
  %v3390 = vand.u32 %v2909, 4294901760
  %3391 = vmatmul.mubr.f32.gmra.mrb[0].mxu0 %v3390
  %v3392 = vpop.f32.mrb[0].mxu0
  %v3393 = vadd.f32 %v3318, %v3392
  %v3394 = vpop.f32.mrb[0].mxu0
  %3395 = vdwg.mxu0
  %v3396 = vadd.f32 %v812, %v3393
  %v3397 = vxor.u32 %v3396, 2147483648
  %v3398 = vmul.f32 %v3397, 1.442695
  %v3399 = vpow.pop %v3398
  %v3400 = vadd.f32 %v3399, 1.0
  %v3401 = vrcp.pop %v3400
  %v3402 = vmul.f32 1.0, %v3401
  %v3403 = vtanh.pop %v3396
  %v3404 = vmul.f32 %v3402, %v2897
  %3406 = vrot.lane.b32.xlu0 %v3403, 64
  %v3407 = vpop.permute.xlu0 %3406
  %v3409 = vmul.f32 %v3402, %v3407
  %3411 = vrot.lane.b32.xlu0 %v3409, 32
  %v3412 = vpop.permute.xlu0 %3411
  %v3414 = vadd.f32 %v3404, %v3412
  %v3415 = vtanh.pop %v3414
  %3417 = vrot.lane.b32.xlu0 %v3415, 64
  %v3418 = vpop.permute.xlu0 %3417
  %v3420 = vmul.f32 %v3402, %v3418
  %3422 = vrot.lane.b32.xlu0 %v3420, 32
  %v3423 = vpop.permute.xlu0 %3422
  %3425 = vst.msk [vmem:[#allocation2 + $0x20] sm:$0xff] %vm835, %v3423
  %v3426 = vsel %vm835, %v3423, 0
  %3428 = vmatprep.subr.mxu0 0.0
  %v3429 = vand.u32 %v42, 4294901760
  %3430 = vmatpush1.msra.mxu0 %v3429
  %3431 = vmatprep.subr.mxu0 0.0
  %v3432 = vand.u32 %v43, 4294901760
  %3433 = vmatpush1.msra.mxu0 %v3432
  %3434 = vmatprep.subr.mxu0 0.0
  %v3435 = vand.u32 %v44, 4294901760
  %3436 = vmatpush1.msra.mxu0 %v3435
  %3437 = vmatprep.subr.mxu0 0.0
  %v3438 = vand.u32 %v45, 4294901760
  %3439 = vmatpush1.msra.mxu0 %v3438
  %3440 = vmatprep.subr.mxu0 0.0
  %3441 = vmatpush1.msra.mxu0 0.0
  %3442 = vmatprep.subr.mxu0 0.0
  %3443 = vmatpush1.msra.mxu0 0.0
  %3444 = vmatprep.subr.mxu0 0.0
  %3445 = vmatpush1.msra.mxu0 0.0
  %3446 = vmatprep.subr.mxu0 0.0
  %3447 = vmatpush1.msra.mxu0 0.0
  %3448 = vmatprep.subr.mxu0 0.0
  %3449 = vmatpush1.msra.mxu0 0.0
  %3450 = vmatprep.subr.mxu0 0.0
  %3451 = vmatpush1.msra.mxu0 0.0
  %3452 = vmatprep.subr.mxu0 0.0
  %3453 = vmatpush1.msra.mxu0 0.0
  %3454 = vmatprep.subr.mxu0 0.0
  %3455 = vmatpush1.msra.mxu0 0.0
  %3456 = vmatprep.subr.mxu0 0.0
  %3457 = vmatpush1.msra.mxu0 0.0
  %3458 = vmatprep.subr.mxu0 0.0
  %3459 = vmatpush1.msra.mxu0 0.0
  %3460 = vmatprep.subr.mxu0 0.0
  %3461 = vmatpush1.msra.mxu0 0.0
  %3462 = vmatprep.subr.mxu0 0.0
  %3463 = vmatpush1.msra.mxu0 0.0
  %3464 = vmatprep.subr.mxu0 0.0
  %3465 = vmatpush1.msra.mxu0 0.0
  %3466 = vmatprep.subr.mxu0 0.0
  %3467 = vmatpush1.msra.mxu0 0.0
  %3468 = vmatprep.subr.mxu0 0.0
  %3469 = vmatpush1.msra.mxu0 0.0
  %3470 = vmatprep.subr.mxu0 0.0
  %3471 = vmatpush1.msra.mxu0 0.0
  %3472 = vmatprep.subr.mxu0 0.0
  %3473 = vmatpush1.msra.mxu0 0.0
  %3474 = vmatprep.subr.mxu0 0.0
  %3475 = vmatpush1.msra.mxu0 0.0
  %3476 = vmatprep.subr.mxu0 0.0
  %3477 = vmatpush1.msra.mxu0 0.0
  %3478 = vmatprep.subr.mxu0 0.0
  %3479 = vmatpush1.msra.mxu0 0.0
  %3480 = vmatprep.subr.mxu0 0.0
  %3481 = vmatpush1.msra.mxu0 0.0
  %3482 = vmatprep.subr.mxu0 0.0
  %3483 = vmatpush1.msra.mxu0 0.0
  %3484 = vmatprep.subr.mxu0 0.0
  %3485 = vmatpush1.msra.mxu0 0.0
  %3486 = vmatprep.subr.mxu0 0.0
  %3487 = vmatpush1.msra.mxu0 0.0
  %3488 = vmatprep.subr.mxu0 0.0
  %3489 = vmatpush1.msra.mxu0 0.0
  %3490 = vmatprep.subr.mxu0 0.0
  %3491 = vmatpush1.msra.mxu0 0.0
  %3492 = vmatprep.subr.mxu0 0.0
  %3493 = vmatpush1.msra.mxu0 0.0
  %3494 = vmatprep.subr.mxu0 0.0
  %3495 = vmatpush1.msra.mxu0 0.0
  %3496 = vmatprep.mubr.f32.mxu0 0.0
  %v3497 = vand.u32 %v3426, 4294901760
  %v3498 = vsub.f32 %v3426, %v3497
  %v3499 = vand.u32 %v3498, 4294901760
  %v3500 = vsub.f32 %v3498, %v3499
  %v3501 = vand.u32 %v3500, 4294901760
  %3502 = vmatmul.mubr.f32.gmra.mrb[0].mxu0 %v3501
  %v3503 = vpop.f32.mrb[0].mxu0
  %v3504 = vadd.f32 0.0, %v3503
  %v3505 = vpop.f32.mrb[0].mxu0
  %3506 = vdwg.mxu0
  %3507 = vmatprep.subr.mxu0 0.0
  %v3508 = vand.u32 %v42, 4294901760
  %v3509 = vsub.f32 %v42, %v3508
  %v3510 = vand.u32 %v3509, 4294901760
  %v3511 = vsub.f32 %v3509, %v3510
  %v3512 = vand.u32 %v3511, 4294901760
  %3513 = vmatpush1.msra.mxu0 %v3512
  %3514 = vmatprep.subr.mxu0 0.0
  %v3515 = vand.u32 %v43, 4294901760
  %v3516 = vsub.f32 %v43, %v3515
  %v3517 = vand.u32 %v3516, 4294901760
  %v3518 = vsub.f32 %v3516, %v3517
  %v3519 = vand.u32 %v3518, 4294901760
  %3520 = vmatpush1.msra.mxu0 %v3519
  %3521 = vmatprep.subr.mxu0 0.0
  %v3522 = vand.u32 %v44, 4294901760
  %v3523 = vsub.f32 %v44, %v3522
  %v3524 = vand.u32 %v3523, 4294901760
  %v3525 = vsub.f32 %v3523, %v3524
  %v3526 = vand.u32 %v3525, 4294901760
  %3527 = vmatpush1.msra.mxu0 %v3526
  %3528 = vmatprep.subr.mxu0 0.0
  %v3529 = vand.u32 %v45, 4294901760
  %v3530 = vsub.f32 %v45, %v3529
  %v3531 = vand.u32 %v3530, 4294901760
  %v3532 = vsub.f32 %v3530, %v3531
  %v3533 = vand.u32 %v3532, 4294901760
  %3534 = vmatpush1.msra.mxu0 %v3533
  %3535 = vmatprep.subr.mxu0 0.0
  %3536 = vmatpush1.msra.mxu0 0.0
  %3537 = vmatprep.subr.mxu0 0.0
  %3538 = vmatpush1.msra.mxu0 0.0
  %3539 = vmatprep.subr.mxu0 0.0
  %3540 = vmatpush1.msra.mxu0 0.0
  %3541 = vmatprep.subr.mxu0 0.0
  %3542 = vmatpush1.msra.mxu0 0.0
  %3543 = vmatprep.subr.mxu0 0.0
  %3544 = vmatpush1.msra.mxu0 0.0
  %3545 = vmatprep.subr.mxu0 0.0
  %3546 = vmatpush1.msra.mxu0 0.0
  %3547 = vmatprep.subr.mxu0 0.0
  %3548 = vmatpush1.msra.mxu0 0.0
  %3549 = vmatprep.subr.mxu0 0.0
  %3550 = vmatpush1.msra.mxu0 0.0
  %3551 = vmatprep.subr.mxu0 0.0
  %3552 = vmatpush1.msra.mxu0 0.0
  %3553 = vmatprep.subr.mxu0 0.0
  %3554 = vmatpush1.msra.mxu0 0.0
  %3555 = vmatprep.subr.mxu0 0.0
  %3556 = vmatpush1.msra.mxu0 0.0
  %3557 = vmatprep.subr.mxu0 0.0
  %3558 = vmatpush1.msra.mxu0 0.0
  %3559 = vmatprep.subr.mxu0 0.0
  %3560 = vmatpush1.msra.mxu0 0.0
  %3561 = vmatprep.subr.mxu0 0.0
  %3562 = vmatpush1.msra.mxu0 0.0
  %3563 = vmatprep.subr.mxu0 0.0
  %3564 = vmatpush1.msra.mxu0 0.0
  %3565 = vmatprep.subr.mxu0 0.0
  %3566 = vmatpush1.msra.mxu0 0.0
  %3567 = vmatprep.subr.mxu0 0.0
  %3568 = vmatpush1.msra.mxu0 0.0
  %3569 = vmatprep.subr.mxu0 0.0
  %3570 = vmatpush1.msra.mxu0 0.0
  %3571 = vmatprep.subr.mxu0 0.0
  %3572 = vmatpush1.msra.mxu0 0.0
  %3573 = vmatprep.subr.mxu0 0.0
  %3574 = vmatpush1.msra.mxu0 0.0
  %3575 = vmatprep.subr.mxu0 0.0
  %3576 = vmatpush1.msra.mxu0 0.0
  %3577 = vmatprep.subr.mxu0 0.0
  %3578 = vmatpush1.msra.mxu0 0.0
  %3579 = vmatprep.subr.mxu0 0.0
  %3580 = vmatpush1.msra.mxu0 0.0
  %3581 = vmatprep.subr.mxu0 0.0
  %3582 = vmatpush1.msra.mxu0 0.0
  %3583 = vmatprep.subr.mxu0 0.0
  %3584 = vmatpush1.msra.mxu0 0.0
  %3585 = vmatprep.subr.mxu0 0.0
  %3586 = vmatpush1.msra.mxu0 0.0
  %3587 = vmatprep.subr.mxu0 0.0
  %3588 = vmatpush1.msra.mxu0 0.0
  %3589 = vmatprep.subr.mxu0 0.0
  %3590 = vmatpush1.msra.mxu0 0.0
  %3591 = vmatprep.mubr.f32.mxu0 0.0
  %v3592 = vand.u32 %v3426, 4294901760
  %3593 = vmatmul.mubr.f32.gmra.mrb[0].mxu0 %v3592
  %v3594 = vpop.f32.mrb[0].mxu0
  %v3595 = vadd.f32 %v3504, %v3594
  %v3596 = vpop.f32.mrb[0].mxu0
  %3597 = vdwg.mxu0
  %3598 = vmatprep.subr.mxu0 0.0
  %v3599 = vand.u32 %v42, 4294901760
  %v3600 = vsub.f32 %v42, %v3599
  %3601 = vmatpush1.msra.mxu0 %v3600
  %3602 = vmatprep.subr.mxu0 0.0
  %v3603 = vand.u32 %v43, 4294901760
  %v3604 = vsub.f32 %v43, %v3603
  %3605 = vmatpush1.msra.mxu0 %v3604
  %3606 = vmatprep.subr.mxu0 0.0
  %v3607 = vand.u32 %v44, 4294901760
  %v3608 = vsub.f32 %v44, %v3607
  %3609 = vmatpush1.msra.mxu0 %v3608
  %3610 = vmatprep.subr.mxu0 0.0
  %v3611 = vand.u32 %v45, 4294901760
  %v3612 = vsub.f32 %v45, %v3611
  %3613 = vmatpush1.msra.mxu0 %v3612
  %3614 = vmatprep.subr.mxu0 0.0
  %3615 = vmatpush1.msra.mxu0 0.0
  %3616 = vmatprep.subr.mxu0 0.0
  %3617 = vmatpush1.msra.mxu0 0.0
  %3618 = vmatprep.subr.mxu0 0.0
  %3619 = vmatpush1.msra.mxu0 0.0
  %3620 = vmatprep.subr.mxu0 0.0
  %3621 = vmatpush1.msra.mxu0 0.0
  %3622 = vmatprep.subr.mxu0 0.0
  %3623 = vmatpush1.msra.mxu0 0.0
  %3624 = vmatprep.subr.mxu0 0.0
  %3625 = vmatpush1.msra.mxu0 0.0
  %3626 = vmatprep.subr.mxu0 0.0
  %3627 = vmatpush1.msra.mxu0 0.0
  %3628 = vmatprep.subr.mxu0 0.0
  %3629 = vmatpush1.msra.mxu0 0.0
  %3630 = vmatprep.subr.mxu0 0.0
  %3631 = vmatpush1.msra.mxu0 0.0
  %3632 = vmatprep.subr.mxu0 0.0
  %3633 = vmatpush1.msra.mxu0 0.0
  %3634 = vmatprep.subr.mxu0 0.0
  %3635 = vmatpush1.msra.mxu0 0.0
  %3636 = vmatprep.subr.mxu0 0.0
  %3637 = vmatpush1.msra.mxu0 0.0
  %3638 = vmatprep.subr.mxu0 0.0
  %3639 = vmatpush1.msra.mxu0 0.0
  %3640 = vmatprep.subr.mxu0 0.0
  %3641 = vmatpush1.msra.mxu0 0.0
  %3642 = vmatprep.subr.mxu0 0.0
  %3643 = vmatpush1.msra.mxu0 0.0
  %3644 = vmatprep.subr.mxu0 0.0
  %3645 = vmatpush1.msra.mxu0 0.0
  %3646 = vmatprep.subr.mxu0 0.0
  %3647 = vmatpush1.msra.mxu0 0.0
  %3648 = vmatprep.subr.mxu0 0.0
  %3649 = vmatpush1.msra.mxu0 0.0
  %3650 = vmatprep.subr.mxu0 0.0
  %3651 = vmatpush1.msra.mxu0 0.0
  %3652 = vmatprep.subr.mxu0 0.0
  %3653 = vmatpush1.msra.mxu0 0.0
  %3654 = vmatprep.subr.mxu0 0.0
  %3655 = vmatpush1.msra.mxu0 0.0
  %3656 = vmatprep.subr.mxu0 0.0
  %3657 = vmatpush1.msra.mxu0 0.0
  %3658 = vmatprep.subr.mxu0 0.0
  %3659 = vmatpush1.msra.mxu0 0.0
  %3660 = vmatprep.subr.mxu0 0.0
  %3661 = vmatpush1.msra.mxu0 0.0
  %3662 = vmatprep.subr.mxu0 0.0
  %3663 = vmatpush1.msra.mxu0 0.0
  %3664 = vmatprep.subr.mxu0 0.0
  %3665 = vmatpush1.msra.mxu0 0.0
  %3666 = vmatprep.subr.mxu0 0.0
  %3667 = vmatpush1.msra.mxu0 0.0
  %3668 = vmatprep.subr.mxu0 0.0
  %3669 = vmatpush1.msra.mxu0 0.0
  %3670 = vmatprep.mubr.f32.mxu0 0.0
  %v3671 = vand.u32 %v3426, 4294901760
  %v3672 = vsub.f32 %v3426, %v3671
  %3673 = vmatmul.mubr.f32.gmra.mrb[0].mxu0 %v3672
  %v3674 = vpop.f32.mrb[0].mxu0
  %v3675 = vadd.f32 %v3595, %v3674
  %v3676 = vpop.f32.mrb[0].mxu0
  %3677 = vdwg.mxu0
  %3678 = vmatprep.subr.mxu0 0.0
  %v3679 = vand.u32 %v42, 4294901760
  %3680 = vmatpush1.msra.mxu0 %v3679
  %3681 = vmatprep.subr.mxu0 0.0
  %v3682 = vand.u32 %v43, 4294901760
  %3683 = vmatpush1.msra.mxu0 %v3682
  %3684 = vmatprep.subr.mxu0 0.0
  %v3685 = vand.u32 %v44, 4294901760
  %3686 = vmatpush1.msra.mxu0 %v3685
  %3687 = vmatprep.subr.mxu0 0.0
  %v3688 = vand.u32 %v45, 4294901760
  %3689 = vmatpush1.msra.mxu0 %v3688
  %3690 = vmatprep.subr.mxu0 0.0
  %3691 = vmatpush1.msra.mxu0 0.0
  %3692 = vmatprep.subr.mxu0 0.0
  %3693 = vmatpush1.msra.mxu0 0.0
  %3694 = vmatprep.subr.mxu0 0.0
  %3695 = vmatpush1.msra.mxu0 0.0
  %3696 = vmatprep.subr.mxu0 0.0
  %3697 = vmatpush1.msra.mxu0 0.0
  %3698 = vmatprep.subr.mxu0 0.0
  %3699 = vmatpush1.msra.mxu0 0.0
  %3700 = vmatprep.subr.mxu0 0.0
  %3701 = vmatpush1.msra.mxu0 0.0
  %3702 = vmatprep.subr.mxu0 0.0
  %3703 = vmatpush1.msra.mxu0 0.0
  %3704 = vmatprep.subr.mxu0 0.0
  %3705 = vmatpush1.msra.mxu0 0.0
  %3706 = vmatprep.subr.mxu0 0.0
  %3707 = vmatpush1.msra.mxu0 0.0
  %3708 = vmatprep.subr.mxu0 0.0
  %3709 = vmatpush1.msra.mxu0 0.0
  %3710 = vmatprep.subr.mxu0 0.0
  %3711 = vmatpush1.msra.mxu0 0.0
  %3712 = vmatprep.subr.mxu0 0.0
  %3713 = vmatpush1.msra.mxu0 0.0
  %3714 = vmatprep.subr.mxu0 0.0
  %3715 = vmatpush1.msra.mxu0 0.0
  %3716 = vmatprep.subr.mxu0 0.0
  %3717 = vmatpush1.msra.mxu0 0.0
  %3718 = vmatprep.subr.mxu0 0.0
  %3719 = vmatpush1.msra.mxu0 0.0
  %3720 = vmatprep.subr.mxu0 0.0
  %3721 = vmatpush1.msra.mxu0 0.0
  %3722 = vmatprep.subr.mxu0 0.0
  %3723 = vmatpush1.msra.mxu0 0.0
  %3724 = vmatprep.subr.mxu0 0.0
  %3725 = vmatpush1.msra.mxu0 0.0
  %3726 = vmatprep.subr.mxu0 0.0
  %3727 = vmatpush1.msra.mxu0 0.0
  %3728 = vmatprep.subr.mxu0 0.0
  %3729 = vmatpush1.msra.mxu0 0.0
  %3730 = vmatprep.subr.mxu0 0.0
  %3731 = vmatpush1.msra.mxu0 0.0
  %3732 = vmatprep.subr.mxu0 0.0
  %3733 = vmatpush1.msra.mxu0 0.0
  %3734 = vmatprep.subr.mxu0 0.0
  %3735 = vmatpush1.msra.mxu0 0.0
  %3736 = vmatprep.subr.mxu0 0.0
  %3737 = vmatpush1.msra.mxu0 0.0
  %3738 = vmatprep.subr.mxu0 0.0
  %3739 = vmatpush1.msra.mxu0 0.0
  %3740 = vmatprep.subr.mxu0 0.0
  %3741 = vmatpush1.msra.mxu0 0.0
  %3742 = vmatprep.subr.mxu0 0.0
  %3743 = vmatpush1.msra.mxu0 0.0
  %3744 = vmatprep.subr.mxu0 0.0
  %3745 = vmatpush1.msra.mxu0 0.0
  %3746 = vmatprep.mubr.f32.mxu0 0.0
  %v3747 = vand.u32 %v3426, 4294901760
  %v3748 = vsub.f32 %v3426, %v3747
  %v3749 = vand.u32 %v3748, 4294901760
  %3750 = vmatmul.mubr.f32.gmra.mrb[0].mxu0 %v3749
  %v3751 = vpop.f32.mrb[0].mxu0
  %v3752 = vadd.f32 %v3675, %v3751
  %v3753 = vpop.f32.mrb[0].mxu0
  %3754 = vdwg.mxu0
  %3755 = vmatprep.subr.mxu0 0.0
  %v3756 = vand.u32 %v42, 4294901760
  %v3757 = vsub.f32 %v42, %v3756
  %v3758 = vand.u32 %v3757, 4294901760
  %3759 = vmatpush1.msra.mxu0 %v3758
  %3760 = vmatprep.subr.mxu0 0.0
  %v3761 = vand.u32 %v43, 4294901760
  %v3762 = vsub.f32 %v43, %v3761
  %v3763 = vand.u32 %v3762, 4294901760
  %3764 = vmatpush1.msra.mxu0 %v3763
  %3765 = vmatprep.subr.mxu0 0.0
  %v3766 = vand.u32 %v44, 4294901760
  %v3767 = vsub.f32 %v44, %v3766
  %v3768 = vand.u32 %v3767, 4294901760
  %3769 = vmatpush1.msra.mxu0 %v3768
  %3770 = vmatprep.subr.mxu0 0.0
  %v3771 = vand.u32 %v45, 4294901760
  %v3772 = vsub.f32 %v45, %v3771
  %v3773 = vand.u32 %v3772, 4294901760
  %3774 = vmatpush1.msra.mxu0 %v3773
  %3775 = vmatprep.subr.mxu0 0.0
  %3776 = vmatpush1.msra.mxu0 0.0
  %3777 = vmatprep.subr.mxu0 0.0
  %3778 = vmatpush1.msra.mxu0 0.0
  %3779 = vmatprep.subr.mxu0 0.0
  %3780 = vmatpush1.msra.mxu0 0.0
  %3781 = vmatprep.subr.mxu0 0.0
  %3782 = vmatpush1.msra.mxu0 0.0
  %3783 = vmatprep.subr.mxu0 0.0
  %3784 = vmatpush1.msra.mxu0 0.0
  %3785 = vmatprep.subr.mxu0 0.0
  %3786 = vmatpush1.msra.mxu0 0.0
  %3787 = vmatprep.subr.mxu0 0.0
  %3788 = vmatpush1.msra.mxu0 0.0
  %3789 = vmatprep.subr.mxu0 0.0
  %3790 = vmatpush1.msra.mxu0 0.0
  %3791 = vmatprep.subr.mxu0 0.0
  %3792 = vmatpush1.msra.mxu0 0.0
  %3793 = vmatprep.subr.mxu0 0.0
  %3794 = vmatpush1.msra.mxu0 0.0
  %3795 = vmatprep.subr.mxu0 0.0
  %3796 = vmatpush1.msra.mxu0 0.0
  %3797 = vmatprep.subr.mxu0 0.0
  %3798 = vmatpush1.msra.mxu0 0.0
  %3799 = vmatprep.subr.mxu0 0.0
  %3800 = vmatpush1.msra.mxu0 0.0
  %3801 = vmatprep.subr.mxu0 0.0
  %3802 = vmatpush1.msra.mxu0 0.0
  %3803 = vmatprep.subr.mxu0 0.0
  %3804 = vmatpush1.msra.mxu0 0.0
  %3805 = vmatprep.subr.mxu0 0.0
  %3806 = vmatpush1.msra.mxu0 0.0
  %3807 = vmatprep.subr.mxu0 0.0
  %3808 = vmatpush1.msra.mxu0 0.0
  %3809 = vmatprep.subr.mxu0 0.0
  %3810 = vmatpush1.msra.mxu0 0.0
  %3811 = vmatprep.subr.mxu0 0.0
  %3812 = vmatpush1.msra.mxu0 0.0
  %3813 = vmatprep.subr.mxu0 0.0
  %3814 = vmatpush1.msra.mxu0 0.0
  %3815 = vmatprep.subr.mxu0 0.0
  %3816 = vmatpush1.msra.mxu0 0.0
  %3817 = vmatprep.subr.mxu0 0.0
  %3818 = vmatpush1.msra.mxu0 0.0
  %3819 = vmatprep.subr.mxu0 0.0
  %3820 = vmatpush1.msra.mxu0 0.0
  %3821 = vmatprep.subr.mxu0 0.0
  %3822 = vmatpush1.msra.mxu0 0.0
  %3823 = vmatprep.subr.mxu0 0.0
  %3824 = vmatpush1.msra.mxu0 0.0
  %3825 = vmatprep.subr.mxu0 0.0
  %3826 = vmatpush1.msra.mxu0 0.0
  %3827 = vmatprep.subr.mxu0 0.0
  %3828 = vmatpush1.msra.mxu0 0.0
  %3829 = vmatprep.subr.mxu0 0.0
  %3830 = vmatpush1.msra.mxu0 0.0
  %3831 = vmatprep.mubr.f32.mxu0 0.0
  %v3832 = vand.u32 %v3426, 4294901760
  %3833 = vmatmul.mubr.f32.gmra.mrb[0].mxu0 %v3832
  %v3834 = vpop.f32.mrb[0].mxu0
  %v3835 = vadd.f32 %v3752, %v3834
  %v3836 = vpop.f32.mrb[0].mxu0
  %3837 = vdwg.mxu0
  %3838 = vmatprep.subr.mxu0 0.0
  %v3839 = vand.u32 %v42, 4294901760
  %3840 = vmatpush1.msra.mxu0 %v3839
  %3841 = vmatprep.subr.mxu0 0.0
  %v3842 = vand.u32 %v43, 4294901760
  %3843 = vmatpush1.msra.mxu0 %v3842
  %3844 = vmatprep.subr.mxu0 0.0
  %v3845 = vand.u32 %v44, 4294901760
  %3846 = vmatpush1.msra.mxu0 %v3845
  %3847 = vmatprep.subr.mxu0 0.0
  %v3848 = vand.u32 %v45, 4294901760
  %3849 = vmatpush1.msra.mxu0 %v3848
  %3850 = vmatprep.subr.mxu0 0.0
  %3851 = vmatpush1.msra.mxu0 0.0
  %3852 = vmatprep.subr.mxu0 0.0
  %3853 = vmatpush1.msra.mxu0 0.0
  %3854 = vmatprep.subr.mxu0 0.0
  %3855 = vmatpush1.msra.mxu0 0.0
  %3856 = vmatprep.subr.mxu0 0.0
  %3857 = vmatpush1.msra.mxu0 0.0
  %3858 = vmatprep.subr.mxu0 0.0
  %3859 = vmatpush1.msra.mxu0 0.0
  %3860 = vmatprep.subr.mxu0 0.0
  %3861 = vmatpush1.msra.mxu0 0.0
  %3862 = vmatprep.subr.mxu0 0.0
  %3863 = vmatpush1.msra.mxu0 0.0
  %3864 = vmatprep.subr.mxu0 0.0
  %3865 = vmatpush1.msra.mxu0 0.0
  %3866 = vmatprep.subr.mxu0 0.0
  %3867 = vmatpush1.msra.mxu0 0.0
  %3868 = vmatprep.subr.mxu0 0.0
  %3869 = vmatpush1.msra.mxu0 0.0
  %3870 = vmatprep.subr.mxu0 0.0
  %3871 = vmatpush1.msra.mxu0 0.0
  %3872 = vmatprep.subr.mxu0 0.0
  %3873 = vmatpush1.msra.mxu0 0.0
  %3874 = vmatprep.subr.mxu0 0.0
  %3875 = vmatpush1.msra.mxu0 0.0
  %3876 = vmatprep.subr.mxu0 0.0
  %3877 = vmatpush1.msra.mxu0 0.0
  %3878 = vmatprep.subr.mxu0 0.0
  %3879 = vmatpush1.msra.mxu0 0.0
  %3880 = vmatprep.subr.mxu0 0.0
  %3881 = vmatpush1.msra.mxu0 0.0
  %3882 = vmatprep.subr.mxu0 0.0
  %3883 = vmatpush1.msra.mxu0 0.0
  %3884 = vmatprep.subr.mxu0 0.0
  %3885 = vmatpush1.msra.mxu0 0.0
  %3886 = vmatprep.subr.mxu0 0.0
  %3887 = vmatpush1.msra.mxu0 0.0
  %3888 = vmatprep.subr.mxu0 0.0
  %3889 = vmatpush1.msra.mxu0 0.0
  %3890 = vmatprep.subr.mxu0 0.0
  %3891 = vmatpush1.msra.mxu0 0.0
  %3892 = vmatprep.subr.mxu0 0.0
  %3893 = vmatpush1.msra.mxu0 0.0
  %3894 = vmatprep.subr.mxu0 0.0
  %3895 = vmatpush1.msra.mxu0 0.0
  %3896 = vmatprep.subr.mxu0 0.0
  %3897 = vmatpush1.msra.mxu0 0.0
  %3898 = vmatprep.subr.mxu0 0.0
  %3899 = vmatpush1.msra.mxu0 0.0
  %3900 = vmatprep.subr.mxu0 0.0
  %3901 = vmatpush1.msra.mxu0 0.0
  %3902 = vmatprep.subr.mxu0 0.0
  %3903 = vmatpush1.msra.mxu0 0.0
  %3904 = vmatprep.subr.mxu0 0.0
  %3905 = vmatpush1.msra.mxu0 0.0
  %3906 = vmatprep.mubr.f32.mxu0 0.0
  %v3907 = vand.u32 %v3426, 4294901760
  %3908 = vmatmul.mubr.f32.gmra.mrb[0].mxu0 %v3907
  %v3909 = vpop.f32.mrb[0].mxu0
  %v3910 = vadd.f32 %v3835, %v3909
  %v3911 = vpop.f32.mrb[0].mxu0
  %3912 = vdwg.mxu0
  %v3913 = vadd.f32 %v818, %v3910
  %v3914 = vxor.u32 %v3913, 2147483648
  %v3915 = vmul.f32 %v3914, 1.442695
  %v3916 = vpow.pop %v3915
  %v3917 = vadd.f32 %v3916, 1.0
  %v3918 = vrcp.pop %v3917
  %v3919 = vmul.f32 1.0, %v3918
  %v3920 = vtanh.pop %v3913
  %v3921 = vmul.f32 %v3919, %v3414
  %3923 = vrot.lane.b32.xlu0 %v3920, 64
  %v3924 = vpop.permute.xlu0 %3923
  %v3926 = vmul.f32 %v3919, %v3924
  %3928 = vrot.lane.b32.xlu0 %v3926, 32
  %v3929 = vpop.permute.xlu0 %3928
  %v3931 = vadd.f32 %v3921, %v3929
  %v3932 = vtanh.pop %v3931
  %3934 = vrot.lane.b32.xlu0 %v3932, 64
  %v3935 = vpop.permute.xlu0 %3934
  %v3937 = vmul.f32 %v3919, %v3935
  %3939 = vrot.lane.b32.xlu0 %v3937, 32
  %v3940 = vpop.permute.xlu0 %3939
  %3942 = vst.msk [vmem:[#allocation2 + $0x28] sm:$0xff] %vm835, %v3940
  %v3943 = vsel %vm835, %v3940, 0
  %3945 = vmatprep.subr.mxu0 0.0
  %v3946 = vand.u32 %v42, 4294901760
  %3947 = vmatpush1.msra.mxu0 %v3946
  %3948 = vmatprep.subr.mxu0 0.0
  %v3949 = vand.u32 %v43, 4294901760
  %3950 = vmatpush1.msra.mxu0 %v3949
  %3951 = vmatprep.subr.mxu0 0.0
  %v3952 = vand.u32 %v44, 4294901760
  %3953 = vmatpush1.msra.mxu0 %v3952
  %3954 = vmatprep.subr.mxu0 0.0
  %v3955 = vand.u32 %v45, 4294901760
  %3956 = vmatpush1.msra.mxu0 %v3955
  %3957 = vmatprep.subr.mxu0 0.0
  %3958 = vmatpush1.msra.mxu0 0.0
  %3959 = vmatprep.subr.mxu0 0.0
  %3960 = vmatpush1.msra.mxu0 0.0
  %3961 = vmatprep.subr.mxu0 0.0
  %3962 = vmatpush1.msra.mxu0 0.0
  %3963 = vmatprep.subr.mxu0 0.0
  %3964 = vmatpush1.msra.mxu0 0.0
  %3965 = vmatprep.subr.mxu0 0.0
  %3966 = vmatpush1.msra.mxu0 0.0
  %3967 = vmatprep.subr.mxu0 0.0
  %3968 = vmatpush1.msra.mxu0 0.0
  %3969 = vmatprep.subr.mxu0 0.0
  %3970 = vmatpush1.msra.mxu0 0.0
  %3971 = vmatprep.subr.mxu0 0.0
  %3972 = vmatpush1.msra.mxu0 0.0
  %3973 = vmatprep.subr.mxu0 0.0
  %3974 = vmatpush1.msra.mxu0 0.0
  %3975 = vmatprep.subr.mxu0 0.0
  %3976 = vmatpush1.msra.mxu0 0.0
  %3977 = vmatprep.subr.mxu0 0.0
  %3978 = vmatpush1.msra.mxu0 0.0
  %3979 = vmatprep.subr.mxu0 0.0
  %3980 = vmatpush1.msra.mxu0 0.0
  %3981 = vmatprep.subr.mxu0 0.0
  %3982 = vmatpush1.msra.mxu0 0.0
  %3983 = vmatprep.subr.mxu0 0.0
  %3984 = vmatpush1.msra.mxu0 0.0
  %3985 = vmatprep.subr.mxu0 0.0
  %3986 = vmatpush1.msra.mxu0 0.0
  %3987 = vmatprep.subr.mxu0 0.0
  %3988 = vmatpush1.msra.mxu0 0.0
  %3989 = vmatprep.subr.mxu0 0.0
  %3990 = vmatpush1.msra.mxu0 0.0
  %3991 = vmatprep.subr.mxu0 0.0
  %3992 = vmatpush1.msra.mxu0 0.0
  %3993 = vmatprep.subr.mxu0 0.0
  %3994 = vmatpush1.msra.mxu0 0.0
  %3995 = vmatprep.subr.mxu0 0.0
  %3996 = vmatpush1.msra.mxu0 0.0
  %3997 = vmatprep.subr.mxu0 0.0
  %3998 = vmatpush1.msra.mxu0 0.0
  %3999 = vmatprep.subr.mxu0 0.0
  %4000 = vmatpush1.msra.mxu0 0.0
  %4001 = vmatprep.subr.mxu0 0.0
  %4002 = vmatpush1.msra.mxu0 0.0
  %4003 = vmatprep.subr.mxu0 0.0
  %4004 = vmatpush1.msra.mxu0 0.0
  %4005 = vmatprep.subr.mxu0 0.0
  %4006 = vmatpush1.msra.mxu0 0.0
  %4007 = vmatprep.subr.mxu0 0.0
  %4008 = vmatpush1.msra.mxu0 0.0
  %4009 = vmatprep.subr.mxu0 0.0
  %4010 = vmatpush1.msra.mxu0 0.0
  %4011 = vmatprep.subr.mxu0 0.0
  %4012 = vmatpush1.msra.mxu0 0.0
  %4013 = vmatprep.mubr.f32.mxu0 0.0
  %v4014 = vand.u32 %v3943, 4294901760
  %v4015 = vsub.f32 %v3943, %v4014
  %v4016 = vand.u32 %v4015, 4294901760
  %v4017 = vsub.f32 %v4015, %v4016
  %v4018 = vand.u32 %v4017, 4294901760
  %4019 = vmatmul.mubr.f32.gmra.mrb[0].mxu0 %v4018
  %v4020 = vpop.f32.mrb[0].mxu0
  %v4021 = vadd.f32 0.0, %v4020
  %v4022 = vpop.f32.mrb[0].mxu0
  %4023 = vdwg.mxu0
  %4024 = vmatprep.subr.mxu0 0.0
  %v4025 = vand.u32 %v42, 4294901760
  %v4026 = vsub.f32 %v42, %v4025
  %v4027 = vand.u32 %v4026, 4294901760
  %v4028 = vsub.f32 %v4026, %v4027
  %v4029 = vand.u32 %v4028, 4294901760
  %4030 = vmatpush1.msra.mxu0 %v4029
  %4031 = vmatprep.subr.mxu0 0.0
  %v4032 = vand.u32 %v43, 4294901760
  %v4033 = vsub.f32 %v43, %v4032
  %v4034 = vand.u32 %v4033, 4294901760
  %v4035 = vsub.f32 %v4033, %v4034
  %v4036 = vand.u32 %v4035, 4294901760
  %4037 = vmatpush1.msra.mxu0 %v4036
  %4038 = vmatprep.subr.mxu0 0.0
  %v4039 = vand.u32 %v44, 4294901760
  %v4040 = vsub.f32 %v44, %v4039
  %v4041 = vand.u32 %v4040, 4294901760
  %v4042 = vsub.f32 %v4040, %v4041
  %v4043 = vand.u32 %v4042, 4294901760
  %4044 = vmatpush1.msra.mxu0 %v4043
  %4045 = vmatprep.subr.mxu0 0.0
  %v4046 = vand.u32 %v45, 4294901760
  %v4047 = vsub.f32 %v45, %v4046
  %v4048 = vand.u32 %v4047, 4294901760
  %v4049 = vsub.f32 %v4047, %v4048
  %v4050 = vand.u32 %v4049, 4294901760
  %4051 = vmatpush1.msra.mxu0 %v4050
  %4052 = vmatprep.subr.mxu0 0.0
  %4053 = vmatpush1.msra.mxu0 0.0
  %4054 = vmatprep.subr.mxu0 0.0
  %4055 = vmatpush1.msra.mxu0 0.0
  %4056 = vmatprep.subr.mxu0 0.0
  %4057 = vmatpush1.msra.mxu0 0.0
  %4058 = vmatprep.subr.mxu0 0.0
  %4059 = vmatpush1.msra.mxu0 0.0
  %4060 = vmatprep.subr.mxu0 0.0
  %4061 = vmatpush1.msra.mxu0 0.0
  %4062 = vmatprep.subr.mxu0 0.0
  %4063 = vmatpush1.msra.mxu0 0.0
  %4064 = vmatprep.subr.mxu0 0.0
  %4065 = vmatpush1.msra.mxu0 0.0
  %4066 = vmatprep.subr.mxu0 0.0
  %4067 = vmatpush1.msra.mxu0 0.0
  %4068 = vmatprep.subr.mxu0 0.0
  %4069 = vmatpush1.msra.mxu0 0.0
  %4070 = vmatprep.subr.mxu0 0.0
  %4071 = vmatpush1.msra.mxu0 0.0
  %4072 = vmatprep.subr.mxu0 0.0
  %4073 = vmatpush1.msra.mxu0 0.0
  %4074 = vmatprep.subr.mxu0 0.0
  %4075 = vmatpush1.msra.mxu0 0.0
  %4076 = vmatprep.subr.mxu0 0.0
  %4077 = vmatpush1.msra.mxu0 0.0
  %4078 = vmatprep.subr.mxu0 0.0
  %4079 = vmatpush1.msra.mxu0 0.0
  %4080 = vmatprep.subr.mxu0 0.0
  %4081 = vmatpush1.msra.mxu0 0.0
  %4082 = vmatprep.subr.mxu0 0.0
  %4083 = vmatpush1.msra.mxu0 0.0
  %4084 = vmatprep.subr.mxu0 0.0
  %4085 = vmatpush1.msra.mxu0 0.0
  %4086 = vmatprep.subr.mxu0 0.0
  %4087 = vmatpush1.msra.mxu0 0.0
  %4088 = vmatprep.subr.mxu0 0.0
  %4089 = vmatpush1.msra.mxu0 0.0
  %4090 = vmatprep.subr.mxu0 0.0
  %4091 = vmatpush1.msra.mxu0 0.0
  %4092 = vmatprep.subr.mxu0 0.0
  %4093 = vmatpush1.msra.mxu0 0.0
  %4094 = vmatprep.subr.mxu0 0.0
  %4095 = vmatpush1.msra.mxu0 0.0
  %4096 = vmatprep.subr.mxu0 0.0
  %4097 = vmatpush1.msra.mxu0 0.0
  %4098 = vmatprep.subr.mxu0 0.0
  %4099 = vmatpush1.msra.mxu0 0.0
  %4100 = vmatprep.subr.mxu0 0.0
  %4101 = vmatpush1.msra.mxu0 0.0
  %4102 = vmatprep.subr.mxu0 0.0
  %4103 = vmatpush1.msra.mxu0 0.0
  %4104 = vmatprep.subr.mxu0 0.0
  %4105 = vmatpush1.msra.mxu0 0.0
  %4106 = vmatprep.subr.mxu0 0.0
  %4107 = vmatpush1.msra.mxu0 0.0
  %4108 = vmatprep.mubr.f32.mxu0 0.0
  %v4109 = vand.u32 %v3943, 4294901760
  %4110 = vmatmul.mubr.f32.gmra.mrb[0].mxu0 %v4109
  %v4111 = vpop.f32.mrb[0].mxu0
  %v4112 = vadd.f32 %v4021, %v4111
  %v4113 = vpop.f32.mrb[0].mxu0
  %4114 = vdwg.mxu0
  %4115 = vmatprep.subr.mxu0 0.0
  %v4116 = vand.u32 %v42, 4294901760
  %v4117 = vsub.f32 %v42, %v4116
  %4118 = vmatpush1.msra.mxu0 %v4117
  %4119 = vmatprep.subr.mxu0 0.0
  %v4120 = vand.u32 %v43, 4294901760
  %v4121 = vsub.f32 %v43, %v4120
  %4122 = vmatpush1.msra.mxu0 %v4121
  %4123 = vmatprep.subr.mxu0 0.0
  %v4124 = vand.u32 %v44, 4294901760
  %v4125 = vsub.f32 %v44, %v4124
  %4126 = vmatpush1.msra.mxu0 %v4125
  %4127 = vmatprep.subr.mxu0 0.0
  %v4128 = vand.u32 %v45, 4294901760
  %v4129 = vsub.f32 %v45, %v4128
  %4130 = vmatpush1.msra.mxu0 %v4129
  %4131 = vmatprep.subr.mxu0 0.0
  %4132 = vmatpush1.msra.mxu0 0.0
  %4133 = vmatprep.subr.mxu0 0.0
  %4134 = vmatpush1.msra.mxu0 0.0
  %4135 = vmatprep.subr.mxu0 0.0
  %4136 = vmatpush1.msra.mxu0 0.0
  %4137 = vmatprep.subr.mxu0 0.0
  %4138 = vmatpush1.msra.mxu0 0.0
  %4139 = vmatprep.subr.mxu0 0.0
  %4140 = vmatpush1.msra.mxu0 0.0
  %4141 = vmatprep.subr.mxu0 0.0
  %4142 = vmatpush1.msra.mxu0 0.0
  %4143 = vmatprep.subr.mxu0 0.0
  %4144 = vmatpush1.msra.mxu0 0.0
  %4145 = vmatprep.subr.mxu0 0.0
  %4146 = vmatpush1.msra.mxu0 0.0
  %4147 = vmatprep.subr.mxu0 0.0
  %4148 = vmatpush1.msra.mxu0 0.0
  %4149 = vmatprep.subr.mxu0 0.0
  %4150 = vmatpush1.msra.mxu0 0.0
  %4151 = vmatprep.subr.mxu0 0.0
  %4152 = vmatpush1.msra.mxu0 0.0
  %4153 = vmatprep.subr.mxu0 0.0
  %4154 = vmatpush1.msra.mxu0 0.0
  %4155 = vmatprep.subr.mxu0 0.0
  %4156 = vmatpush1.msra.mxu0 0.0
  %4157 = vmatprep.subr.mxu0 0.0
  %4158 = vmatpush1.msra.mxu0 0.0
  %4159 = vmatprep.subr.mxu0 0.0
  %4160 = vmatpush1.msra.mxu0 0.0
  %4161 = vmatprep.subr.mxu0 0.0
  %4162 = vmatpush1.msra.mxu0 0.0
  %4163 = vmatprep.subr.mxu0 0.0
  %4164 = vmatpush1.msra.mxu0 0.0
  %4165 = vmatprep.subr.mxu0 0.0
  %4166 = vmatpush1.msra.mxu0 0.0
  %4167 = vmatprep.subr.mxu0 0.0
  %4168 = vmatpush1.msra.mxu0 0.0
  %4169 = vmatprep.subr.mxu0 0.0
  %4170 = vmatpush1.msra.mxu0 0.0
  %4171 = vmatprep.subr.mxu0 0.0
  %4172 = vmatpush1.msra.mxu0 0.0
  %4173 = vmatprep.subr.mxu0 0.0
  %4174 = vmatpush1.msra.mxu0 0.0
  %4175 = vmatprep.subr.mxu0 0.0
  %4176 = vmatpush1.msra.mxu0 0.0
  %4177 = vmatprep.subr.mxu0 0.0
  %4178 = vmatpush1.msra.mxu0 0.0
  %4179 = vmatprep.subr.mxu0 0.0
  %4180 = vmatpush1.msra.mxu0 0.0
  %4181 = vmatprep.subr.mxu0 0.0
  %4182 = vmatpush1.msra.mxu0 0.0
  %4183 = vmatprep.subr.mxu0 0.0
  %4184 = vmatpush1.msra.mxu0 0.0
  %4185 = vmatprep.subr.mxu0 0.0
  %4186 = vmatpush1.msra.mxu0 0.0
  %4187 = vmatprep.mubr.f32.mxu0 0.0
  %v4188 = vand.u32 %v3943, 4294901760
  %v4189 = vsub.f32 %v3943, %v4188
  %4190 = vmatmul.mubr.f32.gmra.mrb[0].mxu0 %v4189
  %v4191 = vpop.f32.mrb[0].mxu0
  %v4192 = vadd.f32 %v4112, %v4191
  %v4193 = vpop.f32.mrb[0].mxu0
  %4194 = vdwg.mxu0
  %4195 = vmatprep.subr.mxu0 0.0
  %v4196 = vand.u32 %v42, 4294901760
  %4197 = vmatpush1.msra.mxu0 %v4196
  %4198 = vmatprep.subr.mxu0 0.0
  %v4199 = vand.u32 %v43, 4294901760
  %4200 = vmatpush1.msra.mxu0 %v4199
  %4201 = vmatprep.subr.mxu0 0.0
  %v4202 = vand.u32 %v44, 4294901760
  %4203 = vmatpush1.msra.mxu0 %v4202
  %4204 = vmatprep.subr.mxu0 0.0
  %v4205 = vand.u32 %v45, 4294901760
  %4206 = vmatpush1.msra.mxu0 %v4205
  %4207 = vmatprep.subr.mxu0 0.0
  %4208 = vmatpush1.msra.mxu0 0.0
  %4209 = vmatprep.subr.mxu0 0.0
  %4210 = vmatpush1.msra.mxu0 0.0
  %4211 = vmatprep.subr.mxu0 0.0
  %4212 = vmatpush1.msra.mxu0 0.0
  %4213 = vmatprep.subr.mxu0 0.0
  %4214 = vmatpush1.msra.mxu0 0.0
  %4215 = vmatprep.subr.mxu0 0.0
  %4216 = vmatpush1.msra.mxu0 0.0
  %4217 = vmatprep.subr.mxu0 0.0
  %4218 = vmatpush1.msra.mxu0 0.0
  %4219 = vmatprep.subr.mxu0 0.0
  %4220 = vmatpush1.msra.mxu0 0.0
  %4221 = vmatprep.subr.mxu0 0.0
  %4222 = vmatpush1.msra.mxu0 0.0
  %4223 = vmatprep.subr.mxu0 0.0
  %4224 = vmatpush1.msra.mxu0 0.0
  %4225 = vmatprep.subr.mxu0 0.0
  %4226 = vmatpush1.msra.mxu0 0.0
  %4227 = vmatprep.subr.mxu0 0.0
  %4228 = vmatpush1.msra.mxu0 0.0
  %4229 = vmatprep.subr.mxu0 0.0
  %4230 = vmatpush1.msra.mxu0 0.0
  %4231 = vmatprep.subr.mxu0 0.0
  %4232 = vmatpush1.msra.mxu0 0.0
  %4233 = vmatprep.subr.mxu0 0.0
  %4234 = vmatpush1.msra.mxu0 0.0
  %4235 = vmatprep.subr.mxu0 0.0
  %4236 = vmatpush1.msra.mxu0 0.0
  %4237 = vmatprep.subr.mxu0 0.0
  %4238 = vmatpush1.msra.mxu0 0.0
  %4239 = vmatprep.subr.mxu0 0.0
  %4240 = vmatpush1.msra.mxu0 0.0
  %4241 = vmatprep.subr.mxu0 0.0
  %4242 = vmatpush1.msra.mxu0 0.0
  %4243 = vmatprep.subr.mxu0 0.0
  %4244 = vmatpush1.msra.mxu0 0.0
  %4245 = vmatprep.subr.mxu0 0.0
  %4246 = vmatpush1.msra.mxu0 0.0
  %4247 = vmatprep.subr.mxu0 0.0
  %4248 = vmatpush1.msra.mxu0 0.0
  %4249 = vmatprep.subr.mxu0 0.0
  %4250 = vmatpush1.msra.mxu0 0.0
  %4251 = vmatprep.subr.mxu0 0.0
  %4252 = vmatpush1.msra.mxu0 0.0
  %4253 = vmatprep.subr.mxu0 0.0
  %4254 = vmatpush1.msra.mxu0 0.0
  %4255 = vmatprep.subr.mxu0 0.0
  %4256 = vmatpush1.msra.mxu0 0.0
  %4257 = vmatprep.subr.mxu0 0.0
  %4258 = vmatpush1.msra.mxu0 0.0
  %4259 = vmatprep.subr.mxu0 0.0
  %4260 = vmatpush1.msra.mxu0 0.0
  %4261 = vmatprep.subr.mxu0 0.0
  %4262 = vmatpush1.msra.mxu0 0.0
  %4263 = vmatprep.mubr.f32.mxu0 0.0
  %v4264 = vand.u32 %v3943, 4294901760
  %v4265 = vsub.f32 %v3943, %v4264
  %v4266 = vand.u32 %v4265, 4294901760
  %4267 = vmatmul.mubr.f32.gmra.mrb[0].mxu0 %v4266
  %v4268 = vpop.f32.mrb[0].mxu0
  %v4269 = vadd.f32 %v4192, %v4268
  %v4270 = vpop.f32.mrb[0].mxu0
  %4271 = vdwg.mxu0
  %4272 = vmatprep.subr.mxu0 0.0
  %v4273 = vand.u32 %v42, 4294901760
  %v4274 = vsub.f32 %v42, %v4273
  %v4275 = vand.u32 %v4274, 4294901760
  %4276 = vmatpush1.msra.mxu0 %v4275
  %4277 = vmatprep.subr.mxu0 0.0
  %v4278 = vand.u32 %v43, 4294901760
  %v4279 = vsub.f32 %v43, %v4278
  %v4280 = vand.u32 %v4279, 4294901760
  %4281 = vmatpush1.msra.mxu0 %v4280
  %4282 = vmatprep.subr.mxu0 0.0
  %v4283 = vand.u32 %v44, 4294901760
  %v4284 = vsub.f32 %v44, %v4283
  %v4285 = vand.u32 %v4284, 4294901760
  %4286 = vmatpush1.msra.mxu0 %v4285
  %4287 = vmatprep.subr.mxu0 0.0
  %v4288 = vand.u32 %v45, 4294901760
  %v4289 = vsub.f32 %v45, %v4288
  %v4290 = vand.u32 %v4289, 4294901760
  %4291 = vmatpush1.msra.mxu0 %v4290
  %4292 = vmatprep.subr.mxu0 0.0
  %4293 = vmatpush1.msra.mxu0 0.0
  %4294 = vmatprep.subr.mxu0 0.0
  %4295 = vmatpush1.msra.mxu0 0.0
  %4296 = vmatprep.subr.mxu0 0.0
  %4297 = vmatpush1.msra.mxu0 0.0
  %4298 = vmatprep.subr.mxu0 0.0
  %4299 = vmatpush1.msra.mxu0 0.0
  %4300 = vmatprep.subr.mxu0 0.0
  %4301 = vmatpush1.msra.mxu0 0.0
  %4302 = vmatprep.subr.mxu0 0.0
  %4303 = vmatpush1.msra.mxu0 0.0
  %4304 = vmatprep.subr.mxu0 0.0
  %4305 = vmatpush1.msra.mxu0 0.0
  %4306 = vmatprep.subr.mxu0 0.0
  %4307 = vmatpush1.msra.mxu0 0.0
  %4308 = vmatprep.subr.mxu0 0.0
  %4309 = vmatpush1.msra.mxu0 0.0
  %4310 = vmatprep.subr.mxu0 0.0
  %4311 = vmatpush1.msra.mxu0 0.0
  %4312 = vmatprep.subr.mxu0 0.0
  %4313 = vmatpush1.msra.mxu0 0.0
  %4314 = vmatprep.subr.mxu0 0.0
  %4315 = vmatpush1.msra.mxu0 0.0
  %4316 = vmatprep.subr.mxu0 0.0
  %4317 = vmatpush1.msra.mxu0 0.0
  %4318 = vmatprep.subr.mxu0 0.0
  %4319 = vmatpush1.msra.mxu0 0.0
  %4320 = vmatprep.subr.mxu0 0.0
  %4321 = vmatpush1.msra.mxu0 0.0
  %4322 = vmatprep.subr.mxu0 0.0
  %4323 = vmatpush1.msra.mxu0 0.0
  %4324 = vmatprep.subr.mxu0 0.0
  %4325 = vmatpush1.msra.mxu0 0.0
  %4326 = vmatprep.subr.mxu0 0.0
  %4327 = vmatpush1.msra.mxu0 0.0
  %4328 = vmatprep.subr.mxu0 0.0
  %4329 = vmatpush1.msra.mxu0 0.0
  %4330 = vmatprep.subr.mxu0 0.0
  %4331 = vmatpush1.msra.mxu0 0.0
  %4332 = vmatprep.subr.mxu0 0.0
  %4333 = vmatpush1.msra.mxu0 0.0
  %4334 = vmatprep.subr.mxu0 0.0
  %4335 = vmatpush1.msra.mxu0 0.0
  %4336 = vmatprep.subr.mxu0 0.0
  %4337 = vmatpush1.msra.mxu0 0.0
  %4338 = vmatprep.subr.mxu0 0.0
  %4339 = vmatpush1.msra.mxu0 0.0
  %4340 = vmatprep.subr.mxu0 0.0
  %4341 = vmatpush1.msra.mxu0 0.0
  %4342 = vmatprep.subr.mxu0 0.0
  %4343 = vmatpush1.msra.mxu0 0.0
  %4344 = vmatprep.subr.mxu0 0.0
  %4345 = vmatpush1.msra.mxu0 0.0
  %4346 = vmatprep.subr.mxu0 0.0
  %4347 = vmatpush1.msra.mxu0 0.0
  %4348 = vmatprep.mubr.f32.mxu0 0.0
  %v4349 = vand.u32 %v3943, 4294901760
  %4350 = vmatmul.mubr.f32.gmra.mrb[0].mxu0 %v4349
  %v4351 = vpop.f32.mrb[0].mxu0
  %v4352 = vadd.f32 %v4269, %v4351
  %v4353 = vpop.f32.mrb[0].mxu0
  %4354 = vdwg.mxu0
  %4355 = vmatprep.subr.mxu0 0.0
  %v4356 = vand.u32 %v42, 4294901760
  %4357 = vmatpush1.msra.mxu0 %v4356
  %4358 = vmatprep.subr.mxu0 0.0
  %v4359 = vand.u32 %v43, 4294901760
  %4360 = vmatpush1.msra.mxu0 %v4359
  %4361 = vmatprep.subr.mxu0 0.0
  %v4362 = vand.u32 %v44, 4294901760
  %4363 = vmatpush1.msra.mxu0 %v4362
  %4364 = vmatprep.subr.mxu0 0.0
  %v4365 = vand.u32 %v45, 4294901760
  %4366 = vmatpush1.msra.mxu0 %v4365
  %4367 = vmatprep.subr.mxu0 0.0
  %4368 = vmatpush1.msra.mxu0 0.0
  %4369 = vmatprep.subr.mxu0 0.0
  %4370 = vmatpush1.msra.mxu0 0.0
  %4371 = vmatprep.subr.mxu0 0.0
  %4372 = vmatpush1.msra.mxu0 0.0
  %4373 = vmatprep.subr.mxu0 0.0
  %4374 = vmatpush1.msra.mxu0 0.0
  %4375 = vmatprep.subr.mxu0 0.0
  %4376 = vmatpush1.msra.mxu0 0.0
  %4377 = vmatprep.subr.mxu0 0.0
  %4378 = vmatpush1.msra.mxu0 0.0
  %4379 = vmatprep.subr.mxu0 0.0
  %4380 = vmatpush1.msra.mxu0 0.0
  %4381 = vmatprep.subr.mxu0 0.0
  %4382 = vmatpush1.msra.mxu0 0.0
  %4383 = vmatprep.subr.mxu0 0.0
  %4384 = vmatpush1.msra.mxu0 0.0
  %4385 = vmatprep.subr.mxu0 0.0
  %4386 = vmatpush1.msra.mxu0 0.0
  %4387 = vmatprep.subr.mxu0 0.0
  %4388 = vmatpush1.msra.mxu0 0.0
  %4389 = vmatprep.subr.mxu0 0.0
  %4390 = vmatpush1.msra.mxu0 0.0
  %4391 = vmatprep.subr.mxu0 0.0
  %4392 = vmatpush1.msra.mxu0 0.0
  %4393 = vmatprep.subr.mxu0 0.0
  %4394 = vmatpush1.msra.mxu0 0.0
  %4395 = vmatprep.subr.mxu0 0.0
  %4396 = vmatpush1.msra.mxu0 0.0
  %4397 = vmatprep.subr.mxu0 0.0
  %4398 = vmatpush1.msra.mxu0 0.0
  %4399 = vmatprep.subr.mxu0 0.0
  %4400 = vmatpush1.msra.mxu0 0.0
  %4401 = vmatprep.subr.mxu0 0.0
  %4402 = vmatpush1.msra.mxu0 0.0
  %4403 = vmatprep.subr.mxu0 0.0
  %4404 = vmatpush1.msra.mxu0 0.0
  %4405 = vmatprep.subr.mxu0 0.0
  %4406 = vmatpush1.msra.mxu0 0.0
  %4407 = vmatprep.subr.mxu0 0.0
  %4408 = vmatpush1.msra.mxu0 0.0
  %4409 = vmatprep.subr.mxu0 0.0
  %4410 = vmatpush1.msra.mxu0 0.0
  %4411 = vmatprep.subr.mxu0 0.0
  %4412 = vmatpush1.msra.mxu0 0.0
  %4413 = vmatprep.subr.mxu0 0.0
  %4414 = vmatpush1.msra.mxu0 0.0
  %4415 = vmatprep.subr.mxu0 0.0
  %4416 = vmatpush1.msra.mxu0 0.0
  %4417 = vmatprep.subr.mxu0 0.0
  %4418 = vmatpush1.msra.mxu0 0.0
  %4419 = vmatprep.subr.mxu0 0.0
  %4420 = vmatpush1.msra.mxu0 0.0
  %4421 = vmatprep.subr.mxu0 0.0
  %4422 = vmatpush1.msra.mxu0 0.0
  %4423 = vmatprep.mubr.f32.mxu0 0.0
  %v4424 = vand.u32 %v3943, 4294901760
  %4425 = vmatmul.mubr.f32.gmra.mrb[0].mxu0 %v4424
  %v4426 = vpop.f32.mrb[0].mxu0
  %v4427 = vadd.f32 %v4352, %v4426
  %v4428 = vpop.f32.mrb[0].mxu0
  %4429 = vdwg.mxu0
  %v4430 = vadd.f32 %v824, %v4427
  %v4431 = vxor.u32 %v4430, 2147483648
  %v4432 = vmul.f32 %v4431, 1.442695
  %v4433 = vpow.pop %v4432
  %v4434 = vadd.f32 %v4433, 1.0
  %v4435 = vrcp.pop %v4434
  %v4436 = vmul.f32 1.0, %v4435
  %v4437 = vtanh.pop %v4430
  %v4438 = vmul.f32 %v4436, %v3931
  %4440 = vrot.lane.b32.xlu0 %v4437, 64
  %v4441 = vpop.permute.xlu0 %4440
  %v4443 = vmul.f32 %v4436, %v4441
  %4445 = vrot.lane.b32.xlu0 %v4443, 32
  %v4446 = vpop.permute.xlu0 %4445
  %v4448 = vadd.f32 %v4438, %v4446
  %v4449 = vtanh.pop %v4448
  %4451 = vrot.lane.b32.xlu0 %v4449, 64
  %v4452 = vpop.permute.xlu0 %4451
  %v4454 = vmul.f32 %v4436, %v4452
  %4456 = vrot.lane.b32.xlu0 %v4454, 32
  %v4457 = vpop.permute.xlu0 %4456
  %4459 = vst.msk [vmem:[#allocation2 + $0x30] sm:$0xff] %vm835, %v4457
  %v4460 = vsel %vm835, %v4457, 0
  %4462 = vmatprep.subr.mxu0 0.0
  %v4463 = vand.u32 %v42, 4294901760
  %4464 = vmatpush1.msra.mxu0 %v4463
  %4465 = vmatprep.subr.mxu0 0.0
  %v4466 = vand.u32 %v43, 4294901760
  %4467 = vmatpush1.msra.mxu0 %v4466
  %4468 = vmatprep.subr.mxu0 0.0
  %v4469 = vand.u32 %v44, 4294901760
  %4470 = vmatpush1.msra.mxu0 %v4469
  %4471 = vmatprep.subr.mxu0 0.0
  %v4472 = vand.u32 %v45, 4294901760
  %4473 = vmatpush1.msra.mxu0 %v4472
  %4474 = vmatprep.subr.mxu0 0.0
  %4475 = vmatpush1.msra.mxu0 0.0
  %4476 = vmatprep.subr.mxu0 0.0
  %4477 = vmatpush1.msra.mxu0 0.0
  %4478 = vmatprep.subr.mxu0 0.0
  %4479 = vmatpush1.msra.mxu0 0.0
  %4480 = vmatprep.subr.mxu0 0.0
  %4481 = vmatpush1.msra.mxu0 0.0
  %4482 = vmatprep.subr.mxu0 0.0
  %4483 = vmatpush1.msra.mxu0 0.0
  %4484 = vmatprep.subr.mxu0 0.0
  %4485 = vmatpush1.msra.mxu0 0.0
  %4486 = vmatprep.subr.mxu0 0.0
  %4487 = vmatpush1.msra.mxu0 0.0
  %4488 = vmatprep.subr.mxu0 0.0
  %4489 = vmatpush1.msra.mxu0 0.0
  %4490 = vmatprep.subr.mxu0 0.0
  %4491 = vmatpush1.msra.mxu0 0.0
  %4492 = vmatprep.subr.mxu0 0.0
  %4493 = vmatpush1.msra.mxu0 0.0
  %4494 = vmatprep.subr.mxu0 0.0
  %4495 = vmatpush1.msra.mxu0 0.0
  %4496 = vmatprep.subr.mxu0 0.0
  %4497 = vmatpush1.msra.mxu0 0.0
  %4498 = vmatprep.subr.mxu0 0.0
  %4499 = vmatpush1.msra.mxu0 0.0
  %4500 = vmatprep.subr.mxu0 0.0
  %4501 = vmatpush1.msra.mxu0 0.0
  %4502 = vmatprep.subr.mxu0 0.0
  %4503 = vmatpush1.msra.mxu0 0.0
  %4504 = vmatprep.subr.mxu0 0.0
  %4505 = vmatpush1.msra.mxu0 0.0
  %4506 = vmatprep.subr.mxu0 0.0
  %4507 = vmatpush1.msra.mxu0 0.0
  %4508 = vmatprep.subr.mxu0 0.0
  %4509 = vmatpush1.msra.mxu0 0.0
  %4510 = vmatprep.subr.mxu0 0.0
  %4511 = vmatpush1.msra.mxu0 0.0
  %4512 = vmatprep.subr.mxu0 0.0
  %4513 = vmatpush1.msra.mxu0 0.0
  %4514 = vmatprep.subr.mxu0 0.0
  %4515 = vmatpush1.msra.mxu0 0.0
  %4516 = vmatprep.subr.mxu0 0.0
  %4517 = vmatpush1.msra.mxu0 0.0
  %4518 = vmatprep.subr.mxu0 0.0
  %4519 = vmatpush1.msra.mxu0 0.0
  %4520 = vmatprep.subr.mxu0 0.0
  %4521 = vmatpush1.msra.mxu0 0.0
  %4522 = vmatprep.subr.mxu0 0.0
  %4523 = vmatpush1.msra.mxu0 0.0
  %4524 = vmatprep.subr.mxu0 0.0
  %4525 = vmatpush1.msra.mxu0 0.0
  %4526 = vmatprep.subr.mxu0 0.0
  %4527 = vmatpush1.msra.mxu0 0.0
  %4528 = vmatprep.subr.mxu0 0.0
  %4529 = vmatpush1.msra.mxu0 0.0
  %4530 = vmatprep.mubr.f32.mxu0 0.0
  %v4531 = vand.u32 %v4460, 4294901760
  %v4532 = vsub.f32 %v4460, %v4531
  %v4533 = vand.u32 %v4532, 4294901760
  %v4534 = vsub.f32 %v4532, %v4533
  %v4535 = vand.u32 %v4534, 4294901760
  %4536 = vmatmul.mubr.f32.gmra.mrb[0].mxu0 %v4535
  %v4537 = vpop.f32.mrb[0].mxu0
  %v4538 = vadd.f32 0.0, %v4537
  %v4539 = vpop.f32.mrb[0].mxu0
  %4540 = vdwg.mxu0
  %4541 = vmatprep.subr.mxu0 0.0
  %v4542 = vand.u32 %v42, 4294901760
  %v4543 = vsub.f32 %v42, %v4542
  %v4544 = vand.u32 %v4543, 4294901760
  %v4545 = vsub.f32 %v4543, %v4544
  %v4546 = vand.u32 %v4545, 4294901760
  %4547 = vmatpush1.msra.mxu0 %v4546
  %4548 = vmatprep.subr.mxu0 0.0
  %v4549 = vand.u32 %v43, 4294901760
  %v4550 = vsub.f32 %v43, %v4549
  %v4551 = vand.u32 %v4550, 4294901760
  %v4552 = vsub.f32 %v4550, %v4551
  %v4553 = vand.u32 %v4552, 4294901760
  %4554 = vmatpush1.msra.mxu0 %v4553
  %4555 = vmatprep.subr.mxu0 0.0
  %v4556 = vand.u32 %v44, 4294901760
  %v4557 = vsub.f32 %v44, %v4556
  %v4558 = vand.u32 %v4557, 4294901760
  %v4559 = vsub.f32 %v4557, %v4558
  %v4560 = vand.u32 %v4559, 4294901760
  %4561 = vmatpush1.msra.mxu0 %v4560
  %4562 = vmatprep.subr.mxu0 0.0
  %v4563 = vand.u32 %v45, 4294901760
  %v4564 = vsub.f32 %v45, %v4563
  %v4565 = vand.u32 %v4564, 4294901760
  %v4566 = vsub.f32 %v4564, %v4565
  %v4567 = vand.u32 %v4566, 4294901760
  %4568 = vmatpush1.msra.mxu0 %v4567
  %4569 = vmatprep.subr.mxu0 0.0
  %4570 = vmatpush1.msra.mxu0 0.0
  %4571 = vmatprep.subr.mxu0 0.0
  %4572 = vmatpush1.msra.mxu0 0.0
  %4573 = vmatprep.subr.mxu0 0.0
  %4574 = vmatpush1.msra.mxu0 0.0
  %4575 = vmatprep.subr.mxu0 0.0
  %4576 = vmatpush1.msra.mxu0 0.0
  %4577 = vmatprep.subr.mxu0 0.0
  %4578 = vmatpush1.msra.mxu0 0.0
  %4579 = vmatprep.subr.mxu0 0.0
  %4580 = vmatpush1.msra.mxu0 0.0
  %4581 = vmatprep.subr.mxu0 0.0
  %4582 = vmatpush1.msra.mxu0 0.0
  %4583 = vmatprep.subr.mxu0 0.0
  %4584 = vmatpush1.msra.mxu0 0.0
  %4585 = vmatprep.subr.mxu0 0.0
  %4586 = vmatpush1.msra.mxu0 0.0
  %4587 = vmatprep.subr.mxu0 0.0
  %4588 = vmatpush1.msra.mxu0 0.0
  %4589 = vmatprep.subr.mxu0 0.0
  %4590 = vmatpush1.msra.mxu0 0.0
  %4591 = vmatprep.subr.mxu0 0.0
  %4592 = vmatpush1.msra.mxu0 0.0
  %4593 = vmatprep.subr.mxu0 0.0
  %4594 = vmatpush1.msra.mxu0 0.0
  %4595 = vmatprep.subr.mxu0 0.0
  %4596 = vmatpush1.msra.mxu0 0.0
  %4597 = vmatprep.subr.mxu0 0.0
  %4598 = vmatpush1.msra.mxu0 0.0
  %4599 = vmatprep.subr.mxu0 0.0
  %4600 = vmatpush1.msra.mxu0 0.0
  %4601 = vmatprep.subr.mxu0 0.0
  %4602 = vmatpush1.msra.mxu0 0.0
  %4603 = vmatprep.subr.mxu0 0.0
  %4604 = vmatpush1.msra.mxu0 0.0
  %4605 = vmatprep.subr.mxu0 0.0
  %4606 = vmatpush1.msra.mxu0 0.0
  %4607 = vmatprep.subr.mxu0 0.0
  %4608 = vmatpush1.msra.mxu0 0.0
  %4609 = vmatprep.subr.mxu0 0.0
  %4610 = vmatpush1.msra.mxu0 0.0
  %4611 = vmatprep.subr.mxu0 0.0
  %4612 = vmatpush1.msra.mxu0 0.0
  %4613 = vmatprep.subr.mxu0 0.0
  %4614 = vmatpush1.msra.mxu0 0.0
  %4615 = vmatprep.subr.mxu0 0.0
  %4616 = vmatpush1.msra.mxu0 0.0
  %4617 = vmatprep.subr.mxu0 0.0
  %4618 = vmatpush1.msra.mxu0 0.0
  %4619 = vmatprep.subr.mxu0 0.0
  %4620 = vmatpush1.msra.mxu0 0.0
  %4621 = vmatprep.subr.mxu0 0.0
  %4622 = vmatpush1.msra.mxu0 0.0
  %4623 = vmatprep.subr.mxu0 0.0
  %4624 = vmatpush1.msra.mxu0 0.0
  %4625 = vmatprep.mubr.f32.mxu0 0.0
  %v4626 = vand.u32 %v4460, 4294901760
  %4627 = vmatmul.mubr.f32.gmra.mrb[0].mxu0 %v4626
  %v4628 = vpop.f32.mrb[0].mxu0
  %v4629 = vadd.f32 %v4538, %v4628
  %v4630 = vpop.f32.mrb[0].mxu0
  %4631 = vdwg.mxu0
  %4632 = vmatprep.subr.mxu0 0.0
  %v4633 = vand.u32 %v42, 4294901760
  %v4634 = vsub.f32 %v42, %v4633
  %4635 = vmatpush1.msra.mxu0 %v4634
  %4636 = vmatprep.subr.mxu0 0.0
  %v4637 = vand.u32 %v43, 4294901760
  %v4638 = vsub.f32 %v43, %v4637
  %4639 = vmatpush1.msra.mxu0 %v4638
  %4640 = vmatprep.subr.mxu0 0.0
  %v4641 = vand.u32 %v44, 4294901760
  %v4642 = vsub.f32 %v44, %v4641
  %4643 = vmatpush1.msra.mxu0 %v4642
  %4644 = vmatprep.subr.mxu0 0.0
  %v4645 = vand.u32 %v45, 4294901760
  %v4646 = vsub.f32 %v45, %v4645
  %4647 = vmatpush1.msra.mxu0 %v4646
  %4648 = vmatprep.subr.mxu0 0.0
  %4649 = vmatpush1.msra.mxu0 0.0
  %4650 = vmatprep.subr.mxu0 0.0
  %4651 = vmatpush1.msra.mxu0 0.0
  %4652 = vmatprep.subr.mxu0 0.0
  %4653 = vmatpush1.msra.mxu0 0.0
  %4654 = vmatprep.subr.mxu0 0.0
  %4655 = vmatpush1.msra.mxu0 0.0
  %4656 = vmatprep.subr.mxu0 0.0
  %4657 = vmatpush1.msra.mxu0 0.0
  %4658 = vmatprep.subr.mxu0 0.0
  %4659 = vmatpush1.msra.mxu0 0.0
  %4660 = vmatprep.subr.mxu0 0.0
  %4661 = vmatpush1.msra.mxu0 0.0
  %4662 = vmatprep.subr.mxu0 0.0
  %4663 = vmatpush1.msra.mxu0 0.0
  %4664 = vmatprep.subr.mxu0 0.0
  %4665 = vmatpush1.msra.mxu0 0.0
  %4666 = vmatprep.subr.mxu0 0.0
  %4667 = vmatpush1.msra.mxu0 0.0
  %4668 = vmatprep.subr.mxu0 0.0
  %4669 = vmatpush1.msra.mxu0 0.0
  %4670 = vmatprep.subr.mxu0 0.0
  %4671 = vmatpush1.msra.mxu0 0.0
  %4672 = vmatprep.subr.mxu0 0.0
  %4673 = vmatpush1.msra.mxu0 0.0
  %4674 = vmatprep.subr.mxu0 0.0
  %4675 = vmatpush1.msra.mxu0 0.0
  %4676 = vmatprep.subr.mxu0 0.0
  %4677 = vmatpush1.msra.mxu0 0.0
  %4678 = vmatprep.subr.mxu0 0.0
  %4679 = vmatpush1.msra.mxu0 0.0
  %4680 = vmatprep.subr.mxu0 0.0
  %4681 = vmatpush1.msra.mxu0 0.0
  %4682 = vmatprep.subr.mxu0 0.0
  %4683 = vmatpush1.msra.mxu0 0.0
  %4684 = vmatprep.subr.mxu0 0.0
  %4685 = vmatpush1.msra.mxu0 0.0
  %4686 = vmatprep.subr.mxu0 0.0
  %4687 = vmatpush1.msra.mxu0 0.0
  %4688 = vmatprep.subr.mxu0 0.0
  %4689 = vmatpush1.msra.mxu0 0.0
  %4690 = vmatprep.subr.mxu0 0.0
  %4691 = vmatpush1.msra.mxu0 0.0
  %4692 = vmatprep.subr.mxu0 0.0
  %4693 = vmatpush1.msra.mxu0 0.0
  %4694 = vmatprep.subr.mxu0 0.0
  %4695 = vmatpush1.msra.mxu0 0.0
  %4696 = vmatprep.subr.mxu0 0.0
  %4697 = vmatpush1.msra.mxu0 0.0
  %4698 = vmatprep.subr.mxu0 0.0
  %4699 = vmatpush1.msra.mxu0 0.0
  %4700 = vmatprep.subr.mxu0 0.0
  %4701 = vmatpush1.msra.mxu0 0.0
  %4702 = vmatprep.subr.mxu0 0.0
  %4703 = vmatpush1.msra.mxu0 0.0
  %4704 = vmatprep.mubr.f32.mxu0 0.0
  %v4705 = vand.u32 %v4460, 4294901760
  %v4706 = vsub.f32 %v4460, %v4705
  %4707 = vmatmul.mubr.f32.gmra.mrb[0].mxu0 %v4706
  %v4708 = vpop.f32.mrb[0].mxu0
  %v4709 = vadd.f32 %v4629, %v4708
  %v4710 = vpop.f32.mrb[0].mxu0
  %4711 = vdwg.mxu0
  %4712 = vmatprep.subr.mxu0 0.0
  %v4713 = vand.u32 %v42, 4294901760
  %4714 = vmatpush1.msra.mxu0 %v4713
  %4715 = vmatprep.subr.mxu0 0.0
  %v4716 = vand.u32 %v43, 4294901760
  %4717 = vmatpush1.msra.mxu0 %v4716
  %4718 = vmatprep.subr.mxu0 0.0
  %v4719 = vand.u32 %v44, 4294901760
  %4720 = vmatpush1.msra.mxu0 %v4719
  %4721 = vmatprep.subr.mxu0 0.0
  %v4722 = vand.u32 %v45, 4294901760
  %4723 = vmatpush1.msra.mxu0 %v4722
  %4724 = vmatprep.subr.mxu0 0.0
  %4725 = vmatpush1.msra.mxu0 0.0
  %4726 = vmatprep.subr.mxu0 0.0
  %4727 = vmatpush1.msra.mxu0 0.0
  %4728 = vmatprep.subr.mxu0 0.0
  %4729 = vmatpush1.msra.mxu0 0.0
  %4730 = vmatprep.subr.mxu0 0.0
  %4731 = vmatpush1.msra.mxu0 0.0
  %4732 = vmatprep.subr.mxu0 0.0
  %4733 = vmatpush1.msra.mxu0 0.0
  %4734 = vmatprep.subr.mxu0 0.0
  %4735 = vmatpush1.msra.mxu0 0.0
  %4736 = vmatprep.subr.mxu0 0.0
  %4737 = vmatpush1.msra.mxu0 0.0
  %4738 = vmatprep.subr.mxu0 0.0
  %4739 = vmatpush1.msra.mxu0 0.0
  %4740 = vmatprep.subr.mxu0 0.0
  %4741 = vmatpush1.msra.mxu0 0.0
  %4742 = vmatprep.subr.mxu0 0.0
  %4743 = vmatpush1.msra.mxu0 0.0
  %4744 = vmatprep.subr.mxu0 0.0
  %4745 = vmatpush1.msra.mxu0 0.0
  %4746 = vmatprep.subr.mxu0 0.0
  %4747 = vmatpush1.msra.mxu0 0.0
  %4748 = vmatprep.subr.mxu0 0.0
  %4749 = vmatpush1.msra.mxu0 0.0
  %4750 = vmatprep.subr.mxu0 0.0
  %4751 = vmatpush1.msra.mxu0 0.0
  %4752 = vmatprep.subr.mxu0 0.0
  %4753 = vmatpush1.msra.mxu0 0.0
  %4754 = vmatprep.subr.mxu0 0.0
  %4755 = vmatpush1.msra.mxu0 0.0
  %4756 = vmatprep.subr.mxu0 0.0
  %4757 = vmatpush1.msra.mxu0 0.0
  %4758 = vmatprep.subr.mxu0 0.0
  %4759 = vmatpush1.msra.mxu0 0.0
  %4760 = vmatprep.subr.mxu0 0.0
  %4761 = vmatpush1.msra.mxu0 0.0
  %4762 = vmatprep.subr.mxu0 0.0
  %4763 = vmatpush1.msra.mxu0 0.0
  %4764 = vmatprep.subr.mxu0 0.0
  %4765 = vmatpush1.msra.mxu0 0.0
  %4766 = vmatprep.subr.mxu0 0.0
  %4767 = vmatpush1.msra.mxu0 0.0
  %4768 = vmatprep.subr.mxu0 0.0
  %4769 = vmatpush1.msra.mxu0 0.0
  %4770 = vmatprep.subr.mxu0 0.0
  %4771 = vmatpush1.msra.mxu0 0.0
  %4772 = vmatprep.subr.mxu0 0.0
  %4773 = vmatpush1.msra.mxu0 0.0
  %4774 = vmatprep.subr.mxu0 0.0
  %4775 = vmatpush1.msra.mxu0 0.0
  %4776 = vmatprep.subr.mxu0 0.0
  %4777 = vmatpush1.msra.mxu0 0.0
  %4778 = vmatprep.subr.mxu0 0.0
  %4779 = vmatpush1.msra.mxu0 0.0
  %4780 = vmatprep.mubr.f32.mxu0 0.0
  %v4781 = vand.u32 %v4460, 4294901760
  %v4782 = vsub.f32 %v4460, %v4781
  %v4783 = vand.u32 %v4782, 4294901760
  %4784 = vmatmul.mubr.f32.gmra.mrb[0].mxu0 %v4783
  %v4785 = vpop.f32.mrb[0].mxu0
  %v4786 = vadd.f32 %v4709, %v4785
  %v4787 = vpop.f32.mrb[0].mxu0
  %4788 = vdwg.mxu0
  %4789 = vmatprep.subr.mxu0 0.0
  %v4790 = vand.u32 %v42, 4294901760
  %v4791 = vsub.f32 %v42, %v4790
  %v4792 = vand.u32 %v4791, 4294901760
  %4793 = vmatpush1.msra.mxu0 %v4792
  %4794 = vmatprep.subr.mxu0 0.0
  %v4795 = vand.u32 %v43, 4294901760
  %v4796 = vsub.f32 %v43, %v4795
  %v4797 = vand.u32 %v4796, 4294901760
  %4798 = vmatpush1.msra.mxu0 %v4797
  %4799 = vmatprep.subr.mxu0 0.0
  %v4800 = vand.u32 %v44, 4294901760
  %v4801 = vsub.f32 %v44, %v4800
  %v4802 = vand.u32 %v4801, 4294901760
  %4803 = vmatpush1.msra.mxu0 %v4802
  %4804 = vmatprep.subr.mxu0 0.0
  %v4805 = vand.u32 %v45, 4294901760
  %v4806 = vsub.f32 %v45, %v4805
  %v4807 = vand.u32 %v4806, 4294901760
  %4808 = vmatpush1.msra.mxu0 %v4807
  %4809 = vmatprep.subr.mxu0 0.0
  %4810 = vmatpush1.msra.mxu0 0.0
  %4811 = vmatprep.subr.mxu0 0.0
  %4812 = vmatpush1.msra.mxu0 0.0
  %4813 = vmatprep.subr.mxu0 0.0
  %4814 = vmatpush1.msra.mxu0 0.0
  %4815 = vmatprep.subr.mxu0 0.0
  %4816 = vmatpush1.msra.mxu0 0.0
  %4817 = vmatprep.subr.mxu0 0.0
  %4818 = vmatpush1.msra.mxu0 0.0
  %4819 = vmatprep.subr.mxu0 0.0
  %4820 = vmatpush1.msra.mxu0 0.0
  %4821 = vmatprep.subr.mxu0 0.0
  %4822 = vmatpush1.msra.mxu0 0.0
  %4823 = vmatprep.subr.mxu0 0.0
  %4824 = vmatpush1.msra.mxu0 0.0
  %4825 = vmatprep.subr.mxu0 0.0
  %4826 = vmatpush1.msra.mxu0 0.0
  %4827 = vmatprep.subr.mxu0 0.0
  %4828 = vmatpush1.msra.mxu0 0.0
  %4829 = vmatprep.subr.mxu0 0.0
  %4830 = vmatpush1.msra.mxu0 0.0
  %4831 = vmatprep.subr.mxu0 0.0
  %4832 = vmatpush1.msra.mxu0 0.0
  %4833 = vmatprep.subr.mxu0 0.0
  %4834 = vmatpush1.msra.mxu0 0.0
  %4835 = vmatprep.subr.mxu0 0.0
  %4836 = vmatpush1.msra.mxu0 0.0
  %4837 = vmatprep.subr.mxu0 0.0
  %4838 = vmatpush1.msra.mxu0 0.0
  %4839 = vmatprep.subr.mxu0 0.0
  %4840 = vmatpush1.msra.mxu0 0.0
  %4841 = vmatprep.subr.mxu0 0.0
  %4842 = vmatpush1.msra.mxu0 0.0
  %4843 = vmatprep.subr.mxu0 0.0
  %4844 = vmatpush1.msra.mxu0 0.0
  %4845 = vmatprep.subr.mxu0 0.0
  %4846 = vmatpush1.msra.mxu0 0.0
  %4847 = vmatprep.subr.mxu0 0.0
  %4848 = vmatpush1.msra.mxu0 0.0
  %4849 = vmatprep.subr.mxu0 0.0
  %4850 = vmatpush1.msra.mxu0 0.0
  %4851 = vmatprep.subr.mxu0 0.0
  %4852 = vmatpush1.msra.mxu0 0.0
  %4853 = vmatprep.subr.mxu0 0.0
  %4854 = vmatpush1.msra.mxu0 0.0
  %4855 = vmatprep.subr.mxu0 0.0
  %4856 = vmatpush1.msra.mxu0 0.0
  %4857 = vmatprep.subr.mxu0 0.0
  %4858 = vmatpush1.msra.mxu0 0.0
  %4859 = vmatprep.subr.mxu0 0.0
  %4860 = vmatpush1.msra.mxu0 0.0
  %4861 = vmatprep.subr.mxu0 0.0
  %4862 = vmatpush1.msra.mxu0 0.0
  %4863 = vmatprep.subr.mxu0 0.0
  %4864 = vmatpush1.msra.mxu0 0.0
  %4865 = vmatprep.mubr.f32.mxu0 0.0
  %v4866 = vand.u32 %v4460, 4294901760
  %4867 = vmatmul.mubr.f32.gmra.mrb[0].mxu0 %v4866
  %v4868 = vpop.f32.mrb[0].mxu0
  %v4869 = vadd.f32 %v4786, %v4868
  %v4870 = vpop.f32.mrb[0].mxu0
  %4871 = vdwg.mxu0
  %4872 = vmatprep.subr.mxu0 0.0
  %v4873 = vand.u32 %v42, 4294901760
  %4874 = vmatpush1.msra.mxu0 %v4873
  %4875 = vmatprep.subr.mxu0 0.0
  %v4876 = vand.u32 %v43, 4294901760
  %4877 = vmatpush1.msra.mxu0 %v4876
  %4878 = vmatprep.subr.mxu0 0.0
  %v4879 = vand.u32 %v44, 4294901760
  %4880 = vmatpush1.msra.mxu0 %v4879
  %4881 = vmatprep.subr.mxu0 0.0
  %v4882 = vand.u32 %v45, 4294901760
  %4883 = vmatpush1.msra.mxu0 %v4882
  %4884 = vmatprep.subr.mxu0 0.0
  %4885 = vmatpush1.msra.mxu0 0.0
  %4886 = vmatprep.subr.mxu0 0.0
  %4887 = vmatpush1.msra.mxu0 0.0
  %4888 = vmatprep.subr.mxu0 0.0
  %4889 = vmatpush1.msra.mxu0 0.0
  %4890 = vmatprep.subr.mxu0 0.0
  %4891 = vmatpush1.msra.mxu0 0.0
  %4892 = vmatprep.subr.mxu0 0.0
  %4893 = vmatpush1.msra.mxu0 0.0
  %4894 = vmatprep.subr.mxu0 0.0
  %4895 = vmatpush1.msra.mxu0 0.0
  %4896 = vmatprep.subr.mxu0 0.0
  %4897 = vmatpush1.msra.mxu0 0.0
  %4898 = vmatprep.subr.mxu0 0.0
  %4899 = vmatpush1.msra.mxu0 0.0
  %4900 = vmatprep.subr.mxu0 0.0
  %4901 = vmatpush1.msra.mxu0 0.0
  %4902 = vmatprep.subr.mxu0 0.0
  %4903 = vmatpush1.msra.mxu0 0.0
  %4904 = vmatprep.subr.mxu0 0.0
  %4905 = vmatpush1.msra.mxu0 0.0
  %4906 = vmatprep.subr.mxu0 0.0
  %4907 = vmatpush1.msra.mxu0 0.0
  %4908 = vmatprep.subr.mxu0 0.0
  %4909 = vmatpush1.msra.mxu0 0.0
  %4910 = vmatprep.subr.mxu0 0.0
  %4911 = vmatpush1.msra.mxu0 0.0
  %4912 = vmatprep.subr.mxu0 0.0
  %4913 = vmatpush1.msra.mxu0 0.0
  %4914 = vmatprep.subr.mxu0 0.0
  %4915 = vmatpush1.msra.mxu0 0.0
  %4916 = vmatprep.subr.mxu0 0.0
  %4917 = vmatpush1.msra.mxu0 0.0
  %4918 = vmatprep.subr.mxu0 0.0
  %4919 = vmatpush1.msra.mxu0 0.0
  %4920 = vmatprep.subr.mxu0 0.0
  %4921 = vmatpush1.msra.mxu0 0.0
  %4922 = vmatprep.subr.mxu0 0.0
  %4923 = vmatpush1.msra.mxu0 0.0
  %4924 = vmatprep.subr.mxu0 0.0
  %4925 = vmatpush1.msra.mxu0 0.0
  %4926 = vmatprep.subr.mxu0 0.0
  %4927 = vmatpush1.msra.mxu0 0.0
  %4928 = vmatprep.subr.mxu0 0.0
  %4929 = vmatpush1.msra.mxu0 0.0
  %4930 = vmatprep.subr.mxu0 0.0
  %4931 = vmatpush1.msra.mxu0 0.0
  %4932 = vmatprep.subr.mxu0 0.0
  %4933 = vmatpush1.msra.mxu0 0.0
  %4934 = vmatprep.subr.mxu0 0.0
  %4935 = vmatpush1.msra.mxu0 0.0
  %4936 = vmatprep.subr.mxu0 0.0
  %4937 = vmatpush1.msra.mxu0 0.0
  %4938 = vmatprep.subr.mxu0 0.0
  %4939 = vmatpush1.msra.mxu0 0.0
  %4940 = vmatprep.mubr.f32.mxu0 0.0
  %v4941 = vand.u32 %v4460, 4294901760
  %4942 = vmatmul.mubr.f32.gmra.mrb[0].mxu0 %v4941
  %v4943 = vpop.f32.mrb[0].mxu0
  %v4944 = vadd.f32 %v4869, %v4943
  %v4945 = vpop.f32.mrb[0].mxu0
  %4946 = vdwg.mxu0
  %v4947 = vadd.f32 %v830, %v4944
  %v4948 = vxor.u32 %v4947, 2147483648
  %v4949 = vmul.f32 %v4948, 1.442695
  %v4950 = vpow.pop %v4949
  %v4951 = vadd.f32 %v4950, 1.0
  %v4952 = vrcp.pop %v4951
  %v4953 = vmul.f32 1.0, %v4952
  %v4954 = vtanh.pop %v4947
  %v4955 = vmul.f32 %v4953, %v4448
  %4957 = vrot.lane.b32.xlu0 %v4954, 64
  %v4958 = vpop.permute.xlu0 %4957
  %v4960 = vmul.f32 %v4953, %v4958
  %4962 = vrot.lane.b32.xlu0 %v4960, 32
  %v4963 = vpop.permute.xlu0 %4962
  %v4965 = vadd.f32 %v4955, %v4963
  %v4966 = vtanh.pop %v4965
  %4968 = vrot.lane.b32.xlu0 %v4966, 64
  %v4969 = vpop.permute.xlu0 %4968
  %v4971 = vmul.f32 %v4953, %v4969
  %4973 = vrot.lane.b32.xlu0 %v4971, 32
  %v4974 = vpop.permute.xlu0 %4973
  %4976 = vst.msk [vmem:[#allocation2 + $0x38] sm:$0xff] %vm835, %v4974
  %4977 = vst.msk [vmem:[%s12] sm:$0xff] %vm835, %v4974
  %4979 = vrot.lane.b32.xlu0 %v4965, 96
  %v4980 = vpop.permute.xlu0 %4979
  %4982 = vst.msk [vmem:[%s13] sm:$0xff] %vm835, %v4980
  %v4983 = vld [vmem:[%s6] sm:$0xff]
  %v4984 = vld [vmem:[%s6 + $0x8] sm:$0xff]
  %v4985 = vld [vmem:[%s6 + $0x10] sm:$0xff]
  %v4986 = vld [vmem:[%s6 + $0x18] sm:$0xff]
  %v4987 = vld [vmem:[%s7] sm:$0xff]
  %v4988 = vld [vmem:[%s7 + $0x8] sm:$0xff]
  %v4989 = vld [vmem:[%s7 + $0x10] sm:$0xff]
  %v4990 = vld [vmem:[%s7 + $0x18] sm:$0xff]
  %v4991 = vld [vmem:[%s8] sm:$0x1]
  %v4992 = vld [vmem:[#allocation2] sm:$0xff]
  %v4993 = vld [vmem:[#allocation2 + $0x8] sm:$0xff]
  %v4994 = vld [vmem:[#allocation2 + $0x10] sm:$0xff]
  %v4995 = vld [vmem:[#allocation2 + $0x18] sm:$0xff]
  %v4996 = vld [vmem:[#allocation2 + $0x20] sm:$0xff]
  %v4997 = vld [vmem:[#allocation2 + $0x28] sm:$0xff]
  %v4998 = vld [vmem:[#allocation2 + $0x30] sm:$0xff]
  %v4999 = vld [vmem:[#allocation2 + $0x38] sm:$0xff]
  %v5001 = vlaneseq
  %v5002 = vshrl.u32 %v5001, 7
  %v5003 = vsub.s32 0, %v5002
  %v5004 = vrot.slane %v4991, %v5003
  %v5007 = vsel %vm835, %v4992, 0
  %v5010 = vsel %vm835, %v4993, 0
  %v5013 = vsel %vm835, %v4994, 0
  %v5016 = vsel %vm835, %v4995, 0
  %v5019 = vsel %vm835, %v4996, 0
  %v5022 = vsel %vm835, %v4997, 0
  %v5025 = vsel %vm835, %v4998, 0
  %v5028 = vsel %vm835, %v4999, 0
  %5030 = vmatprep.subr.mxu0 0.0
  %v5031 = vand.u32 %v4983, 4294901760
  %5032 = vmatpush1.msra.mxu0 %v5031
  %5033 = vmatprep.subr.mxu0 0.0
  %v5034 = vand.u32 %v4984, 4294901760
  %5035 = vmatpush1.msra.mxu0 %v5034
  %5036 = vmatprep.subr.mxu0 0.0
  %v5037 = vand.u32 %v4985, 4294901760
  %5038 = vmatpush1.msra.mxu0 %v5037
  %5039 = vmatprep.subr.mxu0 0.0
  %v5040 = vand.u32 %v4986, 4294901760
  %5041 = vmatpush1.msra.mxu0 %v5040
  %5042 = vmatprep.subr.mxu0 0.0
  %5043 = vmatpush1.msra.mxu0 0.0
  %5044 = vmatprep.subr.mxu0 0.0
  %5045 = vmatpush1.msra.mxu0 0.0
  %5046 = vmatprep.subr.mxu0 0.0
  %5047 = vmatpush1.msra.mxu0 0.0
  %5048 = vmatprep.subr.mxu0 0.0
  %5049 = vmatpush1.msra.mxu0 0.0
  %5050 = vmatprep.subr.mxu0 0.0
  %5051 = vmatpush1.msra.mxu0 0.0
  %5052 = vmatprep.subr.mxu0 0.0
  %5053 = vmatpush1.msra.mxu0 0.0
  %5054 = vmatprep.subr.mxu0 0.0
  %5055 = vmatpush1.msra.mxu0 0.0
  %5056 = vmatprep.subr.mxu0 0.0
  %5057 = vmatpush1.msra.mxu0 0.0
  %5058 = vmatprep.subr.mxu0 0.0
  %5059 = vmatpush1.msra.mxu0 0.0
  %5060 = vmatprep.subr.mxu0 0.0
  %5061 = vmatpush1.msra.mxu0 0.0
  %5062 = vmatprep.subr.mxu0 0.0
  %5063 = vmatpush1.msra.mxu0 0.0
  %5064 = vmatprep.subr.mxu0 0.0
  %5065 = vmatpush1.msra.mxu0 0.0
  %5066 = vmatprep.subr.mxu0 0.0
  %5067 = vmatpush1.msra.mxu0 0.0
  %5068 = vmatprep.subr.mxu0 0.0
  %5069 = vmatpush1.msra.mxu0 0.0
  %5070 = vmatprep.subr.mxu0 0.0
  %5071 = vmatpush1.msra.mxu0 0.0
  %5072 = vmatprep.subr.mxu0 0.0
  %5073 = vmatpush1.msra.mxu0 0.0
  %5074 = vmatprep.subr.mxu0 0.0
  %5075 = vmatpush1.msra.mxu0 0.0
  %5076 = vmatprep.subr.mxu0 0.0
  %5077 = vmatpush1.msra.mxu0 0.0
  %5078 = vmatprep.subr.mxu0 0.0
  %5079 = vmatpush1.msra.mxu0 0.0
  %5080 = vmatprep.subr.mxu0 0.0
  %5081 = vmatpush1.msra.mxu0 0.0
  %5082 = vmatprep.subr.mxu0 0.0
  %5083 = vmatpush1.msra.mxu0 0.0
  %5084 = vmatprep.subr.mxu0 0.0
  %5085 = vmatpush1.msra.mxu0 0.0
  %5086 = vmatprep.subr.mxu0 0.0
  %5087 = vmatpush1.msra.mxu0 0.0
  %5088 = vmatprep.subr.mxu0 0.0
  %5089 = vmatpush1.msra.mxu0 0.0
  %5090 = vmatprep.subr.mxu0 0.0
  %5091 = vmatpush1.msra.mxu0 0.0
  %5092 = vmatprep.subr.mxu0 0.0
  %5093 = vmatpush1.msra.mxu0 0.0
  %5094 = vmatprep.subr.mxu0 0.0
  %5095 = vmatpush1.msra.mxu0 0.0
  %5096 = vmatprep.subr.mxu0 0.0
  %5097 = vmatpush1.msra.mxu0 0.0
  %5098 = vmatprep.mubr.f32.mxu0 0.0
  %v5099 = vand.u32 %v5007, 4294901760
  %v5100 = vsub.f32 %v5007, %v5099
  %v5101 = vand.u32 %v5100, 4294901760
  %v5102 = vsub.f32 %v5100, %v5101
  %v5103 = vand.u32 %v5102, 4294901760
  %5104 = vmatmul.mubr.f32.gmra.mrb[0].mxu0 %v5103
  %v5105 = vpop.f32.mrb[0].mxu0
  %v5106 = vadd.f32 %v5004, %v5105
  %v5107 = vpop.f32.mrb[0].mxu0
  %5108 = vmatprep.mubr.f32.mxu0 0.0
  %v5109 = vand.u32 %v5010, 4294901760
  %v5110 = vsub.f32 %v5010, %v5109
  %v5111 = vand.u32 %v5110, 4294901760
  %v5112 = vsub.f32 %v5110, %v5111
  %v5113 = vand.u32 %v5112, 4294901760
  %5114 = vmatmul.mubr.f32.gmra.mrb[0].mxu0 %v5113
  %v5115 = vpop.f32.mrb[0].mxu0
  %v5116 = vadd.f32 %v5004, %v5115
  %v5117 = vpop.f32.mrb[0].mxu0
  %5118 = vmatprep.mubr.f32.mxu0 0.0
  %v5119 = vand.u32 %v5013, 4294901760
  %v5120 = vsub.f32 %v5013, %v5119
  %v5121 = vand.u32 %v5120, 4294901760
  %v5122 = vsub.f32 %v5120, %v5121
  %v5123 = vand.u32 %v5122, 4294901760
  %5124 = vmatmul.mubr.f32.gmra.mrb[0].mxu0 %v5123
  %v5125 = vpop.f32.mrb[0].mxu0
  %v5126 = vadd.f32 %v5004, %v5125
  %v5127 = vpop.f32.mrb[0].mxu0
  %5128 = vmatprep.mubr.f32.mxu0 0.0
  %v5129 = vand.u32 %v5016, 4294901760
  %v5130 = vsub.f32 %v5016, %v5129
  %v5131 = vand.u32 %v5130, 4294901760
  %v5132 = vsub.f32 %v5130, %v5131
  %v5133 = vand.u32 %v5132, 4294901760
  %5134 = vmatmul.mubr.f32.gmra.mrb[0].mxu0 %v5133
  %v5135 = vpop.f32.mrb[0].mxu0
  %v5136 = vadd.f32 %v5004, %v5135
  %v5137 = vpop.f32.mrb[0].mxu0
  %5138 = vmatprep.mubr.f32.mxu0 0.0
  %v5139 = vand.u32 %v5019, 4294901760
  %v5140 = vsub.f32 %v5019, %v5139
  %v5141 = vand.u32 %v5140, 4294901760
  %v5142 = vsub.f32 %v5140, %v5141
  %v5143 = vand.u32 %v5142, 4294901760
  %5144 = vmatmul.mubr.f32.gmra.mrb[0].mxu0 %v5143
  %v5145 = vpop.f32.mrb[0].mxu0
  %v5146 = vadd.f32 %v5004, %v5145
  %v5147 = vpop.f32.mrb[0].mxu0
  %5148 = vmatprep.mubr.f32.mxu0 0.0
  %v5149 = vand.u32 %v5022, 4294901760
  %v5150 = vsub.f32 %v5022, %v5149
  %v5151 = vand.u32 %v5150, 4294901760
  %v5152 = vsub.f32 %v5150, %v5151
  %v5153 = vand.u32 %v5152, 4294901760
  %5154 = vmatmul.mubr.f32.gmra.mrb[0].mxu0 %v5153
  %v5155 = vpop.f32.mrb[0].mxu0
  %v5156 = vadd.f32 %v5004, %v5155
  %v5157 = vpop.f32.mrb[0].mxu0
  %5158 = vmatprep.mubr.f32.mxu0 0.0
  %v5159 = vand.u32 %v5025, 4294901760
  %v5160 = vsub.f32 %v5025, %v5159
  %v5161 = vand.u32 %v5160, 4294901760
  %v5162 = vsub.f32 %v5160, %v5161
  %v5163 = vand.u32 %v5162, 4294901760
  %5164 = vmatmul.mubr.f32.gmra.mrb[0].mxu0 %v5163
  %v5165 = vpop.f32.mrb[0].mxu0
  %v5166 = vadd.f32 %v5004, %v5165
  %v5167 = vpop.f32.mrb[0].mxu0
  %5168 = vmatprep.mubr.f32.mxu0 0.0
  %v5169 = vand.u32 %v5028, 4294901760
  %v5170 = vsub.f32 %v5028, %v5169
  %v5171 = vand.u32 %v5170, 4294901760
  %v5172 = vsub.f32 %v5170, %v5171
  %v5173 = vand.u32 %v5172, 4294901760
  %5174 = vmatmul.mubr.f32.gmra.mrb[0].mxu0 %v5173
  %v5175 = vpop.f32.mrb[0].mxu0
  %v5176 = vadd.f32 %v5004, %v5175
  %v5177 = vpop.f32.mrb[0].mxu0
  %5178 = vdwg.mxu0
  %5179 = vmatprep.subr.mxu0 0.0
  %v5180 = vand.u32 %v4983, 4294901760
  %v5181 = vsub.f32 %v4983, %v5180
  %v5182 = vand.u32 %v5181, 4294901760
  %v5183 = vsub.f32 %v5181, %v5182
  %v5184 = vand.u32 %v5183, 4294901760
  %5185 = vmatpush1.msra.mxu0 %v5184
  %5186 = vmatprep.subr.mxu0 0.0
  %v5187 = vand.u32 %v4984, 4294901760
  %v5188 = vsub.f32 %v4984, %v5187
  %v5189 = vand.u32 %v5188, 4294901760
  %v5190 = vsub.f32 %v5188, %v5189
  %v5191 = vand.u32 %v5190, 4294901760
  %5192 = vmatpush1.msra.mxu0 %v5191
  %5193 = vmatprep.subr.mxu0 0.0
  %v5194 = vand.u32 %v4985, 4294901760
  %v5195 = vsub.f32 %v4985, %v5194
  %v5196 = vand.u32 %v5195, 4294901760
  %v5197 = vsub.f32 %v5195, %v5196
  %v5198 = vand.u32 %v5197, 4294901760
  %5199 = vmatpush1.msra.mxu0 %v5198
  %5200 = vmatprep.subr.mxu0 0.0
  %v5201 = vand.u32 %v4986, 4294901760
  %v5202 = vsub.f32 %v4986, %v5201
  %v5203 = vand.u32 %v5202, 4294901760
  %v5204 = vsub.f32 %v5202, %v5203
  %v5205 = vand.u32 %v5204, 4294901760
  %5206 = vmatpush1.msra.mxu0 %v5205
  %5207 = vmatprep.subr.mxu0 0.0
  %5208 = vmatpush1.msra.mxu0 0.0
  %5209 = vmatprep.subr.mxu0 0.0
  %5210 = vmatpush1.msra.mxu0 0.0
  %5211 = vmatprep.subr.mxu0 0.0
  %5212 = vmatpush1.msra.mxu0 0.0
  %5213 = vmatprep.subr.mxu0 0.0
  %5214 = vmatpush1.msra.mxu0 0.0
  %5215 = vmatprep.subr.mxu0 0.0
  %5216 = vmatpush1.msra.mxu0 0.0
  %5217 = vmatprep.subr.mxu0 0.0
  %5218 = vmatpush1.msra.mxu0 0.0
  %5219 = vmatprep.subr.mxu0 0.0
  %5220 = vmatpush1.msra.mxu0 0.0
  %5221 = vmatprep.subr.mxu0 0.0
  %5222 = vmatpush1.msra.mxu0 0.0
  %5223 = vmatprep.subr.mxu0 0.0
  %5224 = vmatpush1.msra.mxu0 0.0
  %5225 = vmatprep.subr.mxu0 0.0
  %5226 = vmatpush1.msra.mxu0 0.0
  %5227 = vmatprep.subr.mxu0 0.0
  %5228 = vmatpush1.msra.mxu0 0.0
  %5229 = vmatprep.subr.mxu0 0.0
  %5230 = vmatpush1.msra.mxu0 0.0
  %5231 = vmatprep.subr.mxu0 0.0
  %5232 = vmatpush1.msra.mxu0 0.0
  %5233 = vmatprep.subr.mxu0 0.0
  %5234 = vmatpush1.msra.mxu0 0.0
  %5235 = vmatprep.subr.mxu0 0.0
  %5236 = vmatpush1.msra.mxu0 0.0
  %5237 = vmatprep.subr.mxu0 0.0
  %5238 = vmatpush1.msra.mxu0 0.0
  %5239 = vmatprep.subr.mxu0 0.0
  %5240 = vmatpush1.msra.mxu0 0.0
  %5241 = vmatprep.subr.mxu0 0.0
  %5242 = vmatpush1.msra.mxu0 0.0
  %5243 = vmatprep.subr.mxu0 0.0
  %5244 = vmatpush1.msra.mxu0 0.0
  %5245 = vmatprep.subr.mxu0 0.0
  %5246 = vmatpush1.msra.mxu0 0.0
  %5247 = vmatprep.subr.mxu0 0.0
  %5248 = vmatpush1.msra.mxu0 0.0
  %5249 = vmatprep.subr.mxu0 0.0
  %5250 = vmatpush1.msra.mxu0 0.0
  %5251 = vmatprep.subr.mxu0 0.0
  %5252 = vmatpush1.msra.mxu0 0.0
  %5253 = vmatprep.subr.mxu0 0.0
  %5254 = vmatpush1.msra.mxu0 0.0
  %5255 = vmatprep.subr.mxu0 0.0
  %5256 = vmatpush1.msra.mxu0 0.0
  %5257 = vmatprep.subr.mxu0 0.0
  %5258 = vmatpush1.msra.mxu0 0.0
  %5259 = vmatprep.subr.mxu0 0.0
  %5260 = vmatpush1.msra.mxu0 0.0
  %5261 = vmatprep.subr.mxu0 0.0
  %5262 = vmatpush1.msra.mxu0 0.0
  %5263 = vmatprep.mubr.f32.mxu0 0.0
  %v5264 = vand.u32 %v5007, 4294901760
  %5265 = vmatmul.mubr.f32.gmra.mrb[0].mxu0 %v5264
  %v5266 = vpop.f32.mrb[0].mxu0
  %v5267 = vadd.f32 %v5106, %v5266
  %v5268 = vpop.f32.mrb[0].mxu0
  %5269 = vmatprep.mubr.f32.mxu0 0.0
  %v5270 = vand.u32 %v5010, 4294901760
  %5271 = vmatmul.mubr.f32.gmra.mrb[0].mxu0 %v5270
  %v5272 = vpop.f32.mrb[0].mxu0
  %v5273 = vadd.f32 %v5116, %v5272
  %v5274 = vpop.f32.mrb[0].mxu0
  %5275 = vmatprep.mubr.f32.mxu0 0.0
  %v5276 = vand.u32 %v5013, 4294901760
  %5277 = vmatmul.mubr.f32.gmra.mrb[0].mxu0 %v5276
  %v5278 = vpop.f32.mrb[0].mxu0
  %v5279 = vadd.f32 %v5126, %v5278
  %v5280 = vpop.f32.mrb[0].mxu0
  %5281 = vmatprep.mubr.f32.mxu0 0.0
  %v5282 = vand.u32 %v5016, 4294901760
  %5283 = vmatmul.mubr.f32.gmra.mrb[0].mxu0 %v5282
  %v5284 = vpop.f32.mrb[0].mxu0
  %v5285 = vadd.f32 %v5136, %v5284
  %v5286 = vpop.f32.mrb[0].mxu0
  %5287 = vmatprep.mubr.f32.mxu0 0.0
  %v5288 = vand.u32 %v5019, 4294901760
  %5289 = vmatmul.mubr.f32.gmra.mrb[0].mxu0 %v5288
  %v5290 = vpop.f32.mrb[0].mxu0
  %v5291 = vadd.f32 %v5146, %v5290
  %v5292 = vpop.f32.mrb[0].mxu0
  %5293 = vmatprep.mubr.f32.mxu0 0.0
  %v5294 = vand.u32 %v5022, 4294901760
  %5295 = vmatmul.mubr.f32.gmra.mrb[0].mxu0 %v5294
  %v5296 = vpop.f32.mrb[0].mxu0
  %v5297 = vadd.f32 %v5156, %v5296
  %v5298 = vpop.f32.mrb[0].mxu0
  %5299 = vmatprep.mubr.f32.mxu0 0.0
  %v5300 = vand.u32 %v5025, 4294901760
  %5301 = vmatmul.mubr.f32.gmra.mrb[0].mxu0 %v5300
  %v5302 = vpop.f32.mrb[0].mxu0
  %v5303 = vadd.f32 %v5166, %v5302
  %v5304 = vpop.f32.mrb[0].mxu0
  %5305 = vmatprep.mubr.f32.mxu0 0.0
  %v5306 = vand.u32 %v5028, 4294901760
  %5307 = vmatmul.mubr.f32.gmra.mrb[0].mxu0 %v5306
  %v5308 = vpop.f32.mrb[0].mxu0
  %v5309 = vadd.f32 %v5176, %v5308
  %v5310 = vpop.f32.mrb[0].mxu0
  %5311 = vdwg.mxu0
  %5312 = vmatprep.subr.mxu0 0.0
  %v5313 = vand.u32 %v4983, 4294901760
  %v5314 = vsub.f32 %v4983, %v5313
  %5315 = vmatpush1.msra.mxu0 %v5314
  %5316 = vmatprep.subr.mxu0 0.0
  %v5317 = vand.u32 %v4984, 4294901760
  %v5318 = vsub.f32 %v4984, %v5317
  %5319 = vmatpush1.msra.mxu0 %v5318
  %5320 = vmatprep.subr.mxu0 0.0
  %v5321 = vand.u32 %v4985, 4294901760
  %v5322 = vsub.f32 %v4985, %v5321
  %5323 = vmatpush1.msra.mxu0 %v5322
  %5324 = vmatprep.subr.mxu0 0.0
  %v5325 = vand.u32 %v4986, 4294901760
  %v5326 = vsub.f32 %v4986, %v5325
  %5327 = vmatpush1.msra.mxu0 %v5326
  %5328 = vmatprep.subr.mxu0 0.0
  %5329 = vmatpush1.msra.mxu0 0.0
  %5330 = vmatprep.subr.mxu0 0.0
  %5331 = vmatpush1.msra.mxu0 0.0
  %5332 = vmatprep.subr.mxu0 0.0
  %5333 = vmatpush1.msra.mxu0 0.0
  %5334 = vmatprep.subr.mxu0 0.0
  %5335 = vmatpush1.msra.mxu0 0.0
  %5336 = vmatprep.subr.mxu0 0.0
  %5337 = vmatpush1.msra.mxu0 0.0
  %5338 = vmatprep.subr.mxu0 0.0
  %5339 = vmatpush1.msra.mxu0 0.0
  %5340 = vmatprep.subr.mxu0 0.0
  %5341 = vmatpush1.msra.mxu0 0.0
  %5342 = vmatprep.subr.mxu0 0.0
  %5343 = vmatpush1.msra.mxu0 0.0
  %5344 = vmatprep.subr.mxu0 0.0
  %5345 = vmatpush1.msra.mxu0 0.0
  %5346 = vmatprep.subr.mxu0 0.0
  %5347 = vmatpush1.msra.mxu0 0.0
  %5348 = vmatprep.subr.mxu0 0.0
  %5349 = vmatpush1.msra.mxu0 0.0
  %5350 = vmatprep.subr.mxu0 0.0
  %5351 = vmatpush1.msra.mxu0 0.0
  %5352 = vmatprep.subr.mxu0 0.0
  %5353 = vmatpush1.msra.mxu0 0.0
  %5354 = vmatprep.subr.mxu0 0.0
  %5355 = vmatpush1.msra.mxu0 0.0
  %5356 = vmatprep.subr.mxu0 0.0
  %5357 = vmatpush1.msra.mxu0 0.0
  %5358 = vmatprep.subr.mxu0 0.0
  %5359 = vmatpush1.msra.mxu0 0.0
  %5360 = vmatprep.subr.mxu0 0.0
  %5361 = vmatpush1.msra.mxu0 0.0
  %5362 = vmatprep.subr.mxu0 0.0
  %5363 = vmatpush1.msra.mxu0 0.0
  %5364 = vmatprep.subr.mxu0 0.0
  %5365 = vmatpush1.msra.mxu0 0.0
  %5366 = vmatprep.subr.mxu0 0.0
  %5367 = vmatpush1.msra.mxu0 0.0
  %5368 = vmatprep.subr.mxu0 0.0
  %5369 = vmatpush1.msra.mxu0 0.0
  %5370 = vmatprep.subr.mxu0 0.0
  %5371 = vmatpush1.msra.mxu0 0.0
  %5372 = vmatprep.subr.mxu0 0.0
  %5373 = vmatpush1.msra.mxu0 0.0
  %5374 = vmatprep.subr.mxu0 0.0
  %5375 = vmatpush1.msra.mxu0 0.0
  %5376 = vmatprep.subr.mxu0 0.0
  %5377 = vmatpush1.msra.mxu0 0.0
  %5378 = vmatprep.subr.mxu0 0.0
  %5379 = vmatpush1.msra.mxu0 0.0
  %5380 = vmatprep.subr.mxu0 0.0
  %5381 = vmatpush1.msra.mxu0 0.0
  %5382 = vmatprep.subr.mxu0 0.0
  %5383 = vmatpush1.msra.mxu0 0.0
  %5384 = vmatprep.mubr.f32.mxu0 0.0
  %v5385 = vand.u32 %v5007, 4294901760
  %v5386 = vsub.f32 %v5007, %v5385
  %5387 = vmatmul.mubr.f32.gmra.mrb[0].mxu0 %v5386
  %v5388 = vpop.f32.mrb[0].mxu0
  %v5389 = vadd.f32 %v5267, %v5388
  %v5390 = vpop.f32.mrb[0].mxu0
  %5391 = vmatprep.mubr.f32.mxu0 0.0
  %v5392 = vand.u32 %v5010, 4294901760
  %v5393 = vsub.f32 %v5010, %v5392
  %5394 = vmatmul.mubr.f32.gmra.mrb[0].mxu0 %v5393
  %v5395 = vpop.f32.mrb[0].mxu0
  %v5396 = vadd.f32 %v5273, %v5395
  %v5397 = vpop.f32.mrb[0].mxu0
  %5398 = vmatprep.mubr.f32.mxu0 0.0
  %v5399 = vand.u32 %v5013, 4294901760
  %v5400 = vsub.f32 %v5013, %v5399
  %5401 = vmatmul.mubr.f32.gmra.mrb[0].mxu0 %v5400
  %v5402 = vpop.f32.mrb[0].mxu0
  %v5403 = vadd.f32 %v5279, %v5402
  %v5404 = vpop.f32.mrb[0].mxu0
  %5405 = vmatprep.mubr.f32.mxu0 0.0
  %v5406 = vand.u32 %v5016, 4294901760
  %v5407 = vsub.f32 %v5016, %v5406
  %5408 = vmatmul.mubr.f32.gmra.mrb[0].mxu0 %v5407
  %v5409 = vpop.f32.mrb[0].mxu0
  %v5410 = vadd.f32 %v5285, %v5409
  %v5411 = vpop.f32.mrb[0].mxu0
  %5412 = vmatprep.mubr.f32.mxu0 0.0
  %v5413 = vand.u32 %v5019, 4294901760
  %v5414 = vsub.f32 %v5019, %v5413
  %5415 = vmatmul.mubr.f32.gmra.mrb[0].mxu0 %v5414
  %v5416 = vpop.f32.mrb[0].mxu0
  %v5417 = vadd.f32 %v5291, %v5416
  %v5418 = vpop.f32.mrb[0].mxu0
  %5419 = vmatprep.mubr.f32.mxu0 0.0
  %v5420 = vand.u32 %v5022, 4294901760
  %v5421 = vsub.f32 %v5022, %v5420
  %5422 = vmatmul.mubr.f32.gmra.mrb[0].mxu0 %v5421
  %v5423 = vpop.f32.mrb[0].mxu0
  %v5424 = vadd.f32 %v5297, %v5423
  %v5425 = vpop.f32.mrb[0].mxu0
  %5426 = vmatprep.mubr.f32.mxu0 0.0
  %v5427 = vand.u32 %v5025, 4294901760
  %v5428 = vsub.f32 %v5025, %v5427
  %5429 = vmatmul.mubr.f32.gmra.mrb[0].mxu0 %v5428
  %v5430 = vpop.f32.mrb[0].mxu0
  %v5431 = vadd.f32 %v5303, %v5430
  %v5432 = vpop.f32.mrb[0].mxu0
  %5433 = vmatprep.mubr.f32.mxu0 0.0
  %v5434 = vand.u32 %v5028, 4294901760
  %v5435 = vsub.f32 %v5028, %v5434
  %5436 = vmatmul.mubr.f32.gmra.mrb[0].mxu0 %v5435
  %v5437 = vpop.f32.mrb[0].mxu0
  %v5438 = vadd.f32 %v5309, %v5437
  %v5439 = vpop.f32.mrb[0].mxu0
  %5440 = vdwg.mxu0
  %5441 = vmatprep.subr.mxu0 0.0
  %v5442 = vand.u32 %v4983, 4294901760
  %5443 = vmatpush1.msra.mxu0 %v5442
  %5444 = vmatprep.subr.mxu0 0.0
  %v5445 = vand.u32 %v4984, 4294901760
  %5446 = vmatpush1.msra.mxu0 %v5445
  %5447 = vmatprep.subr.mxu0 0.0
  %v5448 = vand.u32 %v4985, 4294901760
  %5449 = vmatpush1.msra.mxu0 %v5448
  %5450 = vmatprep.subr.mxu0 0.0
  %v5451 = vand.u32 %v4986, 4294901760
  %5452 = vmatpush1.msra.mxu0 %v5451
  %5453 = vmatprep.subr.mxu0 0.0
  %5454 = vmatpush1.msra.mxu0 0.0
  %5455 = vmatprep.subr.mxu0 0.0
  %5456 = vmatpush1.msra.mxu0 0.0
  %5457 = vmatprep.subr.mxu0 0.0
  %5458 = vmatpush1.msra.mxu0 0.0
  %5459 = vmatprep.subr.mxu0 0.0
  %5460 = vmatpush1.msra.mxu0 0.0
  %5461 = vmatprep.subr.mxu0 0.0
  %5462 = vmatpush1.msra.mxu0 0.0
  %5463 = vmatprep.subr.mxu0 0.0
  %5464 = vmatpush1.msra.mxu0 0.0
  %5465 = vmatprep.subr.mxu0 0.0
  %5466 = vmatpush1.msra.mxu0 0.0
  %5467 = vmatprep.subr.mxu0 0.0
  %5468 = vmatpush1.msra.mxu0 0.0
  %5469 = vmatprep.subr.mxu0 0.0
  %5470 = vmatpush1.msra.mxu0 0.0
  %5471 = vmatprep.subr.mxu0 0.0
  %5472 = vmatpush1.msra.mxu0 0.0
  %5473 = vmatprep.subr.mxu0 0.0
  %5474 = vmatpush1.msra.mxu0 0.0
  %5475 = vmatprep.subr.mxu0 0.0
  %5476 = vmatpush1.msra.mxu0 0.0
  %5477 = vmatprep.subr.mxu0 0.0
  %5478 = vmatpush1.msra.mxu0 0.0
  %5479 = vmatprep.subr.mxu0 0.0
  %5480 = vmatpush1.msra.mxu0 0.0
  %5481 = vmatprep.subr.mxu0 0.0
  %5482 = vmatpush1.msra.mxu0 0.0
  %5483 = vmatprep.subr.mxu0 0.0
  %5484 = vmatpush1.msra.mxu0 0.0
  %5485 = vmatprep.subr.mxu0 0.0
  %5486 = vmatpush1.msra.mxu0 0.0
  %5487 = vmatprep.subr.mxu0 0.0
  %5488 = vmatpush1.msra.mxu0 0.0
  %5489 = vmatprep.subr.mxu0 0.0
  %5490 = vmatpush1.msra.mxu0 0.0
  %5491 = vmatprep.subr.mxu0 0.0
  %5492 = vmatpush1.msra.mxu0 0.0
  %5493 = vmatprep.subr.mxu0 0.0
  %5494 = vmatpush1.msra.mxu0 0.0
  %5495 = vmatprep.subr.mxu0 0.0
  %5496 = vmatpush1.msra.mxu0 0.0
  %5497 = vmatprep.subr.mxu0 0.0
  %5498 = vmatpush1.msra.mxu0 0.0
  %5499 = vmatprep.subr.mxu0 0.0
  %5500 = vmatpush1.msra.mxu0 0.0
  %5501 = vmatprep.subr.mxu0 0.0
  %5502 = vmatpush1.msra.mxu0 0.0
  %5503 = vmatprep.subr.mxu0 0.0
  %5504 = vmatpush1.msra.mxu0 0.0
  %5505 = vmatprep.subr.mxu0 0.0
  %5506 = vmatpush1.msra.mxu0 0.0
  %5507 = vmatprep.subr.mxu0 0.0
  %5508 = vmatpush1.msra.mxu0 0.0
  %5509 = vmatprep.mubr.f32.mxu0 0.0
  %v5510 = vand.u32 %v5007, 4294901760
  %v5511 = vsub.f32 %v5007, %v5510
  %v5512 = vand.u32 %v5511, 4294901760
  %5513 = vmatmul.mubr.f32.gmra.mrb[0].mxu0 %v5512
  %v5514 = vpop.f32.mrb[0].mxu0
  %v5515 = vadd.f32 %v5389, %v5514
  %v5516 = vpop.f32.mrb[0].mxu0
  %5517 = vmatprep.mubr.f32.mxu0 0.0
  %v5518 = vand.u32 %v5010, 4294901760
  %v5519 = vsub.f32 %v5010, %v5518
  %v5520 = vand.u32 %v5519, 4294901760
  %5521 = vmatmul.mubr.f32.gmra.mrb[0].mxu0 %v5520
  %v5522 = vpop.f32.mrb[0].mxu0
  %v5523 = vadd.f32 %v5396, %v5522
  %v5524 = vpop.f32.mrb[0].mxu0
  %5525 = vmatprep.mubr.f32.mxu0 0.0
  %v5526 = vand.u32 %v5013, 4294901760
  %v5527 = vsub.f32 %v5013, %v5526
  %v5528 = vand.u32 %v5527, 4294901760
  %5529 = vmatmul.mubr.f32.gmra.mrb[0].mxu0 %v5528
  %v5530 = vpop.f32.mrb[0].mxu0
  %v5531 = vadd.f32 %v5403, %v5530
  %v5532 = vpop.f32.mrb[0].mxu0
  %5533 = vmatprep.mubr.f32.mxu0 0.0
  %v5534 = vand.u32 %v5016, 4294901760
  %v5535 = vsub.f32 %v5016, %v5534
  %v5536 = vand.u32 %v5535, 4294901760
  %5537 = vmatmul.mubr.f32.gmra.mrb[0].mxu0 %v5536
  %v5538 = vpop.f32.mrb[0].mxu0
  %v5539 = vadd.f32 %v5410, %v5538
  %v5540 = vpop.f32.mrb[0].mxu0
  %5541 = vmatprep.mubr.f32.mxu0 0.0
  %v5542 = vand.u32 %v5019, 4294901760
  %v5543 = vsub.f32 %v5019, %v5542
  %v5544 = vand.u32 %v5543, 4294901760
  %5545 = vmatmul.mubr.f32.gmra.mrb[0].mxu0 %v5544
  %v5546 = vpop.f32.mrb[0].mxu0
  %v5547 = vadd.f32 %v5417, %v5546
  %v5548 = vpop.f32.mrb[0].mxu0
  %5549 = vmatprep.mubr.f32.mxu0 0.0
  %v5550 = vand.u32 %v5022, 4294901760
  %v5551 = vsub.f32 %v5022, %v5550
  %v5552 = vand.u32 %v5551, 4294901760
  %5553 = vmatmul.mubr.f32.gmra.mrb[0].mxu0 %v5552
  %v5554 = vpop.f32.mrb[0].mxu0
  %v5555 = vadd.f32 %v5424, %v5554
  %v5556 = vpop.f32.mrb[0].mxu0
  %5557 = vmatprep.mubr.f32.mxu0 0.0
  %v5558 = vand.u32 %v5025, 4294901760
  %v5559 = vsub.f32 %v5025, %v5558
  %v5560 = vand.u32 %v5559, 4294901760
  %5561 = vmatmul.mubr.f32.gmra.mrb[0].mxu0 %v5560
  %v5562 = vpop.f32.mrb[0].mxu0
  %v5563 = vadd.f32 %v5431, %v5562
  %v5564 = vpop.f32.mrb[0].mxu0
  %5565 = vmatprep.mubr.f32.mxu0 0.0
  %v5566 = vand.u32 %v5028, 4294901760
  %v5567 = vsub.f32 %v5028, %v5566
  %v5568 = vand.u32 %v5567, 4294901760
  %5569 = vmatmul.mubr.f32.gmra.mrb[0].mxu0 %v5568
  %v5570 = vpop.f32.mrb[0].mxu0
  %v5571 = vadd.f32 %v5438, %v5570
  %v5572 = vpop.f32.mrb[0].mxu0
  %5573 = vdwg.mxu0
  %5574 = vmatprep.subr.mxu0 0.0
  %v5575 = vand.u32 %v4983, 4294901760
  %v5576 = vsub.f32 %v4983, %v5575
  %v5577 = vand.u32 %v5576, 4294901760
  %5578 = vmatpush1.msra.mxu0 %v5577
  %5579 = vmatprep.subr.mxu0 0.0
  %v5580 = vand.u32 %v4984, 4294901760
  %v5581 = vsub.f32 %v4984, %v5580
  %v5582 = vand.u32 %v5581, 4294901760
  %5583 = vmatpush1.msra.mxu0 %v5582
  %5584 = vmatprep.subr.mxu0 0.0
  %v5585 = vand.u32 %v4985, 4294901760
  %v5586 = vsub.f32 %v4985, %v5585
  %v5587 = vand.u32 %v5586, 4294901760
  %5588 = vmatpush1.msra.mxu0 %v5587
  %5589 = vmatprep.subr.mxu0 0.0
  %v5590 = vand.u32 %v4986, 4294901760
  %v5591 = vsub.f32 %v4986, %v5590
  %v5592 = vand.u32 %v5591, 4294901760
  %5593 = vmatpush1.msra.mxu0 %v5592
  %5594 = vmatprep.subr.mxu0 0.0
  %5595 = vmatpush1.msra.mxu0 0.0
  %5596 = vmatprep.subr.mxu0 0.0
  %5597 = vmatpush1.msra.mxu0 0.0
  %5598 = vmatprep.subr.mxu0 0.0
  %5599 = vmatpush1.msra.mxu0 0.0
  %5600 = vmatprep.subr.mxu0 0.0
  %5601 = vmatpush1.msra.mxu0 0.0
  %5602 = vmatprep.subr.mxu0 0.0
  %5603 = vmatpush1.msra.mxu0 0.0
  %5604 = vmatprep.subr.mxu0 0.0
  %5605 = vmatpush1.msra.mxu0 0.0
  %5606 = vmatprep.subr.mxu0 0.0
  %5607 = vmatpush1.msra.mxu0 0.0
  %5608 = vmatprep.subr.mxu0 0.0
  %5609 = vmatpush1.msra.mxu0 0.0
  %5610 = vmatprep.subr.mxu0 0.0
  %5611 = vmatpush1.msra.mxu0 0.0
  %5612 = vmatprep.subr.mxu0 0.0
  %5613 = vmatpush1.msra.mxu0 0.0
  %5614 = vmatprep.subr.mxu0 0.0
  %5615 = vmatpush1.msra.mxu0 0.0
  %5616 = vmatprep.subr.mxu0 0.0
  %5617 = vmatpush1.msra.mxu0 0.0
  %5618 = vmatprep.subr.mxu0 0.0
  %5619 = vmatpush1.msra.mxu0 0.0
  %5620 = vmatprep.subr.mxu0 0.0
  %5621 = vmatpush1.msra.mxu0 0.0
  %5622 = vmatprep.subr.mxu0 0.0
  %5623 = vmatpush1.msra.mxu0 0.0
  %5624 = vmatprep.subr.mxu0 0.0
  %5625 = vmatpush1.msra.mxu0 0.0
  %5626 = vmatprep.subr.mxu0 0.0
  %5627 = vmatpush1.msra.mxu0 0.0
  %5628 = vmatprep.subr.mxu0 0.0
  %5629 = vmatpush1.msra.mxu0 0.0
  %5630 = vmatprep.subr.mxu0 0.0
  %5631 = vmatpush1.msra.mxu0 0.0
  %5632 = vmatprep.subr.mxu0 0.0
  %5633 = vmatpush1.msra.mxu0 0.0
  %5634 = vmatprep.subr.mxu0 0.0
  %5635 = vmatpush1.msra.mxu0 0.0
  %5636 = vmatprep.subr.mxu0 0.0
  %5637 = vmatpush1.msra.mxu0 0.0
  %5638 = vmatprep.subr.mxu0 0.0
  %5639 = vmatpush1.msra.mxu0 0.0
  %5640 = vmatprep.subr.mxu0 0.0
  %5641 = vmatpush1.msra.mxu0 0.0
  %5642 = vmatprep.subr.mxu0 0.0
  %5643 = vmatpush1.msra.mxu0 0.0
  %5644 = vmatprep.subr.mxu0 0.0
  %5645 = vmatpush1.msra.mxu0 0.0
  %5646 = vmatprep.subr.mxu0 0.0
  %5647 = vmatpush1.msra.mxu0 0.0
  %5648 = vmatprep.subr.mxu0 0.0
  %5649 = vmatpush1.msra.mxu0 0.0
  %5650 = vmatprep.mubr.f32.mxu0 0.0
  %v5651 = vand.u32 %v5007, 4294901760
  %5652 = vmatmul.mubr.f32.gmra.mrb[0].mxu0 %v5651
  %v5653 = vpop.f32.mrb[0].mxu0
  %v5654 = vadd.f32 %v5515, %v5653
  %v5655 = vpop.f32.mrb[0].mxu0
  %5656 = vmatprep.mubr.f32.mxu0 0.0
  %v5657 = vand.u32 %v5010, 4294901760
  %5658 = vmatmul.mubr.f32.gmra.mrb[0].mxu0 %v5657
  %v5659 = vpop.f32.mrb[0].mxu0
  %v5660 = vadd.f32 %v5523, %v5659
  %v5661 = vpop.f32.mrb[0].mxu0
  %5662 = vmatprep.mubr.f32.mxu0 0.0
  %v5663 = vand.u32 %v5013, 4294901760
  %5664 = vmatmul.mubr.f32.gmra.mrb[0].mxu0 %v5663
  %v5665 = vpop.f32.mrb[0].mxu0
  %v5666 = vadd.f32 %v5531, %v5665
  %v5667 = vpop.f32.mrb[0].mxu0
  %5668 = vmatprep.mubr.f32.mxu0 0.0
  %v5669 = vand.u32 %v5016, 4294901760
  %5670 = vmatmul.mubr.f32.gmra.mrb[0].mxu0 %v5669
  %v5671 = vpop.f32.mrb[0].mxu0
  %v5672 = vadd.f32 %v5539, %v5671
  %v5673 = vpop.f32.mrb[0].mxu0
  %5674 = vmatprep.mubr.f32.mxu0 0.0
  %v5675 = vand.u32 %v5019, 4294901760
  %5676 = vmatmul.mubr.f32.gmra.mrb[0].mxu0 %v5675
  %v5677 = vpop.f32.mrb[0].mxu0
  %v5678 = vadd.f32 %v5547, %v5677
  %v5679 = vpop.f32.mrb[0].mxu0
  %5680 = vmatprep.mubr.f32.mxu0 0.0
  %v5681 = vand.u32 %v5022, 4294901760
  %5682 = vmatmul.mubr.f32.gmra.mrb[0].mxu0 %v5681
  %v5683 = vpop.f32.mrb[0].mxu0
  %v5684 = vadd.f32 %v5555, %v5683
  %v5685 = vpop.f32.mrb[0].mxu0
  %5686 = vmatprep.mubr.f32.mxu0 0.0
  %v5687 = vand.u32 %v5025, 4294901760
  %5688 = vmatmul.mubr.f32.gmra.mrb[0].mxu0 %v5687
  %v5689 = vpop.f32.mrb[0].mxu0
  %v5690 = vadd.f32 %v5563, %v5689
  %v5691 = vpop.f32.mrb[0].mxu0
  %5692 = vmatprep.mubr.f32.mxu0 0.0
  %v5693 = vand.u32 %v5028, 4294901760
  %5694 = vmatmul.mubr.f32.gmra.mrb[0].mxu0 %v5693
  %v5695 = vpop.f32.mrb[0].mxu0
  %v5696 = vadd.f32 %v5571, %v5695
  %v5697 = vpop.f32.mrb[0].mxu0
  %5698 = vdwg.mxu0
  %5699 = vmatprep.subr.mxu0 0.0
  %v5700 = vand.u32 %v4983, 4294901760
  %5701 = vmatpush1.msra.mxu0 %v5700
  %5702 = vmatprep.subr.mxu0 0.0
  %v5703 = vand.u32 %v4984, 4294901760
  %5704 = vmatpush1.msra.mxu0 %v5703
  %5705 = vmatprep.subr.mxu0 0.0
  %v5706 = vand.u32 %v4985, 4294901760
  %5707 = vmatpush1.msra.mxu0 %v5706
  %5708 = vmatprep.subr.mxu0 0.0
  %v5709 = vand.u32 %v4986, 4294901760
  %5710 = vmatpush1.msra.mxu0 %v5709
  %5711 = vmatprep.subr.mxu0 0.0
  %5712 = vmatpush1.msra.mxu0 0.0
  %5713 = vmatprep.subr.mxu0 0.0
  %5714 = vmatpush1.msra.mxu0 0.0
  %5715 = vmatprep.subr.mxu0 0.0
  %5716 = vmatpush1.msra.mxu0 0.0
  %5717 = vmatprep.subr.mxu0 0.0
  %5718 = vmatpush1.msra.mxu0 0.0
  %5719 = vmatprep.subr.mxu0 0.0
  %5720 = vmatpush1.msra.mxu0 0.0
  %5721 = vmatprep.subr.mxu0 0.0
  %5722 = vmatpush1.msra.mxu0 0.0
  %5723 = vmatprep.subr.mxu0 0.0
  %5724 = vmatpush1.msra.mxu0 0.0
  %5725 = vmatprep.subr.mxu0 0.0
  %5726 = vmatpush1.msra.mxu0 0.0
  %5727 = vmatprep.subr.mxu0 0.0
  %5728 = vmatpush1.msra.mxu0 0.0
  %5729 = vmatprep.subr.mxu0 0.0
  %5730 = vmatpush1.msra.mxu0 0.0
  %5731 = vmatprep.subr.mxu0 0.0
  %5732 = vmatpush1.msra.mxu0 0.0
  %5733 = vmatprep.subr.mxu0 0.0
  %5734 = vmatpush1.msra.mxu0 0.0
  %5735 = vmatprep.subr.mxu0 0.0
  %5736 = vmatpush1.msra.mxu0 0.0
  %5737 = vmatprep.subr.mxu0 0.0
  %5738 = vmatpush1.msra.mxu0 0.0
  %5739 = vmatprep.subr.mxu0 0.0
  %5740 = vmatpush1.msra.mxu0 0.0
  %5741 = vmatprep.subr.mxu0 0.0
  %5742 = vmatpush1.msra.mxu0 0.0
  %5743 = vmatprep.subr.mxu0 0.0
  %5744 = vmatpush1.msra.mxu0 0.0
  %5745 = vmatprep.subr.mxu0 0.0
  %5746 = vmatpush1.msra.mxu0 0.0
  %5747 = vmatprep.subr.mxu0 0.0
  %5748 = vmatpush1.msra.mxu0 0.0
  %5749 = vmatprep.subr.mxu0 0.0
  %5750 = vmatpush1.msra.mxu0 0.0
  %5751 = vmatprep.subr.mxu0 0.0
  %5752 = vmatpush1.msra.mxu0 0.0
  %5753 = vmatprep.subr.mxu0 0.0
  %5754 = vmatpush1.msra.mxu0 0.0
  %5755 = vmatprep.subr.mxu0 0.0
  %5756 = vmatpush1.msra.mxu0 0.0
  %5757 = vmatprep.subr.mxu0 0.0
  %5758 = vmatpush1.msra.mxu0 0.0
  %5759 = vmatprep.subr.mxu0 0.0
  %5760 = vmatpush1.msra.mxu0 0.0
  %5761 = vmatprep.subr.mxu0 0.0
  %5762 = vmatpush1.msra.mxu0 0.0
  %5763 = vmatprep.subr.mxu0 0.0
  %5764 = vmatpush1.msra.mxu0 0.0
  %5765 = vmatprep.subr.mxu0 0.0
  %5766 = vmatpush1.msra.mxu0 0.0
  %5767 = vmatprep.mubr.f32.mxu0 0.0
  %v5768 = vand.u32 %v5007, 4294901760
  %5769 = vmatmul.mubr.f32.gmra.mrb[0].mxu0 %v5768
  %v5770 = vpop.f32.mrb[0].mxu0
  %v5771 = vadd.f32 %v5654, %v5770
  %v5772 = vpop.f32.mrb[0].mxu0
  %5773 = vmatprep.mubr.f32.mxu0 0.0
  %v5774 = vand.u32 %v5010, 4294901760
  %5775 = vmatmul.mubr.f32.gmra.mrb[0].mxu0 %v5774
  %v5776 = vpop.f32.mrb[0].mxu0
  %v5777 = vadd.f32 %v5660, %v5776
  %v5778 = vpop.f32.mrb[0].mxu0
  %5779 = vmatprep.mubr.f32.mxu0 0.0
  %v5780 = vand.u32 %v5013, 4294901760
  %5781 = vmatmul.mubr.f32.gmra.mrb[0].mxu0 %v5780
  %v5782 = vpop.f32.mrb[0].mxu0
  %v5783 = vadd.f32 %v5666, %v5782
  %v5784 = vpop.f32.mrb[0].mxu0
  %5785 = vmatprep.mubr.f32.mxu0 0.0
  %v5786 = vand.u32 %v5016, 4294901760
  %5787 = vmatmul.mubr.f32.gmra.mrb[0].mxu0 %v5786
  %v5788 = vpop.f32.mrb[0].mxu0
  %v5789 = vadd.f32 %v5672, %v5788
  %v5790 = vpop.f32.mrb[0].mxu0
  %5791 = vmatprep.mubr.f32.mxu0 0.0
  %v5792 = vand.u32 %v5019, 4294901760
  %5793 = vmatmul.mubr.f32.gmra.mrb[0].mxu0 %v5792
  %v5794 = vpop.f32.mrb[0].mxu0
  %v5795 = vadd.f32 %v5678, %v5794
  %v5796 = vpop.f32.mrb[0].mxu0
  %5797 = vmatprep.mubr.f32.mxu0 0.0
  %v5798 = vand.u32 %v5022, 4294901760
  %5799 = vmatmul.mubr.f32.gmra.mrb[0].mxu0 %v5798
  %v5800 = vpop.f32.mrb[0].mxu0
  %v5801 = vadd.f32 %v5684, %v5800
  %v5802 = vpop.f32.mrb[0].mxu0
  %5803 = vmatprep.mubr.f32.mxu0 0.0
  %v5804 = vand.u32 %v5025, 4294901760
  %5805 = vmatmul.mubr.f32.gmra.mrb[0].mxu0 %v5804
  %v5806 = vpop.f32.mrb[0].mxu0
  %v5807 = vadd.f32 %v5690, %v5806
  %v5808 = vpop.f32.mrb[0].mxu0
  %5809 = vmatprep.mubr.f32.mxu0 0.0
  %v5810 = vand.u32 %v5028, 4294901760
  %5811 = vmatmul.mubr.f32.gmra.mrb[0].mxu0 %v5810
  %v5812 = vpop.f32.mrb[0].mxu0
  %v5813 = vadd.f32 %v5696, %v5812
  %v5814 = vpop.f32.mrb[0].mxu0
  %5815 = vdwg.mxu0
  %s5816 = scalar_lea.vmem %s1, 8
  %v5817 = vld [vmem:[%s5816] sm:$0xff]
  %s5818 = scalar_lea.vmem %s2, 8
  %v5819 = vld [vmem:[%s5818] sm:$0xff]
  %v5821 = vsel %vm835, %v5817, 0
  %5823 = vmatprep.subr.mxu0 0.0
  %v5824 = vand.u32 %v4987, 4294901760
  %5825 = vmatpush1.msra.mxu0 %v5824
  %5826 = vmatprep.subr.mxu0 0.0
  %v5827 = vand.u32 %v4988, 4294901760
  %5828 = vmatpush1.msra.mxu0 %v5827
  %5829 = vmatprep.subr.mxu0 0.0
  %v5830 = vand.u32 %v4989, 4294901760
  %5831 = vmatpush1.msra.mxu0 %v5830
  %5832 = vmatprep.subr.mxu0 0.0
  %v5833 = vand.u32 %v4990, 4294901760
  %5834 = vmatpush1.msra.mxu0 %v5833
  %5835 = vmatprep.subr.mxu0 0.0
  %5836 = vmatpush1.msra.mxu0 0.0
  %5837 = vmatprep.subr.mxu0 0.0
  %5838 = vmatpush1.msra.mxu0 0.0
  %5839 = vmatprep.subr.mxu0 0.0
  %5840 = vmatpush1.msra.mxu0 0.0
  %5841 = vmatprep.subr.mxu0 0.0
  %5842 = vmatpush1.msra.mxu0 0.0
  %5843 = vmatprep.subr.mxu0 0.0
  %5844 = vmatpush1.msra.mxu0 0.0
  %5845 = vmatprep.subr.mxu0 0.0
  %5846 = vmatpush1.msra.mxu0 0.0
  %5847 = vmatprep.subr.mxu0 0.0
  %5848 = vmatpush1.msra.mxu0 0.0
  %5849 = vmatprep.subr.mxu0 0.0
  %5850 = vmatpush1.msra.mxu0 0.0
  %5851 = vmatprep.subr.mxu0 0.0
  %5852 = vmatpush1.msra.mxu0 0.0
  %5853 = vmatprep.subr.mxu0 0.0
  %5854 = vmatpush1.msra.mxu0 0.0
  %5855 = vmatprep.subr.mxu0 0.0
  %5856 = vmatpush1.msra.mxu0 0.0
  %5857 = vmatprep.subr.mxu0 0.0
  %5858 = vmatpush1.msra.mxu0 0.0
  %5859 = vmatprep.subr.mxu0 0.0
  %5860 = vmatpush1.msra.mxu0 0.0
  %5861 = vmatprep.subr.mxu0 0.0
  %5862 = vmatpush1.msra.mxu0 0.0
  %5863 = vmatprep.subr.mxu0 0.0
  %5864 = vmatpush1.msra.mxu0 0.0
  %5865 = vmatprep.subr.mxu0 0.0
  %5866 = vmatpush1.msra.mxu0 0.0
  %5867 = vmatprep.subr.mxu0 0.0
  %5868 = vmatpush1.msra.mxu0 0.0
  %5869 = vmatprep.subr.mxu0 0.0
  %5870 = vmatpush1.msra.mxu0 0.0
  %5871 = vmatprep.subr.mxu0 0.0
  %5872 = vmatpush1.msra.mxu0 0.0
  %5873 = vmatprep.subr.mxu0 0.0
  %5874 = vmatpush1.msra.mxu0 0.0
  %5875 = vmatprep.subr.mxu0 0.0
  %5876 = vmatpush1.msra.mxu0 0.0
  %5877 = vmatprep.subr.mxu0 0.0
  %5878 = vmatpush1.msra.mxu0 0.0
  %5879 = vmatprep.subr.mxu0 0.0
  %5880 = vmatpush1.msra.mxu0 0.0
  %5881 = vmatprep.subr.mxu0 0.0
  %5882 = vmatpush1.msra.mxu0 0.0
  %5883 = vmatprep.subr.mxu0 0.0
  %5884 = vmatpush1.msra.mxu0 0.0
  %5885 = vmatprep.subr.mxu0 0.0
  %5886 = vmatpush1.msra.mxu0 0.0
  %5887 = vmatprep.subr.mxu0 0.0
  %5888 = vmatpush1.msra.mxu0 0.0
  %5889 = vmatprep.subr.mxu0 0.0
  %5890 = vmatpush1.msra.mxu0 0.0
  %5891 = vmatprep.mubr.f32.mxu0 0.0
  %v5892 = vand.u32 %v5821, 4294901760
  %v5893 = vsub.f32 %v5821, %v5892
  %v5894 = vand.u32 %v5893, 4294901760
  %v5895 = vsub.f32 %v5893, %v5894
  %v5896 = vand.u32 %v5895, 4294901760
  %5897 = vmatmul.mubr.f32.gmra.mrb[0].mxu0 %v5896
  %v5898 = vpop.f32.mrb[0].mxu0
  %v5899 = vadd.f32 0.0, %v5898
  %v5900 = vpop.f32.mrb[0].mxu0
  %5901 = vdwg.mxu0
  %5902 = vmatprep.subr.mxu0 0.0
  %v5903 = vand.u32 %v4987, 4294901760
  %v5904 = vsub.f32 %v4987, %v5903
  %v5905 = vand.u32 %v5904, 4294901760
  %v5906 = vsub.f32 %v5904, %v5905
  %v5907 = vand.u32 %v5906, 4294901760
  %5908 = vmatpush1.msra.mxu0 %v5907
  %5909 = vmatprep.subr.mxu0 0.0
  %v5910 = vand.u32 %v4988, 4294901760
  %v5911 = vsub.f32 %v4988, %v5910
  %v5912 = vand.u32 %v5911, 4294901760
  %v5913 = vsub.f32 %v5911, %v5912
  %v5914 = vand.u32 %v5913, 4294901760
  %5915 = vmatpush1.msra.mxu0 %v5914
  %5916 = vmatprep.subr.mxu0 0.0
  %v5917 = vand.u32 %v4989, 4294901760
  %v5918 = vsub.f32 %v4989, %v5917
  %v5919 = vand.u32 %v5918, 4294901760
  %v5920 = vsub.f32 %v5918, %v5919
  %v5921 = vand.u32 %v5920, 4294901760
  %5922 = vmatpush1.msra.mxu0 %v5921
  %5923 = vmatprep.subr.mxu0 0.0
  %v5924 = vand.u32 %v4990, 4294901760
  %v5925 = vsub.f32 %v4990, %v5924
  %v5926 = vand.u32 %v5925, 4294901760
  %v5927 = vsub.f32 %v5925, %v5926
  %v5928 = vand.u32 %v5927, 4294901760
  %5929 = vmatpush1.msra.mxu0 %v5928
  %5930 = vmatprep.subr.mxu0 0.0
  %5931 = vmatpush1.msra.mxu0 0.0
  %5932 = vmatprep.subr.mxu0 0.0
  %5933 = vmatpush1.msra.mxu0 0.0
  %5934 = vmatprep.subr.mxu0 0.0
  %5935 = vmatpush1.msra.mxu0 0.0
  %5936 = vmatprep.subr.mxu0 0.0
  %5937 = vmatpush1.msra.mxu0 0.0
  %5938 = vmatprep.subr.mxu0 0.0
  %5939 = vmatpush1.msra.mxu0 0.0
  %5940 = vmatprep.subr.mxu0 0.0
  %5941 = vmatpush1.msra.mxu0 0.0
  %5942 = vmatprep.subr.mxu0 0.0
  %5943 = vmatpush1.msra.mxu0 0.0
  %5944 = vmatprep.subr.mxu0 0.0
  %5945 = vmatpush1.msra.mxu0 0.0
  %5946 = vmatprep.subr.mxu0 0.0
  %5947 = vmatpush1.msra.mxu0 0.0
  %5948 = vmatprep.subr.mxu0 0.0
  %5949 = vmatpush1.msra.mxu0 0.0
  %5950 = vmatprep.subr.mxu0 0.0
  %5951 = vmatpush1.msra.mxu0 0.0
  %5952 = vmatprep.subr.mxu0 0.0
  %5953 = vmatpush1.msra.mxu0 0.0
  %5954 = vmatprep.subr.mxu0 0.0
  %5955 = vmatpush1.msra.mxu0 0.0
  %5956 = vmatprep.subr.mxu0 0.0
  %5957 = vmatpush1.msra.mxu0 0.0
  %5958 = vmatprep.subr.mxu0 0.0
  %5959 = vmatpush1.msra.mxu0 0.0
  %5960 = vmatprep.subr.mxu0 0.0
  %5961 = vmatpush1.msra.mxu0 0.0
  %5962 = vmatprep.subr.mxu0 0.0
  %5963 = vmatpush1.msra.mxu0 0.0
  %5964 = vmatprep.subr.mxu0 0.0
  %5965 = vmatpush1.msra.mxu0 0.0
  %5966 = vmatprep.subr.mxu0 0.0
  %5967 = vmatpush1.msra.mxu0 0.0
  %5968 = vmatprep.subr.mxu0 0.0
  %5969 = vmatpush1.msra.mxu0 0.0
  %5970 = vmatprep.subr.mxu0 0.0
  %5971 = vmatpush1.msra.mxu0 0.0
  %5972 = vmatprep.subr.mxu0 0.0
  %5973 = vmatpush1.msra.mxu0 0.0
  %5974 = vmatprep.subr.mxu0 0.0
  %5975 = vmatpush1.msra.mxu0 0.0
  %5976 = vmatprep.subr.mxu0 0.0
  %5977 = vmatpush1.msra.mxu0 0.0
  %5978 = vmatprep.subr.mxu0 0.0
  %5979 = vmatpush1.msra.mxu0 0.0
  %5980 = vmatprep.subr.mxu0 0.0
  %5981 = vmatpush1.msra.mxu0 0.0
  %5982 = vmatprep.subr.mxu0 0.0
  %5983 = vmatpush1.msra.mxu0 0.0
  %5984 = vmatprep.subr.mxu0 0.0
  %5985 = vmatpush1.msra.mxu0 0.0
  %5986 = vmatprep.mubr.f32.mxu0 0.0
  %v5987 = vand.u32 %v5821, 4294901760
  %5988 = vmatmul.mubr.f32.gmra.mrb[0].mxu0 %v5987
  %v5989 = vpop.f32.mrb[0].mxu0
  %v5990 = vadd.f32 %v5899, %v5989
  %v5991 = vpop.f32.mrb[0].mxu0
  %5992 = vdwg.mxu0
  %5993 = vmatprep.subr.mxu0 0.0
  %v5994 = vand.u32 %v4987, 4294901760
  %v5995 = vsub.f32 %v4987, %v5994
  %5996 = vmatpush1.msra.mxu0 %v5995
  %5997 = vmatprep.subr.mxu0 0.0
  %v5998 = vand.u32 %v4988, 4294901760
  %v5999 = vsub.f32 %v4988, %v5998
  %6000 = vmatpush1.msra.mxu0 %v5999
  %6001 = vmatprep.subr.mxu0 0.0
  %v6002 = vand.u32 %v4989, 4294901760
  %v6003 = vsub.f32 %v4989, %v6002
  %6004 = vmatpush1.msra.mxu0 %v6003
  %6005 = vmatprep.subr.mxu0 0.0
  %v6006 = vand.u32 %v4990, 4294901760
  %v6007 = vsub.f32 %v4990, %v6006
  %6008 = vmatpush1.msra.mxu0 %v6007
  %6009 = vmatprep.subr.mxu0 0.0
  %6010 = vmatpush1.msra.mxu0 0.0
  %6011 = vmatprep.subr.mxu0 0.0
  %6012 = vmatpush1.msra.mxu0 0.0
  %6013 = vmatprep.subr.mxu0 0.0
  %6014 = vmatpush1.msra.mxu0 0.0
  %6015 = vmatprep.subr.mxu0 0.0
  %6016 = vmatpush1.msra.mxu0 0.0
  %6017 = vmatprep.subr.mxu0 0.0
  %6018 = vmatpush1.msra.mxu0 0.0
  %6019 = vmatprep.subr.mxu0 0.0
  %6020 = vmatpush1.msra.mxu0 0.0
  %6021 = vmatprep.subr.mxu0 0.0
  %6022 = vmatpush1.msra.mxu0 0.0
  %6023 = vmatprep.subr.mxu0 0.0
  %6024 = vmatpush1.msra.mxu0 0.0
  %6025 = vmatprep.subr.mxu0 0.0
  %6026 = vmatpush1.msra.mxu0 0.0
  %6027 = vmatprep.subr.mxu0 0.0
  %6028 = vmatpush1.msra.mxu0 0.0
  %6029 = vmatprep.subr.mxu0 0.0
  %6030 = vmatpush1.msra.mxu0 0.0
  %6031 = vmatprep.subr.mxu0 0.0
  %6032 = vmatpush1.msra.mxu0 0.0
  %6033 = vmatprep.subr.mxu0 0.0
  %6034 = vmatpush1.msra.mxu0 0.0
  %6035 = vmatprep.subr.mxu0 0.0
  %6036 = vmatpush1.msra.mxu0 0.0
  %6037 = vmatprep.subr.mxu0 0.0
  %6038 = vmatpush1.msra.mxu0 0.0
  %6039 = vmatprep.subr.mxu0 0.0
  %6040 = vmatpush1.msra.mxu0 0.0
  %6041 = vmatprep.subr.mxu0 0.0
  %6042 = vmatpush1.msra.mxu0 0.0
  %6043 = vmatprep.subr.mxu0 0.0
  %6044 = vmatpush1.msra.mxu0 0.0
  %6045 = vmatprep.subr.mxu0 0.0
  %6046 = vmatpush1.msra.mxu0 0.0
  %6047 = vmatprep.subr.mxu0 0.0
  %6048 = vmatpush1.msra.mxu0 0.0
  %6049 = vmatprep.subr.mxu0 0.0
  %6050 = vmatpush1.msra.mxu0 0.0
  %6051 = vmatprep.subr.mxu0 0.0
  %6052 = vmatpush1.msra.mxu0 0.0
  %6053 = vmatprep.subr.mxu0 0.0
  %6054 = vmatpush1.msra.mxu0 0.0
  %6055 = vmatprep.subr.mxu0 0.0
  %6056 = vmatpush1.msra.mxu0 0.0
  %6057 = vmatprep.subr.mxu0 0.0
  %6058 = vmatpush1.msra.mxu0 0.0
  %6059 = vmatprep.subr.mxu0 0.0
  %6060 = vmatpush1.msra.mxu0 0.0
  %6061 = vmatprep.subr.mxu0 0.0
  %6062 = vmatpush1.msra.mxu0 0.0
  %6063 = vmatprep.subr.mxu0 0.0
  %6064 = vmatpush1.msra.mxu0 0.0
  %6065 = vmatprep.mubr.f32.mxu0 0.0
  %v6066 = vand.u32 %v5821, 4294901760
  %v6067 = vsub.f32 %v5821, %v6066
  %6068 = vmatmul.mubr.f32.gmra.mrb[0].mxu0 %v6067
  %v6069 = vpop.f32.mrb[0].mxu0
  %v6070 = vadd.f32 %v5990, %v6069
  %v6071 = vpop.f32.mrb[0].mxu0
  %6072 = vdwg.mxu0
  %6073 = vmatprep.subr.mxu0 0.0
  %v6074 = vand.u32 %v4987, 4294901760
  %6075 = vmatpush1.msra.mxu0 %v6074
  %6076 = vmatprep.subr.mxu0 0.0
  %v6077 = vand.u32 %v4988, 4294901760
  %6078 = vmatpush1.msra.mxu0 %v6077
  %6079 = vmatprep.subr.mxu0 0.0
  %v6080 = vand.u32 %v4989, 4294901760
  %6081 = vmatpush1.msra.mxu0 %v6080
  %6082 = vmatprep.subr.mxu0 0.0
  %v6083 = vand.u32 %v4990, 4294901760
  %6084 = vmatpush1.msra.mxu0 %v6083
  %6085 = vmatprep.subr.mxu0 0.0
  %6086 = vmatpush1.msra.mxu0 0.0
  %6087 = vmatprep.subr.mxu0 0.0
  %6088 = vmatpush1.msra.mxu0 0.0
  %6089 = vmatprep.subr.mxu0 0.0
  %6090 = vmatpush1.msra.mxu0 0.0
  %6091 = vmatprep.subr.mxu0 0.0
  %6092 = vmatpush1.msra.mxu0 0.0
  %6093 = vmatprep.subr.mxu0 0.0
  %6094 = vmatpush1.msra.mxu0 0.0
  %6095 = vmatprep.subr.mxu0 0.0
  %6096 = vmatpush1.msra.mxu0 0.0
  %6097 = vmatprep.subr.mxu0 0.0
  %6098 = vmatpush1.msra.mxu0 0.0
  %6099 = vmatprep.subr.mxu0 0.0
  %6100 = vmatpush1.msra.mxu0 0.0
  %6101 = vmatprep.subr.mxu0 0.0
  %6102 = vmatpush1.msra.mxu0 0.0
  %6103 = vmatprep.subr.mxu0 0.0
  %6104 = vmatpush1.msra.mxu0 0.0
  %6105 = vmatprep.subr.mxu0 0.0
  %6106 = vmatpush1.msra.mxu0 0.0
  %6107 = vmatprep.subr.mxu0 0.0
  %6108 = vmatpush1.msra.mxu0 0.0
  %6109 = vmatprep.subr.mxu0 0.0
  %6110 = vmatpush1.msra.mxu0 0.0
  %6111 = vmatprep.subr.mxu0 0.0
  %6112 = vmatpush1.msra.mxu0 0.0
  %6113 = vmatprep.subr.mxu0 0.0
  %6114 = vmatpush1.msra.mxu0 0.0
  %6115 = vmatprep.subr.mxu0 0.0
  %6116 = vmatpush1.msra.mxu0 0.0
  %6117 = vmatprep.subr.mxu0 0.0
  %6118 = vmatpush1.msra.mxu0 0.0
  %6119 = vmatprep.subr.mxu0 0.0
  %6120 = vmatpush1.msra.mxu0 0.0
  %6121 = vmatprep.subr.mxu0 0.0
  %6122 = vmatpush1.msra.mxu0 0.0
  %6123 = vmatprep.subr.mxu0 0.0
  %6124 = vmatpush1.msra.mxu0 0.0
  %6125 = vmatprep.subr.mxu0 0.0
  %6126 = vmatpush1.msra.mxu0 0.0
  %6127 = vmatprep.subr.mxu0 0.0
  %6128 = vmatpush1.msra.mxu0 0.0
  %6129 = vmatprep.subr.mxu0 0.0
  %6130 = vmatpush1.msra.mxu0 0.0
  %6131 = vmatprep.subr.mxu0 0.0
  %6132 = vmatpush1.msra.mxu0 0.0
  %6133 = vmatprep.subr.mxu0 0.0
  %6134 = vmatpush1.msra.mxu0 0.0
  %6135 = vmatprep.subr.mxu0 0.0
  %6136 = vmatpush1.msra.mxu0 0.0
  %6137 = vmatprep.subr.mxu0 0.0
  %6138 = vmatpush1.msra.mxu0 0.0
  %6139 = vmatprep.subr.mxu0 0.0
  %6140 = vmatpush1.msra.mxu0 0.0
  %6141 = vmatprep.mubr.f32.mxu0 0.0
  %v6142 = vand.u32 %v5821, 4294901760
  %v6143 = vsub.f32 %v5821, %v6142
  %v6144 = vand.u32 %v6143, 4294901760
  %6145 = vmatmul.mubr.f32.gmra.mrb[0].mxu0 %v6144
  %v6146 = vpop.f32.mrb[0].mxu0
  %v6147 = vadd.f32 %v6070, %v6146
  %v6148 = vpop.f32.mrb[0].mxu0
  %6149 = vdwg.mxu0
  %6150 = vmatprep.subr.mxu0 0.0
  %v6151 = vand.u32 %v4987, 4294901760
  %v6152 = vsub.f32 %v4987, %v6151
  %v6153 = vand.u32 %v6152, 4294901760
  %6154 = vmatpush1.msra.mxu0 %v6153
  %6155 = vmatprep.subr.mxu0 0.0
  %v6156 = vand.u32 %v4988, 4294901760
  %v6157 = vsub.f32 %v4988, %v6156
  %v6158 = vand.u32 %v6157, 4294901760
  %6159 = vmatpush1.msra.mxu0 %v6158
  %6160 = vmatprep.subr.mxu0 0.0
  %v6161 = vand.u32 %v4989, 4294901760
  %v6162 = vsub.f32 %v4989, %v6161
  %v6163 = vand.u32 %v6162, 4294901760
  %6164 = vmatpush1.msra.mxu0 %v6163
  %6165 = vmatprep.subr.mxu0 0.0
  %v6166 = vand.u32 %v4990, 4294901760
  %v6167 = vsub.f32 %v4990, %v6166
  %v6168 = vand.u32 %v6167, 4294901760
  %6169 = vmatpush1.msra.mxu0 %v6168
  %6170 = vmatprep.subr.mxu0 0.0
  %6171 = vmatpush1.msra.mxu0 0.0
  %6172 = vmatprep.subr.mxu0 0.0
  %6173 = vmatpush1.msra.mxu0 0.0
  %6174 = vmatprep.subr.mxu0 0.0
  %6175 = vmatpush1.msra.mxu0 0.0
  %6176 = vmatprep.subr.mxu0 0.0
  %6177 = vmatpush1.msra.mxu0 0.0
  %6178 = vmatprep.subr.mxu0 0.0
  %6179 = vmatpush1.msra.mxu0 0.0
  %6180 = vmatprep.subr.mxu0 0.0
  %6181 = vmatpush1.msra.mxu0 0.0
  %6182 = vmatprep.subr.mxu0 0.0
  %6183 = vmatpush1.msra.mxu0 0.0
  %6184 = vmatprep.subr.mxu0 0.0
  %6185 = vmatpush1.msra.mxu0 0.0
  %6186 = vmatprep.subr.mxu0 0.0
  %6187 = vmatpush1.msra.mxu0 0.0
  %6188 = vmatprep.subr.mxu0 0.0
  %6189 = vmatpush1.msra.mxu0 0.0
  %6190 = vmatprep.subr.mxu0 0.0
  %6191 = vmatpush1.msra.mxu0 0.0
  %6192 = vmatprep.subr.mxu0 0.0
  %6193 = vmatpush1.msra.mxu0 0.0
  %6194 = vmatprep.subr.mxu0 0.0
  %6195 = vmatpush1.msra.mxu0 0.0
  %6196 = vmatprep.subr.mxu0 0.0
  %6197 = vmatpush1.msra.mxu0 0.0
  %6198 = vmatprep.subr.mxu0 0.0
  %6199 = vmatpush1.msra.mxu0 0.0
  %6200 = vmatprep.subr.mxu0 0.0
  %6201 = vmatpush1.msra.mxu0 0.0
  %6202 = vmatprep.subr.mxu0 0.0
  %6203 = vmatpush1.msra.mxu0 0.0
  %6204 = vmatprep.subr.mxu0 0.0
  %6205 = vmatpush1.msra.mxu0 0.0
  %6206 = vmatprep.subr.mxu0 0.0
  %6207 = vmatpush1.msra.mxu0 0.0
  %6208 = vmatprep.subr.mxu0 0.0
  %6209 = vmatpush1.msra.mxu0 0.0
  %6210 = vmatprep.subr.mxu0 0.0
  %6211 = vmatpush1.msra.mxu0 0.0
  %6212 = vmatprep.subr.mxu0 0.0
  %6213 = vmatpush1.msra.mxu0 0.0
  %6214 = vmatprep.subr.mxu0 0.0
  %6215 = vmatpush1.msra.mxu0 0.0
  %6216 = vmatprep.subr.mxu0 0.0
  %6217 = vmatpush1.msra.mxu0 0.0
  %6218 = vmatprep.subr.mxu0 0.0
  %6219 = vmatpush1.msra.mxu0 0.0
  %6220 = vmatprep.subr.mxu0 0.0
  %6221 = vmatpush1.msra.mxu0 0.0
  %6222 = vmatprep.subr.mxu0 0.0
  %6223 = vmatpush1.msra.mxu0 0.0
  %6224 = vmatprep.subr.mxu0 0.0
  %6225 = vmatpush1.msra.mxu0 0.0
  %6226 = vmatprep.mubr.f32.mxu0 0.0
  %v6227 = vand.u32 %v5821, 4294901760
  %6228 = vmatmul.mubr.f32.gmra.mrb[0].mxu0 %v6227
  %v6229 = vpop.f32.mrb[0].mxu0
  %v6230 = vadd.f32 %v6147, %v6229
  %v6231 = vpop.f32.mrb[0].mxu0
  %6232 = vdwg.mxu0
  %6233 = vmatprep.subr.mxu0 0.0
  %v6234 = vand.u32 %v4987, 4294901760
  %6235 = vmatpush1.msra.mxu0 %v6234
  %6236 = vmatprep.subr.mxu0 0.0
  %v6237 = vand.u32 %v4988, 4294901760
  %6238 = vmatpush1.msra.mxu0 %v6237
  %6239 = vmatprep.subr.mxu0 0.0
  %v6240 = vand.u32 %v4989, 4294901760
  %6241 = vmatpush1.msra.mxu0 %v6240
  %6242 = vmatprep.subr.mxu0 0.0
  %v6243 = vand.u32 %v4990, 4294901760
  %6244 = vmatpush1.msra.mxu0 %v6243
  %6245 = vmatprep.subr.mxu0 0.0
  %6246 = vmatpush1.msra.mxu0 0.0
  %6247 = vmatprep.subr.mxu0 0.0
  %6248 = vmatpush1.msra.mxu0 0.0
  %6249 = vmatprep.subr.mxu0 0.0
  %6250 = vmatpush1.msra.mxu0 0.0
  %6251 = vmatprep.subr.mxu0 0.0
  %6252 = vmatpush1.msra.mxu0 0.0
  %6253 = vmatprep.subr.mxu0 0.0
  %6254 = vmatpush1.msra.mxu0 0.0
  %6255 = vmatprep.subr.mxu0 0.0
  %6256 = vmatpush1.msra.mxu0 0.0
  %6257 = vmatprep.subr.mxu0 0.0
  %6258 = vmatpush1.msra.mxu0 0.0
  %6259 = vmatprep.subr.mxu0 0.0
  %6260 = vmatpush1.msra.mxu0 0.0
  %6261 = vmatprep.subr.mxu0 0.0
  %6262 = vmatpush1.msra.mxu0 0.0
  %6263 = vmatprep.subr.mxu0 0.0
  %6264 = vmatpush1.msra.mxu0 0.0
  %6265 = vmatprep.subr.mxu0 0.0
  %6266 = vmatpush1.msra.mxu0 0.0
  %6267 = vmatprep.subr.mxu0 0.0
  %6268 = vmatpush1.msra.mxu0 0.0
  %6269 = vmatprep.subr.mxu0 0.0
  %6270 = vmatpush1.msra.mxu0 0.0
  %6271 = vmatprep.subr.mxu0 0.0
  %6272 = vmatpush1.msra.mxu0 0.0
  %6273 = vmatprep.subr.mxu0 0.0
  %6274 = vmatpush1.msra.mxu0 0.0
  %6275 = vmatprep.subr.mxu0 0.0
  %6276 = vmatpush1.msra.mxu0 0.0
  %6277 = vmatprep.subr.mxu0 0.0
  %6278 = vmatpush1.msra.mxu0 0.0
  %6279 = vmatprep.subr.mxu0 0.0
  %6280 = vmatpush1.msra.mxu0 0.0
  %6281 = vmatprep.subr.mxu0 0.0
  %6282 = vmatpush1.msra.mxu0 0.0
  %6283 = vmatprep.subr.mxu0 0.0
  %6284 = vmatpush1.msra.mxu0 0.0
  %6285 = vmatprep.subr.mxu0 0.0
  %6286 = vmatpush1.msra.mxu0 0.0
  %6287 = vmatprep.subr.mxu0 0.0
  %6288 = vmatpush1.msra.mxu0 0.0
  %6289 = vmatprep.subr.mxu0 0.0
  %6290 = vmatpush1.msra.mxu0 0.0
  %6291 = vmatprep.subr.mxu0 0.0
  %6292 = vmatpush1.msra.mxu0 0.0
  %6293 = vmatprep.subr.mxu0 0.0
  %6294 = vmatpush1.msra.mxu0 0.0
  %6295 = vmatprep.subr.mxu0 0.0
  %6296 = vmatpush1.msra.mxu0 0.0
  %6297 = vmatprep.subr.mxu0 0.0
  %6298 = vmatpush1.msra.mxu0 0.0
  %6299 = vmatprep.subr.mxu0 0.0
  %6300 = vmatpush1.msra.mxu0 0.0
  %6301 = vmatprep.mubr.f32.mxu0 0.0
  %v6302 = vand.u32 %v5821, 4294901760
  %6303 = vmatmul.mubr.f32.gmra.mrb[0].mxu0 %v6302
  %v6304 = vpop.f32.mrb[0].mxu0
  %v6305 = vadd.f32 %v6230, %v6304
  %v6306 = vpop.f32.mrb[0].mxu0
  %6307 = vdwg.mxu0
  %v6308 = vadd.f32 %v5771, %v6305
  %v6309 = vxor.u32 %v6308, 2147483648
  %v6310 = vmul.f32 %v6309, 1.442695
  %v6311 = vpow.pop %v6310
  %v6312 = vadd.f32 %v6311, 1.0
  %v6313 = vrcp.pop %v6312
  %v6314 = vmul.f32 1.0, %v6313
  %v6315 = vtanh.pop %v6308
  %6317 = vrot.lane.b32.xlu0 %v5819, 32
  %v6318 = vpop.permute.xlu0 %6317
  %v6320 = vmul.f32 %v6314, %v6318
  %6322 = vrot.lane.b32.xlu0 %v6315, 64
  %v6323 = vpop.permute.xlu0 %6322
  %v6325 = vmul.f32 %v6314, %v6323
  %6327 = vrot.lane.b32.xlu0 %v6325, 32
  %v6328 = vpop.permute.xlu0 %6327
  %v6330 = vadd.f32 %v6320, %v6328
  %v6331 = vtanh.pop %v6330
  %6333 = vrot.lane.b32.xlu0 %v6331, 64
  %v6334 = vpop.permute.xlu0 %6333
  %v6336 = vmul.f32 %v6314, %v6334
  %6338 = vrot.lane.b32.xlu0 %v6336, 32
  %v6339 = vpop.permute.xlu0 %6338
  %6341 = vst.msk [vmem:[#allocation2] sm:$0xff] %vm835, %v6339
  %v6342 = vsel %vm835, %v6339, 0
  %6344 = vmatprep.subr.mxu0 0.0
  %v6345 = vand.u32 %v4987, 4294901760
  %6346 = vmatpush1.msra.mxu0 %v6345
  %6347 = vmatprep.subr.mxu0 0.0
  %v6348 = vand.u32 %v4988, 4294901760
  %6349 = vmatpush1.msra.mxu0 %v6348
  %6350 = vmatprep.subr.mxu0 0.0
  %v6351 = vand.u32 %v4989, 4294901760
  %6352 = vmatpush1.msra.mxu0 %v6351
  %6353 = vmatprep.subr.mxu0 0.0
  %v6354 = vand.u32 %v4990, 4294901760
  %6355 = vmatpush1.msra.mxu0 %v6354
  %6356 = vmatprep.subr.mxu0 0.0
  %6357 = vmatpush1.msra.mxu0 0.0
  %6358 = vmatprep.subr.mxu0 0.0
  %6359 = vmatpush1.msra.mxu0 0.0
  %6360 = vmatprep.subr.mxu0 0.0
  %6361 = vmatpush1.msra.mxu0 0.0
  %6362 = vmatprep.subr.mxu0 0.0
  %6363 = vmatpush1.msra.mxu0 0.0
  %6364 = vmatprep.subr.mxu0 0.0
  %6365 = vmatpush1.msra.mxu0 0.0
  %6366 = vmatprep.subr.mxu0 0.0
  %6367 = vmatpush1.msra.mxu0 0.0
  %6368 = vmatprep.subr.mxu0 0.0
  %6369 = vmatpush1.msra.mxu0 0.0
  %6370 = vmatprep.subr.mxu0 0.0
  %6371 = vmatpush1.msra.mxu0 0.0
  %6372 = vmatprep.subr.mxu0 0.0
  %6373 = vmatpush1.msra.mxu0 0.0
  %6374 = vmatprep.subr.mxu0 0.0
  %6375 = vmatpush1.msra.mxu0 0.0
  %6376 = vmatprep.subr.mxu0 0.0
  %6377 = vmatpush1.msra.mxu0 0.0
  %6378 = vmatprep.subr.mxu0 0.0
  %6379 = vmatpush1.msra.mxu0 0.0
  %6380 = vmatprep.subr.mxu0 0.0
  %6381 = vmatpush1.msra.mxu0 0.0
  %6382 = vmatprep.subr.mxu0 0.0
  %6383 = vmatpush1.msra.mxu0 0.0
  %6384 = vmatprep.subr.mxu0 0.0
  %6385 = vmatpush1.msra.mxu0 0.0
  %6386 = vmatprep.subr.mxu0 0.0
  %6387 = vmatpush1.msra.mxu0 0.0
  %6388 = vmatprep.subr.mxu0 0.0
  %6389 = vmatpush1.msra.mxu0 0.0
  %6390 = vmatprep.subr.mxu0 0.0
  %6391 = vmatpush1.msra.mxu0 0.0
  %6392 = vmatprep.subr.mxu0 0.0
  %6393 = vmatpush1.msra.mxu0 0.0
  %6394 = vmatprep.subr.mxu0 0.0
  %6395 = vmatpush1.msra.mxu0 0.0
  %6396 = vmatprep.subr.mxu0 0.0
  %6397 = vmatpush1.msra.mxu0 0.0
  %6398 = vmatprep.subr.mxu0 0.0
  %6399 = vmatpush1.msra.mxu0 0.0
  %6400 = vmatprep.subr.mxu0 0.0
  %6401 = vmatpush1.msra.mxu0 0.0
  %6402 = vmatprep.subr.mxu0 0.0
  %6403 = vmatpush1.msra.mxu0 0.0
  %6404 = vmatprep.subr.mxu0 0.0
  %6405 = vmatpush1.msra.mxu0 0.0
  %6406 = vmatprep.subr.mxu0 0.0
  %6407 = vmatpush1.msra.mxu0 0.0
  %6408 = vmatprep.subr.mxu0 0.0
  %6409 = vmatpush1.msra.mxu0 0.0
  %6410 = vmatprep.subr.mxu0 0.0
  %6411 = vmatpush1.msra.mxu0 0.0
  %6412 = vmatprep.mubr.f32.mxu0 0.0
  %v6413 = vand.u32 %v6342, 4294901760
  %v6414 = vsub.f32 %v6342, %v6413
  %v6415 = vand.u32 %v6414, 4294901760
  %v6416 = vsub.f32 %v6414, %v6415
  %v6417 = vand.u32 %v6416, 4294901760
  %6418 = vmatmul.mubr.f32.gmra.mrb[0].mxu0 %v6417
  %v6419 = vpop.f32.mrb[0].mxu0
  %v6420 = vadd.f32 0.0, %v6419
  %v6421 = vpop.f32.mrb[0].mxu0
  %6422 = vdwg.mxu0
  %6423 = vmatprep.subr.mxu0 0.0
  %v6424 = vand.u32 %v4987, 4294901760
  %v6425 = vsub.f32 %v4987, %v6424
  %v6426 = vand.u32 %v6425, 4294901760
  %v6427 = vsub.f32 %v6425, %v6426
  %v6428 = vand.u32 %v6427, 4294901760
  %6429 = vmatpush1.msra.mxu0 %v6428
  %6430 = vmatprep.subr.mxu0 0.0
  %v6431 = vand.u32 %v4988, 4294901760
  %v6432 = vsub.f32 %v4988, %v6431
  %v6433 = vand.u32 %v6432, 4294901760
  %v6434 = vsub.f32 %v6432, %v6433
  %v6435 = vand.u32 %v6434, 4294901760
  %6436 = vmatpush1.msra.mxu0 %v6435
  %6437 = vmatprep.subr.mxu0 0.0
  %v6438 = vand.u32 %v4989, 4294901760
  %v6439 = vsub.f32 %v4989, %v6438
  %v6440 = vand.u32 %v6439, 4294901760
  %v6441 = vsub.f32 %v6439, %v6440
  %v6442 = vand.u32 %v6441, 4294901760
  %6443 = vmatpush1.msra.mxu0 %v6442
  %6444 = vmatprep.subr.mxu0 0.0
  %v6445 = vand.u32 %v4990, 4294901760
  %v6446 = vsub.f32 %v4990, %v6445
  %v6447 = vand.u32 %v6446, 4294901760
  %v6448 = vsub.f32 %v6446, %v6447
  %v6449 = vand.u32 %v6448, 4294901760
  %6450 = vmatpush1.msra.mxu0 %v6449
  %6451 = vmatprep.subr.mxu0 0.0
  %6452 = vmatpush1.msra.mxu0 0.0
  %6453 = vmatprep.subr.mxu0 0.0
  %6454 = vmatpush1.msra.mxu0 0.0
  %6455 = vmatprep.subr.mxu0 0.0
  %6456 = vmatpush1.msra.mxu0 0.0
  %6457 = vmatprep.subr.mxu0 0.0
  %6458 = vmatpush1.msra.mxu0 0.0
  %6459 = vmatprep.subr.mxu0 0.0
  %6460 = vmatpush1.msra.mxu0 0.0
  %6461 = vmatprep.subr.mxu0 0.0
  %6462 = vmatpush1.msra.mxu0 0.0
  %6463 = vmatprep.subr.mxu0 0.0
  %6464 = vmatpush1.msra.mxu0 0.0
  %6465 = vmatprep.subr.mxu0 0.0
  %6466 = vmatpush1.msra.mxu0 0.0
  %6467 = vmatprep.subr.mxu0 0.0
  %6468 = vmatpush1.msra.mxu0 0.0
  %6469 = vmatprep.subr.mxu0 0.0
  %6470 = vmatpush1.msra.mxu0 0.0
  %6471 = vmatprep.subr.mxu0 0.0
  %6472 = vmatpush1.msra.mxu0 0.0
  %6473 = vmatprep.subr.mxu0 0.0
  %6474 = vmatpush1.msra.mxu0 0.0
  %6475 = vmatprep.subr.mxu0 0.0
  %6476 = vmatpush1.msra.mxu0 0.0
  %6477 = vmatprep.subr.mxu0 0.0
  %6478 = vmatpush1.msra.mxu0 0.0
  %6479 = vmatprep.subr.mxu0 0.0
  %6480 = vmatpush1.msra.mxu0 0.0
  %6481 = vmatprep.subr.mxu0 0.0
  %6482 = vmatpush1.msra.mxu0 0.0
  %6483 = vmatprep.subr.mxu0 0.0
  %6484 = vmatpush1.msra.mxu0 0.0
  %6485 = vmatprep.subr.mxu0 0.0
  %6486 = vmatpush1.msra.mxu0 0.0
  %6487 = vmatprep.subr.mxu0 0.0
  %6488 = vmatpush1.msra.mxu0 0.0
  %6489 = vmatprep.subr.mxu0 0.0
  %6490 = vmatpush1.msra.mxu0 0.0
  %6491 = vmatprep.subr.mxu0 0.0
  %6492 = vmatpush1.msra.mxu0 0.0
  %6493 = vmatprep.subr.mxu0 0.0
  %6494 = vmatpush1.msra.mxu0 0.0
  %6495 = vmatprep.subr.mxu0 0.0
  %6496 = vmatpush1.msra.mxu0 0.0
  %6497 = vmatprep.subr.mxu0 0.0
  %6498 = vmatpush1.msra.mxu0 0.0
  %6499 = vmatprep.subr.mxu0 0.0
  %6500 = vmatpush1.msra.mxu0 0.0
  %6501 = vmatprep.subr.mxu0 0.0
  %6502 = vmatpush1.msra.mxu0 0.0
  %6503 = vmatprep.subr.mxu0 0.0
  %6504 = vmatpush1.msra.mxu0 0.0
  %6505 = vmatprep.subr.mxu0 0.0
  %6506 = vmatpush1.msra.mxu0 0.0
  %6507 = vmatprep.mubr.f32.mxu0 0.0
  %v6508 = vand.u32 %v6342, 4294901760
  %6509 = vmatmul.mubr.f32.gmra.mrb[0].mxu0 %v6508
  %v6510 = vpop.f32.mrb[0].mxu0
  %v6511 = vadd.f32 %v6420, %v6510
  %v6512 = vpop.f32.mrb[0].mxu0
  %6513 = vdwg.mxu0
  %6514 = vmatprep.subr.mxu0 0.0
  %v6515 = vand.u32 %v4987, 4294901760
  %v6516 = vsub.f32 %v4987, %v6515
  %6517 = vmatpush1.msra.mxu0 %v6516
  %6518 = vmatprep.subr.mxu0 0.0
  %v6519 = vand.u32 %v4988, 4294901760
  %v6520 = vsub.f32 %v4988, %v6519
  %6521 = vmatpush1.msra.mxu0 %v6520
  %6522 = vmatprep.subr.mxu0 0.0
  %v6523 = vand.u32 %v4989, 4294901760
  %v6524 = vsub.f32 %v4989, %v6523
  %6525 = vmatpush1.msra.mxu0 %v6524
  %6526 = vmatprep.subr.mxu0 0.0
  %v6527 = vand.u32 %v4990, 4294901760
  %v6528 = vsub.f32 %v4990, %v6527
  %6529 = vmatpush1.msra.mxu0 %v6528
  %6530 = vmatprep.subr.mxu0 0.0
  %6531 = vmatpush1.msra.mxu0 0.0
  %6532 = vmatprep.subr.mxu0 0.0
  %6533 = vmatpush1.msra.mxu0 0.0
  %6534 = vmatprep.subr.mxu0 0.0
  %6535 = vmatpush1.msra.mxu0 0.0
  %6536 = vmatprep.subr.mxu0 0.0
  %6537 = vmatpush1.msra.mxu0 0.0
  %6538 = vmatprep.subr.mxu0 0.0
  %6539 = vmatpush1.msra.mxu0 0.0
  %6540 = vmatprep.subr.mxu0 0.0
  %6541 = vmatpush1.msra.mxu0 0.0
  %6542 = vmatprep.subr.mxu0 0.0
  %6543 = vmatpush1.msra.mxu0 0.0
  %6544 = vmatprep.subr.mxu0 0.0
  %6545 = vmatpush1.msra.mxu0 0.0
  %6546 = vmatprep.subr.mxu0 0.0
  %6547 = vmatpush1.msra.mxu0 0.0
  %6548 = vmatprep.subr.mxu0 0.0
  %6549 = vmatpush1.msra.mxu0 0.0
  %6550 = vmatprep.subr.mxu0 0.0
  %6551 = vmatpush1.msra.mxu0 0.0
  %6552 = vmatprep.subr.mxu0 0.0
  %6553 = vmatpush1.msra.mxu0 0.0
  %6554 = vmatprep.subr.mxu0 0.0
  %6555 = vmatpush1.msra.mxu0 0.0
  %6556 = vmatprep.subr.mxu0 0.0
  %6557 = vmatpush1.msra.mxu0 0.0
  %6558 = vmatprep.subr.mxu0 0.0
  %6559 = vmatpush1.msra.mxu0 0.0
  %6560 = vmatprep.subr.mxu0 0.0
  %6561 = vmatpush1.msra.mxu0 0.0
  %6562 = vmatprep.subr.mxu0 0.0
  %6563 = vmatpush1.msra.mxu0 0.0
  %6564 = vmatprep.subr.mxu0 0.0
  %6565 = vmatpush1.msra.mxu0 0.0
  %6566 = vmatprep.subr.mxu0 0.0
  %6567 = vmatpush1.msra.mxu0 0.0
  %6568 = vmatprep.subr.mxu0 0.0
  %6569 = vmatpush1.msra.mxu0 0.0
  %6570 = vmatprep.subr.mxu0 0.0
  %6571 = vmatpush1.msra.mxu0 0.0
  %6572 = vmatprep.subr.mxu0 0.0
  %6573 = vmatpush1.msra.mxu0 0.0
  %6574 = vmatprep.subr.mxu0 0.0
  %6575 = vmatpush1.msra.mxu0 0.0
  %6576 = vmatprep.subr.mxu0 0.0
  %6577 = vmatpush1.msra.mxu0 0.0
  %6578 = vmatprep.subr.mxu0 0.0
  %6579 = vmatpush1.msra.mxu0 0.0
  %6580 = vmatprep.subr.mxu0 0.0
  %6581 = vmatpush1.msra.mxu0 0.0
  %6582 = vmatprep.subr.mxu0 0.0
  %6583 = vmatpush1.msra.mxu0 0.0
  %6584 = vmatprep.subr.mxu0 0.0
  %6585 = vmatpush1.msra.mxu0 0.0
  %6586 = vmatprep.mubr.f32.mxu0 0.0
  %v6587 = vand.u32 %v6342, 4294901760
  %v6588 = vsub.f32 %v6342, %v6587
  %6589 = vmatmul.mubr.f32.gmra.mrb[0].mxu0 %v6588
  %v6590 = vpop.f32.mrb[0].mxu0
  %v6591 = vadd.f32 %v6511, %v6590
  %v6592 = vpop.f32.mrb[0].mxu0
  %6593 = vdwg.mxu0
  %6594 = vmatprep.subr.mxu0 0.0
  %v6595 = vand.u32 %v4987, 4294901760
  %6596 = vmatpush1.msra.mxu0 %v6595
  %6597 = vmatprep.subr.mxu0 0.0
  %v6598 = vand.u32 %v4988, 4294901760
  %6599 = vmatpush1.msra.mxu0 %v6598
  %6600 = vmatprep.subr.mxu0 0.0
  %v6601 = vand.u32 %v4989, 4294901760
  %6602 = vmatpush1.msra.mxu0 %v6601
  %6603 = vmatprep.subr.mxu0 0.0
  %v6604 = vand.u32 %v4990, 4294901760
  %6605 = vmatpush1.msra.mxu0 %v6604
  %6606 = vmatprep.subr.mxu0 0.0
  %6607 = vmatpush1.msra.mxu0 0.0
  %6608 = vmatprep.subr.mxu0 0.0
  %6609 = vmatpush1.msra.mxu0 0.0
  %6610 = vmatprep.subr.mxu0 0.0
  %6611 = vmatpush1.msra.mxu0 0.0
  %6612 = vmatprep.subr.mxu0 0.0
  %6613 = vmatpush1.msra.mxu0 0.0
  %6614 = vmatprep.subr.mxu0 0.0
  %6615 = vmatpush1.msra.mxu0 0.0
  %6616 = vmatprep.subr.mxu0 0.0
  %6617 = vmatpush1.msra.mxu0 0.0
  %6618 = vmatprep.subr.mxu0 0.0
  %6619 = vmatpush1.msra.mxu0 0.0
  %6620 = vmatprep.subr.mxu0 0.0
  %6621 = vmatpush1.msra.mxu0 0.0
  %6622 = vmatprep.subr.mxu0 0.0
  %6623 = vmatpush1.msra.mxu0 0.0
  %6624 = vmatprep.subr.mxu0 0.0
  %6625 = vmatpush1.msra.mxu0 0.0
  %6626 = vmatprep.subr.mxu0 0.0
  %6627 = vmatpush1.msra.mxu0 0.0
  %6628 = vmatprep.subr.mxu0 0.0
  %6629 = vmatpush1.msra.mxu0 0.0
  %6630 = vmatprep.subr.mxu0 0.0
  %6631 = vmatpush1.msra.mxu0 0.0
  %6632 = vmatprep.subr.mxu0 0.0
  %6633 = vmatpush1.msra.mxu0 0.0
  %6634 = vmatprep.subr.mxu0 0.0
  %6635 = vmatpush1.msra.mxu0 0.0
  %6636 = vmatprep.subr.mxu0 0.0
  %6637 = vmatpush1.msra.mxu0 0.0
  %6638 = vmatprep.subr.mxu0 0.0
  %6639 = vmatpush1.msra.mxu0 0.0
  %6640 = vmatprep.subr.mxu0 0.0
  %6641 = vmatpush1.msra.mxu0 0.0
  %6642 = vmatprep.subr.mxu0 0.0
  %6643 = vmatpush1.msra.mxu0 0.0
  %6644 = vmatprep.subr.mxu0 0.0
  %6645 = vmatpush1.msra.mxu0 0.0
  %6646 = vmatprep.subr.mxu0 0.0
  %6647 = vmatpush1.msra.mxu0 0.0
  %6648 = vmatprep.subr.mxu0 0.0
  %6649 = vmatpush1.msra.mxu0 0.0
  %6650 = vmatprep.subr.mxu0 0.0
  %6651 = vmatpush1.msra.mxu0 0.0
  %6652 = vmatprep.subr.mxu0 0.0
  %6653 = vmatpush1.msra.mxu0 0.0
  %6654 = vmatprep.subr.mxu0 0.0
  %6655 = vmatpush1.msra.mxu0 0.0
  %6656 = vmatprep.subr.mxu0 0.0
  %6657 = vmatpush1.msra.mxu0 0.0
  %6658 = vmatprep.subr.mxu0 0.0
  %6659 = vmatpush1.msra.mxu0 0.0
  %6660 = vmatprep.subr.mxu0 0.0
  %6661 = vmatpush1.msra.mxu0 0.0
  %6662 = vmatprep.mubr.f32.mxu0 0.0
  %v6663 = vand.u32 %v6342, 4294901760
  %v6664 = vsub.f32 %v6342, %v6663
  %v6665 = vand.u32 %v6664, 4294901760
  %6666 = vmatmul.mubr.f32.gmra.mrb[0].mxu0 %v6665
  %v6667 = vpop.f32.mrb[0].mxu0
  %v6668 = vadd.f32 %v6591, %v6667
  %v6669 = vpop.f32.mrb[0].mxu0
  %6670 = vdwg.mxu0
  %6671 = vmatprep.subr.mxu0 0.0
  %v6672 = vand.u32 %v4987, 4294901760
  %v6673 = vsub.f32 %v4987, %v6672
  %v6674 = vand.u32 %v6673, 4294901760
  %6675 = vmatpush1.msra.mxu0 %v6674
  %6676 = vmatprep.subr.mxu0 0.0
  %v6677 = vand.u32 %v4988, 4294901760
  %v6678 = vsub.f32 %v4988, %v6677
  %v6679 = vand.u32 %v6678, 4294901760
  %6680 = vmatpush1.msra.mxu0 %v6679
  %6681 = vmatprep.subr.mxu0 0.0
  %v6682 = vand.u32 %v4989, 4294901760
  %v6683 = vsub.f32 %v4989, %v6682
  %v6684 = vand.u32 %v6683, 4294901760
  %6685 = vmatpush1.msra.mxu0 %v6684
  %6686 = vmatprep.subr.mxu0 0.0
  %v6687 = vand.u32 %v4990, 4294901760
  %v6688 = vsub.f32 %v4990, %v6687
  %v6689 = vand.u32 %v6688, 4294901760
  %6690 = vmatpush1.msra.mxu0 %v6689
  %6691 = vmatprep.subr.mxu0 0.0
  %6692 = vmatpush1.msra.mxu0 0.0
  %6693 = vmatprep.subr.mxu0 0.0
  %6694 = vmatpush1.msra.mxu0 0.0
  %6695 = vmatprep.subr.mxu0 0.0
  %6696 = vmatpush1.msra.mxu0 0.0
  %6697 = vmatprep.subr.mxu0 0.0
  %6698 = vmatpush1.msra.mxu0 0.0
  %6699 = vmatprep.subr.mxu0 0.0
  %6700 = vmatpush1.msra.mxu0 0.0
  %6701 = vmatprep.subr.mxu0 0.0
  %6702 = vmatpush1.msra.mxu0 0.0
  %6703 = vmatprep.subr.mxu0 0.0
  %6704 = vmatpush1.msra.mxu0 0.0
  %6705 = vmatprep.subr.mxu0 0.0
  %6706 = vmatpush1.msra.mxu0 0.0
  %6707 = vmatprep.subr.mxu0 0.0
  %6708 = vmatpush1.msra.mxu0 0.0
  %6709 = vmatprep.subr.mxu0 0.0
  %6710 = vmatpush1.msra.mxu0 0.0
  %6711 = vmatprep.subr.mxu0 0.0
  %6712 = vmatpush1.msra.mxu0 0.0
  %6713 = vmatprep.subr.mxu0 0.0
  %6714 = vmatpush1.msra.mxu0 0.0
  %6715 = vmatprep.subr.mxu0 0.0
  %6716 = vmatpush1.msra.mxu0 0.0
  %6717 = vmatprep.subr.mxu0 0.0
  %6718 = vmatpush1.msra.mxu0 0.0
  %6719 = vmatprep.subr.mxu0 0.0
  %6720 = vmatpush1.msra.mxu0 0.0
  %6721 = vmatprep.subr.mxu0 0.0
  %6722 = vmatpush1.msra.mxu0 0.0
  %6723 = vmatprep.subr.mxu0 0.0
  %6724 = vmatpush1.msra.mxu0 0.0
  %6725 = vmatprep.subr.mxu0 0.0
  %6726 = vmatpush1.msra.mxu0 0.0
  %6727 = vmatprep.subr.mxu0 0.0
  %6728 = vmatpush1.msra.mxu0 0.0
  %6729 = vmatprep.subr.mxu0 0.0
  %6730 = vmatpush1.msra.mxu0 0.0
  %6731 = vmatprep.subr.mxu0 0.0
  %6732 = vmatpush1.msra.mxu0 0.0
  %6733 = vmatprep.subr.mxu0 0.0
  %6734 = vmatpush1.msra.mxu0 0.0
  %6735 = vmatprep.subr.mxu0 0.0
  %6736 = vmatpush1.msra.mxu0 0.0
  %6737 = vmatprep.subr.mxu0 0.0
  %6738 = vmatpush1.msra.mxu0 0.0
  %6739 = vmatprep.subr.mxu0 0.0
  %6740 = vmatpush1.msra.mxu0 0.0
  %6741 = vmatprep.subr.mxu0 0.0
  %6742 = vmatpush1.msra.mxu0 0.0
  %6743 = vmatprep.subr.mxu0 0.0
  %6744 = vmatpush1.msra.mxu0 0.0
  %6745 = vmatprep.subr.mxu0 0.0
  %6746 = vmatpush1.msra.mxu0 0.0
  %6747 = vmatprep.mubr.f32.mxu0 0.0
  %v6748 = vand.u32 %v6342, 4294901760
  %6749 = vmatmul.mubr.f32.gmra.mrb[0].mxu0 %v6748
  %v6750 = vpop.f32.mrb[0].mxu0
  %v6751 = vadd.f32 %v6668, %v6750
  %v6752 = vpop.f32.mrb[0].mxu0
  %6753 = vdwg.mxu0
  %6754 = vmatprep.subr.mxu0 0.0
  %v6755 = vand.u32 %v4987, 4294901760
  %6756 = vmatpush1.msra.mxu0 %v6755
  %6757 = vmatprep.subr.mxu0 0.0
  %v6758 = vand.u32 %v4988, 4294901760
  %6759 = vmatpush1.msra.mxu0 %v6758
  %6760 = vmatprep.subr.mxu0 0.0
  %v6761 = vand.u32 %v4989, 4294901760
  %6762 = vmatpush1.msra.mxu0 %v6761
  %6763 = vmatprep.subr.mxu0 0.0
  %v6764 = vand.u32 %v4990, 4294901760
  %6765 = vmatpush1.msra.mxu0 %v6764
  %6766 = vmatprep.subr.mxu0 0.0
  %6767 = vmatpush1.msra.mxu0 0.0
  %6768 = vmatprep.subr.mxu0 0.0
  %6769 = vmatpush1.msra.mxu0 0.0
  %6770 = vmatprep.subr.mxu0 0.0
  %6771 = vmatpush1.msra.mxu0 0.0
  %6772 = vmatprep.subr.mxu0 0.0
  %6773 = vmatpush1.msra.mxu0 0.0
  %6774 = vmatprep.subr.mxu0 0.0
  %6775 = vmatpush1.msra.mxu0 0.0
  %6776 = vmatprep.subr.mxu0 0.0
  %6777 = vmatpush1.msra.mxu0 0.0
  %6778 = vmatprep.subr.mxu0 0.0
  %6779 = vmatpush1.msra.mxu0 0.0
  %6780 = vmatprep.subr.mxu0 0.0
  %6781 = vmatpush1.msra.mxu0 0.0
  %6782 = vmatprep.subr.mxu0 0.0
  %6783 = vmatpush1.msra.mxu0 0.0
  %6784 = vmatprep.subr.mxu0 0.0
  %6785 = vmatpush1.msra.mxu0 0.0
  %6786 = vmatprep.subr.mxu0 0.0
  %6787 = vmatpush1.msra.mxu0 0.0
  %6788 = vmatprep.subr.mxu0 0.0
  %6789 = vmatpush1.msra.mxu0 0.0
  %6790 = vmatprep.subr.mxu0 0.0
  %6791 = vmatpush1.msra.mxu0 0.0
  %6792 = vmatprep.subr.mxu0 0.0
  %6793 = vmatpush1.msra.mxu0 0.0
  %6794 = vmatprep.subr.mxu0 0.0
  %6795 = vmatpush1.msra.mxu0 0.0
  %6796 = vmatprep.subr.mxu0 0.0
  %6797 = vmatpush1.msra.mxu0 0.0
  %6798 = vmatprep.subr.mxu0 0.0
  %6799 = vmatpush1.msra.mxu0 0.0
  %6800 = vmatprep.subr.mxu0 0.0
  %6801 = vmatpush1.msra.mxu0 0.0
  %6802 = vmatprep.subr.mxu0 0.0
  %6803 = vmatpush1.msra.mxu0 0.0
  %6804 = vmatprep.subr.mxu0 0.0
  %6805 = vmatpush1.msra.mxu0 0.0
  %6806 = vmatprep.subr.mxu0 0.0
  %6807 = vmatpush1.msra.mxu0 0.0
  %6808 = vmatprep.subr.mxu0 0.0
  %6809 = vmatpush1.msra.mxu0 0.0
  %6810 = vmatprep.subr.mxu0 0.0
  %6811 = vmatpush1.msra.mxu0 0.0
  %6812 = vmatprep.subr.mxu0 0.0
  %6813 = vmatpush1.msra.mxu0 0.0
  %6814 = vmatprep.subr.mxu0 0.0
  %6815 = vmatpush1.msra.mxu0 0.0
  %6816 = vmatprep.subr.mxu0 0.0
  %6817 = vmatpush1.msra.mxu0 0.0
  %6818 = vmatprep.subr.mxu0 0.0
  %6819 = vmatpush1.msra.mxu0 0.0
  %6820 = vmatprep.subr.mxu0 0.0
  %6821 = vmatpush1.msra.mxu0 0.0
  %6822 = vmatprep.mubr.f32.mxu0 0.0
  %v6823 = vand.u32 %v6342, 4294901760
  %6824 = vmatmul.mubr.f32.gmra.mrb[0].mxu0 %v6823
  %v6825 = vpop.f32.mrb[0].mxu0
  %v6826 = vadd.f32 %v6751, %v6825
  %v6827 = vpop.f32.mrb[0].mxu0
  %6828 = vdwg.mxu0
  %v6829 = vadd.f32 %v5777, %v6826
  %v6830 = vxor.u32 %v6829, 2147483648
  %v6831 = vmul.f32 %v6830, 1.442695
  %v6832 = vpow.pop %v6831
  %v6833 = vadd.f32 %v6832, 1.0
  %v6834 = vrcp.pop %v6833
  %v6835 = vmul.f32 1.0, %v6834
  %v6836 = vtanh.pop %v6829
  %v6837 = vmul.f32 %v6835, %v6330
  %6839 = vrot.lane.b32.xlu0 %v6836, 64
  %v6840 = vpop.permute.xlu0 %6839
  %v6842 = vmul.f32 %v6835, %v6840
  %6844 = vrot.lane.b32.xlu0 %v6842, 32
  %v6845 = vpop.permute.xlu0 %6844
  %v6847 = vadd.f32 %v6837, %v6845
  %v6848 = vtanh.pop %v6847
  %6850 = vrot.lane.b32.xlu0 %v6848, 64
  %v6851 = vpop.permute.xlu0 %6850
  %v6853 = vmul.f32 %v6835, %v6851
  %6855 = vrot.lane.b32.xlu0 %v6853, 32
  %v6856 = vpop.permute.xlu0 %6855
  %6858 = vst.msk [vmem:[#allocation2 + $0x8] sm:$0xff] %vm835, %v6856
  %v6859 = vsel %vm835, %v6856, 0
  %6861 = vmatprep.subr.mxu0 0.0
  %v6862 = vand.u32 %v4987, 4294901760
  %6863 = vmatpush1.msra.mxu0 %v6862
  %6864 = vmatprep.subr.mxu0 0.0
  %v6865 = vand.u32 %v4988, 4294901760
  %6866 = vmatpush1.msra.mxu0 %v6865
  %6867 = vmatprep.subr.mxu0 0.0
  %v6868 = vand.u32 %v4989, 4294901760
  %6869 = vmatpush1.msra.mxu0 %v6868
  %6870 = vmatprep.subr.mxu0 0.0
  %v6871 = vand.u32 %v4990, 4294901760
  %6872 = vmatpush1.msra.mxu0 %v6871
  %6873 = vmatprep.subr.mxu0 0.0
  %6874 = vmatpush1.msra.mxu0 0.0
  %6875 = vmatprep.subr.mxu0 0.0
  %6876 = vmatpush1.msra.mxu0 0.0
  %6877 = vmatprep.subr.mxu0 0.0
  %6878 = vmatpush1.msra.mxu0 0.0
  %6879 = vmatprep.subr.mxu0 0.0
  %6880 = vmatpush1.msra.mxu0 0.0
  %6881 = vmatprep.subr.mxu0 0.0
  %6882 = vmatpush1.msra.mxu0 0.0
  %6883 = vmatprep.subr.mxu0 0.0
  %6884 = vmatpush1.msra.mxu0 0.0
  %6885 = vmatprep.subr.mxu0 0.0
  %6886 = vmatpush1.msra.mxu0 0.0
  %6887 = vmatprep.subr.mxu0 0.0
  %6888 = vmatpush1.msra.mxu0 0.0
  %6889 = vmatprep.subr.mxu0 0.0
  %6890 = vmatpush1.msra.mxu0 0.0
  %6891 = vmatprep.subr.mxu0 0.0
  %6892 = vmatpush1.msra.mxu0 0.0
  %6893 = vmatprep.subr.mxu0 0.0
  %6894 = vmatpush1.msra.mxu0 0.0
  %6895 = vmatprep.subr.mxu0 0.0
  %6896 = vmatpush1.msra.mxu0 0.0
  %6897 = vmatprep.subr.mxu0 0.0
  %6898 = vmatpush1.msra.mxu0 0.0
  %6899 = vmatprep.subr.mxu0 0.0
  %6900 = vmatpush1.msra.mxu0 0.0
  %6901 = vmatprep.subr.mxu0 0.0
  %6902 = vmatpush1.msra.mxu0 0.0
  %6903 = vmatprep.subr.mxu0 0.0
  %6904 = vmatpush1.msra.mxu0 0.0
  %6905 = vmatprep.subr.mxu0 0.0
  %6906 = vmatpush1.msra.mxu0 0.0
  %6907 = vmatprep.subr.mxu0 0.0
  %6908 = vmatpush1.msra.mxu0 0.0
  %6909 = vmatprep.subr.mxu0 0.0
  %6910 = vmatpush1.msra.mxu0 0.0
  %6911 = vmatprep.subr.mxu0 0.0
  %6912 = vmatpush1.msra.mxu0 0.0
  %6913 = vmatprep.subr.mxu0 0.0
  %6914 = vmatpush1.msra.mxu0 0.0
  %6915 = vmatprep.subr.mxu0 0.0
  %6916 = vmatpush1.msra.mxu0 0.0
  %6917 = vmatprep.subr.mxu0 0.0
  %6918 = vmatpush1.msra.mxu0 0.0
  %6919 = vmatprep.subr.mxu0 0.0
  %6920 = vmatpush1.msra.mxu0 0.0
  %6921 = vmatprep.subr.mxu0 0.0
  %6922 = vmatpush1.msra.mxu0 0.0
  %6923 = vmatprep.subr.mxu0 0.0
  %6924 = vmatpush1.msra.mxu0 0.0
  %6925 = vmatprep.subr.mxu0 0.0
  %6926 = vmatpush1.msra.mxu0 0.0
  %6927 = vmatprep.subr.mxu0 0.0
  %6928 = vmatpush1.msra.mxu0 0.0
  %6929 = vmatprep.mubr.f32.mxu0 0.0
  %v6930 = vand.u32 %v6859, 4294901760
  %v6931 = vsub.f32 %v6859, %v6930
  %v6932 = vand.u32 %v6931, 4294901760
  %v6933 = vsub.f32 %v6931, %v6932
  %v6934 = vand.u32 %v6933, 4294901760
  %6935 = vmatmul.mubr.f32.gmra.mrb[0].mxu0 %v6934
  %v6936 = vpop.f32.mrb[0].mxu0
  %v6937 = vadd.f32 0.0, %v6936
  %v6938 = vpop.f32.mrb[0].mxu0
  %6939 = vdwg.mxu0
  %6940 = vmatprep.subr.mxu0 0.0
  %v6941 = vand.u32 %v4987, 4294901760
  %v6942 = vsub.f32 %v4987, %v6941
  %v6943 = vand.u32 %v6942, 4294901760
  %v6944 = vsub.f32 %v6942, %v6943
  %v6945 = vand.u32 %v6944, 4294901760
  %6946 = vmatpush1.msra.mxu0 %v6945
  %6947 = vmatprep.subr.mxu0 0.0
  %v6948 = vand.u32 %v4988, 4294901760
  %v6949 = vsub.f32 %v4988, %v6948
  %v6950 = vand.u32 %v6949, 4294901760
  %v6951 = vsub.f32 %v6949, %v6950
  %v6952 = vand.u32 %v6951, 4294901760
  %6953 = vmatpush1.msra.mxu0 %v6952
  %6954 = vmatprep.subr.mxu0 0.0
  %v6955 = vand.u32 %v4989, 4294901760
  %v6956 = vsub.f32 %v4989, %v6955
  %v6957 = vand.u32 %v6956, 4294901760
  %v6958 = vsub.f32 %v6956, %v6957
  %v6959 = vand.u32 %v6958, 4294901760
  %6960 = vmatpush1.msra.mxu0 %v6959
  %6961 = vmatprep.subr.mxu0 0.0
  %v6962 = vand.u32 %v4990, 4294901760
  %v6963 = vsub.f32 %v4990, %v6962
  %v6964 = vand.u32 %v6963, 4294901760
  %v6965 = vsub.f32 %v6963, %v6964
  %v6966 = vand.u32 %v6965, 4294901760
  %6967 = vmatpush1.msra.mxu0 %v6966
  %6968 = vmatprep.subr.mxu0 0.0
  %6969 = vmatpush1.msra.mxu0 0.0
  %6970 = vmatprep.subr.mxu0 0.0
  %6971 = vmatpush1.msra.mxu0 0.0
  %6972 = vmatprep.subr.mxu0 0.0
  %6973 = vmatpush1.msra.mxu0 0.0
  %6974 = vmatprep.subr.mxu0 0.0
  %6975 = vmatpush1.msra.mxu0 0.0
  %6976 = vmatprep.subr.mxu0 0.0
  %6977 = vmatpush1.msra.mxu0 0.0
  %6978 = vmatprep.subr.mxu0 0.0
  %6979 = vmatpush1.msra.mxu0 0.0
  %6980 = vmatprep.subr.mxu0 0.0
  %6981 = vmatpush1.msra.mxu0 0.0
  %6982 = vmatprep.subr.mxu0 0.0
  %6983 = vmatpush1.msra.mxu0 0.0
  %6984 = vmatprep.subr.mxu0 0.0
  %6985 = vmatpush1.msra.mxu0 0.0
  %6986 = vmatprep.subr.mxu0 0.0
  %6987 = vmatpush1.msra.mxu0 0.0
  %6988 = vmatprep.subr.mxu0 0.0
  %6989 = vmatpush1.msra.mxu0 0.0
  %6990 = vmatprep.subr.mxu0 0.0
  %6991 = vmatpush1.msra.mxu0 0.0
  %6992 = vmatprep.subr.mxu0 0.0
  %6993 = vmatpush1.msra.mxu0 0.0
  %6994 = vmatprep.subr.mxu0 0.0
  %6995 = vmatpush1.msra.mxu0 0.0
  %6996 = vmatprep.subr.mxu0 0.0
  %6997 = vmatpush1.msra.mxu0 0.0
  %6998 = vmatprep.subr.mxu0 0.0
  %6999 = vmatpush1.msra.mxu0 0.0
  %7000 = vmatprep.subr.mxu0 0.0
  %7001 = vmatpush1.msra.mxu0 0.0
  %7002 = vmatprep.subr.mxu0 0.0
  %7003 = vmatpush1.msra.mxu0 0.0
  %7004 = vmatprep.subr.mxu0 0.0
  %7005 = vmatpush1.msra.mxu0 0.0
  %7006 = vmatprep.subr.mxu0 0.0
  %7007 = vmatpush1.msra.mxu0 0.0
  %7008 = vmatprep.subr.mxu0 0.0
  %7009 = vmatpush1.msra.mxu0 0.0
  %7010 = vmatprep.subr.mxu0 0.0
  %7011 = vmatpush1.msra.mxu0 0.0
  %7012 = vmatprep.subr.mxu0 0.0
  %7013 = vmatpush1.msra.mxu0 0.0
  %7014 = vmatprep.subr.mxu0 0.0
  %7015 = vmatpush1.msra.mxu0 0.0
  %7016 = vmatprep.subr.mxu0 0.0
  %7017 = vmatpush1.msra.mxu0 0.0
  %7018 = vmatprep.subr.mxu0 0.0
  %7019 = vmatpush1.msra.mxu0 0.0
  %7020 = vmatprep.subr.mxu0 0.0
  %7021 = vmatpush1.msra.mxu0 0.0
  %7022 = vmatprep.subr.mxu0 0.0
  %7023 = vmatpush1.msra.mxu0 0.0
  %7024 = vmatprep.mubr.f32.mxu0 0.0
  %v7025 = vand.u32 %v6859, 4294901760
  %7026 = vmatmul.mubr.f32.gmra.mrb[0].mxu0 %v7025
  %v7027 = vpop.f32.mrb[0].mxu0
  %v7028 = vadd.f32 %v6937, %v7027
  %v7029 = vpop.f32.mrb[0].mxu0
  %7030 = vdwg.mxu0
  %7031 = vmatprep.subr.mxu0 0.0
  %v7032 = vand.u32 %v4987, 4294901760
  %v7033 = vsub.f32 %v4987, %v7032
  %7034 = vmatpush1.msra.mxu0 %v7033
  %7035 = vmatprep.subr.mxu0 0.0
  %v7036 = vand.u32 %v4988, 4294901760
  %v7037 = vsub.f32 %v4988, %v7036
  %7038 = vmatpush1.msra.mxu0 %v7037
  %7039 = vmatprep.subr.mxu0 0.0
  %v7040 = vand.u32 %v4989, 4294901760
  %v7041 = vsub.f32 %v4989, %v7040
  %7042 = vmatpush1.msra.mxu0 %v7041
  %7043 = vmatprep.subr.mxu0 0.0
  %v7044 = vand.u32 %v4990, 4294901760
  %v7045 = vsub.f32 %v4990, %v7044
  %7046 = vmatpush1.msra.mxu0 %v7045
  %7047 = vmatprep.subr.mxu0 0.0
  %7048 = vmatpush1.msra.mxu0 0.0
  %7049 = vmatprep.subr.mxu0 0.0
  %7050 = vmatpush1.msra.mxu0 0.0
  %7051 = vmatprep.subr.mxu0 0.0
  %7052 = vmatpush1.msra.mxu0 0.0
  %7053 = vmatprep.subr.mxu0 0.0
  %7054 = vmatpush1.msra.mxu0 0.0
  %7055 = vmatprep.subr.mxu0 0.0
  %7056 = vmatpush1.msra.mxu0 0.0
  %7057 = vmatprep.subr.mxu0 0.0
  %7058 = vmatpush1.msra.mxu0 0.0
  %7059 = vmatprep.subr.mxu0 0.0
  %7060 = vmatpush1.msra.mxu0 0.0
  %7061 = vmatprep.subr.mxu0 0.0
  %7062 = vmatpush1.msra.mxu0 0.0
  %7063 = vmatprep.subr.mxu0 0.0
  %7064 = vmatpush1.msra.mxu0 0.0
  %7065 = vmatprep.subr.mxu0 0.0
  %7066 = vmatpush1.msra.mxu0 0.0
  %7067 = vmatprep.subr.mxu0 0.0
  %7068 = vmatpush1.msra.mxu0 0.0
  %7069 = vmatprep.subr.mxu0 0.0
  %7070 = vmatpush1.msra.mxu0 0.0
  %7071 = vmatprep.subr.mxu0 0.0
  %7072 = vmatpush1.msra.mxu0 0.0
  %7073 = vmatprep.subr.mxu0 0.0
  %7074 = vmatpush1.msra.mxu0 0.0
  %7075 = vmatprep.subr.mxu0 0.0
  %7076 = vmatpush1.msra.mxu0 0.0
  %7077 = vmatprep.subr.mxu0 0.0
  %7078 = vmatpush1.msra.mxu0 0.0
  %7079 = vmatprep.subr.mxu0 0.0
  %7080 = vmatpush1.msra.mxu0 0.0
  %7081 = vmatprep.subr.mxu0 0.0
  %7082 = vmatpush1.msra.mxu0 0.0
  %7083 = vmatprep.subr.mxu0 0.0
  %7084 = vmatpush1.msra.mxu0 0.0
  %7085 = vmatprep.subr.mxu0 0.0
  %7086 = vmatpush1.msra.mxu0 0.0
  %7087 = vmatprep.subr.mxu0 0.0
  %7088 = vmatpush1.msra.mxu0 0.0
  %7089 = vmatprep.subr.mxu0 0.0
  %7090 = vmatpush1.msra.mxu0 0.0
  %7091 = vmatprep.subr.mxu0 0.0
  %7092 = vmatpush1.msra.mxu0 0.0
  %7093 = vmatprep.subr.mxu0 0.0
  %7094 = vmatpush1.msra.mxu0 0.0
  %7095 = vmatprep.subr.mxu0 0.0
  %7096 = vmatpush1.msra.mxu0 0.0
  %7097 = vmatprep.subr.mxu0 0.0
  %7098 = vmatpush1.msra.mxu0 0.0
  %7099 = vmatprep.subr.mxu0 0.0
  %7100 = vmatpush1.msra.mxu0 0.0
  %7101 = vmatprep.subr.mxu0 0.0
  %7102 = vmatpush1.msra.mxu0 0.0
  %7103 = vmatprep.mubr.f32.mxu0 0.0
  %v7104 = vand.u32 %v6859, 4294901760
  %v7105 = vsub.f32 %v6859, %v7104
  %7106 = vmatmul.mubr.f32.gmra.mrb[0].mxu0 %v7105
  %v7107 = vpop.f32.mrb[0].mxu0
  %v7108 = vadd.f32 %v7028, %v7107
  %v7109 = vpop.f32.mrb[0].mxu0
  %7110 = vdwg.mxu0
  %7111 = vmatprep.subr.mxu0 0.0
  %v7112 = vand.u32 %v4987, 4294901760
  %7113 = vmatpush1.msra.mxu0 %v7112
  %7114 = vmatprep.subr.mxu0 0.0
  %v7115 = vand.u32 %v4988, 4294901760
  %7116 = vmatpush1.msra.mxu0 %v7115
  %7117 = vmatprep.subr.mxu0 0.0
  %v7118 = vand.u32 %v4989, 4294901760
  %7119 = vmatpush1.msra.mxu0 %v7118
  %7120 = vmatprep.subr.mxu0 0.0
  %v7121 = vand.u32 %v4990, 4294901760
  %7122 = vmatpush1.msra.mxu0 %v7121
  %7123 = vmatprep.subr.mxu0 0.0
  %7124 = vmatpush1.msra.mxu0 0.0
  %7125 = vmatprep.subr.mxu0 0.0
  %7126 = vmatpush1.msra.mxu0 0.0
  %7127 = vmatprep.subr.mxu0 0.0
  %7128 = vmatpush1.msra.mxu0 0.0
  %7129 = vmatprep.subr.mxu0 0.0
  %7130 = vmatpush1.msra.mxu0 0.0
  %7131 = vmatprep.subr.mxu0 0.0
  %7132 = vmatpush1.msra.mxu0 0.0
  %7133 = vmatprep.subr.mxu0 0.0
  %7134 = vmatpush1.msra.mxu0 0.0
  %7135 = vmatprep.subr.mxu0 0.0
  %7136 = vmatpush1.msra.mxu0 0.0
  %7137 = vmatprep.subr.mxu0 0.0
  %7138 = vmatpush1.msra.mxu0 0.0
  %7139 = vmatprep.subr.mxu0 0.0
  %7140 = vmatpush1.msra.mxu0 0.0
  %7141 = vmatprep.subr.mxu0 0.0
  %7142 = vmatpush1.msra.mxu0 0.0
  %7143 = vmatprep.subr.mxu0 0.0
  %7144 = vmatpush1.msra.mxu0 0.0
  %7145 = vmatprep.subr.mxu0 0.0
  %7146 = vmatpush1.msra.mxu0 0.0
  %7147 = vmatprep.subr.mxu0 0.0
  %7148 = vmatpush1.msra.mxu0 0.0
  %7149 = vmatprep.subr.mxu0 0.0
  %7150 = vmatpush1.msra.mxu0 0.0
  %7151 = vmatprep.subr.mxu0 0.0
  %7152 = vmatpush1.msra.mxu0 0.0
  %7153 = vmatprep.subr.mxu0 0.0
  %7154 = vmatpush1.msra.mxu0 0.0
  %7155 = vmatprep.subr.mxu0 0.0
  %7156 = vmatpush1.msra.mxu0 0.0
  %7157 = vmatprep.subr.mxu0 0.0
  %7158 = vmatpush1.msra.mxu0 0.0
  %7159 = vmatprep.subr.mxu0 0.0
  %7160 = vmatpush1.msra.mxu0 0.0
  %7161 = vmatprep.subr.mxu0 0.0
  %7162 = vmatpush1.msra.mxu0 0.0
  %7163 = vmatprep.subr.mxu0 0.0
  %7164 = vmatpush1.msra.mxu0 0.0
  %7165 = vmatprep.subr.mxu0 0.0
  %7166 = vmatpush1.msra.mxu0 0.0
  %7167 = vmatprep.subr.mxu0 0.0
  %7168 = vmatpush1.msra.mxu0 0.0
  %7169 = vmatprep.subr.mxu0 0.0
  %7170 = vmatpush1.msra.mxu0 0.0
  %7171 = vmatprep.subr.mxu0 0.0
  %7172 = vmatpush1.msra.mxu0 0.0
  %7173 = vmatprep.subr.mxu0 0.0
  %7174 = vmatpush1.msra.mxu0 0.0
  %7175 = vmatprep.subr.mxu0 0.0
  %7176 = vmatpush1.msra.mxu0 0.0
  %7177 = vmatprep.subr.mxu0 0.0
  %7178 = vmatpush1.msra.mxu0 0.0
  %7179 = vmatprep.mubr.f32.mxu0 0.0
  %v7180 = vand.u32 %v6859, 4294901760
  %v7181 = vsub.f32 %v6859, %v7180
  %v7182 = vand.u32 %v7181, 4294901760
  %7183 = vmatmul.mubr.f32.gmra.mrb[0].mxu0 %v7182
  %v7184 = vpop.f32.mrb[0].mxu0
  %v7185 = vadd.f32 %v7108, %v7184
  %v7186 = vpop.f32.mrb[0].mxu0
  %7187 = vdwg.mxu0
  %7188 = vmatprep.subr.mxu0 0.0
  %v7189 = vand.u32 %v4987, 4294901760
  %v7190 = vsub.f32 %v4987, %v7189
  %v7191 = vand.u32 %v7190, 4294901760
  %7192 = vmatpush1.msra.mxu0 %v7191
  %7193 = vmatprep.subr.mxu0 0.0
  %v7194 = vand.u32 %v4988, 4294901760
  %v7195 = vsub.f32 %v4988, %v7194
  %v7196 = vand.u32 %v7195, 4294901760
  %7197 = vmatpush1.msra.mxu0 %v7196
  %7198 = vmatprep.subr.mxu0 0.0
  %v7199 = vand.u32 %v4989, 4294901760
  %v7200 = vsub.f32 %v4989, %v7199
  %v7201 = vand.u32 %v7200, 4294901760
  %7202 = vmatpush1.msra.mxu0 %v7201
  %7203 = vmatprep.subr.mxu0 0.0
  %v7204 = vand.u32 %v4990, 4294901760
  %v7205 = vsub.f32 %v4990, %v7204
  %v7206 = vand.u32 %v7205, 4294901760
  %7207 = vmatpush1.msra.mxu0 %v7206
  %7208 = vmatprep.subr.mxu0 0.0
  %7209 = vmatpush1.msra.mxu0 0.0
  %7210 = vmatprep.subr.mxu0 0.0
  %7211 = vmatpush1.msra.mxu0 0.0
  %7212 = vmatprep.subr.mxu0 0.0
  %7213 = vmatpush1.msra.mxu0 0.0
  %7214 = vmatprep.subr.mxu0 0.0
  %7215 = vmatpush1.msra.mxu0 0.0
  %7216 = vmatprep.subr.mxu0 0.0
  %7217 = vmatpush1.msra.mxu0 0.0
  %7218 = vmatprep.subr.mxu0 0.0
  %7219 = vmatpush1.msra.mxu0 0.0
  %7220 = vmatprep.subr.mxu0 0.0
  %7221 = vmatpush1.msra.mxu0 0.0
  %7222 = vmatprep.subr.mxu0 0.0
  %7223 = vmatpush1.msra.mxu0 0.0
  %7224 = vmatprep.subr.mxu0 0.0
  %7225 = vmatpush1.msra.mxu0 0.0
  %7226 = vmatprep.subr.mxu0 0.0
  %7227 = vmatpush1.msra.mxu0 0.0
  %7228 = vmatprep.subr.mxu0 0.0
  %7229 = vmatpush1.msra.mxu0 0.0
  %7230 = vmatprep.subr.mxu0 0.0
  %7231 = vmatpush1.msra.mxu0 0.0
  %7232 = vmatprep.subr.mxu0 0.0
  %7233 = vmatpush1.msra.mxu0 0.0
  %7234 = vmatprep.subr.mxu0 0.0
  %7235 = vmatpush1.msra.mxu0 0.0
  %7236 = vmatprep.subr.mxu0 0.0
  %7237 = vmatpush1.msra.mxu0 0.0
  %7238 = vmatprep.subr.mxu0 0.0
  %7239 = vmatpush1.msra.mxu0 0.0
  %7240 = vmatprep.subr.mxu0 0.0
  %7241 = vmatpush1.msra.mxu0 0.0
  %7242 = vmatprep.subr.mxu0 0.0
  %7243 = vmatpush1.msra.mxu0 0.0
  %7244 = vmatprep.subr.mxu0 0.0
  %7245 = vmatpush1.msra.mxu0 0.0
  %7246 = vmatprep.subr.mxu0 0.0
  %7247 = vmatpush1.msra.mxu0 0.0
  %7248 = vmatprep.subr.mxu0 0.0
  %7249 = vmatpush1.msra.mxu0 0.0
  %7250 = vmatprep.subr.mxu0 0.0
  %7251 = vmatpush1.msra.mxu0 0.0
  %7252 = vmatprep.subr.mxu0 0.0
  %7253 = vmatpush1.msra.mxu0 0.0
  %7254 = vmatprep.subr.mxu0 0.0
  %7255 = vmatpush1.msra.mxu0 0.0
  %7256 = vmatprep.subr.mxu0 0.0
  %7257 = vmatpush1.msra.mxu0 0.0
  %7258 = vmatprep.subr.mxu0 0.0
  %7259 = vmatpush1.msra.mxu0 0.0
  %7260 = vmatprep.subr.mxu0 0.0
  %7261 = vmatpush1.msra.mxu0 0.0
  %7262 = vmatprep.subr.mxu0 0.0
  %7263 = vmatpush1.msra.mxu0 0.0
  %7264 = vmatprep.mubr.f32.mxu0 0.0
  %v7265 = vand.u32 %v6859, 4294901760
  %7266 = vmatmul.mubr.f32.gmra.mrb[0].mxu0 %v7265
  %v7267 = vpop.f32.mrb[0].mxu0
  %v7268 = vadd.f32 %v7185, %v7267
  %v7269 = vpop.f32.mrb[0].mxu0
  %7270 = vdwg.mxu0
  %7271 = vmatprep.subr.mxu0 0.0
  %v7272 = vand.u32 %v4987, 4294901760
  %7273 = vmatpush1.msra.mxu0 %v7272
  %7274 = vmatprep.subr.mxu0 0.0
  %v7275 = vand.u32 %v4988, 4294901760
  %7276 = vmatpush1.msra.mxu0 %v7275
  %7277 = vmatprep.subr.mxu0 0.0
  %v7278 = vand.u32 %v4989, 4294901760
  %7279 = vmatpush1.msra.mxu0 %v7278
  %7280 = vmatprep.subr.mxu0 0.0
  %v7281 = vand.u32 %v4990, 4294901760
  %7282 = vmatpush1.msra.mxu0 %v7281
  %7283 = vmatprep.subr.mxu0 0.0
  %7284 = vmatpush1.msra.mxu0 0.0
  %7285 = vmatprep.subr.mxu0 0.0
  %7286 = vmatpush1.msra.mxu0 0.0
  %7287 = vmatprep.subr.mxu0 0.0
  %7288 = vmatpush1.msra.mxu0 0.0
  %7289 = vmatprep.subr.mxu0 0.0
  %7290 = vmatpush1.msra.mxu0 0.0
  %7291 = vmatprep.subr.mxu0 0.0
  %7292 = vmatpush1.msra.mxu0 0.0
  %7293 = vmatprep.subr.mxu0 0.0
  %7294 = vmatpush1.msra.mxu0 0.0
  %7295 = vmatprep.subr.mxu0 0.0
  %7296 = vmatpush1.msra.mxu0 0.0
  %7297 = vmatprep.subr.mxu0 0.0
  %7298 = vmatpush1.msra.mxu0 0.0
  %7299 = vmatprep.subr.mxu0 0.0
  %7300 = vmatpush1.msra.mxu0 0.0
  %7301 = vmatprep.subr.mxu0 0.0
  %7302 = vmatpush1.msra.mxu0 0.0
  %7303 = vmatprep.subr.mxu0 0.0
  %7304 = vmatpush1.msra.mxu0 0.0
  %7305 = vmatprep.subr.mxu0 0.0
  %7306 = vmatpush1.msra.mxu0 0.0
  %7307 = vmatprep.subr.mxu0 0.0
  %7308 = vmatpush1.msra.mxu0 0.0
  %7309 = vmatprep.subr.mxu0 0.0
  %7310 = vmatpush1.msra.mxu0 0.0
  %7311 = vmatprep.subr.mxu0 0.0
  %7312 = vmatpush1.msra.mxu0 0.0
  %7313 = vmatprep.subr.mxu0 0.0
  %7314 = vmatpush1.msra.mxu0 0.0
  %7315 = vmatprep.subr.mxu0 0.0
  %7316 = vmatpush1.msra.mxu0 0.0
  %7317 = vmatprep.subr.mxu0 0.0
  %7318 = vmatpush1.msra.mxu0 0.0
  %7319 = vmatprep.subr.mxu0 0.0
  %7320 = vmatpush1.msra.mxu0 0.0
  %7321 = vmatprep.subr.mxu0 0.0
  %7322 = vmatpush1.msra.mxu0 0.0
  %7323 = vmatprep.subr.mxu0 0.0
  %7324 = vmatpush1.msra.mxu0 0.0
  %7325 = vmatprep.subr.mxu0 0.0
  %7326 = vmatpush1.msra.mxu0 0.0
  %7327 = vmatprep.subr.mxu0 0.0
  %7328 = vmatpush1.msra.mxu0 0.0
  %7329 = vmatprep.subr.mxu0 0.0
  %7330 = vmatpush1.msra.mxu0 0.0
  %7331 = vmatprep.subr.mxu0 0.0
  %7332 = vmatpush1.msra.mxu0 0.0
  %7333 = vmatprep.subr.mxu0 0.0
  %7334 = vmatpush1.msra.mxu0 0.0
  %7335 = vmatprep.subr.mxu0 0.0
  %7336 = vmatpush1.msra.mxu0 0.0
  %7337 = vmatprep.subr.mxu0 0.0
  %7338 = vmatpush1.msra.mxu0 0.0
  %7339 = vmatprep.mubr.f32.mxu0 0.0
  %v7340 = vand.u32 %v6859, 4294901760
  %7341 = vmatmul.mubr.f32.gmra.mrb[0].mxu0 %v7340
  %v7342 = vpop.f32.mrb[0].mxu0
  %v7343 = vadd.f32 %v7268, %v7342
  %v7344 = vpop.f32.mrb[0].mxu0
  %7345 = vdwg.mxu0
  %v7346 = vadd.f32 %v5783, %v7343
  %v7347 = vxor.u32 %v7346, 2147483648
  %v7348 = vmul.f32 %v7347, 1.442695
  %v7349 = vpow.pop %v7348
  %v7350 = vadd.f32 %v7349, 1.0
  %v7351 = vrcp.pop %v7350
  %v7352 = vmul.f32 1.0, %v7351
  %v7353 = vtanh.pop %v7346
  %v7354 = vmul.f32 %v7352, %v6847
  %7356 = vrot.lane.b32.xlu0 %v7353, 64
  %v7357 = vpop.permute.xlu0 %7356
  %v7359 = vmul.f32 %v7352, %v7357
  %7361 = vrot.lane.b32.xlu0 %v7359, 32
  %v7362 = vpop.permute.xlu0 %7361
  %v7364 = vadd.f32 %v7354, %v7362
  %v7365 = vtanh.pop %v7364
  %7367 = vrot.lane.b32.xlu0 %v7365, 64
  %v7368 = vpop.permute.xlu0 %7367
  %v7370 = vmul.f32 %v7352, %v7368
  %7372 = vrot.lane.b32.xlu0 %v7370, 32
  %v7373 = vpop.permute.xlu0 %7372
  %7375 = vst.msk [vmem:[#allocation2 + $0x10] sm:$0xff] %vm835, %v7373
  %v7376 = vsel %vm835, %v7373, 0
  %7378 = vmatprep.subr.mxu0 0.0
  %v7379 = vand.u32 %v4987, 4294901760
  %7380 = vmatpush1.msra.mxu0 %v7379
  %7381 = vmatprep.subr.mxu0 0.0
  %v7382 = vand.u32 %v4988, 4294901760
  %7383 = vmatpush1.msra.mxu0 %v7382
  %7384 = vmatprep.subr.mxu0 0.0
  %v7385 = vand.u32 %v4989, 4294901760
  %7386 = vmatpush1.msra.mxu0 %v7385
  %7387 = vmatprep.subr.mxu0 0.0
  %v7388 = vand.u32 %v4990, 4294901760
  %7389 = vmatpush1.msra.mxu0 %v7388
  %7390 = vmatprep.subr.mxu0 0.0
  %7391 = vmatpush1.msra.mxu0 0.0
  %7392 = vmatprep.subr.mxu0 0.0
  %7393 = vmatpush1.msra.mxu0 0.0
  %7394 = vmatprep.subr.mxu0 0.0
  %7395 = vmatpush1.msra.mxu0 0.0
  %7396 = vmatprep.subr.mxu0 0.0
  %7397 = vmatpush1.msra.mxu0 0.0
  %7398 = vmatprep.subr.mxu0 0.0
  %7399 = vmatpush1.msra.mxu0 0.0
  %7400 = vmatprep.subr.mxu0 0.0
  %7401 = vmatpush1.msra.mxu0 0.0
  %7402 = vmatprep.subr.mxu0 0.0
  %7403 = vmatpush1.msra.mxu0 0.0
  %7404 = vmatprep.subr.mxu0 0.0
  %7405 = vmatpush1.msra.mxu0 0.0
  %7406 = vmatprep.subr.mxu0 0.0
  %7407 = vmatpush1.msra.mxu0 0.0
  %7408 = vmatprep.subr.mxu0 0.0
  %7409 = vmatpush1.msra.mxu0 0.0
  %7410 = vmatprep.subr.mxu0 0.0
  %7411 = vmatpush1.msra.mxu0 0.0
  %7412 = vmatprep.subr.mxu0 0.0
  %7413 = vmatpush1.msra.mxu0 0.0
  %7414 = vmatprep.subr.mxu0 0.0
  %7415 = vmatpush1.msra.mxu0 0.0
  %7416 = vmatprep.subr.mxu0 0.0
  %7417 = vmatpush1.msra.mxu0 0.0
  %7418 = vmatprep.subr.mxu0 0.0
  %7419 = vmatpush1.msra.mxu0 0.0
  %7420 = vmatprep.subr.mxu0 0.0
  %7421 = vmatpush1.msra.mxu0 0.0
  %7422 = vmatprep.subr.mxu0 0.0
  %7423 = vmatpush1.msra.mxu0 0.0
  %7424 = vmatprep.subr.mxu0 0.0
  %7425 = vmatpush1.msra.mxu0 0.0
  %7426 = vmatprep.subr.mxu0 0.0
  %7427 = vmatpush1.msra.mxu0 0.0
  %7428 = vmatprep.subr.mxu0 0.0
  %7429 = vmatpush1.msra.mxu0 0.0
  %7430 = vmatprep.subr.mxu0 0.0
  %7431 = vmatpush1.msra.mxu0 0.0
  %7432 = vmatprep.subr.mxu0 0.0
  %7433 = vmatpush1.msra.mxu0 0.0
  %7434 = vmatprep.subr.mxu0 0.0
  %7435 = vmatpush1.msra.mxu0 0.0
  %7436 = vmatprep.subr.mxu0 0.0
  %7437 = vmatpush1.msra.mxu0 0.0
  %7438 = vmatprep.subr.mxu0 0.0
  %7439 = vmatpush1.msra.mxu0 0.0
  %7440 = vmatprep.subr.mxu0 0.0
  %7441 = vmatpush1.msra.mxu0 0.0
  %7442 = vmatprep.subr.mxu0 0.0
  %7443 = vmatpush1.msra.mxu0 0.0
  %7444 = vmatprep.subr.mxu0 0.0
  %7445 = vmatpush1.msra.mxu0 0.0
  %7446 = vmatprep.mubr.f32.mxu0 0.0
  %v7447 = vand.u32 %v7376, 4294901760
  %v7448 = vsub.f32 %v7376, %v7447
  %v7449 = vand.u32 %v7448, 4294901760
  %v7450 = vsub.f32 %v7448, %v7449
  %v7451 = vand.u32 %v7450, 4294901760
  %7452 = vmatmul.mubr.f32.gmra.mrb[0].mxu0 %v7451
  %v7453 = vpop.f32.mrb[0].mxu0
  %v7454 = vadd.f32 0.0, %v7453
  %v7455 = vpop.f32.mrb[0].mxu0
  %7456 = vdwg.mxu0
  %7457 = vmatprep.subr.mxu0 0.0
  %v7458 = vand.u32 %v4987, 4294901760
  %v7459 = vsub.f32 %v4987, %v7458
  %v7460 = vand.u32 %v7459, 4294901760
  %v7461 = vsub.f32 %v7459, %v7460
  %v7462 = vand.u32 %v7461, 4294901760
  %7463 = vmatpush1.msra.mxu0 %v7462
  %7464 = vmatprep.subr.mxu0 0.0
  %v7465 = vand.u32 %v4988, 4294901760
  %v7466 = vsub.f32 %v4988, %v7465
  %v7467 = vand.u32 %v7466, 4294901760
  %v7468 = vsub.f32 %v7466, %v7467
  %v7469 = vand.u32 %v7468, 4294901760
  %7470 = vmatpush1.msra.mxu0 %v7469
  %7471 = vmatprep.subr.mxu0 0.0
  %v7472 = vand.u32 %v4989, 4294901760
  %v7473 = vsub.f32 %v4989, %v7472
  %v7474 = vand.u32 %v7473, 4294901760
  %v7475 = vsub.f32 %v7473, %v7474
  %v7476 = vand.u32 %v7475, 4294901760
  %7477 = vmatpush1.msra.mxu0 %v7476
  %7478 = vmatprep.subr.mxu0 0.0
  %v7479 = vand.u32 %v4990, 4294901760
  %v7480 = vsub.f32 %v4990, %v7479
  %v7481 = vand.u32 %v7480, 4294901760
  %v7482 = vsub.f32 %v7480, %v7481
  %v7483 = vand.u32 %v7482, 4294901760
  %7484 = vmatpush1.msra.mxu0 %v7483
  %7485 = vmatprep.subr.mxu0 0.0
  %7486 = vmatpush1.msra.mxu0 0.0
  %7487 = vmatprep.subr.mxu0 0.0
  %7488 = vmatpush1.msra.mxu0 0.0
  %7489 = vmatprep.subr.mxu0 0.0
  %7490 = vmatpush1.msra.mxu0 0.0
  %7491 = vmatprep.subr.mxu0 0.0
  %7492 = vmatpush1.msra.mxu0 0.0
  %7493 = vmatprep.subr.mxu0 0.0
  %7494 = vmatpush1.msra.mxu0 0.0
  %7495 = vmatprep.subr.mxu0 0.0
  %7496 = vmatpush1.msra.mxu0 0.0
  %7497 = vmatprep.subr.mxu0 0.0
  %7498 = vmatpush1.msra.mxu0 0.0
  %7499 = vmatprep.subr.mxu0 0.0
  %7500 = vmatpush1.msra.mxu0 0.0
  %7501 = vmatprep.subr.mxu0 0.0
  %7502 = vmatpush1.msra.mxu0 0.0
  %7503 = vmatprep.subr.mxu0 0.0
  %7504 = vmatpush1.msra.mxu0 0.0
  %7505 = vmatprep.subr.mxu0 0.0
  %7506 = vmatpush1.msra.mxu0 0.0
  %7507 = vmatprep.subr.mxu0 0.0
  %7508 = vmatpush1.msra.mxu0 0.0
  %7509 = vmatprep.subr.mxu0 0.0
  %7510 = vmatpush1.msra.mxu0 0.0
  %7511 = vmatprep.subr.mxu0 0.0
  %7512 = vmatpush1.msra.mxu0 0.0
  %7513 = vmatprep.subr.mxu0 0.0
  %7514 = vmatpush1.msra.mxu0 0.0
  %7515 = vmatprep.subr.mxu0 0.0
  %7516 = vmatpush1.msra.mxu0 0.0
  %7517 = vmatprep.subr.mxu0 0.0
  %7518 = vmatpush1.msra.mxu0 0.0
  %7519 = vmatprep.subr.mxu0 0.0
  %7520 = vmatpush1.msra.mxu0 0.0
  %7521 = vmatprep.subr.mxu0 0.0
  %7522 = vmatpush1.msra.mxu0 0.0
  %7523 = vmatprep.subr.mxu0 0.0
  %7524 = vmatpush1.msra.mxu0 0.0
  %7525 = vmatprep.subr.mxu0 0.0
  %7526 = vmatpush1.msra.mxu0 0.0
  %7527 = vmatprep.subr.mxu0 0.0
  %7528 = vmatpush1.msra.mxu0 0.0
  %7529 = vmatprep.subr.mxu0 0.0
  %7530 = vmatpush1.msra.mxu0 0.0
  %7531 = vmatprep.subr.mxu0 0.0
  %7532 = vmatpush1.msra.mxu0 0.0
  %7533 = vmatprep.subr.mxu0 0.0
  %7534 = vmatpush1.msra.mxu0 0.0
  %7535 = vmatprep.subr.mxu0 0.0
  %7536 = vmatpush1.msra.mxu0 0.0
  %7537 = vmatprep.subr.mxu0 0.0
  %7538 = vmatpush1.msra.mxu0 0.0
  %7539 = vmatprep.subr.mxu0 0.0
  %7540 = vmatpush1.msra.mxu0 0.0
  %7541 = vmatprep.mubr.f32.mxu0 0.0
  %v7542 = vand.u32 %v7376, 4294901760
  %7543 = vmatmul.mubr.f32.gmra.mrb[0].mxu0 %v7542
  %v7544 = vpop.f32.mrb[0].mxu0
  %v7545 = vadd.f32 %v7454, %v7544
  %v7546 = vpop.f32.mrb[0].mxu0
  %7547 = vdwg.mxu0
  %7548 = vmatprep.subr.mxu0 0.0
  %v7549 = vand.u32 %v4987, 4294901760
  %v7550 = vsub.f32 %v4987, %v7549
  %7551 = vmatpush1.msra.mxu0 %v7550
  %7552 = vmatprep.subr.mxu0 0.0
  %v7553 = vand.u32 %v4988, 4294901760
  %v7554 = vsub.f32 %v4988, %v7553
  %7555 = vmatpush1.msra.mxu0 %v7554
  %7556 = vmatprep.subr.mxu0 0.0
  %v7557 = vand.u32 %v4989, 4294901760
  %v7558 = vsub.f32 %v4989, %v7557
  %7559 = vmatpush1.msra.mxu0 %v7558
  %7560 = vmatprep.subr.mxu0 0.0
  %v7561 = vand.u32 %v4990, 4294901760
  %v7562 = vsub.f32 %v4990, %v7561
  %7563 = vmatpush1.msra.mxu0 %v7562
  %7564 = vmatprep.subr.mxu0 0.0
  %7565 = vmatpush1.msra.mxu0 0.0
  %7566 = vmatprep.subr.mxu0 0.0
  %7567 = vmatpush1.msra.mxu0 0.0
  %7568 = vmatprep.subr.mxu0 0.0
  %7569 = vmatpush1.msra.mxu0 0.0
  %7570 = vmatprep.subr.mxu0 0.0
  %7571 = vmatpush1.msra.mxu0 0.0
  %7572 = vmatprep.subr.mxu0 0.0
  %7573 = vmatpush1.msra.mxu0 0.0
  %7574 = vmatprep.subr.mxu0 0.0
  %7575 = vmatpush1.msra.mxu0 0.0
  %7576 = vmatprep.subr.mxu0 0.0
  %7577 = vmatpush1.msra.mxu0 0.0
  %7578 = vmatprep.subr.mxu0 0.0
  %7579 = vmatpush1.msra.mxu0 0.0
  %7580 = vmatprep.subr.mxu0 0.0
  %7581 = vmatpush1.msra.mxu0 0.0
  %7582 = vmatprep.subr.mxu0 0.0
  %7583 = vmatpush1.msra.mxu0 0.0
  %7584 = vmatprep.subr.mxu0 0.0
  %7585 = vmatpush1.msra.mxu0 0.0
  %7586 = vmatprep.subr.mxu0 0.0
  %7587 = vmatpush1.msra.mxu0 0.0
  %7588 = vmatprep.subr.mxu0 0.0
  %7589 = vmatpush1.msra.mxu0 0.0
  %7590 = vmatprep.subr.mxu0 0.0
  %7591 = vmatpush1.msra.mxu0 0.0
  %7592 = vmatprep.subr.mxu0 0.0
  %7593 = vmatpush1.msra.mxu0 0.0
  %7594 = vmatprep.subr.mxu0 0.0
  %7595 = vmatpush1.msra.mxu0 0.0
  %7596 = vmatprep.subr.mxu0 0.0
  %7597 = vmatpush1.msra.mxu0 0.0
  %7598 = vmatprep.subr.mxu0 0.0
  %7599 = vmatpush1.msra.mxu0 0.0
  %7600 = vmatprep.subr.mxu0 0.0
  %7601 = vmatpush1.msra.mxu0 0.0
  %7602 = vmatprep.subr.mxu0 0.0
  %7603 = vmatpush1.msra.mxu0 0.0
  %7604 = vmatprep.subr.mxu0 0.0
  %7605 = vmatpush1.msra.mxu0 0.0
  %7606 = vmatprep.subr.mxu0 0.0
  %7607 = vmatpush1.msra.mxu0 0.0
  %7608 = vmatprep.subr.mxu0 0.0
  %7609 = vmatpush1.msra.mxu0 0.0
  %7610 = vmatprep.subr.mxu0 0.0
  %7611 = vmatpush1.msra.mxu0 0.0
  %7612 = vmatprep.subr.mxu0 0.0
  %7613 = vmatpush1.msra.mxu0 0.0
  %7614 = vmatprep.subr.mxu0 0.0
  %7615 = vmatpush1.msra.mxu0 0.0
  %7616 = vmatprep.subr.mxu0 0.0
  %7617 = vmatpush1.msra.mxu0 0.0
  %7618 = vmatprep.subr.mxu0 0.0
  %7619 = vmatpush1.msra.mxu0 0.0
  %7620 = vmatprep.mubr.f32.mxu0 0.0
  %v7621 = vand.u32 %v7376, 4294901760
  %v7622 = vsub.f32 %v7376, %v7621
  %7623 = vmatmul.mubr.f32.gmra.mrb[0].mxu0 %v7622
  %v7624 = vpop.f32.mrb[0].mxu0
  %v7625 = vadd.f32 %v7545, %v7624
  %v7626 = vpop.f32.mrb[0].mxu0
  %7627 = vdwg.mxu0
  %7628 = vmatprep.subr.mxu0 0.0
  %v7629 = vand.u32 %v4987, 4294901760
  %7630 = vmatpush1.msra.mxu0 %v7629
  %7631 = vmatprep.subr.mxu0 0.0
  %v7632 = vand.u32 %v4988, 4294901760
  %7633 = vmatpush1.msra.mxu0 %v7632
  %7634 = vmatprep.subr.mxu0 0.0
  %v7635 = vand.u32 %v4989, 4294901760
  %7636 = vmatpush1.msra.mxu0 %v7635
  %7637 = vmatprep.subr.mxu0 0.0
  %v7638 = vand.u32 %v4990, 4294901760
  %7639 = vmatpush1.msra.mxu0 %v7638
  %7640 = vmatprep.subr.mxu0 0.0
  %7641 = vmatpush1.msra.mxu0 0.0
  %7642 = vmatprep.subr.mxu0 0.0
  %7643 = vmatpush1.msra.mxu0 0.0
  %7644 = vmatprep.subr.mxu0 0.0
  %7645 = vmatpush1.msra.mxu0 0.0
  %7646 = vmatprep.subr.mxu0 0.0
  %7647 = vmatpush1.msra.mxu0 0.0
  %7648 = vmatprep.subr.mxu0 0.0
  %7649 = vmatpush1.msra.mxu0 0.0
  %7650 = vmatprep.subr.mxu0 0.0
  %7651 = vmatpush1.msra.mxu0 0.0
  %7652 = vmatprep.subr.mxu0 0.0
  %7653 = vmatpush1.msra.mxu0 0.0
  %7654 = vmatprep.subr.mxu0 0.0
  %7655 = vmatpush1.msra.mxu0 0.0
  %7656 = vmatprep.subr.mxu0 0.0
  %7657 = vmatpush1.msra.mxu0 0.0
  %7658 = vmatprep.subr.mxu0 0.0
  %7659 = vmatpush1.msra.mxu0 0.0
  %7660 = vmatprep.subr.mxu0 0.0
  %7661 = vmatpush1.msra.mxu0 0.0
  %7662 = vmatprep.subr.mxu0 0.0
  %7663 = vmatpush1.msra.mxu0 0.0
  %7664 = vmatprep.subr.mxu0 0.0
  %7665 = vmatpush1.msra.mxu0 0.0
  %7666 = vmatprep.subr.mxu0 0.0
  %7667 = vmatpush1.msra.mxu0 0.0
  %7668 = vmatprep.subr.mxu0 0.0
  %7669 = vmatpush1.msra.mxu0 0.0
  %7670 = vmatprep.subr.mxu0 0.0
  %7671 = vmatpush1.msra.mxu0 0.0
  %7672 = vmatprep.subr.mxu0 0.0
  %7673 = vmatpush1.msra.mxu0 0.0
  %7674 = vmatprep.subr.mxu0 0.0
  %7675 = vmatpush1.msra.mxu0 0.0
  %7676 = vmatprep.subr.mxu0 0.0
  %7677 = vmatpush1.msra.mxu0 0.0
  %7678 = vmatprep.subr.mxu0 0.0
  %7679 = vmatpush1.msra.mxu0 0.0
  %7680 = vmatprep.subr.mxu0 0.0
  %7681 = vmatpush1.msra.mxu0 0.0
  %7682 = vmatprep.subr.mxu0 0.0
  %7683 = vmatpush1.msra.mxu0 0.0
  %7684 = vmatprep.subr.mxu0 0.0
  %7685 = vmatpush1.msra.mxu0 0.0
  %7686 = vmatprep.subr.mxu0 0.0
  %7687 = vmatpush1.msra.mxu0 0.0
  %7688 = vmatprep.subr.mxu0 0.0
  %7689 = vmatpush1.msra.mxu0 0.0
  %7690 = vmatprep.subr.mxu0 0.0
  %7691 = vmatpush1.msra.mxu0 0.0
  %7692 = vmatprep.subr.mxu0 0.0
  %7693 = vmatpush1.msra.mxu0 0.0
  %7694 = vmatprep.subr.mxu0 0.0
  %7695 = vmatpush1.msra.mxu0 0.0
  %7696 = vmatprep.mubr.f32.mxu0 0.0
  %v7697 = vand.u32 %v7376, 4294901760
  %v7698 = vsub.f32 %v7376, %v7697
  %v7699 = vand.u32 %v7698, 4294901760
  %7700 = vmatmul.mubr.f32.gmra.mrb[0].mxu0 %v7699
  %v7701 = vpop.f32.mrb[0].mxu0
  %v7702 = vadd.f32 %v7625, %v7701
  %v7703 = vpop.f32.mrb[0].mxu0
  %7704 = vdwg.mxu0
  %7705 = vmatprep.subr.mxu0 0.0
  %v7706 = vand.u32 %v4987, 4294901760
  %v7707 = vsub.f32 %v4987, %v7706
  %v7708 = vand.u32 %v7707, 4294901760
  %7709 = vmatpush1.msra.mxu0 %v7708
  %7710 = vmatprep.subr.mxu0 0.0
  %v7711 = vand.u32 %v4988, 4294901760
  %v7712 = vsub.f32 %v4988, %v7711
  %v7713 = vand.u32 %v7712, 4294901760
  %7714 = vmatpush1.msra.mxu0 %v7713
  %7715 = vmatprep.subr.mxu0 0.0
  %v7716 = vand.u32 %v4989, 4294901760
  %v7717 = vsub.f32 %v4989, %v7716
  %v7718 = vand.u32 %v7717, 4294901760
  %7719 = vmatpush1.msra.mxu0 %v7718
  %7720 = vmatprep.subr.mxu0 0.0
  %v7721 = vand.u32 %v4990, 4294901760
  %v7722 = vsub.f32 %v4990, %v7721
  %v7723 = vand.u32 %v7722, 4294901760
  %7724 = vmatpush1.msra.mxu0 %v7723
  %7725 = vmatprep.subr.mxu0 0.0
  %7726 = vmatpush1.msra.mxu0 0.0
  %7727 = vmatprep.subr.mxu0 0.0
  %7728 = vmatpush1.msra.mxu0 0.0
  %7729 = vmatprep.subr.mxu0 0.0
  %7730 = vmatpush1.msra.mxu0 0.0
  %7731 = vmatprep.subr.mxu0 0.0
  %7732 = vmatpush1.msra.mxu0 0.0
  %7733 = vmatprep.subr.mxu0 0.0
  %7734 = vmatpush1.msra.mxu0 0.0
  %7735 = vmatprep.subr.mxu0 0.0
  %7736 = vmatpush1.msra.mxu0 0.0
  %7737 = vmatprep.subr.mxu0 0.0
  %7738 = vmatpush1.msra.mxu0 0.0
  %7739 = vmatprep.subr.mxu0 0.0
  %7740 = vmatpush1.msra.mxu0 0.0
  %7741 = vmatprep.subr.mxu0 0.0
  %7742 = vmatpush1.msra.mxu0 0.0
  %7743 = vmatprep.subr.mxu0 0.0
  %7744 = vmatpush1.msra.mxu0 0.0
  %7745 = vmatprep.subr.mxu0 0.0
  %7746 = vmatpush1.msra.mxu0 0.0
  %7747 = vmatprep.subr.mxu0 0.0
  %7748 = vmatpush1.msra.mxu0 0.0
  %7749 = vmatprep.subr.mxu0 0.0
  %7750 = vmatpush1.msra.mxu0 0.0
  %7751 = vmatprep.subr.mxu0 0.0
  %7752 = vmatpush1.msra.mxu0 0.0
  %7753 = vmatprep.subr.mxu0 0.0
  %7754 = vmatpush1.msra.mxu0 0.0
  %7755 = vmatprep.subr.mxu0 0.0
  %7756 = vmatpush1.msra.mxu0 0.0
  %7757 = vmatprep.subr.mxu0 0.0
  %7758 = vmatpush1.msra.mxu0 0.0
  %7759 = vmatprep.subr.mxu0 0.0
  %7760 = vmatpush1.msra.mxu0 0.0
  %7761 = vmatprep.subr.mxu0 0.0
  %7762 = vmatpush1.msra.mxu0 0.0
  %7763 = vmatprep.subr.mxu0 0.0
  %7764 = vmatpush1.msra.mxu0 0.0
  %7765 = vmatprep.subr.mxu0 0.0
  %7766 = vmatpush1.msra.mxu0 0.0
  %7767 = vmatprep.subr.mxu0 0.0
  %7768 = vmatpush1.msra.mxu0 0.0
  %7769 = vmatprep.subr.mxu0 0.0
  %7770 = vmatpush1.msra.mxu0 0.0
  %7771 = vmatprep.subr.mxu0 0.0
  %7772 = vmatpush1.msra.mxu0 0.0
  %7773 = vmatprep.subr.mxu0 0.0
  %7774 = vmatpush1.msra.mxu0 0.0
  %7775 = vmatprep.subr.mxu0 0.0
  %7776 = vmatpush1.msra.mxu0 0.0
  %7777 = vmatprep.subr.mxu0 0.0
  %7778 = vmatpush1.msra.mxu0 0.0
  %7779 = vmatprep.subr.mxu0 0.0
  %7780 = vmatpush1.msra.mxu0 0.0
  %7781 = vmatprep.mubr.f32.mxu0 0.0
  %v7782 = vand.u32 %v7376, 4294901760
  %7783 = vmatmul.mubr.f32.gmra.mrb[0].mxu0 %v7782
  %v7784 = vpop.f32.mrb[0].mxu0
  %v7785 = vadd.f32 %v7702, %v7784
  %v7786 = vpop.f32.mrb[0].mxu0
  %7787 = vdwg.mxu0
  %7788 = vmatprep.subr.mxu0 0.0
  %v7789 = vand.u32 %v4987, 4294901760
  %7790 = vmatpush1.msra.mxu0 %v7789
  %7791 = vmatprep.subr.mxu0 0.0
  %v7792 = vand.u32 %v4988, 4294901760
  %7793 = vmatpush1.msra.mxu0 %v7792
  %7794 = vmatprep.subr.mxu0 0.0
  %v7795 = vand.u32 %v4989, 4294901760
  %7796 = vmatpush1.msra.mxu0 %v7795
  %7797 = vmatprep.subr.mxu0 0.0
  %v7798 = vand.u32 %v4990, 4294901760
  %7799 = vmatpush1.msra.mxu0 %v7798
  %7800 = vmatprep.subr.mxu0 0.0
  %7801 = vmatpush1.msra.mxu0 0.0
  %7802 = vmatprep.subr.mxu0 0.0
  %7803 = vmatpush1.msra.mxu0 0.0
  %7804 = vmatprep.subr.mxu0 0.0
  %7805 = vmatpush1.msra.mxu0 0.0
  %7806 = vmatprep.subr.mxu0 0.0
  %7807 = vmatpush1.msra.mxu0 0.0
  %7808 = vmatprep.subr.mxu0 0.0
  %7809 = vmatpush1.msra.mxu0 0.0
  %7810 = vmatprep.subr.mxu0 0.0
  %7811 = vmatpush1.msra.mxu0 0.0
  %7812 = vmatprep.subr.mxu0 0.0
  %7813 = vmatpush1.msra.mxu0 0.0
  %7814 = vmatprep.subr.mxu0 0.0
  %7815 = vmatpush1.msra.mxu0 0.0
  %7816 = vmatprep.subr.mxu0 0.0
  %7817 = vmatpush1.msra.mxu0 0.0
  %7818 = vmatprep.subr.mxu0 0.0
  %7819 = vmatpush1.msra.mxu0 0.0
  %7820 = vmatprep.subr.mxu0 0.0
  %7821 = vmatpush1.msra.mxu0 0.0
  %7822 = vmatprep.subr.mxu0 0.0
  %7823 = vmatpush1.msra.mxu0 0.0
  %7824 = vmatprep.subr.mxu0 0.0
  %7825 = vmatpush1.msra.mxu0 0.0
  %7826 = vmatprep.subr.mxu0 0.0
  %7827 = vmatpush1.msra.mxu0 0.0
  %7828 = vmatprep.subr.mxu0 0.0
  %7829 = vmatpush1.msra.mxu0 0.0
  %7830 = vmatprep.subr.mxu0 0.0
  %7831 = vmatpush1.msra.mxu0 0.0
  %7832 = vmatprep.subr.mxu0 0.0
  %7833 = vmatpush1.msra.mxu0 0.0
  %7834 = vmatprep.subr.mxu0 0.0
  %7835 = vmatpush1.msra.mxu0 0.0
  %7836 = vmatprep.subr.mxu0 0.0
  %7837 = vmatpush1.msra.mxu0 0.0
  %7838 = vmatprep.subr.mxu0 0.0
  %7839 = vmatpush1.msra.mxu0 0.0
  %7840 = vmatprep.subr.mxu0 0.0
  %7841 = vmatpush1.msra.mxu0 0.0
  %7842 = vmatprep.subr.mxu0 0.0
  %7843 = vmatpush1.msra.mxu0 0.0
  %7844 = vmatprep.subr.mxu0 0.0
  %7845 = vmatpush1.msra.mxu0 0.0
  %7846 = vmatprep.subr.mxu0 0.0
  %7847 = vmatpush1.msra.mxu0 0.0
  %7848 = vmatprep.subr.mxu0 0.0
  %7849 = vmatpush1.msra.mxu0 0.0
  %7850 = vmatprep.subr.mxu0 0.0
  %7851 = vmatpush1.msra.mxu0 0.0
  %7852 = vmatprep.subr.mxu0 0.0
  %7853 = vmatpush1.msra.mxu0 0.0
  %7854 = vmatprep.subr.mxu0 0.0
  %7855 = vmatpush1.msra.mxu0 0.0
  %7856 = vmatprep.mubr.f32.mxu0 0.0
  %v7857 = vand.u32 %v7376, 4294901760
  %7858 = vmatmul.mubr.f32.gmra.mrb[0].mxu0 %v7857
  %v7859 = vpop.f32.mrb[0].mxu0
  %v7860 = vadd.f32 %v7785, %v7859
  %v7861 = vpop.f32.mrb[0].mxu0
  %7862 = vdwg.mxu0
  %v7863 = vadd.f32 %v5789, %v7860
  %v7864 = vxor.u32 %v7863, 2147483648
  %v7865 = vmul.f32 %v7864, 1.442695
  %v7866 = vpow.pop %v7865
  %v7867 = vadd.f32 %v7866, 1.0
  %v7868 = vrcp.pop %v7867
  %v7869 = vmul.f32 1.0, %v7868
  %v7870 = vtanh.pop %v7863
  %v7871 = vmul.f32 %v7869, %v7364
  %7873 = vrot.lane.b32.xlu0 %v7870, 64
  %v7874 = vpop.permute.xlu0 %7873
  %v7876 = vmul.f32 %v7869, %v7874
  %7878 = vrot.lane.b32.xlu0 %v7876, 32
  %v7879 = vpop.permute.xlu0 %7878
  %v7881 = vadd.f32 %v7871, %v7879
  %v7882 = vtanh.pop %v7881
  %7884 = vrot.lane.b32.xlu0 %v7882, 64
  %v7885 = vpop.permute.xlu0 %7884
  %v7887 = vmul.f32 %v7869, %v7885
  %7889 = vrot.lane.b32.xlu0 %v7887, 32
  %v7890 = vpop.permute.xlu0 %7889
  %7892 = vst.msk [vmem:[#allocation2 + $0x18] sm:$0xff] %vm835, %v7890
  %v7893 = vsel %vm835, %v7890, 0
  %7895 = vmatprep.subr.mxu0 0.0
  %v7896 = vand.u32 %v4987, 4294901760
  %7897 = vmatpush1.msra.mxu0 %v7896
  %7898 = vmatprep.subr.mxu0 0.0
  %v7899 = vand.u32 %v4988, 4294901760
  %7900 = vmatpush1.msra.mxu0 %v7899
  %7901 = vmatprep.subr.mxu0 0.0
  %v7902 = vand.u32 %v4989, 4294901760
  %7903 = vmatpush1.msra.mxu0 %v7902
  %7904 = vmatprep.subr.mxu0 0.0
  %v7905 = vand.u32 %v4990, 4294901760
  %7906 = vmatpush1.msra.mxu0 %v7905
  %7907 = vmatprep.subr.mxu0 0.0
  %7908 = vmatpush1.msra.mxu0 0.0
  %7909 = vmatprep.subr.mxu0 0.0
  %7910 = vmatpush1.msra.mxu0 0.0
  %7911 = vmatprep.subr.mxu0 0.0
  %7912 = vmatpush1.msra.mxu0 0.0
  %7913 = vmatprep.subr.mxu0 0.0
  %7914 = vmatpush1.msra.mxu0 0.0
  %7915 = vmatprep.subr.mxu0 0.0
  %7916 = vmatpush1.msra.mxu0 0.0
  %7917 = vmatprep.subr.mxu0 0.0
  %7918 = vmatpush1.msra.mxu0 0.0
  %7919 = vmatprep.subr.mxu0 0.0
  %7920 = vmatpush1.msra.mxu0 0.0
  %7921 = vmatprep.subr.mxu0 0.0
  %7922 = vmatpush1.msra.mxu0 0.0
  %7923 = vmatprep.subr.mxu0 0.0
  %7924 = vmatpush1.msra.mxu0 0.0
  %7925 = vmatprep.subr.mxu0 0.0
  %7926 = vmatpush1.msra.mxu0 0.0
  %7927 = vmatprep.subr.mxu0 0.0
  %7928 = vmatpush1.msra.mxu0 0.0
  %7929 = vmatprep.subr.mxu0 0.0
  %7930 = vmatpush1.msra.mxu0 0.0
  %7931 = vmatprep.subr.mxu0 0.0
  %7932 = vmatpush1.msra.mxu0 0.0
  %7933 = vmatprep.subr.mxu0 0.0
  %7934 = vmatpush1.msra.mxu0 0.0
  %7935 = vmatprep.subr.mxu0 0.0
  %7936 = vmatpush1.msra.mxu0 0.0
  %7937 = vmatprep.subr.mxu0 0.0
  %7938 = vmatpush1.msra.mxu0 0.0
  %7939 = vmatprep.subr.mxu0 0.0
  %7940 = vmatpush1.msra.mxu0 0.0
  %7941 = vmatprep.subr.mxu0 0.0
  %7942 = vmatpush1.msra.mxu0 0.0
  %7943 = vmatprep.subr.mxu0 0.0
  %7944 = vmatpush1.msra.mxu0 0.0
  %7945 = vmatprep.subr.mxu0 0.0
  %7946 = vmatpush1.msra.mxu0 0.0
  %7947 = vmatprep.subr.mxu0 0.0
  %7948 = vmatpush1.msra.mxu0 0.0
  %7949 = vmatprep.subr.mxu0 0.0
  %7950 = vmatpush1.msra.mxu0 0.0
  %7951 = vmatprep.subr.mxu0 0.0
  %7952 = vmatpush1.msra.mxu0 0.0
  %7953 = vmatprep.subr.mxu0 0.0
  %7954 = vmatpush1.msra.mxu0 0.0
  %7955 = vmatprep.subr.mxu0 0.0
  %7956 = vmatpush1.msra.mxu0 0.0
  %7957 = vmatprep.subr.mxu0 0.0
  %7958 = vmatpush1.msra.mxu0 0.0
  %7959 = vmatprep.subr.mxu0 0.0
  %7960 = vmatpush1.msra.mxu0 0.0
  %7961 = vmatprep.subr.mxu0 0.0
  %7962 = vmatpush1.msra.mxu0 0.0
  %7963 = vmatprep.mubr.f32.mxu0 0.0
  %v7964 = vand.u32 %v7893, 4294901760
  %v7965 = vsub.f32 %v7893, %v7964
  %v7966 = vand.u32 %v7965, 4294901760
  %v7967 = vsub.f32 %v7965, %v7966
  %v7968 = vand.u32 %v7967, 4294901760
  %7969 = vmatmul.mubr.f32.gmra.mrb[0].mxu0 %v7968
  %v7970 = vpop.f32.mrb[0].mxu0
  %v7971 = vadd.f32 0.0, %v7970
  %v7972 = vpop.f32.mrb[0].mxu0
  %7973 = vdwg.mxu0
  %7974 = vmatprep.subr.mxu0 0.0
  %v7975 = vand.u32 %v4987, 4294901760
  %v7976 = vsub.f32 %v4987, %v7975
  %v7977 = vand.u32 %v7976, 4294901760
  %v7978 = vsub.f32 %v7976, %v7977
  %v7979 = vand.u32 %v7978, 4294901760
  %7980 = vmatpush1.msra.mxu0 %v7979
  %7981 = vmatprep.subr.mxu0 0.0
  %v7982 = vand.u32 %v4988, 4294901760
  %v7983 = vsub.f32 %v4988, %v7982
  %v7984 = vand.u32 %v7983, 4294901760
  %v7985 = vsub.f32 %v7983, %v7984
  %v7986 = vand.u32 %v7985, 4294901760
  %7987 = vmatpush1.msra.mxu0 %v7986
  %7988 = vmatprep.subr.mxu0 0.0
  %v7989 = vand.u32 %v4989, 4294901760
  %v7990 = vsub.f32 %v4989, %v7989
  %v7991 = vand.u32 %v7990, 4294901760
  %v7992 = vsub.f32 %v7990, %v7991
  %v7993 = vand.u32 %v7992, 4294901760
  %7994 = vmatpush1.msra.mxu0 %v7993
  %7995 = vmatprep.subr.mxu0 0.0
  %v7996 = vand.u32 %v4990, 4294901760
  %v7997 = vsub.f32 %v4990, %v7996
  %v7998 = vand.u32 %v7997, 4294901760
  %v7999 = vsub.f32 %v7997, %v7998
  %v8000 = vand.u32 %v7999, 4294901760
  %8001 = vmatpush1.msra.mxu0 %v8000
  %8002 = vmatprep.subr.mxu0 0.0
  %8003 = vmatpush1.msra.mxu0 0.0
  %8004 = vmatprep.subr.mxu0 0.0
  %8005 = vmatpush1.msra.mxu0 0.0
  %8006 = vmatprep.subr.mxu0 0.0
  %8007 = vmatpush1.msra.mxu0 0.0
  %8008 = vmatprep.subr.mxu0 0.0
  %8009 = vmatpush1.msra.mxu0 0.0
  %8010 = vmatprep.subr.mxu0 0.0
  %8011 = vmatpush1.msra.mxu0 0.0
  %8012 = vmatprep.subr.mxu0 0.0
  %8013 = vmatpush1.msra.mxu0 0.0
  %8014 = vmatprep.subr.mxu0 0.0
  %8015 = vmatpush1.msra.mxu0 0.0
  %8016 = vmatprep.subr.mxu0 0.0
  %8017 = vmatpush1.msra.mxu0 0.0
  %8018 = vmatprep.subr.mxu0 0.0
  %8019 = vmatpush1.msra.mxu0 0.0
  %8020 = vmatprep.subr.mxu0 0.0
  %8021 = vmatpush1.msra.mxu0 0.0
  %8022 = vmatprep.subr.mxu0 0.0
  %8023 = vmatpush1.msra.mxu0 0.0
  %8024 = vmatprep.subr.mxu0 0.0
  %8025 = vmatpush1.msra.mxu0 0.0
  %8026 = vmatprep.subr.mxu0 0.0
  %8027 = vmatpush1.msra.mxu0 0.0
  %8028 = vmatprep.subr.mxu0 0.0
  %8029 = vmatpush1.msra.mxu0 0.0
  %8030 = vmatprep.subr.mxu0 0.0
  %8031 = vmatpush1.msra.mxu0 0.0
  %8032 = vmatprep.subr.mxu0 0.0
  %8033 = vmatpush1.msra.mxu0 0.0
  %8034 = vmatprep.subr.mxu0 0.0
  %8035 = vmatpush1.msra.mxu0 0.0
  %8036 = vmatprep.subr.mxu0 0.0
  %8037 = vmatpush1.msra.mxu0 0.0
  %8038 = vmatprep.subr.mxu0 0.0
  %8039 = vmatpush1.msra.mxu0 0.0
  %8040 = vmatprep.subr.mxu0 0.0
  %8041 = vmatpush1.msra.mxu0 0.0
  %8042 = vmatprep.subr.mxu0 0.0
  %8043 = vmatpush1.msra.mxu0 0.0
  %8044 = vmatprep.subr.mxu0 0.0
  %8045 = vmatpush1.msra.mxu0 0.0
  %8046 = vmatprep.subr.mxu0 0.0
  %8047 = vmatpush1.msra.mxu0 0.0
  %8048 = vmatprep.subr.mxu0 0.0
  %8049 = vmatpush1.msra.mxu0 0.0
  %8050 = vmatprep.subr.mxu0 0.0
  %8051 = vmatpush1.msra.mxu0 0.0
  %8052 = vmatprep.subr.mxu0 0.0
  %8053 = vmatpush1.msra.mxu0 0.0
  %8054 = vmatprep.subr.mxu0 0.0
  %8055 = vmatpush1.msra.mxu0 0.0
  %8056 = vmatprep.subr.mxu0 0.0
  %8057 = vmatpush1.msra.mxu0 0.0
  %8058 = vmatprep.mubr.f32.mxu0 0.0
  %v8059 = vand.u32 %v7893, 4294901760
  %8060 = vmatmul.mubr.f32.gmra.mrb[0].mxu0 %v8059
  %v8061 = vpop.f32.mrb[0].mxu0
  %v8062 = vadd.f32 %v7971, %v8061
  %v8063 = vpop.f32.mrb[0].mxu0
  %8064 = vdwg.mxu0
  %8065 = vmatprep.subr.mxu0 0.0
  %v8066 = vand.u32 %v4987, 4294901760
  %v8067 = vsub.f32 %v4987, %v8066
  %8068 = vmatpush1.msra.mxu0 %v8067
  %8069 = vmatprep.subr.mxu0 0.0
  %v8070 = vand.u32 %v4988, 4294901760
  %v8071 = vsub.f32 %v4988, %v8070
  %8072 = vmatpush1.msra.mxu0 %v8071
  %8073 = vmatprep.subr.mxu0 0.0
  %v8074 = vand.u32 %v4989, 4294901760
  %v8075 = vsub.f32 %v4989, %v8074
  %8076 = vmatpush1.msra.mxu0 %v8075
  %8077 = vmatprep.subr.mxu0 0.0
  %v8078 = vand.u32 %v4990, 4294901760
  %v8079 = vsub.f32 %v4990, %v8078
  %8080 = vmatpush1.msra.mxu0 %v8079
  %8081 = vmatprep.subr.mxu0 0.0
  %8082 = vmatpush1.msra.mxu0 0.0
  %8083 = vmatprep.subr.mxu0 0.0
  %8084 = vmatpush1.msra.mxu0 0.0
  %8085 = vmatprep.subr.mxu0 0.0
  %8086 = vmatpush1.msra.mxu0 0.0
  %8087 = vmatprep.subr.mxu0 0.0
  %8088 = vmatpush1.msra.mxu0 0.0
  %8089 = vmatprep.subr.mxu0 0.0
  %8090 = vmatpush1.msra.mxu0 0.0
  %8091 = vmatprep.subr.mxu0 0.0
  %8092 = vmatpush1.msra.mxu0 0.0
  %8093 = vmatprep.subr.mxu0 0.0
  %8094 = vmatpush1.msra.mxu0 0.0
  %8095 = vmatprep.subr.mxu0 0.0
  %8096 = vmatpush1.msra.mxu0 0.0
  %8097 = vmatprep.subr.mxu0 0.0
  %8098 = vmatpush1.msra.mxu0 0.0
  %8099 = vmatprep.subr.mxu0 0.0
  %8100 = vmatpush1.msra.mxu0 0.0
  %8101 = vmatprep.subr.mxu0 0.0
  %8102 = vmatpush1.msra.mxu0 0.0
  %8103 = vmatprep.subr.mxu0 0.0
  %8104 = vmatpush1.msra.mxu0 0.0
  %8105 = vmatprep.subr.mxu0 0.0
  %8106 = vmatpush1.msra.mxu0 0.0
  %8107 = vmatprep.subr.mxu0 0.0
  %8108 = vmatpush1.msra.mxu0 0.0
  %8109 = vmatprep.subr.mxu0 0.0
  %8110 = vmatpush1.msra.mxu0 0.0
  %8111 = vmatprep.subr.mxu0 0.0
  %8112 = vmatpush1.msra.mxu0 0.0
  %8113 = vmatprep.subr.mxu0 0.0
  %8114 = vmatpush1.msra.mxu0 0.0
  %8115 = vmatprep.subr.mxu0 0.0
  %8116 = vmatpush1.msra.mxu0 0.0
  %8117 = vmatprep.subr.mxu0 0.0
  %8118 = vmatpush1.msra.mxu0 0.0
  %8119 = vmatprep.subr.mxu0 0.0
  %8120 = vmatpush1.msra.mxu0 0.0
  %8121 = vmatprep.subr.mxu0 0.0
  %8122 = vmatpush1.msra.mxu0 0.0
  %8123 = vmatprep.subr.mxu0 0.0
  %8124 = vmatpush1.msra.mxu0 0.0
  %8125 = vmatprep.subr.mxu0 0.0
  %8126 = vmatpush1.msra.mxu0 0.0
  %8127 = vmatprep.subr.mxu0 0.0
  %8128 = vmatpush1.msra.mxu0 0.0
  %8129 = vmatprep.subr.mxu0 0.0
  %8130 = vmatpush1.msra.mxu0 0.0
  %8131 = vmatprep.subr.mxu0 0.0
  %8132 = vmatpush1.msra.mxu0 0.0
  %8133 = vmatprep.subr.mxu0 0.0
  %8134 = vmatpush1.msra.mxu0 0.0
  %8135 = vmatprep.subr.mxu0 0.0
  %8136 = vmatpush1.msra.mxu0 0.0
  %8137 = vmatprep.mubr.f32.mxu0 0.0
  %v8138 = vand.u32 %v7893, 4294901760
  %v8139 = vsub.f32 %v7893, %v8138
  %8140 = vmatmul.mubr.f32.gmra.mrb[0].mxu0 %v8139
  %v8141 = vpop.f32.mrb[0].mxu0
  %v8142 = vadd.f32 %v8062, %v8141
  %v8143 = vpop.f32.mrb[0].mxu0
  %8144 = vdwg.mxu0
  %8145 = vmatprep.subr.mxu0 0.0
  %v8146 = vand.u32 %v4987, 4294901760
  %8147 = vmatpush1.msra.mxu0 %v8146
  %8148 = vmatprep.subr.mxu0 0.0
  %v8149 = vand.u32 %v4988, 4294901760
  %8150 = vmatpush1.msra.mxu0 %v8149
  %8151 = vmatprep.subr.mxu0 0.0
  %v8152 = vand.u32 %v4989, 4294901760
  %8153 = vmatpush1.msra.mxu0 %v8152
  %8154 = vmatprep.subr.mxu0 0.0
  %v8155 = vand.u32 %v4990, 4294901760
  %8156 = vmatpush1.msra.mxu0 %v8155
  %8157 = vmatprep.subr.mxu0 0.0
  %8158 = vmatpush1.msra.mxu0 0.0
  %8159 = vmatprep.subr.mxu0 0.0
  %8160 = vmatpush1.msra.mxu0 0.0
  %8161 = vmatprep.subr.mxu0 0.0
  %8162 = vmatpush1.msra.mxu0 0.0
  %8163 = vmatprep.subr.mxu0 0.0
  %8164 = vmatpush1.msra.mxu0 0.0
  %8165 = vmatprep.subr.mxu0 0.0
  %8166 = vmatpush1.msra.mxu0 0.0
  %8167 = vmatprep.subr.mxu0 0.0
  %8168 = vmatpush1.msra.mxu0 0.0
  %8169 = vmatprep.subr.mxu0 0.0
  %8170 = vmatpush1.msra.mxu0 0.0
  %8171 = vmatprep.subr.mxu0 0.0
  %8172 = vmatpush1.msra.mxu0 0.0
  %8173 = vmatprep.subr.mxu0 0.0
  %8174 = vmatpush1.msra.mxu0 0.0
  %8175 = vmatprep.subr.mxu0 0.0
  %8176 = vmatpush1.msra.mxu0 0.0
  %8177 = vmatprep.subr.mxu0 0.0
  %8178 = vmatpush1.msra.mxu0 0.0
  %8179 = vmatprep.subr.mxu0 0.0
  %8180 = vmatpush1.msra.mxu0 0.0
  %8181 = vmatprep.subr.mxu0 0.0
  %8182 = vmatpush1.msra.mxu0 0.0
  %8183 = vmatprep.subr.mxu0 0.0
  %8184 = vmatpush1.msra.mxu0 0.0
  %8185 = vmatprep.subr.mxu0 0.0
  %8186 = vmatpush1.msra.mxu0 0.0
  %8187 = vmatprep.subr.mxu0 0.0
  %8188 = vmatpush1.msra.mxu0 0.0
  %8189 = vmatprep.subr.mxu0 0.0
  %8190 = vmatpush1.msra.mxu0 0.0
  %8191 = vmatprep.subr.mxu0 0.0
  %8192 = vmatpush1.msra.mxu0 0.0
  %8193 = vmatprep.subr.mxu0 0.0
  %8194 = vmatpush1.msra.mxu0 0.0
  %8195 = vmatprep.subr.mxu0 0.0
  %8196 = vmatpush1.msra.mxu0 0.0
  %8197 = vmatprep.subr.mxu0 0.0
  %8198 = vmatpush1.msra.mxu0 0.0
  %8199 = vmatprep.subr.mxu0 0.0
  %8200 = vmatpush1.msra.mxu0 0.0
  %8201 = vmatprep.subr.mxu0 0.0
  %8202 = vmatpush1.msra.mxu0 0.0
  %8203 = vmatprep.subr.mxu0 0.0
  %8204 = vmatpush1.msra.mxu0 0.0
  %8205 = vmatprep.subr.mxu0 0.0
  %8206 = vmatpush1.msra.mxu0 0.0
  %8207 = vmatprep.subr.mxu0 0.0
  %8208 = vmatpush1.msra.mxu0 0.0
  %8209 = vmatprep.subr.mxu0 0.0
  %8210 = vmatpush1.msra.mxu0 0.0
  %8211 = vmatprep.subr.mxu0 0.0
  %8212 = vmatpush1.msra.mxu0 0.0
  %8213 = vmatprep.mubr.f32.mxu0 0.0
  %v8214 = vand.u32 %v7893, 4294901760
  %v8215 = vsub.f32 %v7893, %v8214
  %v8216 = vand.u32 %v8215, 4294901760
  %8217 = vmatmul.mubr.f32.gmra.mrb[0].mxu0 %v8216
  %v8218 = vpop.f32.mrb[0].mxu0
  %v8219 = vadd.f32 %v8142, %v8218
  %v8220 = vpop.f32.mrb[0].mxu0
  %8221 = vdwg.mxu0
  %8222 = vmatprep.subr.mxu0 0.0
  %v8223 = vand.u32 %v4987, 4294901760
  %v8224 = vsub.f32 %v4987, %v8223
  %v8225 = vand.u32 %v8224, 4294901760
  %8226 = vmatpush1.msra.mxu0 %v8225
  %8227 = vmatprep.subr.mxu0 0.0
  %v8228 = vand.u32 %v4988, 4294901760
  %v8229 = vsub.f32 %v4988, %v8228
  %v8230 = vand.u32 %v8229, 4294901760
  %8231 = vmatpush1.msra.mxu0 %v8230
  %8232 = vmatprep.subr.mxu0 0.0
  %v8233 = vand.u32 %v4989, 4294901760
  %v8234 = vsub.f32 %v4989, %v8233
  %v8235 = vand.u32 %v8234, 4294901760
  %8236 = vmatpush1.msra.mxu0 %v8235
  %8237 = vmatprep.subr.mxu0 0.0
  %v8238 = vand.u32 %v4990, 4294901760
  %v8239 = vsub.f32 %v4990, %v8238
  %v8240 = vand.u32 %v8239, 4294901760
  %8241 = vmatpush1.msra.mxu0 %v8240
  %8242 = vmatprep.subr.mxu0 0.0
  %8243 = vmatpush1.msra.mxu0 0.0
  %8244 = vmatprep.subr.mxu0 0.0
  %8245 = vmatpush1.msra.mxu0 0.0
  %8246 = vmatprep.subr.mxu0 0.0
  %8247 = vmatpush1.msra.mxu0 0.0
  %8248 = vmatprep.subr.mxu0 0.0
  %8249 = vmatpush1.msra.mxu0 0.0
  %8250 = vmatprep.subr.mxu0 0.0
  %8251 = vmatpush1.msra.mxu0 0.0
  %8252 = vmatprep.subr.mxu0 0.0
  %8253 = vmatpush1.msra.mxu0 0.0
  %8254 = vmatprep.subr.mxu0 0.0
  %8255 = vmatpush1.msra.mxu0 0.0
  %8256 = vmatprep.subr.mxu0 0.0
  %8257 = vmatpush1.msra.mxu0 0.0
  %8258 = vmatprep.subr.mxu0 0.0
  %8259 = vmatpush1.msra.mxu0 0.0
  %8260 = vmatprep.subr.mxu0 0.0
  %8261 = vmatpush1.msra.mxu0 0.0
  %8262 = vmatprep.subr.mxu0 0.0
  %8263 = vmatpush1.msra.mxu0 0.0
  %8264 = vmatprep.subr.mxu0 0.0
  %8265 = vmatpush1.msra.mxu0 0.0
  %8266 = vmatprep.subr.mxu0 0.0
  %8267 = vmatpush1.msra.mxu0 0.0
  %8268 = vmatprep.subr.mxu0 0.0
  %8269 = vmatpush1.msra.mxu0 0.0
  %8270 = vmatprep.subr.mxu0 0.0
  %8271 = vmatpush1.msra.mxu0 0.0
  %8272 = vmatprep.subr.mxu0 0.0
  %8273 = vmatpush1.msra.mxu0 0.0
  %8274 = vmatprep.subr.mxu0 0.0
  %8275 = vmatpush1.msra.mxu0 0.0
  %8276 = vmatprep.subr.mxu0 0.0
  %8277 = vmatpush1.msra.mxu0 0.0
  %8278 = vmatprep.subr.mxu0 0.0
  %8279 = vmatpush1.msra.mxu0 0.0
  %8280 = vmatprep.subr.mxu0 0.0
  %8281 = vmatpush1.msra.mxu0 0.0
  %8282 = vmatprep.subr.mxu0 0.0
  %8283 = vmatpush1.msra.mxu0 0.0
  %8284 = vmatprep.subr.mxu0 0.0
  %8285 = vmatpush1.msra.mxu0 0.0
  %8286 = vmatprep.subr.mxu0 0.0
  %8287 = vmatpush1.msra.mxu0 0.0
  %8288 = vmatprep.subr.mxu0 0.0
  %8289 = vmatpush1.msra.mxu0 0.0
  %8290 = vmatprep.subr.mxu0 0.0
  %8291 = vmatpush1.msra.mxu0 0.0
  %8292 = vmatprep.subr.mxu0 0.0
  %8293 = vmatpush1.msra.mxu0 0.0
  %8294 = vmatprep.subr.mxu0 0.0
  %8295 = vmatpush1.msra.mxu0 0.0
  %8296 = vmatprep.subr.mxu0 0.0
  %8297 = vmatpush1.msra.mxu0 0.0
  %8298 = vmatprep.mubr.f32.mxu0 0.0
  %v8299 = vand.u32 %v7893, 4294901760
  %8300 = vmatmul.mubr.f32.gmra.mrb[0].mxu0 %v8299
  %v8301 = vpop.f32.mrb[0].mxu0
  %v8302 = vadd.f32 %v8219, %v8301
  %v8303 = vpop.f32.mrb[0].mxu0
  %8304 = vdwg.mxu0
  %8305 = vmatprep.subr.mxu0 0.0
  %v8306 = vand.u32 %v4987, 4294901760
  %8307 = vmatpush1.msra.mxu0 %v8306
  %8308 = vmatprep.subr.mxu0 0.0
  %v8309 = vand.u32 %v4988, 4294901760
  %8310 = vmatpush1.msra.mxu0 %v8309
  %8311 = vmatprep.subr.mxu0 0.0
  %v8312 = vand.u32 %v4989, 4294901760
  %8313 = vmatpush1.msra.mxu0 %v8312
  %8314 = vmatprep.subr.mxu0 0.0
  %v8315 = vand.u32 %v4990, 4294901760
  %8316 = vmatpush1.msra.mxu0 %v8315
  %8317 = vmatprep.subr.mxu0 0.0
  %8318 = vmatpush1.msra.mxu0 0.0
  %8319 = vmatprep.subr.mxu0 0.0
  %8320 = vmatpush1.msra.mxu0 0.0
  %8321 = vmatprep.subr.mxu0 0.0
  %8322 = vmatpush1.msra.mxu0 0.0
  %8323 = vmatprep.subr.mxu0 0.0
  %8324 = vmatpush1.msra.mxu0 0.0
  %8325 = vmatprep.subr.mxu0 0.0
  %8326 = vmatpush1.msra.mxu0 0.0
  %8327 = vmatprep.subr.mxu0 0.0
  %8328 = vmatpush1.msra.mxu0 0.0
  %8329 = vmatprep.subr.mxu0 0.0
  %8330 = vmatpush1.msra.mxu0 0.0
  %8331 = vmatprep.subr.mxu0 0.0
  %8332 = vmatpush1.msra.mxu0 0.0
  %8333 = vmatprep.subr.mxu0 0.0
  %8334 = vmatpush1.msra.mxu0 0.0
  %8335 = vmatprep.subr.mxu0 0.0
  %8336 = vmatpush1.msra.mxu0 0.0
  %8337 = vmatprep.subr.mxu0 0.0
  %8338 = vmatpush1.msra.mxu0 0.0
  %8339 = vmatprep.subr.mxu0 0.0
  %8340 = vmatpush1.msra.mxu0 0.0
  %8341 = vmatprep.subr.mxu0 0.0
  %8342 = vmatpush1.msra.mxu0 0.0
  %8343 = vmatprep.subr.mxu0 0.0
  %8344 = vmatpush1.msra.mxu0 0.0
  %8345 = vmatprep.subr.mxu0 0.0
  %8346 = vmatpush1.msra.mxu0 0.0
  %8347 = vmatprep.subr.mxu0 0.0
  %8348 = vmatpush1.msra.mxu0 0.0
  %8349 = vmatprep.subr.mxu0 0.0
  %8350 = vmatpush1.msra.mxu0 0.0
  %8351 = vmatprep.subr.mxu0 0.0
  %8352 = vmatpush1.msra.mxu0 0.0
  %8353 = vmatprep.subr.mxu0 0.0
  %8354 = vmatpush1.msra.mxu0 0.0
  %8355 = vmatprep.subr.mxu0 0.0
  %8356 = vmatpush1.msra.mxu0 0.0
  %8357 = vmatprep.subr.mxu0 0.0
  %8358 = vmatpush1.msra.mxu0 0.0
  %8359 = vmatprep.subr.mxu0 0.0
  %8360 = vmatpush1.msra.mxu0 0.0
  %8361 = vmatprep.subr.mxu0 0.0
  %8362 = vmatpush1.msra.mxu0 0.0
  %8363 = vmatprep.subr.mxu0 0.0
  %8364 = vmatpush1.msra.mxu0 0.0
  %8365 = vmatprep.subr.mxu0 0.0
  %8366 = vmatpush1.msra.mxu0 0.0
  %8367 = vmatprep.subr.mxu0 0.0
  %8368 = vmatpush1.msra.mxu0 0.0
  %8369 = vmatprep.subr.mxu0 0.0
  %8370 = vmatpush1.msra.mxu0 0.0
  %8371 = vmatprep.subr.mxu0 0.0
  %8372 = vmatpush1.msra.mxu0 0.0
  %8373 = vmatprep.mubr.f32.mxu0 0.0
  %v8374 = vand.u32 %v7893, 4294901760
  %8375 = vmatmul.mubr.f32.gmra.mrb[0].mxu0 %v8374
  %v8376 = vpop.f32.mrb[0].mxu0
  %v8377 = vadd.f32 %v8302, %v8376
  %v8378 = vpop.f32.mrb[0].mxu0
  %8379 = vdwg.mxu0
  %v8380 = vadd.f32 %v5795, %v8377
  %v8381 = vxor.u32 %v8380, 2147483648
  %v8382 = vmul.f32 %v8381, 1.442695
  %v8383 = vpow.pop %v8382
  %v8384 = vadd.f32 %v8383, 1.0
  %v8385 = vrcp.pop %v8384
  %v8386 = vmul.f32 1.0, %v8385
  %v8387 = vtanh.pop %v8380
  %v8388 = vmul.f32 %v8386, %v7881
  %8390 = vrot.lane.b32.xlu0 %v8387, 64
  %v8391 = vpop.permute.xlu0 %8390
  %v8393 = vmul.f32 %v8386, %v8391
  %8395 = vrot.lane.b32.xlu0 %v8393, 32
  %v8396 = vpop.permute.xlu0 %8395
  %v8398 = vadd.f32 %v8388, %v8396
  %v8399 = vtanh.pop %v8398
  %8401 = vrot.lane.b32.xlu0 %v8399, 64
  %v8402 = vpop.permute.xlu0 %8401
  %v8404 = vmul.f32 %v8386, %v8402
  %8406 = vrot.lane.b32.xlu0 %v8404, 32
  %v8407 = vpop.permute.xlu0 %8406
  %8409 = vst.msk [vmem:[#allocation2 + $0x20] sm:$0xff] %vm835, %v8407
  %v8410 = vsel %vm835, %v8407, 0
  %8412 = vmatprep.subr.mxu0 0.0
  %v8413 = vand.u32 %v4987, 4294901760
  %8414 = vmatpush1.msra.mxu0 %v8413
  %8415 = vmatprep.subr.mxu0 0.0
  %v8416 = vand.u32 %v4988, 4294901760
  %8417 = vmatpush1.msra.mxu0 %v8416
  %8418 = vmatprep.subr.mxu0 0.0
  %v8419 = vand.u32 %v4989, 4294901760
  %8420 = vmatpush1.msra.mxu0 %v8419
  %8421 = vmatprep.subr.mxu0 0.0
  %v8422 = vand.u32 %v4990, 4294901760
  %8423 = vmatpush1.msra.mxu0 %v8422
  %8424 = vmatprep.subr.mxu0 0.0
  %8425 = vmatpush1.msra.mxu0 0.0
  %8426 = vmatprep.subr.mxu0 0.0
  %8427 = vmatpush1.msra.mxu0 0.0
  %8428 = vmatprep.subr.mxu0 0.0
  %8429 = vmatpush1.msra.mxu0 0.0
  %8430 = vmatprep.subr.mxu0 0.0
  %8431 = vmatpush1.msra.mxu0 0.0
  %8432 = vmatprep.subr.mxu0 0.0
  %8433 = vmatpush1.msra.mxu0 0.0
  %8434 = vmatprep.subr.mxu0 0.0
  %8435 = vmatpush1.msra.mxu0 0.0
  %8436 = vmatprep.subr.mxu0 0.0
  %8437 = vmatpush1.msra.mxu0 0.0
  %8438 = vmatprep.subr.mxu0 0.0
  %8439 = vmatpush1.msra.mxu0 0.0
  %8440 = vmatprep.subr.mxu0 0.0
  %8441 = vmatpush1.msra.mxu0 0.0
  %8442 = vmatprep.subr.mxu0 0.0
  %8443 = vmatpush1.msra.mxu0 0.0
  %8444 = vmatprep.subr.mxu0 0.0
  %8445 = vmatpush1.msra.mxu0 0.0
  %8446 = vmatprep.subr.mxu0 0.0
  %8447 = vmatpush1.msra.mxu0 0.0
  %8448 = vmatprep.subr.mxu0 0.0
  %8449 = vmatpush1.msra.mxu0 0.0
  %8450 = vmatprep.subr.mxu0 0.0
  %8451 = vmatpush1.msra.mxu0 0.0
  %8452 = vmatprep.subr.mxu0 0.0
  %8453 = vmatpush1.msra.mxu0 0.0
  %8454 = vmatprep.subr.mxu0 0.0
  %8455 = vmatpush1.msra.mxu0 0.0
  %8456 = vmatprep.subr.mxu0 0.0
  %8457 = vmatpush1.msra.mxu0 0.0
  %8458 = vmatprep.subr.mxu0 0.0
  %8459 = vmatpush1.msra.mxu0 0.0
  %8460 = vmatprep.subr.mxu0 0.0
  %8461 = vmatpush1.msra.mxu0 0.0
  %8462 = vmatprep.subr.mxu0 0.0
  %8463 = vmatpush1.msra.mxu0 0.0
  %8464 = vmatprep.subr.mxu0 0.0
  %8465 = vmatpush1.msra.mxu0 0.0
  %8466 = vmatprep.subr.mxu0 0.0
  %8467 = vmatpush1.msra.mxu0 0.0
  %8468 = vmatprep.subr.mxu0 0.0
  %8469 = vmatpush1.msra.mxu0 0.0
  %8470 = vmatprep.subr.mxu0 0.0
  %8471 = vmatpush1.msra.mxu0 0.0
  %8472 = vmatprep.subr.mxu0 0.0
  %8473 = vmatpush1.msra.mxu0 0.0
  %8474 = vmatprep.subr.mxu0 0.0
  %8475 = vmatpush1.msra.mxu0 0.0
  %8476 = vmatprep.subr.mxu0 0.0
  %8477 = vmatpush1.msra.mxu0 0.0
  %8478 = vmatprep.subr.mxu0 0.0
  %8479 = vmatpush1.msra.mxu0 0.0
  %8480 = vmatprep.mubr.f32.mxu0 0.0
  %v8481 = vand.u32 %v8410, 4294901760
  %v8482 = vsub.f32 %v8410, %v8481
  %v8483 = vand.u32 %v8482, 4294901760
  %v8484 = vsub.f32 %v8482, %v8483
  %v8485 = vand.u32 %v8484, 4294901760
  %8486 = vmatmul.mubr.f32.gmra.mrb[0].mxu0 %v8485
  %v8487 = vpop.f32.mrb[0].mxu0
  %v8488 = vadd.f32 0.0, %v8487
  %v8489 = vpop.f32.mrb[0].mxu0
  %8490 = vdwg.mxu0
  %8491 = vmatprep.subr.mxu0 0.0
  %v8492 = vand.u32 %v4987, 4294901760
  %v8493 = vsub.f32 %v4987, %v8492
  %v8494 = vand.u32 %v8493, 4294901760
  %v8495 = vsub.f32 %v8493, %v8494
  %v8496 = vand.u32 %v8495, 4294901760
  %8497 = vmatpush1.msra.mxu0 %v8496
  %8498 = vmatprep.subr.mxu0 0.0
  %v8499 = vand.u32 %v4988, 4294901760
  %v8500 = vsub.f32 %v4988, %v8499
  %v8501 = vand.u32 %v8500, 4294901760
  %v8502 = vsub.f32 %v8500, %v8501
  %v8503 = vand.u32 %v8502, 4294901760
  %8504 = vmatpush1.msra.mxu0 %v8503
  %8505 = vmatprep.subr.mxu0 0.0
  %v8506 = vand.u32 %v4989, 4294901760
  %v8507 = vsub.f32 %v4989, %v8506
  %v8508 = vand.u32 %v8507, 4294901760
  %v8509 = vsub.f32 %v8507, %v8508
  %v8510 = vand.u32 %v8509, 4294901760
  %8511 = vmatpush1.msra.mxu0 %v8510
  %8512 = vmatprep.subr.mxu0 0.0
  %v8513 = vand.u32 %v4990, 4294901760
  %v8514 = vsub.f32 %v4990, %v8513
  %v8515 = vand.u32 %v8514, 4294901760
  %v8516 = vsub.f32 %v8514, %v8515
  %v8517 = vand.u32 %v8516, 4294901760
  %8518 = vmatpush1.msra.mxu0 %v8517
  %8519 = vmatprep.subr.mxu0 0.0
  %8520 = vmatpush1.msra.mxu0 0.0
  %8521 = vmatprep.subr.mxu0 0.0
  %8522 = vmatpush1.msra.mxu0 0.0
  %8523 = vmatprep.subr.mxu0 0.0
  %8524 = vmatpush1.msra.mxu0 0.0
  %8525 = vmatprep.subr.mxu0 0.0
  %8526 = vmatpush1.msra.mxu0 0.0
  %8527 = vmatprep.subr.mxu0 0.0
  %8528 = vmatpush1.msra.mxu0 0.0
  %8529 = vmatprep.subr.mxu0 0.0
  %8530 = vmatpush1.msra.mxu0 0.0
  %8531 = vmatprep.subr.mxu0 0.0
  %8532 = vmatpush1.msra.mxu0 0.0
  %8533 = vmatprep.subr.mxu0 0.0
  %8534 = vmatpush1.msra.mxu0 0.0
  %8535 = vmatprep.subr.mxu0 0.0
  %8536 = vmatpush1.msra.mxu0 0.0
  %8537 = vmatprep.subr.mxu0 0.0
  %8538 = vmatpush1.msra.mxu0 0.0
  %8539 = vmatprep.subr.mxu0 0.0
  %8540 = vmatpush1.msra.mxu0 0.0
  %8541 = vmatprep.subr.mxu0 0.0
  %8542 = vmatpush1.msra.mxu0 0.0
  %8543 = vmatprep.subr.mxu0 0.0
  %8544 = vmatpush1.msra.mxu0 0.0
  %8545 = vmatprep.subr.mxu0 0.0
  %8546 = vmatpush1.msra.mxu0 0.0
  %8547 = vmatprep.subr.mxu0 0.0
  %8548 = vmatpush1.msra.mxu0 0.0
  %8549 = vmatprep.subr.mxu0 0.0
  %8550 = vmatpush1.msra.mxu0 0.0
  %8551 = vmatprep.subr.mxu0 0.0
  %8552 = vmatpush1.msra.mxu0 0.0
  %8553 = vmatprep.subr.mxu0 0.0
  %8554 = vmatpush1.msra.mxu0 0.0
  %8555 = vmatprep.subr.mxu0 0.0
  %8556 = vmatpush1.msra.mxu0 0.0
  %8557 = vmatprep.subr.mxu0 0.0
  %8558 = vmatpush1.msra.mxu0 0.0
  %8559 = vmatprep.subr.mxu0 0.0
  %8560 = vmatpush1.msra.mxu0 0.0
  %8561 = vmatprep.subr.mxu0 0.0
  %8562 = vmatpush1.msra.mxu0 0.0
  %8563 = vmatprep.subr.mxu0 0.0
  %8564 = vmatpush1.msra.mxu0 0.0
  %8565 = vmatprep.subr.mxu0 0.0
  %8566 = vmatpush1.msra.mxu0 0.0
  %8567 = vmatprep.subr.mxu0 0.0
  %8568 = vmatpush1.msra.mxu0 0.0
  %8569 = vmatprep.subr.mxu0 0.0
  %8570 = vmatpush1.msra.mxu0 0.0
  %8571 = vmatprep.subr.mxu0 0.0
  %8572 = vmatpush1.msra.mxu0 0.0
  %8573 = vmatprep.subr.mxu0 0.0
  %8574 = vmatpush1.msra.mxu0 0.0
  %8575 = vmatprep.mubr.f32.mxu0 0.0
  %v8576 = vand.u32 %v8410, 4294901760
  %8577 = vmatmul.mubr.f32.gmra.mrb[0].mxu0 %v8576
  %v8578 = vpop.f32.mrb[0].mxu0
  %v8579 = vadd.f32 %v8488, %v8578
  %v8580 = vpop.f32.mrb[0].mxu0
  %8581 = vdwg.mxu0
  %8582 = vmatprep.subr.mxu0 0.0
  %v8583 = vand.u32 %v4987, 4294901760
  %v8584 = vsub.f32 %v4987, %v8583
  %8585 = vmatpush1.msra.mxu0 %v8584
  %8586 = vmatprep.subr.mxu0 0.0
  %v8587 = vand.u32 %v4988, 4294901760
  %v8588 = vsub.f32 %v4988, %v8587
  %8589 = vmatpush1.msra.mxu0 %v8588
  %8590 = vmatprep.subr.mxu0 0.0
  %v8591 = vand.u32 %v4989, 4294901760
  %v8592 = vsub.f32 %v4989, %v8591
  %8593 = vmatpush1.msra.mxu0 %v8592
  %8594 = vmatprep.subr.mxu0 0.0
  %v8595 = vand.u32 %v4990, 4294901760
  %v8596 = vsub.f32 %v4990, %v8595
  %8597 = vmatpush1.msra.mxu0 %v8596
  %8598 = vmatprep.subr.mxu0 0.0
  %8599 = vmatpush1.msra.mxu0 0.0
  %8600 = vmatprep.subr.mxu0 0.0
  %8601 = vmatpush1.msra.mxu0 0.0
  %8602 = vmatprep.subr.mxu0 0.0
  %8603 = vmatpush1.msra.mxu0 0.0
  %8604 = vmatprep.subr.mxu0 0.0
  %8605 = vmatpush1.msra.mxu0 0.0
  %8606 = vmatprep.subr.mxu0 0.0
  %8607 = vmatpush1.msra.mxu0 0.0
  %8608 = vmatprep.subr.mxu0 0.0
  %8609 = vmatpush1.msra.mxu0 0.0
  %8610 = vmatprep.subr.mxu0 0.0
  %8611 = vmatpush1.msra.mxu0 0.0
  %8612 = vmatprep.subr.mxu0 0.0
  %8613 = vmatpush1.msra.mxu0 0.0
  %8614 = vmatprep.subr.mxu0 0.0
  %8615 = vmatpush1.msra.mxu0 0.0
  %8616 = vmatprep.subr.mxu0 0.0
  %8617 = vmatpush1.msra.mxu0 0.0
  %8618 = vmatprep.subr.mxu0 0.0
  %8619 = vmatpush1.msra.mxu0 0.0
  %8620 = vmatprep.subr.mxu0 0.0
  %8621 = vmatpush1.msra.mxu0 0.0
  %8622 = vmatprep.subr.mxu0 0.0
  %8623 = vmatpush1.msra.mxu0 0.0
  %8624 = vmatprep.subr.mxu0 0.0
  %8625 = vmatpush1.msra.mxu0 0.0
  %8626 = vmatprep.subr.mxu0 0.0
  %8627 = vmatpush1.msra.mxu0 0.0
  %8628 = vmatprep.subr.mxu0 0.0
  %8629 = vmatpush1.msra.mxu0 0.0
  %8630 = vmatprep.subr.mxu0 0.0
  %8631 = vmatpush1.msra.mxu0 0.0
  %8632 = vmatprep.subr.mxu0 0.0
  %8633 = vmatpush1.msra.mxu0 0.0
  %8634 = vmatprep.subr.mxu0 0.0
  %8635 = vmatpush1.msra.mxu0 0.0
  %8636 = vmatprep.subr.mxu0 0.0
  %8637 = vmatpush1.msra.mxu0 0.0
  %8638 = vmatprep.subr.mxu0 0.0
  %8639 = vmatpush1.msra.mxu0 0.0
  %8640 = vmatprep.subr.mxu0 0.0
  %8641 = vmatpush1.msra.mxu0 0.0
  %8642 = vmatprep.subr.mxu0 0.0
  %8643 = vmatpush1.msra.mxu0 0.0
  %8644 = vmatprep.subr.mxu0 0.0
  %8645 = vmatpush1.msra.mxu0 0.0
  %8646 = vmatprep.subr.mxu0 0.0
  %8647 = vmatpush1.msra.mxu0 0.0
  %8648 = vmatprep.subr.mxu0 0.0
  %8649 = vmatpush1.msra.mxu0 0.0
  %8650 = vmatprep.subr.mxu0 0.0
  %8651 = vmatpush1.msra.mxu0 0.0
  %8652 = vmatprep.subr.mxu0 0.0
  %8653 = vmatpush1.msra.mxu0 0.0
  %8654 = vmatprep.mubr.f32.mxu0 0.0
  %v8655 = vand.u32 %v8410, 4294901760
  %v8656 = vsub.f32 %v8410, %v8655
  %8657 = vmatmul.mubr.f32.gmra.mrb[0].mxu0 %v8656
  %v8658 = vpop.f32.mrb[0].mxu0
  %v8659 = vadd.f32 %v8579, %v8658
  %v8660 = vpop.f32.mrb[0].mxu0
  %8661 = vdwg.mxu0
  %8662 = vmatprep.subr.mxu0 0.0
  %v8663 = vand.u32 %v4987, 4294901760
  %8664 = vmatpush1.msra.mxu0 %v8663
  %8665 = vmatprep.subr.mxu0 0.0
  %v8666 = vand.u32 %v4988, 4294901760
  %8667 = vmatpush1.msra.mxu0 %v8666
  %8668 = vmatprep.subr.mxu0 0.0
  %v8669 = vand.u32 %v4989, 4294901760
  %8670 = vmatpush1.msra.mxu0 %v8669
  %8671 = vmatprep.subr.mxu0 0.0
  %v8672 = vand.u32 %v4990, 4294901760
  %8673 = vmatpush1.msra.mxu0 %v8672
  %8674 = vmatprep.subr.mxu0 0.0
  %8675 = vmatpush1.msra.mxu0 0.0
  %8676 = vmatprep.subr.mxu0 0.0
  %8677 = vmatpush1.msra.mxu0 0.0
  %8678 = vmatprep.subr.mxu0 0.0
  %8679 = vmatpush1.msra.mxu0 0.0
  %8680 = vmatprep.subr.mxu0 0.0
  %8681 = vmatpush1.msra.mxu0 0.0
  %8682 = vmatprep.subr.mxu0 0.0
  %8683 = vmatpush1.msra.mxu0 0.0
  %8684 = vmatprep.subr.mxu0 0.0
  %8685 = vmatpush1.msra.mxu0 0.0
  %8686 = vmatprep.subr.mxu0 0.0
  %8687 = vmatpush1.msra.mxu0 0.0
  %8688 = vmatprep.subr.mxu0 0.0
  %8689 = vmatpush1.msra.mxu0 0.0
  %8690 = vmatprep.subr.mxu0 0.0
  %8691 = vmatpush1.msra.mxu0 0.0
  %8692 = vmatprep.subr.mxu0 0.0
  %8693 = vmatpush1.msra.mxu0 0.0
  %8694 = vmatprep.subr.mxu0 0.0
  %8695 = vmatpush1.msra.mxu0 0.0
  %8696 = vmatprep.subr.mxu0 0.0
  %8697 = vmatpush1.msra.mxu0 0.0
  %8698 = vmatprep.subr.mxu0 0.0
  %8699 = vmatpush1.msra.mxu0 0.0
  %8700 = vmatprep.subr.mxu0 0.0
  %8701 = vmatpush1.msra.mxu0 0.0
  %8702 = vmatprep.subr.mxu0 0.0
  %8703 = vmatpush1.msra.mxu0 0.0
  %8704 = vmatprep.subr.mxu0 0.0
  %8705 = vmatpush1.msra.mxu0 0.0
  %8706 = vmatprep.subr.mxu0 0.0
  %8707 = vmatpush1.msra.mxu0 0.0
  %8708 = vmatprep.subr.mxu0 0.0
  %8709 = vmatpush1.msra.mxu0 0.0
  %8710 = vmatprep.subr.mxu0 0.0
  %8711 = vmatpush1.msra.mxu0 0.0
  %8712 = vmatprep.subr.mxu0 0.0
  %8713 = vmatpush1.msra.mxu0 0.0
  %8714 = vmatprep.subr.mxu0 0.0
  %8715 = vmatpush1.msra.mxu0 0.0
  %8716 = vmatprep.subr.mxu0 0.0
  %8717 = vmatpush1.msra.mxu0 0.0
  %8718 = vmatprep.subr.mxu0 0.0
  %8719 = vmatpush1.msra.mxu0 0.0
  %8720 = vmatprep.subr.mxu0 0.0
  %8721 = vmatpush1.msra.mxu0 0.0
  %8722 = vmatprep.subr.mxu0 0.0
  %8723 = vmatpush1.msra.mxu0 0.0
  %8724 = vmatprep.subr.mxu0 0.0
  %8725 = vmatpush1.msra.mxu0 0.0
  %8726 = vmatprep.subr.mxu0 0.0
  %8727 = vmatpush1.msra.mxu0 0.0
  %8728 = vmatprep.subr.mxu0 0.0
  %8729 = vmatpush1.msra.mxu0 0.0
  %8730 = vmatprep.mubr.f32.mxu0 0.0
  %v8731 = vand.u32 %v8410, 4294901760
  %v8732 = vsub.f32 %v8410, %v8731
  %v8733 = vand.u32 %v8732, 4294901760
  %8734 = vmatmul.mubr.f32.gmra.mrb[0].mxu0 %v8733
  %v8735 = vpop.f32.mrb[0].mxu0
  %v8736 = vadd.f32 %v8659, %v8735
  %v8737 = vpop.f32.mrb[0].mxu0
  %8738 = vdwg.mxu0
  %8739 = vmatprep.subr.mxu0 0.0
  %v8740 = vand.u32 %v4987, 4294901760
  %v8741 = vsub.f32 %v4987, %v8740
  %v8742 = vand.u32 %v8741, 4294901760
  %8743 = vmatpush1.msra.mxu0 %v8742
  %8744 = vmatprep.subr.mxu0 0.0
  %v8745 = vand.u32 %v4988, 4294901760
  %v8746 = vsub.f32 %v4988, %v8745
  %v8747 = vand.u32 %v8746, 4294901760
  %8748 = vmatpush1.msra.mxu0 %v8747
  %8749 = vmatprep.subr.mxu0 0.0
  %v8750 = vand.u32 %v4989, 4294901760
  %v8751 = vsub.f32 %v4989, %v8750
  %v8752 = vand.u32 %v8751, 4294901760
  %8753 = vmatpush1.msra.mxu0 %v8752
  %8754 = vmatprep.subr.mxu0 0.0
  %v8755 = vand.u32 %v4990, 4294901760
  %v8756 = vsub.f32 %v4990, %v8755
  %v8757 = vand.u32 %v8756, 4294901760
  %8758 = vmatpush1.msra.mxu0 %v8757
  %8759 = vmatprep.subr.mxu0 0.0
  %8760 = vmatpush1.msra.mxu0 0.0
  %8761 = vmatprep.subr.mxu0 0.0
  %8762 = vmatpush1.msra.mxu0 0.0
  %8763 = vmatprep.subr.mxu0 0.0
  %8764 = vmatpush1.msra.mxu0 0.0
  %8765 = vmatprep.subr.mxu0 0.0
  %8766 = vmatpush1.msra.mxu0 0.0
  %8767 = vmatprep.subr.mxu0 0.0
  %8768 = vmatpush1.msra.mxu0 0.0
  %8769 = vmatprep.subr.mxu0 0.0
  %8770 = vmatpush1.msra.mxu0 0.0
  %8771 = vmatprep.subr.mxu0 0.0
  %8772 = vmatpush1.msra.mxu0 0.0
  %8773 = vmatprep.subr.mxu0 0.0
  %8774 = vmatpush1.msra.mxu0 0.0
  %8775 = vmatprep.subr.mxu0 0.0
  %8776 = vmatpush1.msra.mxu0 0.0
  %8777 = vmatprep.subr.mxu0 0.0
  %8778 = vmatpush1.msra.mxu0 0.0
  %8779 = vmatprep.subr.mxu0 0.0
  %8780 = vmatpush1.msra.mxu0 0.0
  %8781 = vmatprep.subr.mxu0 0.0
  %8782 = vmatpush1.msra.mxu0 0.0
  %8783 = vmatprep.subr.mxu0 0.0
  %8784 = vmatpush1.msra.mxu0 0.0
  %8785 = vmatprep.subr.mxu0 0.0
  %8786 = vmatpush1.msra.mxu0 0.0
  %8787 = vmatprep.subr.mxu0 0.0
  %8788 = vmatpush1.msra.mxu0 0.0
  %8789 = vmatprep.subr.mxu0 0.0
  %8790 = vmatpush1.msra.mxu0 0.0
  %8791 = vmatprep.subr.mxu0 0.0
  %8792 = vmatpush1.msra.mxu0 0.0
  %8793 = vmatprep.subr.mxu0 0.0
  %8794 = vmatpush1.msra.mxu0 0.0
  %8795 = vmatprep.subr.mxu0 0.0
  %8796 = vmatpush1.msra.mxu0 0.0
  %8797 = vmatprep.subr.mxu0 0.0
  %8798 = vmatpush1.msra.mxu0 0.0
  %8799 = vmatprep.subr.mxu0 0.0
  %8800 = vmatpush1.msra.mxu0 0.0
  %8801 = vmatprep.subr.mxu0 0.0
  %8802 = vmatpush1.msra.mxu0 0.0
  %8803 = vmatprep.subr.mxu0 0.0
  %8804 = vmatpush1.msra.mxu0 0.0
  %8805 = vmatprep.subr.mxu0 0.0
  %8806 = vmatpush1.msra.mxu0 0.0
  %8807 = vmatprep.subr.mxu0 0.0
  %8808 = vmatpush1.msra.mxu0 0.0
  %8809 = vmatprep.subr.mxu0 0.0
  %8810 = vmatpush1.msra.mxu0 0.0
  %8811 = vmatprep.subr.mxu0 0.0
  %8812 = vmatpush1.msra.mxu0 0.0
  %8813 = vmatprep.subr.mxu0 0.0
  %8814 = vmatpush1.msra.mxu0 0.0
  %8815 = vmatprep.mubr.f32.mxu0 0.0
  %v8816 = vand.u32 %v8410, 4294901760
  %8817 = vmatmul.mubr.f32.gmra.mrb[0].mxu0 %v8816
  %v8818 = vpop.f32.mrb[0].mxu0
  %v8819 = vadd.f32 %v8736, %v8818
  %v8820 = vpop.f32.mrb[0].mxu0
  %8821 = vdwg.mxu0
  %8822 = vmatprep.subr.mxu0 0.0
  %v8823 = vand.u32 %v4987, 4294901760
  %8824 = vmatpush1.msra.mxu0 %v8823
  %8825 = vmatprep.subr.mxu0 0.0
  %v8826 = vand.u32 %v4988, 4294901760
  %8827 = vmatpush1.msra.mxu0 %v8826
  %8828 = vmatprep.subr.mxu0 0.0
  %v8829 = vand.u32 %v4989, 4294901760
  %8830 = vmatpush1.msra.mxu0 %v8829
  %8831 = vmatprep.subr.mxu0 0.0
  %v8832 = vand.u32 %v4990, 4294901760
  %8833 = vmatpush1.msra.mxu0 %v8832
  %8834 = vmatprep.subr.mxu0 0.0
  %8835 = vmatpush1.msra.mxu0 0.0
  %8836 = vmatprep.subr.mxu0 0.0
  %8837 = vmatpush1.msra.mxu0 0.0
  %8838 = vmatprep.subr.mxu0 0.0
  %8839 = vmatpush1.msra.mxu0 0.0
  %8840 = vmatprep.subr.mxu0 0.0
  %8841 = vmatpush1.msra.mxu0 0.0
  %8842 = vmatprep.subr.mxu0 0.0
  %8843 = vmatpush1.msra.mxu0 0.0
  %8844 = vmatprep.subr.mxu0 0.0
  %8845 = vmatpush1.msra.mxu0 0.0
  %8846 = vmatprep.subr.mxu0 0.0
  %8847 = vmatpush1.msra.mxu0 0.0
  %8848 = vmatprep.subr.mxu0 0.0
  %8849 = vmatpush1.msra.mxu0 0.0
  %8850 = vmatprep.subr.mxu0 0.0
  %8851 = vmatpush1.msra.mxu0 0.0
  %8852 = vmatprep.subr.mxu0 0.0
  %8853 = vmatpush1.msra.mxu0 0.0
  %8854 = vmatprep.subr.mxu0 0.0
  %8855 = vmatpush1.msra.mxu0 0.0
  %8856 = vmatprep.subr.mxu0 0.0
  %8857 = vmatpush1.msra.mxu0 0.0
  %8858 = vmatprep.subr.mxu0 0.0
  %8859 = vmatpush1.msra.mxu0 0.0
  %8860 = vmatprep.subr.mxu0 0.0
  %8861 = vmatpush1.msra.mxu0 0.0
  %8862 = vmatprep.subr.mxu0 0.0
  %8863 = vmatpush1.msra.mxu0 0.0
  %8864 = vmatprep.subr.mxu0 0.0
  %8865 = vmatpush1.msra.mxu0 0.0
  %8866 = vmatprep.subr.mxu0 0.0
  %8867 = vmatpush1.msra.mxu0 0.0
  %8868 = vmatprep.subr.mxu0 0.0
  %8869 = vmatpush1.msra.mxu0 0.0
  %8870 = vmatprep.subr.mxu0 0.0
  %8871 = vmatpush1.msra.mxu0 0.0
  %8872 = vmatprep.subr.mxu0 0.0
  %8873 = vmatpush1.msra.mxu0 0.0
  %8874 = vmatprep.subr.mxu0 0.0
  %8875 = vmatpush1.msra.mxu0 0.0
  %8876 = vmatprep.subr.mxu0 0.0
  %8877 = vmatpush1.msra.mxu0 0.0
  %8878 = vmatprep.subr.mxu0 0.0
  %8879 = vmatpush1.msra.mxu0 0.0
  %8880 = vmatprep.subr.mxu0 0.0
  %8881 = vmatpush1.msra.mxu0 0.0
  %8882 = vmatprep.subr.mxu0 0.0
  %8883 = vmatpush1.msra.mxu0 0.0
  %8884 = vmatprep.subr.mxu0 0.0
  %8885 = vmatpush1.msra.mxu0 0.0
  %8886 = vmatprep.subr.mxu0 0.0
  %8887 = vmatpush1.msra.mxu0 0.0
  %8888 = vmatprep.subr.mxu0 0.0
  %8889 = vmatpush1.msra.mxu0 0.0
  %8890 = vmatprep.mubr.f32.mxu0 0.0
  %v8891 = vand.u32 %v8410, 4294901760
  %8892 = vmatmul.mubr.f32.gmra.mrb[0].mxu0 %v8891
  %v8893 = vpop.f32.mrb[0].mxu0
  %v8894 = vadd.f32 %v8819, %v8893
  %v8895 = vpop.f32.mrb[0].mxu0
  %8896 = vdwg.mxu0
  %v8897 = vadd.f32 %v5801, %v8894
  %v8898 = vxor.u32 %v8897, 2147483648
  %v8899 = vmul.f32 %v8898, 1.442695
  %v8900 = vpow.pop %v8899
  %v8901 = vadd.f32 %v8900, 1.0
  %v8902 = vrcp.pop %v8901
  %v8903 = vmul.f32 1.0, %v8902
  %v8904 = vtanh.pop %v8897
  %v8905 = vmul.f32 %v8903, %v8398
  %8907 = vrot.lane.b32.xlu0 %v8904, 64
  %v8908 = vpop.permute.xlu0 %8907
  %v8910 = vmul.f32 %v8903, %v8908
  %8912 = vrot.lane.b32.xlu0 %v8910, 32
  %v8913 = vpop.permute.xlu0 %8912
  %v8915 = vadd.f32 %v8905, %v8913
  %v8916 = vtanh.pop %v8915
  %8918 = vrot.lane.b32.xlu0 %v8916, 64
  %v8919 = vpop.permute.xlu0 %8918
  %v8921 = vmul.f32 %v8903, %v8919
  %8923 = vrot.lane.b32.xlu0 %v8921, 32
  %v8924 = vpop.permute.xlu0 %8923
  %8926 = vst.msk [vmem:[#allocation2 + $0x28] sm:$0xff] %vm835, %v8924
  %v8927 = vsel %vm835, %v8924, 0
  %8929 = vmatprep.subr.mxu0 0.0
  %v8930 = vand.u32 %v4987, 4294901760
  %8931 = vmatpush1.msra.mxu0 %v8930
  %8932 = vmatprep.subr.mxu0 0.0
  %v8933 = vand.u32 %v4988, 4294901760
  %8934 = vmatpush1.msra.mxu0 %v8933
  %8935 = vmatprep.subr.mxu0 0.0
  %v8936 = vand.u32 %v4989, 4294901760
  %8937 = vmatpush1.msra.mxu0 %v8936
  %8938 = vmatprep.subr.mxu0 0.0
  %v8939 = vand.u32 %v4990, 4294901760
  %8940 = vmatpush1.msra.mxu0 %v8939
  %8941 = vmatprep.subr.mxu0 0.0
  %8942 = vmatpush1.msra.mxu0 0.0
  %8943 = vmatprep.subr.mxu0 0.0
  %8944 = vmatpush1.msra.mxu0 0.0
  %8945 = vmatprep.subr.mxu0 0.0
  %8946 = vmatpush1.msra.mxu0 0.0
  %8947 = vmatprep.subr.mxu0 0.0
  %8948 = vmatpush1.msra.mxu0 0.0
  %8949 = vmatprep.subr.mxu0 0.0
  %8950 = vmatpush1.msra.mxu0 0.0
  %8951 = vmatprep.subr.mxu0 0.0
  %8952 = vmatpush1.msra.mxu0 0.0
  %8953 = vmatprep.subr.mxu0 0.0
  %8954 = vmatpush1.msra.mxu0 0.0
  %8955 = vmatprep.subr.mxu0 0.0
  %8956 = vmatpush1.msra.mxu0 0.0
  %8957 = vmatprep.subr.mxu0 0.0
  %8958 = vmatpush1.msra.mxu0 0.0
  %8959 = vmatprep.subr.mxu0 0.0
  %8960 = vmatpush1.msra.mxu0 0.0
  %8961 = vmatprep.subr.mxu0 0.0
  %8962 = vmatpush1.msra.mxu0 0.0
  %8963 = vmatprep.subr.mxu0 0.0
  %8964 = vmatpush1.msra.mxu0 0.0
  %8965 = vmatprep.subr.mxu0 0.0
  %8966 = vmatpush1.msra.mxu0 0.0
  %8967 = vmatprep.subr.mxu0 0.0
  %8968 = vmatpush1.msra.mxu0 0.0
  %8969 = vmatprep.subr.mxu0 0.0
  %8970 = vmatpush1.msra.mxu0 0.0
  %8971 = vmatprep.subr.mxu0 0.0
  %8972 = vmatpush1.msra.mxu0 0.0
  %8973 = vmatprep.subr.mxu0 0.0
  %8974 = vmatpush1.msra.mxu0 0.0
  %8975 = vmatprep.subr.mxu0 0.0
  %8976 = vmatpush1.msra.mxu0 0.0
  %8977 = vmatprep.subr.mxu0 0.0
  %8978 = vmatpush1.msra.mxu0 0.0
  %8979 = vmatprep.subr.mxu0 0.0
  %8980 = vmatpush1.msra.mxu0 0.0
  %8981 = vmatprep.subr.mxu0 0.0
  %8982 = vmatpush1.msra.mxu0 0.0
  %8983 = vmatprep.subr.mxu0 0.0
  %8984 = vmatpush1.msra.mxu0 0.0
  %8985 = vmatprep.subr.mxu0 0.0
  %8986 = vmatpush1.msra.mxu0 0.0
  %8987 = vmatprep.subr.mxu0 0.0
  %8988 = vmatpush1.msra.mxu0 0.0
  %8989 = vmatprep.subr.mxu0 0.0
  %8990 = vmatpush1.msra.mxu0 0.0
  %8991 = vmatprep.subr.mxu0 0.0
  %8992 = vmatpush1.msra.mxu0 0.0
  %8993 = vmatprep.subr.mxu0 0.0
  %8994 = vmatpush1.msra.mxu0 0.0
  %8995 = vmatprep.subr.mxu0 0.0
  %8996 = vmatpush1.msra.mxu0 0.0
  %8997 = vmatprep.mubr.f32.mxu0 0.0
  %v8998 = vand.u32 %v8927, 4294901760
  %v8999 = vsub.f32 %v8927, %v8998
  %v9000 = vand.u32 %v8999, 4294901760
  %v9001 = vsub.f32 %v8999, %v9000
  %v9002 = vand.u32 %v9001, 4294901760
  %9003 = vmatmul.mubr.f32.gmra.mrb[0].mxu0 %v9002
  %v9004 = vpop.f32.mrb[0].mxu0
  %v9005 = vadd.f32 0.0, %v9004
  %v9006 = vpop.f32.mrb[0].mxu0
  %9007 = vdwg.mxu0
  %9008 = vmatprep.subr.mxu0 0.0
  %v9009 = vand.u32 %v4987, 4294901760
  %v9010 = vsub.f32 %v4987, %v9009
  %v9011 = vand.u32 %v9010, 4294901760
  %v9012 = vsub.f32 %v9010, %v9011
  %v9013 = vand.u32 %v9012, 4294901760
  %9014 = vmatpush1.msra.mxu0 %v9013
  %9015 = vmatprep.subr.mxu0 0.0
  %v9016 = vand.u32 %v4988, 4294901760
  %v9017 = vsub.f32 %v4988, %v9016
  %v9018 = vand.u32 %v9017, 4294901760
  %v9019 = vsub.f32 %v9017, %v9018
  %v9020 = vand.u32 %v9019, 4294901760
  %9021 = vmatpush1.msra.mxu0 %v9020
  %9022 = vmatprep.subr.mxu0 0.0
  %v9023 = vand.u32 %v4989, 4294901760
  %v9024 = vsub.f32 %v4989, %v9023
  %v9025 = vand.u32 %v9024, 4294901760
  %v9026 = vsub.f32 %v9024, %v9025
  %v9027 = vand.u32 %v9026, 4294901760
  %9028 = vmatpush1.msra.mxu0 %v9027
  %9029 = vmatprep.subr.mxu0 0.0
  %v9030 = vand.u32 %v4990, 4294901760
  %v9031 = vsub.f32 %v4990, %v9030
  %v9032 = vand.u32 %v9031, 4294901760
  %v9033 = vsub.f32 %v9031, %v9032
  %v9034 = vand.u32 %v9033, 4294901760
  %9035 = vmatpush1.msra.mxu0 %v9034
  %9036 = vmatprep.subr.mxu0 0.0
  %9037 = vmatpush1.msra.mxu0 0.0
  %9038 = vmatprep.subr.mxu0 0.0
  %9039 = vmatpush1.msra.mxu0 0.0
  %9040 = vmatprep.subr.mxu0 0.0
  %9041 = vmatpush1.msra.mxu0 0.0
  %9042 = vmatprep.subr.mxu0 0.0
  %9043 = vmatpush1.msra.mxu0 0.0
  %9044 = vmatprep.subr.mxu0 0.0
  %9045 = vmatpush1.msra.mxu0 0.0
  %9046 = vmatprep.subr.mxu0 0.0
  %9047 = vmatpush1.msra.mxu0 0.0
  %9048 = vmatprep.subr.mxu0 0.0
  %9049 = vmatpush1.msra.mxu0 0.0
  %9050 = vmatprep.subr.mxu0 0.0
  %9051 = vmatpush1.msra.mxu0 0.0
  %9052 = vmatprep.subr.mxu0 0.0
  %9053 = vmatpush1.msra.mxu0 0.0
  %9054 = vmatprep.subr.mxu0 0.0
  %9055 = vmatpush1.msra.mxu0 0.0
  %9056 = vmatprep.subr.mxu0 0.0
  %9057 = vmatpush1.msra.mxu0 0.0
  %9058 = vmatprep.subr.mxu0 0.0
  %9059 = vmatpush1.msra.mxu0 0.0
  %9060 = vmatprep.subr.mxu0 0.0
  %9061 = vmatpush1.msra.mxu0 0.0
  %9062 = vmatprep.subr.mxu0 0.0
  %9063 = vmatpush1.msra.mxu0 0.0
  %9064 = vmatprep.subr.mxu0 0.0
  %9065 = vmatpush1.msra.mxu0 0.0
  %9066 = vmatprep.subr.mxu0 0.0
  %9067 = vmatpush1.msra.mxu0 0.0
  %9068 = vmatprep.subr.mxu0 0.0
  %9069 = vmatpush1.msra.mxu0 0.0
  %9070 = vmatprep.subr.mxu0 0.0
  %9071 = vmatpush1.msra.mxu0 0.0
  %9072 = vmatprep.subr.mxu0 0.0
  %9073 = vmatpush1.msra.mxu0 0.0
  %9074 = vmatprep.subr.mxu0 0.0
  %9075 = vmatpush1.msra.mxu0 0.0
  %9076 = vmatprep.subr.mxu0 0.0
  %9077 = vmatpush1.msra.mxu0 0.0
  %9078 = vmatprep.subr.mxu0 0.0
  %9079 = vmatpush1.msra.mxu0 0.0
  %9080 = vmatprep.subr.mxu0 0.0
  %9081 = vmatpush1.msra.mxu0 0.0
  %9082 = vmatprep.subr.mxu0 0.0
  %9083 = vmatpush1.msra.mxu0 0.0
  %9084 = vmatprep.subr.mxu0 0.0
  %9085 = vmatpush1.msra.mxu0 0.0
  %9086 = vmatprep.subr.mxu0 0.0
  %9087 = vmatpush1.msra.mxu0 0.0
  %9088 = vmatprep.subr.mxu0 0.0
  %9089 = vmatpush1.msra.mxu0 0.0
  %9090 = vmatprep.subr.mxu0 0.0
  %9091 = vmatpush1.msra.mxu0 0.0
  %9092 = vmatprep.mubr.f32.mxu0 0.0
  %v9093 = vand.u32 %v8927, 4294901760
  %9094 = vmatmul.mubr.f32.gmra.mrb[0].mxu0 %v9093
  %v9095 = vpop.f32.mrb[0].mxu0
  %v9096 = vadd.f32 %v9005, %v9095
  %v9097 = vpop.f32.mrb[0].mxu0
  %9098 = vdwg.mxu0
  %9099 = vmatprep.subr.mxu0 0.0
  %v9100 = vand.u32 %v4987, 4294901760
  %v9101 = vsub.f32 %v4987, %v9100
  %9102 = vmatpush1.msra.mxu0 %v9101
  %9103 = vmatprep.subr.mxu0 0.0
  %v9104 = vand.u32 %v4988, 4294901760
  %v9105 = vsub.f32 %v4988, %v9104
  %9106 = vmatpush1.msra.mxu0 %v9105
  %9107 = vmatprep.subr.mxu0 0.0
  %v9108 = vand.u32 %v4989, 4294901760
  %v9109 = vsub.f32 %v4989, %v9108
  %9110 = vmatpush1.msra.mxu0 %v9109
  %9111 = vmatprep.subr.mxu0 0.0
  %v9112 = vand.u32 %v4990, 4294901760
  %v9113 = vsub.f32 %v4990, %v9112
  %9114 = vmatpush1.msra.mxu0 %v9113
  %9115 = vmatprep.subr.mxu0 0.0
  %9116 = vmatpush1.msra.mxu0 0.0
  %9117 = vmatprep.subr.mxu0 0.0
  %9118 = vmatpush1.msra.mxu0 0.0
  %9119 = vmatprep.subr.mxu0 0.0
  %9120 = vmatpush1.msra.mxu0 0.0
  %9121 = vmatprep.subr.mxu0 0.0
  %9122 = vmatpush1.msra.mxu0 0.0
  %9123 = vmatprep.subr.mxu0 0.0
  %9124 = vmatpush1.msra.mxu0 0.0
  %9125 = vmatprep.subr.mxu0 0.0
  %9126 = vmatpush1.msra.mxu0 0.0
  %9127 = vmatprep.subr.mxu0 0.0
  %9128 = vmatpush1.msra.mxu0 0.0
  %9129 = vmatprep.subr.mxu0 0.0
  %9130 = vmatpush1.msra.mxu0 0.0
  %9131 = vmatprep.subr.mxu0 0.0
  %9132 = vmatpush1.msra.mxu0 0.0
  %9133 = vmatprep.subr.mxu0 0.0
  %9134 = vmatpush1.msra.mxu0 0.0
  %9135 = vmatprep.subr.mxu0 0.0
  %9136 = vmatpush1.msra.mxu0 0.0
  %9137 = vmatprep.subr.mxu0 0.0
  %9138 = vmatpush1.msra.mxu0 0.0
  %9139 = vmatprep.subr.mxu0 0.0
  %9140 = vmatpush1.msra.mxu0 0.0
  %9141 = vmatprep.subr.mxu0 0.0
  %9142 = vmatpush1.msra.mxu0 0.0
  %9143 = vmatprep.subr.mxu0 0.0
  %9144 = vmatpush1.msra.mxu0 0.0
  %9145 = vmatprep.subr.mxu0 0.0
  %9146 = vmatpush1.msra.mxu0 0.0
  %9147 = vmatprep.subr.mxu0 0.0
  %9148 = vmatpush1.msra.mxu0 0.0
  %9149 = vmatprep.subr.mxu0 0.0
  %9150 = vmatpush1.msra.mxu0 0.0
  %9151 = vmatprep.subr.mxu0 0.0
  %9152 = vmatpush1.msra.mxu0 0.0
  %9153 = vmatprep.subr.mxu0 0.0
  %9154 = vmatpush1.msra.mxu0 0.0
  %9155 = vmatprep.subr.mxu0 0.0
  %9156 = vmatpush1.msra.mxu0 0.0
  %9157 = vmatprep.subr.mxu0 0.0
  %9158 = vmatpush1.msra.mxu0 0.0
  %9159 = vmatprep.subr.mxu0 0.0
  %9160 = vmatpush1.msra.mxu0 0.0
  %9161 = vmatprep.subr.mxu0 0.0
  %9162 = vmatpush1.msra.mxu0 0.0
  %9163 = vmatprep.subr.mxu0 0.0
  %9164 = vmatpush1.msra.mxu0 0.0
  %9165 = vmatprep.subr.mxu0 0.0
  %9166 = vmatpush1.msra.mxu0 0.0
  %9167 = vmatprep.subr.mxu0 0.0
  %9168 = vmatpush1.msra.mxu0 0.0
  %9169 = vmatprep.subr.mxu0 0.0
  %9170 = vmatpush1.msra.mxu0 0.0
  %9171 = vmatprep.mubr.f32.mxu0 0.0
  %v9172 = vand.u32 %v8927, 4294901760
  %v9173 = vsub.f32 %v8927, %v9172
  %9174 = vmatmul.mubr.f32.gmra.mrb[0].mxu0 %v9173
  %v9175 = vpop.f32.mrb[0].mxu0
  %v9176 = vadd.f32 %v9096, %v9175
  %v9177 = vpop.f32.mrb[0].mxu0
  %9178 = vdwg.mxu0
  %9179 = vmatprep.subr.mxu0 0.0
  %v9180 = vand.u32 %v4987, 4294901760
  %9181 = vmatpush1.msra.mxu0 %v9180
  %9182 = vmatprep.subr.mxu0 0.0
  %v9183 = vand.u32 %v4988, 4294901760
  %9184 = vmatpush1.msra.mxu0 %v9183
  %9185 = vmatprep.subr.mxu0 0.0
  %v9186 = vand.u32 %v4989, 4294901760
  %9187 = vmatpush1.msra.mxu0 %v9186
  %9188 = vmatprep.subr.mxu0 0.0
  %v9189 = vand.u32 %v4990, 4294901760
  %9190 = vmatpush1.msra.mxu0 %v9189
  %9191 = vmatprep.subr.mxu0 0.0
  %9192 = vmatpush1.msra.mxu0 0.0
  %9193 = vmatprep.subr.mxu0 0.0
  %9194 = vmatpush1.msra.mxu0 0.0
  %9195 = vmatprep.subr.mxu0 0.0
  %9196 = vmatpush1.msra.mxu0 0.0
  %9197 = vmatprep.subr.mxu0 0.0
  %9198 = vmatpush1.msra.mxu0 0.0
  %9199 = vmatprep.subr.mxu0 0.0
  %9200 = vmatpush1.msra.mxu0 0.0
  %9201 = vmatprep.subr.mxu0 0.0
  %9202 = vmatpush1.msra.mxu0 0.0
  %9203 = vmatprep.subr.mxu0 0.0
  %9204 = vmatpush1.msra.mxu0 0.0
  %9205 = vmatprep.subr.mxu0 0.0
  %9206 = vmatpush1.msra.mxu0 0.0
  %9207 = vmatprep.subr.mxu0 0.0
  %9208 = vmatpush1.msra.mxu0 0.0
  %9209 = vmatprep.subr.mxu0 0.0
  %9210 = vmatpush1.msra.mxu0 0.0
  %9211 = vmatprep.subr.mxu0 0.0
  %9212 = vmatpush1.msra.mxu0 0.0
  %9213 = vmatprep.subr.mxu0 0.0
  %9214 = vmatpush1.msra.mxu0 0.0
  %9215 = vmatprep.subr.mxu0 0.0
  %9216 = vmatpush1.msra.mxu0 0.0
  %9217 = vmatprep.subr.mxu0 0.0
  %9218 = vmatpush1.msra.mxu0 0.0
  %9219 = vmatprep.subr.mxu0 0.0
  %9220 = vmatpush1.msra.mxu0 0.0
  %9221 = vmatprep.subr.mxu0 0.0
  %9222 = vmatpush1.msra.mxu0 0.0
  %9223 = vmatprep.subr.mxu0 0.0
  %9224 = vmatpush1.msra.mxu0 0.0
  %9225 = vmatprep.subr.mxu0 0.0
  %9226 = vmatpush1.msra.mxu0 0.0
  %9227 = vmatprep.subr.mxu0 0.0
  %9228 = vmatpush1.msra.mxu0 0.0
  %9229 = vmatprep.subr.mxu0 0.0
  %9230 = vmatpush1.msra.mxu0 0.0
  %9231 = vmatprep.subr.mxu0 0.0
  %9232 = vmatpush1.msra.mxu0 0.0
  %9233 = vmatprep.subr.mxu0 0.0
  %9234 = vmatpush1.msra.mxu0 0.0
  %9235 = vmatprep.subr.mxu0 0.0
  %9236 = vmatpush1.msra.mxu0 0.0
  %9237 = vmatprep.subr.mxu0 0.0
  %9238 = vmatpush1.msra.mxu0 0.0
  %9239 = vmatprep.subr.mxu0 0.0
  %9240 = vmatpush1.msra.mxu0 0.0
  %9241 = vmatprep.subr.mxu0 0.0
  %9242 = vmatpush1.msra.mxu0 0.0
  %9243 = vmatprep.subr.mxu0 0.0
  %9244 = vmatpush1.msra.mxu0 0.0
  %9245 = vmatprep.subr.mxu0 0.0
  %9246 = vmatpush1.msra.mxu0 0.0
  %9247 = vmatprep.mubr.f32.mxu0 0.0
  %v9248 = vand.u32 %v8927, 4294901760
  %v9249 = vsub.f32 %v8927, %v9248
  %v9250 = vand.u32 %v9249, 4294901760
  %9251 = vmatmul.mubr.f32.gmra.mrb[0].mxu0 %v9250
  %v9252 = vpop.f32.mrb[0].mxu0
  %v9253 = vadd.f32 %v9176, %v9252
  %v9254 = vpop.f32.mrb[0].mxu0
  %9255 = vdwg.mxu0
  %9256 = vmatprep.subr.mxu0 0.0
  %v9257 = vand.u32 %v4987, 4294901760
  %v9258 = vsub.f32 %v4987, %v9257
  %v9259 = vand.u32 %v9258, 4294901760
  %9260 = vmatpush1.msra.mxu0 %v9259
  %9261 = vmatprep.subr.mxu0 0.0
  %v9262 = vand.u32 %v4988, 4294901760
  %v9263 = vsub.f32 %v4988, %v9262
  %v9264 = vand.u32 %v9263, 4294901760
  %9265 = vmatpush1.msra.mxu0 %v9264
  %9266 = vmatprep.subr.mxu0 0.0
  %v9267 = vand.u32 %v4989, 4294901760
  %v9268 = vsub.f32 %v4989, %v9267
  %v9269 = vand.u32 %v9268, 4294901760
  %9270 = vmatpush1.msra.mxu0 %v9269
  %9271 = vmatprep.subr.mxu0 0.0
  %v9272 = vand.u32 %v4990, 4294901760
  %v9273 = vsub.f32 %v4990, %v9272
  %v9274 = vand.u32 %v9273, 4294901760
  %9275 = vmatpush1.msra.mxu0 %v9274
  %9276 = vmatprep.subr.mxu0 0.0
  %9277 = vmatpush1.msra.mxu0 0.0
  %9278 = vmatprep.subr.mxu0 0.0
  %9279 = vmatpush1.msra.mxu0 0.0
  %9280 = vmatprep.subr.mxu0 0.0
  %9281 = vmatpush1.msra.mxu0 0.0
  %9282 = vmatprep.subr.mxu0 0.0
  %9283 = vmatpush1.msra.mxu0 0.0
  %9284 = vmatprep.subr.mxu0 0.0
  %9285 = vmatpush1.msra.mxu0 0.0
  %9286 = vmatprep.subr.mxu0 0.0
  %9287 = vmatpush1.msra.mxu0 0.0
  %9288 = vmatprep.subr.mxu0 0.0
  %9289 = vmatpush1.msra.mxu0 0.0
  %9290 = vmatprep.subr.mxu0 0.0
  %9291 = vmatpush1.msra.mxu0 0.0
  %9292 = vmatprep.subr.mxu0 0.0
  %9293 = vmatpush1.msra.mxu0 0.0
  %9294 = vmatprep.subr.mxu0 0.0
  %9295 = vmatpush1.msra.mxu0 0.0
  %9296 = vmatprep.subr.mxu0 0.0
  %9297 = vmatpush1.msra.mxu0 0.0
  %9298 = vmatprep.subr.mxu0 0.0
  %9299 = vmatpush1.msra.mxu0 0.0
  %9300 = vmatprep.subr.mxu0 0.0
  %9301 = vmatpush1.msra.mxu0 0.0
  %9302 = vmatprep.subr.mxu0 0.0
  %9303 = vmatpush1.msra.mxu0 0.0
  %9304 = vmatprep.subr.mxu0 0.0
  %9305 = vmatpush1.msra.mxu0 0.0
  %9306 = vmatprep.subr.mxu0 0.0
  %9307 = vmatpush1.msra.mxu0 0.0
  %9308 = vmatprep.subr.mxu0 0.0
  %9309 = vmatpush1.msra.mxu0 0.0
  %9310 = vmatprep.subr.mxu0 0.0
  %9311 = vmatpush1.msra.mxu0 0.0
  %9312 = vmatprep.subr.mxu0 0.0
  %9313 = vmatpush1.msra.mxu0 0.0
  %9314 = vmatprep.subr.mxu0 0.0
  %9315 = vmatpush1.msra.mxu0 0.0
  %9316 = vmatprep.subr.mxu0 0.0
  %9317 = vmatpush1.msra.mxu0 0.0
  %9318 = vmatprep.subr.mxu0 0.0
  %9319 = vmatpush1.msra.mxu0 0.0
  %9320 = vmatprep.subr.mxu0 0.0
  %9321 = vmatpush1.msra.mxu0 0.0
  %9322 = vmatprep.subr.mxu0 0.0
  %9323 = vmatpush1.msra.mxu0 0.0
  %9324 = vmatprep.subr.mxu0 0.0
  %9325 = vmatpush1.msra.mxu0 0.0
  %9326 = vmatprep.subr.mxu0 0.0
  %9327 = vmatpush1.msra.mxu0 0.0
  %9328 = vmatprep.subr.mxu0 0.0
  %9329 = vmatpush1.msra.mxu0 0.0
  %9330 = vmatprep.subr.mxu0 0.0
  %9331 = vmatpush1.msra.mxu0 0.0
  %9332 = vmatprep.mubr.f32.mxu0 0.0
  %v9333 = vand.u32 %v8927, 4294901760
  %9334 = vmatmul.mubr.f32.gmra.mrb[0].mxu0 %v9333
  %v9335 = vpop.f32.mrb[0].mxu0
  %v9336 = vadd.f32 %v9253, %v9335
  %v9337 = vpop.f32.mrb[0].mxu0
  %9338 = vdwg.mxu0
  %9339 = vmatprep.subr.mxu0 0.0
  %v9340 = vand.u32 %v4987, 4294901760
  %9341 = vmatpush1.msra.mxu0 %v9340
  %9342 = vmatprep.subr.mxu0 0.0
  %v9343 = vand.u32 %v4988, 4294901760
  %9344 = vmatpush1.msra.mxu0 %v9343
  %9345 = vmatprep.subr.mxu0 0.0
  %v9346 = vand.u32 %v4989, 4294901760
  %9347 = vmatpush1.msra.mxu0 %v9346
  %9348 = vmatprep.subr.mxu0 0.0
  %v9349 = vand.u32 %v4990, 4294901760
  %9350 = vmatpush1.msra.mxu0 %v9349
  %9351 = vmatprep.subr.mxu0 0.0
  %9352 = vmatpush1.msra.mxu0 0.0
  %9353 = vmatprep.subr.mxu0 0.0
  %9354 = vmatpush1.msra.mxu0 0.0
  %9355 = vmatprep.subr.mxu0 0.0
  %9356 = vmatpush1.msra.mxu0 0.0
  %9357 = vmatprep.subr.mxu0 0.0
  %9358 = vmatpush1.msra.mxu0 0.0
  %9359 = vmatprep.subr.mxu0 0.0
  %9360 = vmatpush1.msra.mxu0 0.0
  %9361 = vmatprep.subr.mxu0 0.0
  %9362 = vmatpush1.msra.mxu0 0.0
  %9363 = vmatprep.subr.mxu0 0.0
  %9364 = vmatpush1.msra.mxu0 0.0
  %9365 = vmatprep.subr.mxu0 0.0
  %9366 = vmatpush1.msra.mxu0 0.0
  %9367 = vmatprep.subr.mxu0 0.0
  %9368 = vmatpush1.msra.mxu0 0.0
  %9369 = vmatprep.subr.mxu0 0.0
  %9370 = vmatpush1.msra.mxu0 0.0
  %9371 = vmatprep.subr.mxu0 0.0
  %9372 = vmatpush1.msra.mxu0 0.0
  %9373 = vmatprep.subr.mxu0 0.0
  %9374 = vmatpush1.msra.mxu0 0.0
  %9375 = vmatprep.subr.mxu0 0.0
  %9376 = vmatpush1.msra.mxu0 0.0
  %9377 = vmatprep.subr.mxu0 0.0
  %9378 = vmatpush1.msra.mxu0 0.0
  %9379 = vmatprep.subr.mxu0 0.0
  %9380 = vmatpush1.msra.mxu0 0.0
  %9381 = vmatprep.subr.mxu0 0.0
  %9382 = vmatpush1.msra.mxu0 0.0
  %9383 = vmatprep.subr.mxu0 0.0
  %9384 = vmatpush1.msra.mxu0 0.0
  %9385 = vmatprep.subr.mxu0 0.0
  %9386 = vmatpush1.msra.mxu0 0.0
  %9387 = vmatprep.subr.mxu0 0.0
  %9388 = vmatpush1.msra.mxu0 0.0
  %9389 = vmatprep.subr.mxu0 0.0
  %9390 = vmatpush1.msra.mxu0 0.0
  %9391 = vmatprep.subr.mxu0 0.0
  %9392 = vmatpush1.msra.mxu0 0.0
  %9393 = vmatprep.subr.mxu0 0.0
  %9394 = vmatpush1.msra.mxu0 0.0
  %9395 = vmatprep.subr.mxu0 0.0
  %9396 = vmatpush1.msra.mxu0 0.0
  %9397 = vmatprep.subr.mxu0 0.0
  %9398 = vmatpush1.msra.mxu0 0.0
  %9399 = vmatprep.subr.mxu0 0.0
  %9400 = vmatpush1.msra.mxu0 0.0
  %9401 = vmatprep.subr.mxu0 0.0
  %9402 = vmatpush1.msra.mxu0 0.0
  %9403 = vmatprep.subr.mxu0 0.0
  %9404 = vmatpush1.msra.mxu0 0.0
  %9405 = vmatprep.subr.mxu0 0.0
  %9406 = vmatpush1.msra.mxu0 0.0
  %9407 = vmatprep.mubr.f32.mxu0 0.0
  %v9408 = vand.u32 %v8927, 4294901760
  %9409 = vmatmul.mubr.f32.gmra.mrb[0].mxu0 %v9408
  %v9410 = vpop.f32.mrb[0].mxu0
  %v9411 = vadd.f32 %v9336, %v9410
  %v9412 = vpop.f32.mrb[0].mxu0
  %9413 = vdwg.mxu0
  %v9414 = vadd.f32 %v5807, %v9411
  %v9415 = vxor.u32 %v9414, 2147483648
  %v9416 = vmul.f32 %v9415, 1.442695
  %v9417 = vpow.pop %v9416
  %v9418 = vadd.f32 %v9417, 1.0
  %v9419 = vrcp.pop %v9418
  %v9420 = vmul.f32 1.0, %v9419
  %v9421 = vtanh.pop %v9414
  %v9422 = vmul.f32 %v9420, %v8915
  %9424 = vrot.lane.b32.xlu0 %v9421, 64
  %v9425 = vpop.permute.xlu0 %9424
  %v9427 = vmul.f32 %v9420, %v9425
  %9429 = vrot.lane.b32.xlu0 %v9427, 32
  %v9430 = vpop.permute.xlu0 %9429
  %v9432 = vadd.f32 %v9422, %v9430
  %v9433 = vtanh.pop %v9432
  %9435 = vrot.lane.b32.xlu0 %v9433, 64
  %v9436 = vpop.permute.xlu0 %9435
  %v9438 = vmul.f32 %v9420, %v9436
  %9440 = vrot.lane.b32.xlu0 %v9438, 32
  %v9441 = vpop.permute.xlu0 %9440
  %9443 = vst.msk [vmem:[#allocation2 + $0x30] sm:$0xff] %vm835, %v9441
  %v9444 = vsel %vm835, %v9441, 0
  %9446 = vmatprep.subr.mxu0 0.0
  %v9447 = vand.u32 %v4987, 4294901760
  %9448 = vmatpush1.msra.mxu0 %v9447
  %9449 = vmatprep.subr.mxu0 0.0
  %v9450 = vand.u32 %v4988, 4294901760
  %9451 = vmatpush1.msra.mxu0 %v9450
  %9452 = vmatprep.subr.mxu0 0.0
  %v9453 = vand.u32 %v4989, 4294901760
  %9454 = vmatpush1.msra.mxu0 %v9453
  %9455 = vmatprep.subr.mxu0 0.0
  %v9456 = vand.u32 %v4990, 4294901760
  %9457 = vmatpush1.msra.mxu0 %v9456
  %9458 = vmatprep.subr.mxu0 0.0
  %9459 = vmatpush1.msra.mxu0 0.0
  %9460 = vmatprep.subr.mxu0 0.0
  %9461 = vmatpush1.msra.mxu0 0.0
  %9462 = vmatprep.subr.mxu0 0.0
  %9463 = vmatpush1.msra.mxu0 0.0
  %9464 = vmatprep.subr.mxu0 0.0
  %9465 = vmatpush1.msra.mxu0 0.0
  %9466 = vmatprep.subr.mxu0 0.0
  %9467 = vmatpush1.msra.mxu0 0.0
  %9468 = vmatprep.subr.mxu0 0.0
  %9469 = vmatpush1.msra.mxu0 0.0
  %9470 = vmatprep.subr.mxu0 0.0
  %9471 = vmatpush1.msra.mxu0 0.0
  %9472 = vmatprep.subr.mxu0 0.0
  %9473 = vmatpush1.msra.mxu0 0.0
  %9474 = vmatprep.subr.mxu0 0.0
  %9475 = vmatpush1.msra.mxu0 0.0
  %9476 = vmatprep.subr.mxu0 0.0
  %9477 = vmatpush1.msra.mxu0 0.0
  %9478 = vmatprep.subr.mxu0 0.0
  %9479 = vmatpush1.msra.mxu0 0.0
  %9480 = vmatprep.subr.mxu0 0.0
  %9481 = vmatpush1.msra.mxu0 0.0
  %9482 = vmatprep.subr.mxu0 0.0
  %9483 = vmatpush1.msra.mxu0 0.0
  %9484 = vmatprep.subr.mxu0 0.0
  %9485 = vmatpush1.msra.mxu0 0.0
  %9486 = vmatprep.subr.mxu0 0.0
  %9487 = vmatpush1.msra.mxu0 0.0
  %9488 = vmatprep.subr.mxu0 0.0
  %9489 = vmatpush1.msra.mxu0 0.0
  %9490 = vmatprep.subr.mxu0 0.0
  %9491 = vmatpush1.msra.mxu0 0.0
  %9492 = vmatprep.subr.mxu0 0.0
  %9493 = vmatpush1.msra.mxu0 0.0
  %9494 = vmatprep.subr.mxu0 0.0
  %9495 = vmatpush1.msra.mxu0 0.0
  %9496 = vmatprep.subr.mxu0 0.0
  %9497 = vmatpush1.msra.mxu0 0.0
  %9498 = vmatprep.subr.mxu0 0.0
  %9499 = vmatpush1.msra.mxu0 0.0
  %9500 = vmatprep.subr.mxu0 0.0
  %9501 = vmatpush1.msra.mxu0 0.0
  %9502 = vmatprep.subr.mxu0 0.0
  %9503 = vmatpush1.msra.mxu0 0.0
  %9504 = vmatprep.subr.mxu0 0.0
  %9505 = vmatpush1.msra.mxu0 0.0
  %9506 = vmatprep.subr.mxu0 0.0
  %9507 = vmatpush1.msra.mxu0 0.0
  %9508 = vmatprep.subr.mxu0 0.0
  %9509 = vmatpush1.msra.mxu0 0.0
  %9510 = vmatprep.subr.mxu0 0.0
  %9511 = vmatpush1.msra.mxu0 0.0
  %9512 = vmatprep.subr.mxu0 0.0
  %9513 = vmatpush1.msra.mxu0 0.0
  %9514 = vmatprep.mubr.f32.mxu0 0.0
  %v9515 = vand.u32 %v9444, 4294901760
  %v9516 = vsub.f32 %v9444, %v9515
  %v9517 = vand.u32 %v9516, 4294901760
  %v9518 = vsub.f32 %v9516, %v9517
  %v9519 = vand.u32 %v9518, 4294901760
  %9520 = vmatmul.mubr.f32.gmra.mrb[0].mxu0 %v9519
  %v9521 = vpop.f32.mrb[0].mxu0
  %v9522 = vadd.f32 0.0, %v9521
  %v9523 = vpop.f32.mrb[0].mxu0
  %9524 = vdwg.mxu0
  %9525 = vmatprep.subr.mxu0 0.0
  %v9526 = vand.u32 %v4987, 4294901760
  %v9527 = vsub.f32 %v4987, %v9526
  %v9528 = vand.u32 %v9527, 4294901760
  %v9529 = vsub.f32 %v9527, %v9528
  %v9530 = vand.u32 %v9529, 4294901760
  %9531 = vmatpush1.msra.mxu0 %v9530
  %9532 = vmatprep.subr.mxu0 0.0
  %v9533 = vand.u32 %v4988, 4294901760
  %v9534 = vsub.f32 %v4988, %v9533
  %v9535 = vand.u32 %v9534, 4294901760
  %v9536 = vsub.f32 %v9534, %v9535
  %v9537 = vand.u32 %v9536, 4294901760
  %9538 = vmatpush1.msra.mxu0 %v9537
  %9539 = vmatprep.subr.mxu0 0.0
  %v9540 = vand.u32 %v4989, 4294901760
  %v9541 = vsub.f32 %v4989, %v9540
  %v9542 = vand.u32 %v9541, 4294901760
  %v9543 = vsub.f32 %v9541, %v9542
  %v9544 = vand.u32 %v9543, 4294901760
  %9545 = vmatpush1.msra.mxu0 %v9544
  %9546 = vmatprep.subr.mxu0 0.0
  %v9547 = vand.u32 %v4990, 4294901760
  %v9548 = vsub.f32 %v4990, %v9547
  %v9549 = vand.u32 %v9548, 4294901760
  %v9550 = vsub.f32 %v9548, %v9549
  %v9551 = vand.u32 %v9550, 4294901760
  %9552 = vmatpush1.msra.mxu0 %v9551
  %9553 = vmatprep.subr.mxu0 0.0
  %9554 = vmatpush1.msra.mxu0 0.0
  %9555 = vmatprep.subr.mxu0 0.0
  %9556 = vmatpush1.msra.mxu0 0.0
  %9557 = vmatprep.subr.mxu0 0.0
  %9558 = vmatpush1.msra.mxu0 0.0
  %9559 = vmatprep.subr.mxu0 0.0
  %9560 = vmatpush1.msra.mxu0 0.0
  %9561 = vmatprep.subr.mxu0 0.0
  %9562 = vmatpush1.msra.mxu0 0.0
  %9563 = vmatprep.subr.mxu0 0.0
  %9564 = vmatpush1.msra.mxu0 0.0
  %9565 = vmatprep.subr.mxu0 0.0
  %9566 = vmatpush1.msra.mxu0 0.0
  %9567 = vmatprep.subr.mxu0 0.0
  %9568 = vmatpush1.msra.mxu0 0.0
  %9569 = vmatprep.subr.mxu0 0.0
  %9570 = vmatpush1.msra.mxu0 0.0
  %9571 = vmatprep.subr.mxu0 0.0
  %9572 = vmatpush1.msra.mxu0 0.0
  %9573 = vmatprep.subr.mxu0 0.0
  %9574 = vmatpush1.msra.mxu0 0.0
  %9575 = vmatprep.subr.mxu0 0.0
  %9576 = vmatpush1.msra.mxu0 0.0
  %9577 = vmatprep.subr.mxu0 0.0
  %9578 = vmatpush1.msra.mxu0 0.0
  %9579 = vmatprep.subr.mxu0 0.0
  %9580 = vmatpush1.msra.mxu0 0.0
  %9581 = vmatprep.subr.mxu0 0.0
  %9582 = vmatpush1.msra.mxu0 0.0
  %9583 = vmatprep.subr.mxu0 0.0
  %9584 = vmatpush1.msra.mxu0 0.0
  %9585 = vmatprep.subr.mxu0 0.0
  %9586 = vmatpush1.msra.mxu0 0.0
  %9587 = vmatprep.subr.mxu0 0.0
  %9588 = vmatpush1.msra.mxu0 0.0
  %9589 = vmatprep.subr.mxu0 0.0
  %9590 = vmatpush1.msra.mxu0 0.0
  %9591 = vmatprep.subr.mxu0 0.0
  %9592 = vmatpush1.msra.mxu0 0.0
  %9593 = vmatprep.subr.mxu0 0.0
  %9594 = vmatpush1.msra.mxu0 0.0
  %9595 = vmatprep.subr.mxu0 0.0
  %9596 = vmatpush1.msra.mxu0 0.0
  %9597 = vmatprep.subr.mxu0 0.0
  %9598 = vmatpush1.msra.mxu0 0.0
  %9599 = vmatprep.subr.mxu0 0.0
  %9600 = vmatpush1.msra.mxu0 0.0
  %9601 = vmatprep.subr.mxu0 0.0
  %9602 = vmatpush1.msra.mxu0 0.0
  %9603 = vmatprep.subr.mxu0 0.0
  %9604 = vmatpush1.msra.mxu0 0.0
  %9605 = vmatprep.subr.mxu0 0.0
  %9606 = vmatpush1.msra.mxu0 0.0
  %9607 = vmatprep.subr.mxu0 0.0
  %9608 = vmatpush1.msra.mxu0 0.0
  %9609 = vmatprep.mubr.f32.mxu0 0.0
  %v9610 = vand.u32 %v9444, 4294901760
  %9611 = vmatmul.mubr.f32.gmra.mrb[0].mxu0 %v9610
  %v9612 = vpop.f32.mrb[0].mxu0
  %v9613 = vadd.f32 %v9522, %v9612
  %v9614 = vpop.f32.mrb[0].mxu0
  %9615 = vdwg.mxu0
  %9616 = vmatprep.subr.mxu0 0.0
  %v9617 = vand.u32 %v4987, 4294901760
  %v9618 = vsub.f32 %v4987, %v9617
  %9619 = vmatpush1.msra.mxu0 %v9618
  %9620 = vmatprep.subr.mxu0 0.0
  %v9621 = vand.u32 %v4988, 4294901760
  %v9622 = vsub.f32 %v4988, %v9621
  %9623 = vmatpush1.msra.mxu0 %v9622
  %9624 = vmatprep.subr.mxu0 0.0
  %v9625 = vand.u32 %v4989, 4294901760
  %v9626 = vsub.f32 %v4989, %v9625
  %9627 = vmatpush1.msra.mxu0 %v9626
  %9628 = vmatprep.subr.mxu0 0.0
  %v9629 = vand.u32 %v4990, 4294901760
  %v9630 = vsub.f32 %v4990, %v9629
  %9631 = vmatpush1.msra.mxu0 %v9630
  %9632 = vmatprep.subr.mxu0 0.0
  %9633 = vmatpush1.msra.mxu0 0.0
  %9634 = vmatprep.subr.mxu0 0.0
  %9635 = vmatpush1.msra.mxu0 0.0
  %9636 = vmatprep.subr.mxu0 0.0
  %9637 = vmatpush1.msra.mxu0 0.0
  %9638 = vmatprep.subr.mxu0 0.0
  %9639 = vmatpush1.msra.mxu0 0.0
  %9640 = vmatprep.subr.mxu0 0.0
  %9641 = vmatpush1.msra.mxu0 0.0
  %9642 = vmatprep.subr.mxu0 0.0
  %9643 = vmatpush1.msra.mxu0 0.0
  %9644 = vmatprep.subr.mxu0 0.0
  %9645 = vmatpush1.msra.mxu0 0.0
  %9646 = vmatprep.subr.mxu0 0.0
  %9647 = vmatpush1.msra.mxu0 0.0
  %9648 = vmatprep.subr.mxu0 0.0
  %9649 = vmatpush1.msra.mxu0 0.0
  %9650 = vmatprep.subr.mxu0 0.0
  %9651 = vmatpush1.msra.mxu0 0.0
  %9652 = vmatprep.subr.mxu0 0.0
  %9653 = vmatpush1.msra.mxu0 0.0
  %9654 = vmatprep.subr.mxu0 0.0
  %9655 = vmatpush1.msra.mxu0 0.0
  %9656 = vmatprep.subr.mxu0 0.0
  %9657 = vmatpush1.msra.mxu0 0.0
  %9658 = vmatprep.subr.mxu0 0.0
  %9659 = vmatpush1.msra.mxu0 0.0
  %9660 = vmatprep.subr.mxu0 0.0
  %9661 = vmatpush1.msra.mxu0 0.0
  %9662 = vmatprep.subr.mxu0 0.0
  %9663 = vmatpush1.msra.mxu0 0.0
  %9664 = vmatprep.subr.mxu0 0.0
  %9665 = vmatpush1.msra.mxu0 0.0
  %9666 = vmatprep.subr.mxu0 0.0
  %9667 = vmatpush1.msra.mxu0 0.0
  %9668 = vmatprep.subr.mxu0 0.0
  %9669 = vmatpush1.msra.mxu0 0.0
  %9670 = vmatprep.subr.mxu0 0.0
  %9671 = vmatpush1.msra.mxu0 0.0
  %9672 = vmatprep.subr.mxu0 0.0
  %9673 = vmatpush1.msra.mxu0 0.0
  %9674 = vmatprep.subr.mxu0 0.0
  %9675 = vmatpush1.msra.mxu0 0.0
  %9676 = vmatprep.subr.mxu0 0.0
  %9677 = vmatpush1.msra.mxu0 0.0
  %9678 = vmatprep.subr.mxu0 0.0
  %9679 = vmatpush1.msra.mxu0 0.0
  %9680 = vmatprep.subr.mxu0 0.0
  %9681 = vmatpush1.msra.mxu0 0.0
  %9682 = vmatprep.subr.mxu0 0.0
  %9683 = vmatpush1.msra.mxu0 0.0
  %9684 = vmatprep.subr.mxu0 0.0
  %9685 = vmatpush1.msra.mxu0 0.0
  %9686 = vmatprep.subr.mxu0 0.0
  %9687 = vmatpush1.msra.mxu0 0.0
  %9688 = vmatprep.mubr.f32.mxu0 0.0
  %v9689 = vand.u32 %v9444, 4294901760
  %v9690 = vsub.f32 %v9444, %v9689
  %9691 = vmatmul.mubr.f32.gmra.mrb[0].mxu0 %v9690
  %v9692 = vpop.f32.mrb[0].mxu0
  %v9693 = vadd.f32 %v9613, %v9692
  %v9694 = vpop.f32.mrb[0].mxu0
  %9695 = vdwg.mxu0
  %9696 = vmatprep.subr.mxu0 0.0
  %v9697 = vand.u32 %v4987, 4294901760
  %9698 = vmatpush1.msra.mxu0 %v9697
  %9699 = vmatprep.subr.mxu0 0.0
  %v9700 = vand.u32 %v4988, 4294901760
  %9701 = vmatpush1.msra.mxu0 %v9700
  %9702 = vmatprep.subr.mxu0 0.0
  %v9703 = vand.u32 %v4989, 4294901760
  %9704 = vmatpush1.msra.mxu0 %v9703
  %9705 = vmatprep.subr.mxu0 0.0
  %v9706 = vand.u32 %v4990, 4294901760
  %9707 = vmatpush1.msra.mxu0 %v9706
  %9708 = vmatprep.subr.mxu0 0.0
  %9709 = vmatpush1.msra.mxu0 0.0
  %9710 = vmatprep.subr.mxu0 0.0
  %9711 = vmatpush1.msra.mxu0 0.0
  %9712 = vmatprep.subr.mxu0 0.0
  %9713 = vmatpush1.msra.mxu0 0.0
  %9714 = vmatprep.subr.mxu0 0.0
  %9715 = vmatpush1.msra.mxu0 0.0
  %9716 = vmatprep.subr.mxu0 0.0
  %9717 = vmatpush1.msra.mxu0 0.0
  %9718 = vmatprep.subr.mxu0 0.0
  %9719 = vmatpush1.msra.mxu0 0.0
  %9720 = vmatprep.subr.mxu0 0.0
  %9721 = vmatpush1.msra.mxu0 0.0
  %9722 = vmatprep.subr.mxu0 0.0
  %9723 = vmatpush1.msra.mxu0 0.0
  %9724 = vmatprep.subr.mxu0 0.0
  %9725 = vmatpush1.msra.mxu0 0.0
  %9726 = vmatprep.subr.mxu0 0.0
  %9727 = vmatpush1.msra.mxu0 0.0
  %9728 = vmatprep.subr.mxu0 0.0
  %9729 = vmatpush1.msra.mxu0 0.0
  %9730 = vmatprep.subr.mxu0 0.0
  %9731 = vmatpush1.msra.mxu0 0.0
  %9732 = vmatprep.subr.mxu0 0.0
  %9733 = vmatpush1.msra.mxu0 0.0
  %9734 = vmatprep.subr.mxu0 0.0
  %9735 = vmatpush1.msra.mxu0 0.0
  %9736 = vmatprep.subr.mxu0 0.0
  %9737 = vmatpush1.msra.mxu0 0.0
  %9738 = vmatprep.subr.mxu0 0.0
  %9739 = vmatpush1.msra.mxu0 0.0
  %9740 = vmatprep.subr.mxu0 0.0
  %9741 = vmatpush1.msra.mxu0 0.0
  %9742 = vmatprep.subr.mxu0 0.0
  %9743 = vmatpush1.msra.mxu0 0.0
  %9744 = vmatprep.subr.mxu0 0.0
  %9745 = vmatpush1.msra.mxu0 0.0
  %9746 = vmatprep.subr.mxu0 0.0
  %9747 = vmatpush1.msra.mxu0 0.0
  %9748 = vmatprep.subr.mxu0 0.0
  %9749 = vmatpush1.msra.mxu0 0.0
  %9750 = vmatprep.subr.mxu0 0.0
  %9751 = vmatpush1.msra.mxu0 0.0
  %9752 = vmatprep.subr.mxu0 0.0
  %9753 = vmatpush1.msra.mxu0 0.0
  %9754 = vmatprep.subr.mxu0 0.0
  %9755 = vmatpush1.msra.mxu0 0.0
  %9756 = vmatprep.subr.mxu0 0.0
  %9757 = vmatpush1.msra.mxu0 0.0
  %9758 = vmatprep.subr.mxu0 0.0
  %9759 = vmatpush1.msra.mxu0 0.0
  %9760 = vmatprep.subr.mxu0 0.0
  %9761 = vmatpush1.msra.mxu0 0.0
  %9762 = vmatprep.subr.mxu0 0.0
  %9763 = vmatpush1.msra.mxu0 0.0
  %9764 = vmatprep.mubr.f32.mxu0 0.0
  %v9765 = vand.u32 %v9444, 4294901760
  %v9766 = vsub.f32 %v9444, %v9765
  %v9767 = vand.u32 %v9766, 4294901760
  %9768 = vmatmul.mubr.f32.gmra.mrb[0].mxu0 %v9767
  %v9769 = vpop.f32.mrb[0].mxu0
  %v9770 = vadd.f32 %v9693, %v9769
  %v9771 = vpop.f32.mrb[0].mxu0
  %9772 = vdwg.mxu0
  %9773 = vmatprep.subr.mxu0 0.0
  %v9774 = vand.u32 %v4987, 4294901760
  %v9775 = vsub.f32 %v4987, %v9774
  %v9776 = vand.u32 %v9775, 4294901760
  %9777 = vmatpush1.msra.mxu0 %v9776
  %9778 = vmatprep.subr.mxu0 0.0
  %v9779 = vand.u32 %v4988, 4294901760
  %v9780 = vsub.f32 %v4988, %v9779
  %v9781 = vand.u32 %v9780, 4294901760
  %9782 = vmatpush1.msra.mxu0 %v9781
  %9783 = vmatprep.subr.mxu0 0.0
  %v9784 = vand.u32 %v4989, 4294901760
  %v9785 = vsub.f32 %v4989, %v9784
  %v9786 = vand.u32 %v9785, 4294901760
  %9787 = vmatpush1.msra.mxu0 %v9786
  %9788 = vmatprep.subr.mxu0 0.0
  %v9789 = vand.u32 %v4990, 4294901760
  %v9790 = vsub.f32 %v4990, %v9789
  %v9791 = vand.u32 %v9790, 4294901760
  %9792 = vmatpush1.msra.mxu0 %v9791
  %9793 = vmatprep.subr.mxu0 0.0
  %9794 = vmatpush1.msra.mxu0 0.0
  %9795 = vmatprep.subr.mxu0 0.0
  %9796 = vmatpush1.msra.mxu0 0.0
  %9797 = vmatprep.subr.mxu0 0.0
  %9798 = vmatpush1.msra.mxu0 0.0
  %9799 = vmatprep.subr.mxu0 0.0
  %9800 = vmatpush1.msra.mxu0 0.0
  %9801 = vmatprep.subr.mxu0 0.0
  %9802 = vmatpush1.msra.mxu0 0.0
  %9803 = vmatprep.subr.mxu0 0.0
  %9804 = vmatpush1.msra.mxu0 0.0
  %9805 = vmatprep.subr.mxu0 0.0
  %9806 = vmatpush1.msra.mxu0 0.0
  %9807 = vmatprep.subr.mxu0 0.0
  %9808 = vmatpush1.msra.mxu0 0.0
  %9809 = vmatprep.subr.mxu0 0.0
  %9810 = vmatpush1.msra.mxu0 0.0
  %9811 = vmatprep.subr.mxu0 0.0
  %9812 = vmatpush1.msra.mxu0 0.0
  %9813 = vmatprep.subr.mxu0 0.0
  %9814 = vmatpush1.msra.mxu0 0.0
  %9815 = vmatprep.subr.mxu0 0.0
  %9816 = vmatpush1.msra.mxu0 0.0
  %9817 = vmatprep.subr.mxu0 0.0
  %9818 = vmatpush1.msra.mxu0 0.0
  %9819 = vmatprep.subr.mxu0 0.0
  %9820 = vmatpush1.msra.mxu0 0.0
  %9821 = vmatprep.subr.mxu0 0.0
  %9822 = vmatpush1.msra.mxu0 0.0
  %9823 = vmatprep.subr.mxu0 0.0
  %9824 = vmatpush1.msra.mxu0 0.0
  %9825 = vmatprep.subr.mxu0 0.0
  %9826 = vmatpush1.msra.mxu0 0.0
  %9827 = vmatprep.subr.mxu0 0.0
  %9828 = vmatpush1.msra.mxu0 0.0
  %9829 = vmatprep.subr.mxu0 0.0
  %9830 = vmatpush1.msra.mxu0 0.0
  %9831 = vmatprep.subr.mxu0 0.0
  %9832 = vmatpush1.msra.mxu0 0.0
  %9833 = vmatprep.subr.mxu0 0.0
  %9834 = vmatpush1.msra.mxu0 0.0
  %9835 = vmatprep.subr.mxu0 0.0
  %9836 = vmatpush1.msra.mxu0 0.0
  %9837 = vmatprep.subr.mxu0 0.0
  %9838 = vmatpush1.msra.mxu0 0.0
  %9839 = vmatprep.subr.mxu0 0.0
  %9840 = vmatpush1.msra.mxu0 0.0
  %9841 = vmatprep.subr.mxu0 0.0
  %9842 = vmatpush1.msra.mxu0 0.0
  %9843 = vmatprep.subr.mxu0 0.0
  %9844 = vmatpush1.msra.mxu0 0.0
  %9845 = vmatprep.subr.mxu0 0.0
  %9846 = vmatpush1.msra.mxu0 0.0
  %9847 = vmatprep.subr.mxu0 0.0
  %9848 = vmatpush1.msra.mxu0 0.0
  %9849 = vmatprep.mubr.f32.mxu0 0.0
  %v9850 = vand.u32 %v9444, 4294901760
  %9851 = vmatmul.mubr.f32.gmra.mrb[0].mxu0 %v9850
  %v9852 = vpop.f32.mrb[0].mxu0
  %v9853 = vadd.f32 %v9770, %v9852
  %v9854 = vpop.f32.mrb[0].mxu0
  %9855 = vdwg.mxu0
  %9856 = vmatprep.subr.mxu0 0.0
  %v9857 = vand.u32 %v4987, 4294901760
  %9858 = vmatpush1.msra.mxu0 %v9857
  %9859 = vmatprep.subr.mxu0 0.0
  %v9860 = vand.u32 %v4988, 4294901760
  %9861 = vmatpush1.msra.mxu0 %v9860
  %9862 = vmatprep.subr.mxu0 0.0
  %v9863 = vand.u32 %v4989, 4294901760
  %9864 = vmatpush1.msra.mxu0 %v9863
  %9865 = vmatprep.subr.mxu0 0.0
  %v9866 = vand.u32 %v4990, 4294901760
  %9867 = vmatpush1.msra.mxu0 %v9866
  %9868 = vmatprep.subr.mxu0 0.0
  %9869 = vmatpush1.msra.mxu0 0.0
  %9870 = vmatprep.subr.mxu0 0.0
  %9871 = vmatpush1.msra.mxu0 0.0
  %9872 = vmatprep.subr.mxu0 0.0
  %9873 = vmatpush1.msra.mxu0 0.0
  %9874 = vmatprep.subr.mxu0 0.0
  %9875 = vmatpush1.msra.mxu0 0.0
  %9876 = vmatprep.subr.mxu0 0.0
  %9877 = vmatpush1.msra.mxu0 0.0
  %9878 = vmatprep.subr.mxu0 0.0
  %9879 = vmatpush1.msra.mxu0 0.0
  %9880 = vmatprep.subr.mxu0 0.0
  %9881 = vmatpush1.msra.mxu0 0.0
  %9882 = vmatprep.subr.mxu0 0.0
  %9883 = vmatpush1.msra.mxu0 0.0
  %9884 = vmatprep.subr.mxu0 0.0
  %9885 = vmatpush1.msra.mxu0 0.0
  %9886 = vmatprep.subr.mxu0 0.0
  %9887 = vmatpush1.msra.mxu0 0.0
  %9888 = vmatprep.subr.mxu0 0.0
  %9889 = vmatpush1.msra.mxu0 0.0
  %9890 = vmatprep.subr.mxu0 0.0
  %9891 = vmatpush1.msra.mxu0 0.0
  %9892 = vmatprep.subr.mxu0 0.0
  %9893 = vmatpush1.msra.mxu0 0.0
  %9894 = vmatprep.subr.mxu0 0.0
  %9895 = vmatpush1.msra.mxu0 0.0
  %9896 = vmatprep.subr.mxu0 0.0
  %9897 = vmatpush1.msra.mxu0 0.0
  %9898 = vmatprep.subr.mxu0 0.0
  %9899 = vmatpush1.msra.mxu0 0.0
  %9900 = vmatprep.subr.mxu0 0.0
  %9901 = vmatpush1.msra.mxu0 0.0
  %9902 = vmatprep.subr.mxu0 0.0
  %9903 = vmatpush1.msra.mxu0 0.0
  %9904 = vmatprep.subr.mxu0 0.0
  %9905 = vmatpush1.msra.mxu0 0.0
  %9906 = vmatprep.subr.mxu0 0.0
  %9907 = vmatpush1.msra.mxu0 0.0
  %9908 = vmatprep.subr.mxu0 0.0
  %9909 = vmatpush1.msra.mxu0 0.0
  %9910 = vmatprep.subr.mxu0 0.0
  %9911 = vmatpush1.msra.mxu0 0.0
  %9912 = vmatprep.subr.mxu0 0.0
  %9913 = vmatpush1.msra.mxu0 0.0
  %9914 = vmatprep.subr.mxu0 0.0
  %9915 = vmatpush1.msra.mxu0 0.0
  %9916 = vmatprep.subr.mxu0 0.0
  %9917 = vmatpush1.msra.mxu0 0.0
  %9918 = vmatprep.subr.mxu0 0.0
  %9919 = vmatpush1.msra.mxu0 0.0
  %9920 = vmatprep.subr.mxu0 0.0
  %9921 = vmatpush1.msra.mxu0 0.0
  %9922 = vmatprep.subr.mxu0 0.0
  %9923 = vmatpush1.msra.mxu0 0.0
  %9924 = vmatprep.mubr.f32.mxu0 0.0
  %v9925 = vand.u32 %v9444, 4294901760
  %9926 = vmatmul.mubr.f32.gmra.mrb[0].mxu0 %v9925
  %v9927 = vpop.f32.mrb[0].mxu0
  %v9928 = vadd.f32 %v9853, %v9927
  %v9929 = vpop.f32.mrb[0].mxu0
  %9930 = vdwg.mxu0
  %v9931 = vadd.f32 %v5813, %v9928
  %v9932 = vxor.u32 %v9931, 2147483648
  %v9933 = vmul.f32 %v9932, 1.442695
  %v9934 = vpow.pop %v9933
  %v9935 = vadd.f32 %v9934, 1.0
  %v9936 = vrcp.pop %v9935
  %v9937 = vmul.f32 1.0, %v9936
  %v9938 = vtanh.pop %v9931
  %v9939 = vmul.f32 %v9937, %v9432
  %9941 = vrot.lane.b32.xlu0 %v9938, 64
  %v9942 = vpop.permute.xlu0 %9941
  %v9944 = vmul.f32 %v9937, %v9942
  %9946 = vrot.lane.b32.xlu0 %v9944, 32
  %v9947 = vpop.permute.xlu0 %9946
  %v9949 = vadd.f32 %v9939, %v9947
  %v9950 = vtanh.pop %v9949
  %9952 = vrot.lane.b32.xlu0 %v9950, 64
  %v9953 = vpop.permute.xlu0 %9952
  %v9955 = vmul.f32 %v9937, %v9953
  %9957 = vrot.lane.b32.xlu0 %v9955, 32
  %v9958 = vpop.permute.xlu0 %9957
  %9960 = vst.msk [vmem:[#allocation2 + $0x38] sm:$0xff] %vm835, %v9958
  %s9961 = scalar_lea.vmem %s12, 8
  %9962 = vst.msk [vmem:[%s9961] sm:$0xff] %vm835, %v9958
  %9964 = vrot.lane.b32.xlu0 %v9949, 96
  %v9965 = vpop.permute.xlu0 %9964
  %s9967 = scalar_lea.vmem %s13, 8
  %9968 = vst.msk [vmem:[%s9967] sm:$0xff] %vm835, %v9965
  %v9969 = vld [vmem:[#allocation2] sm:$0xff]
  %v9970 = vld [vmem:[#allocation2 + $0x8] sm:$0xff]
  %v9971 = vld [vmem:[#allocation2 + $0x10] sm:$0xff]
  %v9972 = vld [vmem:[#allocation2 + $0x18] sm:$0xff]
  %v9973 = vld [vmem:[#allocation2 + $0x20] sm:$0xff]
  %v9974 = vld [vmem:[#allocation2 + $0x28] sm:$0xff]
  %v9975 = vld [vmem:[#allocation2 + $0x30] sm:$0xff]
  %v9976 = vld [vmem:[#allocation2 + $0x38] sm:$0xff]
  %v9977 = vld [vmem:[%s9] sm:$0xff]
  %v9978 = vld [vmem:[%s9 + $0x8] sm:$0xff]
  %v9979 = vld [vmem:[%s9 + $0x10] sm:$0xff]
  %v9980 = vld [vmem:[%s9 + $0x18] sm:$0xff]
  %v9981 = vld [vmem:[%s10] sm:$0x1]
  %v9983 = vlaneseq
  %v9984 = vshrl.u32 %v9983, 7
  %v9985 = vsub.s32 0, %v9984
  %v9986 = vrot.slane %v9981, %v9985
  %v9989 = vsel %vm835, %v9969, 0
  %v9992 = vsel %vm835, %v9970, 0
  %v9995 = vsel %vm835, %v9971, 0
  %v9998 = vsel %vm835, %v9972, 0
  %v10001 = vsel %vm835, %v9973, 0
  %v10004 = vsel %vm835, %v9974, 0
  %v10007 = vsel %vm835, %v9975, 0
  %v10010 = vsel %vm835, %v9976, 0
  %10012 = vmatprep.subr.mxu0 0.0
  %v10013 = vand.u32 %v9977, 4294901760
  %10014 = vmatpush1.msra.mxu0 %v10013
  %10015 = vmatprep.subr.mxu0 0.0
  %v10016 = vand.u32 %v9978, 4294901760
  %10017 = vmatpush1.msra.mxu0 %v10016
  %10018 = vmatprep.subr.mxu0 0.0
  %v10019 = vand.u32 %v9979, 4294901760
  %10020 = vmatpush1.msra.mxu0 %v10019
  %10021 = vmatprep.subr.mxu0 0.0
  %v10022 = vand.u32 %v9980, 4294901760
  %10023 = vmatpush1.msra.mxu0 %v10022
  %10024 = vmatprep.subr.mxu0 0.0
  %10025 = vmatpush1.msra.mxu0 0.0
  %10026 = vmatprep.subr.mxu0 0.0
  %10027 = vmatpush1.msra.mxu0 0.0
  %10028 = vmatprep.subr.mxu0 0.0
  %10029 = vmatpush1.msra.mxu0 0.0
  %10030 = vmatprep.subr.mxu0 0.0
  %10031 = vmatpush1.msra.mxu0 0.0
  %10032 = vmatprep.subr.mxu0 0.0
  %10033 = vmatpush1.msra.mxu0 0.0
  %10034 = vmatprep.subr.mxu0 0.0
  %10035 = vmatpush1.msra.mxu0 0.0
  %10036 = vmatprep.subr.mxu0 0.0
  %10037 = vmatpush1.msra.mxu0 0.0
  %10038 = vmatprep.subr.mxu0 0.0
  %10039 = vmatpush1.msra.mxu0 0.0
  %10040 = vmatprep.subr.mxu0 0.0
  %10041 = vmatpush1.msra.mxu0 0.0
  %10042 = vmatprep.subr.mxu0 0.0
  %10043 = vmatpush1.msra.mxu0 0.0
  %10044 = vmatprep.subr.mxu0 0.0
  %10045 = vmatpush1.msra.mxu0 0.0
  %10046 = vmatprep.subr.mxu0 0.0
  %10047 = vmatpush1.msra.mxu0 0.0
  %10048 = vmatprep.subr.mxu0 0.0
  %10049 = vmatpush1.msra.mxu0 0.0
  %10050 = vmatprep.subr.mxu0 0.0
  %10051 = vmatpush1.msra.mxu0 0.0
  %10052 = vmatprep.subr.mxu0 0.0
  %10053 = vmatpush1.msra.mxu0 0.0
  %10054 = vmatprep.subr.mxu0 0.0
  %10055 = vmatpush1.msra.mxu0 0.0
  %10056 = vmatprep.subr.mxu0 0.0
  %10057 = vmatpush1.msra.mxu0 0.0
  %10058 = vmatprep.subr.mxu0 0.0
  %10059 = vmatpush1.msra.mxu0 0.0
  %10060 = vmatprep.subr.mxu0 0.0
  %10061 = vmatpush1.msra.mxu0 0.0
  %10062 = vmatprep.subr.mxu0 0.0
  %10063 = vmatpush1.msra.mxu0 0.0
  %10064 = vmatprep.subr.mxu0 0.0
  %10065 = vmatpush1.msra.mxu0 0.0
  %10066 = vmatprep.subr.mxu0 0.0
  %10067 = vmatpush1.msra.mxu0 0.0
  %10068 = vmatprep.subr.mxu0 0.0
  %10069 = vmatpush1.msra.mxu0 0.0
  %10070 = vmatprep.subr.mxu0 0.0
  %10071 = vmatpush1.msra.mxu0 0.0
  %10072 = vmatprep.subr.mxu0 0.0
  %10073 = vmatpush1.msra.mxu0 0.0
  %10074 = vmatprep.subr.mxu0 0.0
  %10075 = vmatpush1.msra.mxu0 0.0
  %10076 = vmatprep.subr.mxu0 0.0
  %10077 = vmatpush1.msra.mxu0 0.0
  %10078 = vmatprep.subr.mxu0 0.0
  %10079 = vmatpush1.msra.mxu0 0.0
  %10080 = vmatprep.mubr.f32.mxu0 0.0
  %v10081 = vand.u32 %v9989, 4294901760
  %v10082 = vsub.f32 %v9989, %v10081
  %v10083 = vand.u32 %v10082, 4294901760
  %v10084 = vsub.f32 %v10082, %v10083
  %v10085 = vand.u32 %v10084, 4294901760
  %10086 = vmatmul.mubr.f32.gmra.mrb[0].mxu0 %v10085
  %v10087 = vpop.f32.mrb[0].mxu0
  %v10088 = vadd.f32 %v9986, %v10087
  %v10089 = vpop.f32.mrb[0].mxu0
  %10090 = vmatprep.mubr.f32.mxu0 0.0
  %v10091 = vand.u32 %v9992, 4294901760
  %v10092 = vsub.f32 %v9992, %v10091
  %v10093 = vand.u32 %v10092, 4294901760
  %v10094 = vsub.f32 %v10092, %v10093
  %v10095 = vand.u32 %v10094, 4294901760
  %10096 = vmatmul.mubr.f32.gmra.mrb[0].mxu0 %v10095
  %v10097 = vpop.f32.mrb[0].mxu0
  %v10098 = vadd.f32 %v9986, %v10097
  %v10099 = vpop.f32.mrb[0].mxu0
  %10100 = vmatprep.mubr.f32.mxu0 0.0
  %v10101 = vand.u32 %v9995, 4294901760
  %v10102 = vsub.f32 %v9995, %v10101
  %v10103 = vand.u32 %v10102, 4294901760
  %v10104 = vsub.f32 %v10102, %v10103
  %v10105 = vand.u32 %v10104, 4294901760
  %10106 = vmatmul.mubr.f32.gmra.mrb[0].mxu0 %v10105
  %v10107 = vpop.f32.mrb[0].mxu0
  %v10108 = vadd.f32 %v9986, %v10107
  %v10109 = vpop.f32.mrb[0].mxu0
  %10110 = vmatprep.mubr.f32.mxu0 0.0
  %v10111 = vand.u32 %v9998, 4294901760
  %v10112 = vsub.f32 %v9998, %v10111
  %v10113 = vand.u32 %v10112, 4294901760
  %v10114 = vsub.f32 %v10112, %v10113
  %v10115 = vand.u32 %v10114, 4294901760
  %10116 = vmatmul.mubr.f32.gmra.mrb[0].mxu0 %v10115
  %v10117 = vpop.f32.mrb[0].mxu0
  %v10118 = vadd.f32 %v9986, %v10117
  %v10119 = vpop.f32.mrb[0].mxu0
  %10120 = vmatprep.mubr.f32.mxu0 0.0
  %v10121 = vand.u32 %v10001, 4294901760
  %v10122 = vsub.f32 %v10001, %v10121
  %v10123 = vand.u32 %v10122, 4294901760
  %v10124 = vsub.f32 %v10122, %v10123
  %v10125 = vand.u32 %v10124, 4294901760
  %10126 = vmatmul.mubr.f32.gmra.mrb[0].mxu0 %v10125
  %v10127 = vpop.f32.mrb[0].mxu0
  %v10128 = vadd.f32 %v9986, %v10127
  %v10129 = vpop.f32.mrb[0].mxu0
  %10130 = vmatprep.mubr.f32.mxu0 0.0
  %v10131 = vand.u32 %v10004, 4294901760
  %v10132 = vsub.f32 %v10004, %v10131
  %v10133 = vand.u32 %v10132, 4294901760
  %v10134 = vsub.f32 %v10132, %v10133
  %v10135 = vand.u32 %v10134, 4294901760
  %10136 = vmatmul.mubr.f32.gmra.mrb[0].mxu0 %v10135
  %v10137 = vpop.f32.mrb[0].mxu0
  %v10138 = vadd.f32 %v9986, %v10137
  %v10139 = vpop.f32.mrb[0].mxu0
  %10140 = vmatprep.mubr.f32.mxu0 0.0
  %v10141 = vand.u32 %v10007, 4294901760
  %v10142 = vsub.f32 %v10007, %v10141
  %v10143 = vand.u32 %v10142, 4294901760
  %v10144 = vsub.f32 %v10142, %v10143
  %v10145 = vand.u32 %v10144, 4294901760
  %10146 = vmatmul.mubr.f32.gmra.mrb[0].mxu0 %v10145
  %v10147 = vpop.f32.mrb[0].mxu0
  %v10148 = vadd.f32 %v9986, %v10147
  %v10149 = vpop.f32.mrb[0].mxu0
  %10150 = vmatprep.mubr.f32.mxu0 0.0
  %v10151 = vand.u32 %v10010, 4294901760
  %v10152 = vsub.f32 %v10010, %v10151
  %v10153 = vand.u32 %v10152, 4294901760
  %v10154 = vsub.f32 %v10152, %v10153
  %v10155 = vand.u32 %v10154, 4294901760
  %10156 = vmatmul.mubr.f32.gmra.mrb[0].mxu0 %v10155
  %v10157 = vpop.f32.mrb[0].mxu0
  %v10158 = vadd.f32 %v9986, %v10157
  %v10159 = vpop.f32.mrb[0].mxu0
  %10160 = vdwg.mxu0
  %10161 = vmatprep.subr.mxu0 0.0
  %v10162 = vand.u32 %v9977, 4294901760
  %v10163 = vsub.f32 %v9977, %v10162
  %v10164 = vand.u32 %v10163, 4294901760
  %v10165 = vsub.f32 %v10163, %v10164
  %v10166 = vand.u32 %v10165, 4294901760
  %10167 = vmatpush1.msra.mxu0 %v10166
  %10168 = vmatprep.subr.mxu0 0.0
  %v10169 = vand.u32 %v9978, 4294901760
  %v10170 = vsub.f32 %v9978, %v10169
  %v10171 = vand.u32 %v10170, 4294901760
  %v10172 = vsub.f32 %v10170, %v10171
  %v10173 = vand.u32 %v10172, 4294901760
  %10174 = vmatpush1.msra.mxu0 %v10173
  %10175 = vmatprep.subr.mxu0 0.0
  %v10176 = vand.u32 %v9979, 4294901760
  %v10177 = vsub.f32 %v9979, %v10176
  %v10178 = vand.u32 %v10177, 4294901760
  %v10179 = vsub.f32 %v10177, %v10178
  %v10180 = vand.u32 %v10179, 4294901760
  %10181 = vmatpush1.msra.mxu0 %v10180
  %10182 = vmatprep.subr.mxu0 0.0
  %v10183 = vand.u32 %v9980, 4294901760
  %v10184 = vsub.f32 %v9980, %v10183
  %v10185 = vand.u32 %v10184, 4294901760
  %v10186 = vsub.f32 %v10184, %v10185
  %v10187 = vand.u32 %v10186, 4294901760
  %10188 = vmatpush1.msra.mxu0 %v10187
  %10189 = vmatprep.subr.mxu0 0.0
  %10190 = vmatpush1.msra.mxu0 0.0
  %10191 = vmatprep.subr.mxu0 0.0
  %10192 = vmatpush1.msra.mxu0 0.0
  %10193 = vmatprep.subr.mxu0 0.0
  %10194 = vmatpush1.msra.mxu0 0.0
  %10195 = vmatprep.subr.mxu0 0.0
  %10196 = vmatpush1.msra.mxu0 0.0
  %10197 = vmatprep.subr.mxu0 0.0
  %10198 = vmatpush1.msra.mxu0 0.0
  %10199 = vmatprep.subr.mxu0 0.0
  %10200 = vmatpush1.msra.mxu0 0.0
  %10201 = vmatprep.subr.mxu0 0.0
  %10202 = vmatpush1.msra.mxu0 0.0
  %10203 = vmatprep.subr.mxu0 0.0
  %10204 = vmatpush1.msra.mxu0 0.0
  %10205 = vmatprep.subr.mxu0 0.0
  %10206 = vmatpush1.msra.mxu0 0.0
  %10207 = vmatprep.subr.mxu0 0.0
  %10208 = vmatpush1.msra.mxu0 0.0
  %10209 = vmatprep.subr.mxu0 0.0
  %10210 = vmatpush1.msra.mxu0 0.0
  %10211 = vmatprep.subr.mxu0 0.0
  %10212 = vmatpush1.msra.mxu0 0.0
  %10213 = vmatprep.subr.mxu0 0.0
  %10214 = vmatpush1.msra.mxu0 0.0
  %10215 = vmatprep.subr.mxu0 0.0
  %10216 = vmatpush1.msra.mxu0 0.0
  %10217 = vmatprep.subr.mxu0 0.0
  %10218 = vmatpush1.msra.mxu0 0.0
  %10219 = vmatprep.subr.mxu0 0.0
  %10220 = vmatpush1.msra.mxu0 0.0
  %10221 = vmatprep.subr.mxu0 0.0
  %10222 = vmatpush1.msra.mxu0 0.0
  %10223 = vmatprep.subr.mxu0 0.0
  %10224 = vmatpush1.msra.mxu0 0.0
  %10225 = vmatprep.subr.mxu0 0.0
  %10226 = vmatpush1.msra.mxu0 0.0
  %10227 = vmatprep.subr.mxu0 0.0
  %10228 = vmatpush1.msra.mxu0 0.0
  %10229 = vmatprep.subr.mxu0 0.0
  %10230 = vmatpush1.msra.mxu0 0.0
  %10231 = vmatprep.subr.mxu0 0.0
  %10232 = vmatpush1.msra.mxu0 0.0
  %10233 = vmatprep.subr.mxu0 0.0
  %10234 = vmatpush1.msra.mxu0 0.0
  %10235 = vmatprep.subr.mxu0 0.0
  %10236 = vmatpush1.msra.mxu0 0.0
  %10237 = vmatprep.subr.mxu0 0.0
  %10238 = vmatpush1.msra.mxu0 0.0
  %10239 = vmatprep.subr.mxu0 0.0
  %10240 = vmatpush1.msra.mxu0 0.0
  %10241 = vmatprep.subr.mxu0 0.0
  %10242 = vmatpush1.msra.mxu0 0.0
  %10243 = vmatprep.subr.mxu0 0.0
  %10244 = vmatpush1.msra.mxu0 0.0
  %10245 = vmatprep.mubr.f32.mxu0 0.0
  %v10246 = vand.u32 %v9989, 4294901760
  %10247 = vmatmul.mubr.f32.gmra.mrb[0].mxu0 %v10246
  %v10248 = vpop.f32.mrb[0].mxu0
  %v10249 = vadd.f32 %v10088, %v10248
  %v10250 = vpop.f32.mrb[0].mxu0
  %10251 = vmatprep.mubr.f32.mxu0 0.0
  %v10252 = vand.u32 %v9992, 4294901760
  %10253 = vmatmul.mubr.f32.gmra.mrb[0].mxu0 %v10252
  %v10254 = vpop.f32.mrb[0].mxu0
  %v10255 = vadd.f32 %v10098, %v10254
  %v10256 = vpop.f32.mrb[0].mxu0
  %10257 = vmatprep.mubr.f32.mxu0 0.0
  %v10258 = vand.u32 %v9995, 4294901760
  %10259 = vmatmul.mubr.f32.gmra.mrb[0].mxu0 %v10258
  %v10260 = vpop.f32.mrb[0].mxu0
  %v10261 = vadd.f32 %v10108, %v10260
  %v10262 = vpop.f32.mrb[0].mxu0
  %10263 = vmatprep.mubr.f32.mxu0 0.0
  %v10264 = vand.u32 %v9998, 4294901760
  %10265 = vmatmul.mubr.f32.gmra.mrb[0].mxu0 %v10264
  %v10266 = vpop.f32.mrb[0].mxu0
  %v10267 = vadd.f32 %v10118, %v10266
  %v10268 = vpop.f32.mrb[0].mxu0
  %10269 = vmatprep.mubr.f32.mxu0 0.0
  %v10270 = vand.u32 %v10001, 4294901760
  %10271 = vmatmul.mubr.f32.gmra.mrb[0].mxu0 %v10270
  %v10272 = vpop.f32.mrb[0].mxu0
  %v10273 = vadd.f32 %v10128, %v10272
  %v10274 = vpop.f32.mrb[0].mxu0
  %10275 = vmatprep.mubr.f32.mxu0 0.0
  %v10276 = vand.u32 %v10004, 4294901760
  %10277 = vmatmul.mubr.f32.gmra.mrb[0].mxu0 %v10276
  %v10278 = vpop.f32.mrb[0].mxu0
  %v10279 = vadd.f32 %v10138, %v10278
  %v10280 = vpop.f32.mrb[0].mxu0
  %10281 = vmatprep.mubr.f32.mxu0 0.0
  %v10282 = vand.u32 %v10007, 4294901760
  %10283 = vmatmul.mubr.f32.gmra.mrb[0].mxu0 %v10282
  %v10284 = vpop.f32.mrb[0].mxu0
  %v10285 = vadd.f32 %v10148, %v10284
  %v10286 = vpop.f32.mrb[0].mxu0
  %10287 = vmatprep.mubr.f32.mxu0 0.0
  %v10288 = vand.u32 %v10010, 4294901760
  %10289 = vmatmul.mubr.f32.gmra.mrb[0].mxu0 %v10288
  %v10290 = vpop.f32.mrb[0].mxu0
  %v10291 = vadd.f32 %v10158, %v10290
  %v10292 = vpop.f32.mrb[0].mxu0
  %10293 = vdwg.mxu0
  %10294 = vmatprep.subr.mxu0 0.0
  %v10295 = vand.u32 %v9977, 4294901760
  %v10296 = vsub.f32 %v9977, %v10295
  %10297 = vmatpush1.msra.mxu0 %v10296
  %10298 = vmatprep.subr.mxu0 0.0
  %v10299 = vand.u32 %v9978, 4294901760
  %v10300 = vsub.f32 %v9978, %v10299
  %10301 = vmatpush1.msra.mxu0 %v10300
  %10302 = vmatprep.subr.mxu0 0.0
  %v10303 = vand.u32 %v9979, 4294901760
  %v10304 = vsub.f32 %v9979, %v10303
  %10305 = vmatpush1.msra.mxu0 %v10304
  %10306 = vmatprep.subr.mxu0 0.0
  %v10307 = vand.u32 %v9980, 4294901760
  %v10308 = vsub.f32 %v9980, %v10307
  %10309 = vmatpush1.msra.mxu0 %v10308
  %10310 = vmatprep.subr.mxu0 0.0
  %10311 = vmatpush1.msra.mxu0 0.0
  %10312 = vmatprep.subr.mxu0 0.0
  %10313 = vmatpush1.msra.mxu0 0.0
  %10314 = vmatprep.subr.mxu0 0.0
  %10315 = vmatpush1.msra.mxu0 0.0
  %10316 = vmatprep.subr.mxu0 0.0
  %10317 = vmatpush1.msra.mxu0 0.0
  %10318 = vmatprep.subr.mxu0 0.0
  %10319 = vmatpush1.msra.mxu0 0.0
  %10320 = vmatprep.subr.mxu0 0.0
  %10321 = vmatpush1.msra.mxu0 0.0
  %10322 = vmatprep.subr.mxu0 0.0
  %10323 = vmatpush1.msra.mxu0 0.0
  %10324 = vmatprep.subr.mxu0 0.0
  %10325 = vmatpush1.msra.mxu0 0.0
  %10326 = vmatprep.subr.mxu0 0.0
  %10327 = vmatpush1.msra.mxu0 0.0
  %10328 = vmatprep.subr.mxu0 0.0
  %10329 = vmatpush1.msra.mxu0 0.0
  %10330 = vmatprep.subr.mxu0 0.0
  %10331 = vmatpush1.msra.mxu0 0.0
  %10332 = vmatprep.subr.mxu0 0.0
  %10333 = vmatpush1.msra.mxu0 0.0
  %10334 = vmatprep.subr.mxu0 0.0
  %10335 = vmatpush1.msra.mxu0 0.0
  %10336 = vmatprep.subr.mxu0 0.0
  %10337 = vmatpush1.msra.mxu0 0.0
  %10338 = vmatprep.subr.mxu0 0.0
  %10339 = vmatpush1.msra.mxu0 0.0
  %10340 = vmatprep.subr.mxu0 0.0
  %10341 = vmatpush1.msra.mxu0 0.0
  %10342 = vmatprep.subr.mxu0 0.0
  %10343 = vmatpush1.msra.mxu0 0.0
  %10344 = vmatprep.subr.mxu0 0.0
  %10345 = vmatpush1.msra.mxu0 0.0
  %10346 = vmatprep.subr.mxu0 0.0
  %10347 = vmatpush1.msra.mxu0 0.0
  %10348 = vmatprep.subr.mxu0 0.0
  %10349 = vmatpush1.msra.mxu0 0.0
  %10350 = vmatprep.subr.mxu0 0.0
  %10351 = vmatpush1.msra.mxu0 0.0
  %10352 = vmatprep.subr.mxu0 0.0
  %10353 = vmatpush1.msra.mxu0 0.0
  %10354 = vmatprep.subr.mxu0 0.0
  %10355 = vmatpush1.msra.mxu0 0.0
  %10356 = vmatprep.subr.mxu0 0.0
  %10357 = vmatpush1.msra.mxu0 0.0
  %10358 = vmatprep.subr.mxu0 0.0
  %10359 = vmatpush1.msra.mxu0 0.0
  %10360 = vmatprep.subr.mxu0 0.0
  %10361 = vmatpush1.msra.mxu0 0.0
  %10362 = vmatprep.subr.mxu0 0.0
  %10363 = vmatpush1.msra.mxu0 0.0
  %10364 = vmatprep.subr.mxu0 0.0
  %10365 = vmatpush1.msra.mxu0 0.0
  %10366 = vmatprep.mubr.f32.mxu0 0.0
  %v10367 = vand.u32 %v9989, 4294901760
  %v10368 = vsub.f32 %v9989, %v10367
  %10369 = vmatmul.mubr.f32.gmra.mrb[0].mxu0 %v10368
  %v10370 = vpop.f32.mrb[0].mxu0
  %v10371 = vadd.f32 %v10249, %v10370
  %v10372 = vpop.f32.mrb[0].mxu0
  %10373 = vmatprep.mubr.f32.mxu0 0.0
  %v10374 = vand.u32 %v9992, 4294901760
  %v10375 = vsub.f32 %v9992, %v10374
  %10376 = vmatmul.mubr.f32.gmra.mrb[0].mxu0 %v10375
  %v10377 = vpop.f32.mrb[0].mxu0
  %v10378 = vadd.f32 %v10255, %v10377
  %v10379 = vpop.f32.mrb[0].mxu0
  %10380 = vmatprep.mubr.f32.mxu0 0.0
  %v10381 = vand.u32 %v9995, 4294901760
  %v10382 = vsub.f32 %v9995, %v10381
  %10383 = vmatmul.mubr.f32.gmra.mrb[0].mxu0 %v10382
  %v10384 = vpop.f32.mrb[0].mxu0
  %v10385 = vadd.f32 %v10261, %v10384
  %v10386 = vpop.f32.mrb[0].mxu0
  %10387 = vmatprep.mubr.f32.mxu0 0.0
  %v10388 = vand.u32 %v9998, 4294901760
  %v10389 = vsub.f32 %v9998, %v10388
  %10390 = vmatmul.mubr.f32.gmra.mrb[0].mxu0 %v10389
  %v10391 = vpop.f32.mrb[0].mxu0
  %v10392 = vadd.f32 %v10267, %v10391
  %v10393 = vpop.f32.mrb[0].mxu0
  %10394 = vmatprep.mubr.f32.mxu0 0.0
  %v10395 = vand.u32 %v10001, 4294901760
  %v10396 = vsub.f32 %v10001, %v10395
  %10397 = vmatmul.mubr.f32.gmra.mrb[0].mxu0 %v10396
  %v10398 = vpop.f32.mrb[0].mxu0
  %v10399 = vadd.f32 %v10273, %v10398
  %v10400 = vpop.f32.mrb[0].mxu0
  %10401 = vmatprep.mubr.f32.mxu0 0.0
  %v10402 = vand.u32 %v10004, 4294901760
  %v10403 = vsub.f32 %v10004, %v10402
  %10404 = vmatmul.mubr.f32.gmra.mrb[0].mxu0 %v10403
  %v10405 = vpop.f32.mrb[0].mxu0
  %v10406 = vadd.f32 %v10279, %v10405
  %v10407 = vpop.f32.mrb[0].mxu0
  %10408 = vmatprep.mubr.f32.mxu0 0.0
  %v10409 = vand.u32 %v10007, 4294901760
  %v10410 = vsub.f32 %v10007, %v10409
  %10411 = vmatmul.mubr.f32.gmra.mrb[0].mxu0 %v10410
  %v10412 = vpop.f32.mrb[0].mxu0
  %v10413 = vadd.f32 %v10285, %v10412
  %v10414 = vpop.f32.mrb[0].mxu0
  %10415 = vmatprep.mubr.f32.mxu0 0.0
  %v10416 = vand.u32 %v10010, 4294901760
  %v10417 = vsub.f32 %v10010, %v10416
  %10418 = vmatmul.mubr.f32.gmra.mrb[0].mxu0 %v10417
  %v10419 = vpop.f32.mrb[0].mxu0
  %v10420 = vadd.f32 %v10291, %v10419
  %v10421 = vpop.f32.mrb[0].mxu0
  %10422 = vdwg.mxu0
  %10423 = vmatprep.subr.mxu0 0.0
  %v10424 = vand.u32 %v9977, 4294901760
  %10425 = vmatpush1.msra.mxu0 %v10424
  %10426 = vmatprep.subr.mxu0 0.0
  %v10427 = vand.u32 %v9978, 4294901760
  %10428 = vmatpush1.msra.mxu0 %v10427
  %10429 = vmatprep.subr.mxu0 0.0
  %v10430 = vand.u32 %v9979, 4294901760
  %10431 = vmatpush1.msra.mxu0 %v10430
  %10432 = vmatprep.subr.mxu0 0.0
  %v10433 = vand.u32 %v9980, 4294901760
  %10434 = vmatpush1.msra.mxu0 %v10433
  %10435 = vmatprep.subr.mxu0 0.0
  %10436 = vmatpush1.msra.mxu0 0.0
  %10437 = vmatprep.subr.mxu0 0.0
  %10438 = vmatpush1.msra.mxu0 0.0
  %10439 = vmatprep.subr.mxu0 0.0
  %10440 = vmatpush1.msra.mxu0 0.0
  %10441 = vmatprep.subr.mxu0 0.0
  %10442 = vmatpush1.msra.mxu0 0.0
  %10443 = vmatprep.subr.mxu0 0.0
  %10444 = vmatpush1.msra.mxu0 0.0
  %10445 = vmatprep.subr.mxu0 0.0
  %10446 = vmatpush1.msra.mxu0 0.0
  %10447 = vmatprep.subr.mxu0 0.0
  %10448 = vmatpush1.msra.mxu0 0.0
  %10449 = vmatprep.subr.mxu0 0.0
  %10450 = vmatpush1.msra.mxu0 0.0
  %10451 = vmatprep.subr.mxu0 0.0
  %10452 = vmatpush1.msra.mxu0 0.0
  %10453 = vmatprep.subr.mxu0 0.0
  %10454 = vmatpush1.msra.mxu0 0.0
  %10455 = vmatprep.subr.mxu0 0.0
  %10456 = vmatpush1.msra.mxu0 0.0
  %10457 = vmatprep.subr.mxu0 0.0
  %10458 = vmatpush1.msra.mxu0 0.0
  %10459 = vmatprep.subr.mxu0 0.0
  %10460 = vmatpush1.msra.mxu0 0.0
  %10461 = vmatprep.subr.mxu0 0.0
  %10462 = vmatpush1.msra.mxu0 0.0
  %10463 = vmatprep.subr.mxu0 0.0
  %10464 = vmatpush1.msra.mxu0 0.0
  %10465 = vmatprep.subr.mxu0 0.0
  %10466 = vmatpush1.msra.mxu0 0.0
  %10467 = vmatprep.subr.mxu0 0.0
  %10468 = vmatpush1.msra.mxu0 0.0
  %10469 = vmatprep.subr.mxu0 0.0
  %10470 = vmatpush1.msra.mxu0 0.0
  %10471 = vmatprep.subr.mxu0 0.0
  %10472 = vmatpush1.msra.mxu0 0.0
  %10473 = vmatprep.subr.mxu0 0.0
  %10474 = vmatpush1.msra.mxu0 0.0
  %10475 = vmatprep.subr.mxu0 0.0
  %10476 = vmatpush1.msra.mxu0 0.0
  %10477 = vmatprep.subr.mxu0 0.0
  %10478 = vmatpush1.msra.mxu0 0.0
  %10479 = vmatprep.subr.mxu0 0.0
  %10480 = vmatpush1.msra.mxu0 0.0
  %10481 = vmatprep.subr.mxu0 0.0
  %10482 = vmatpush1.msra.mxu0 0.0
  %10483 = vmatprep.subr.mxu0 0.0
  %10484 = vmatpush1.msra.mxu0 0.0
  %10485 = vmatprep.subr.mxu0 0.0
  %10486 = vmatpush1.msra.mxu0 0.0
  %10487 = vmatprep.subr.mxu0 0.0
  %10488 = vmatpush1.msra.mxu0 0.0
  %10489 = vmatprep.subr.mxu0 0.0
  %10490 = vmatpush1.msra.mxu0 0.0
  %10491 = vmatprep.mubr.f32.mxu0 0.0
  %v10492 = vand.u32 %v9989, 4294901760
  %v10493 = vsub.f32 %v9989, %v10492
  %v10494 = vand.u32 %v10493, 4294901760
  %10495 = vmatmul.mubr.f32.gmra.mrb[0].mxu0 %v10494
  %v10496 = vpop.f32.mrb[0].mxu0
  %v10497 = vadd.f32 %v10371, %v10496
  %v10498 = vpop.f32.mrb[0].mxu0
  %10499 = vmatprep.mubr.f32.mxu0 0.0
  %v10500 = vand.u32 %v9992, 4294901760
  %v10501 = vsub.f32 %v9992, %v10500
  %v10502 = vand.u32 %v10501, 4294901760
  %10503 = vmatmul.mubr.f32.gmra.mrb[0].mxu0 %v10502
  %v10504 = vpop.f32.mrb[0].mxu0
  %v10505 = vadd.f32 %v10378, %v10504
  %v10506 = vpop.f32.mrb[0].mxu0
  %10507 = vmatprep.mubr.f32.mxu0 0.0
  %v10508 = vand.u32 %v9995, 4294901760
  %v10509 = vsub.f32 %v9995, %v10508
  %v10510 = vand.u32 %v10509, 4294901760
  %10511 = vmatmul.mubr.f32.gmra.mrb[0].mxu0 %v10510
  %v10512 = vpop.f32.mrb[0].mxu0
  %v10513 = vadd.f32 %v10385, %v10512
  %v10514 = vpop.f32.mrb[0].mxu0
  %10515 = vmatprep.mubr.f32.mxu0 0.0
  %v10516 = vand.u32 %v9998, 4294901760
  %v10517 = vsub.f32 %v9998, %v10516
  %v10518 = vand.u32 %v10517, 4294901760
  %10519 = vmatmul.mubr.f32.gmra.mrb[0].mxu0 %v10518
  %v10520 = vpop.f32.mrb[0].mxu0
  %v10521 = vadd.f32 %v10392, %v10520
  %v10522 = vpop.f32.mrb[0].mxu0
  %10523 = vmatprep.mubr.f32.mxu0 0.0
  %v10524 = vand.u32 %v10001, 4294901760
  %v10525 = vsub.f32 %v10001, %v10524
  %v10526 = vand.u32 %v10525, 4294901760
  %10527 = vmatmul.mubr.f32.gmra.mrb[0].mxu0 %v10526
  %v10528 = vpop.f32.mrb[0].mxu0
  %v10529 = vadd.f32 %v10399, %v10528
  %v10530 = vpop.f32.mrb[0].mxu0
  %10531 = vmatprep.mubr.f32.mxu0 0.0
  %v10532 = vand.u32 %v10004, 4294901760
  %v10533 = vsub.f32 %v10004, %v10532
  %v10534 = vand.u32 %v10533, 4294901760
  %10535 = vmatmul.mubr.f32.gmra.mrb[0].mxu0 %v10534
  %v10536 = vpop.f32.mrb[0].mxu0
  %v10537 = vadd.f32 %v10406, %v10536
  %v10538 = vpop.f32.mrb[0].mxu0
  %10539 = vmatprep.mubr.f32.mxu0 0.0
  %v10540 = vand.u32 %v10007, 4294901760
  %v10541 = vsub.f32 %v10007, %v10540
  %v10542 = vand.u32 %v10541, 4294901760
  %10543 = vmatmul.mubr.f32.gmra.mrb[0].mxu0 %v10542
  %v10544 = vpop.f32.mrb[0].mxu0
  %v10545 = vadd.f32 %v10413, %v10544
  %v10546 = vpop.f32.mrb[0].mxu0
  %10547 = vmatprep.mubr.f32.mxu0 0.0
  %v10548 = vand.u32 %v10010, 4294901760
  %v10549 = vsub.f32 %v10010, %v10548
  %v10550 = vand.u32 %v10549, 4294901760
  %10551 = vmatmul.mubr.f32.gmra.mrb[0].mxu0 %v10550
  %v10552 = vpop.f32.mrb[0].mxu0
  %v10553 = vadd.f32 %v10420, %v10552
  %v10554 = vpop.f32.mrb[0].mxu0
  %10555 = vdwg.mxu0
  %10556 = vmatprep.subr.mxu0 0.0
  %v10557 = vand.u32 %v9977, 4294901760
  %v10558 = vsub.f32 %v9977, %v10557
  %v10559 = vand.u32 %v10558, 4294901760
  %10560 = vmatpush1.msra.mxu0 %v10559
  %10561 = vmatprep.subr.mxu0 0.0
  %v10562 = vand.u32 %v9978, 4294901760
  %v10563 = vsub.f32 %v9978, %v10562
  %v10564 = vand.u32 %v10563, 4294901760
  %10565 = vmatpush1.msra.mxu0 %v10564
  %10566 = vmatprep.subr.mxu0 0.0
  %v10567 = vand.u32 %v9979, 4294901760
  %v10568 = vsub.f32 %v9979, %v10567
  %v10569 = vand.u32 %v10568, 4294901760
  %10570 = vmatpush1.msra.mxu0 %v10569
  %10571 = vmatprep.subr.mxu0 0.0
  %v10572 = vand.u32 %v9980, 4294901760
  %v10573 = vsub.f32 %v9980, %v10572
  %v10574 = vand.u32 %v10573, 4294901760
  %10575 = vmatpush1.msra.mxu0 %v10574
  %10576 = vmatprep.subr.mxu0 0.0
  %10577 = vmatpush1.msra.mxu0 0.0
  %10578 = vmatprep.subr.mxu0 0.0
  %10579 = vmatpush1.msra.mxu0 0.0
  %10580 = vmatprep.subr.mxu0 0.0
  %10581 = vmatpush1.msra.mxu0 0.0
  %10582 = vmatprep.subr.mxu0 0.0
  %10583 = vmatpush1.msra.mxu0 0.0
  %10584 = vmatprep.subr.mxu0 0.0
  %10585 = vmatpush1.msra.mxu0 0.0
  %10586 = vmatprep.subr.mxu0 0.0
  %10587 = vmatpush1.msra.mxu0 0.0
  %10588 = vmatprep.subr.mxu0 0.0
  %10589 = vmatpush1.msra.mxu0 0.0
  %10590 = vmatprep.subr.mxu0 0.0
  %10591 = vmatpush1.msra.mxu0 0.0
  %10592 = vmatprep.subr.mxu0 0.0
  %10593 = vmatpush1.msra.mxu0 0.0
  %10594 = vmatprep.subr.mxu0 0.0
  %10595 = vmatpush1.msra.mxu0 0.0
  %10596 = vmatprep.subr.mxu0 0.0
  %10597 = vmatpush1.msra.mxu0 0.0
  %10598 = vmatprep.subr.mxu0 0.0
  %10599 = vmatpush1.msra.mxu0 0.0
  %10600 = vmatprep.subr.mxu0 0.0
  %10601 = vmatpush1.msra.mxu0 0.0
  %10602 = vmatprep.subr.mxu0 0.0
  %10603 = vmatpush1.msra.mxu0 0.0
  %10604 = vmatprep.subr.mxu0 0.0
  %10605 = vmatpush1.msra.mxu0 0.0
  %10606 = vmatprep.subr.mxu0 0.0
  %10607 = vmatpush1.msra.mxu0 0.0
  %10608 = vmatprep.subr.mxu0 0.0
  %10609 = vmatpush1.msra.mxu0 0.0
  %10610 = vmatprep.subr.mxu0 0.0
  %10611 = vmatpush1.msra.mxu0 0.0
  %10612 = vmatprep.subr.mxu0 0.0
  %10613 = vmatpush1.msra.mxu0 0.0
  %10614 = vmatprep.subr.mxu0 0.0
  %10615 = vmatpush1.msra.mxu0 0.0
  %10616 = vmatprep.subr.mxu0 0.0
  %10617 = vmatpush1.msra.mxu0 0.0
  %10618 = vmatprep.subr.mxu0 0.0
  %10619 = vmatpush1.msra.mxu0 0.0
  %10620 = vmatprep.subr.mxu0 0.0
  %10621 = vmatpush1.msra.mxu0 0.0
  %10622 = vmatprep.subr.mxu0 0.0
  %10623 = vmatpush1.msra.mxu0 0.0
  %10624 = vmatprep.subr.mxu0 0.0
  %10625 = vmatpush1.msra.mxu0 0.0
  %10626 = vmatprep.subr.mxu0 0.0
  %10627 = vmatpush1.msra.mxu0 0.0
  %10628 = vmatprep.subr.mxu0 0.0
  %10629 = vmatpush1.msra.mxu0 0.0
  %10630 = vmatprep.subr.mxu0 0.0
  %10631 = vmatpush1.msra.mxu0 0.0
  %10632 = vmatprep.mubr.f32.mxu0 0.0
  %v10633 = vand.u32 %v9989, 4294901760
  %10634 = vmatmul.mubr.f32.gmra.mrb[0].mxu0 %v10633
  %v10635 = vpop.f32.mrb[0].mxu0
  %v10636 = vadd.f32 %v10497, %v10635
  %v10637 = vpop.f32.mrb[0].mxu0
  %10638 = vmatprep.mubr.f32.mxu0 0.0
  %v10639 = vand.u32 %v9992, 4294901760
  %10640 = vmatmul.mubr.f32.gmra.mrb[0].mxu0 %v10639
  %v10641 = vpop.f32.mrb[0].mxu0
  %v10642 = vadd.f32 %v10505, %v10641
  %v10643 = vpop.f32.mrb[0].mxu0
  %10644 = vmatprep.mubr.f32.mxu0 0.0
  %v10645 = vand.u32 %v9995, 4294901760
  %10646 = vmatmul.mubr.f32.gmra.mrb[0].mxu0 %v10645
  %v10647 = vpop.f32.mrb[0].mxu0
  %v10648 = vadd.f32 %v10513, %v10647
  %v10649 = vpop.f32.mrb[0].mxu0
  %10650 = vmatprep.mubr.f32.mxu0 0.0
  %v10651 = vand.u32 %v9998, 4294901760
  %10652 = vmatmul.mubr.f32.gmra.mrb[0].mxu0 %v10651
  %v10653 = vpop.f32.mrb[0].mxu0
  %v10654 = vadd.f32 %v10521, %v10653
  %v10655 = vpop.f32.mrb[0].mxu0
  %10656 = vmatprep.mubr.f32.mxu0 0.0
  %v10657 = vand.u32 %v10001, 4294901760
  %10658 = vmatmul.mubr.f32.gmra.mrb[0].mxu0 %v10657
  %v10659 = vpop.f32.mrb[0].mxu0
  %v10660 = vadd.f32 %v10529, %v10659
  %v10661 = vpop.f32.mrb[0].mxu0
  %10662 = vmatprep.mubr.f32.mxu0 0.0
  %v10663 = vand.u32 %v10004, 4294901760
  %10664 = vmatmul.mubr.f32.gmra.mrb[0].mxu0 %v10663
  %v10665 = vpop.f32.mrb[0].mxu0
  %v10666 = vadd.f32 %v10537, %v10665
  %v10667 = vpop.f32.mrb[0].mxu0
  %10668 = vmatprep.mubr.f32.mxu0 0.0
  %v10669 = vand.u32 %v10007, 4294901760
  %10670 = vmatmul.mubr.f32.gmra.mrb[0].mxu0 %v10669
  %v10671 = vpop.f32.mrb[0].mxu0
  %v10672 = vadd.f32 %v10545, %v10671
  %v10673 = vpop.f32.mrb[0].mxu0
  %10674 = vmatprep.mubr.f32.mxu0 0.0
  %v10675 = vand.u32 %v10010, 4294901760
  %10676 = vmatmul.mubr.f32.gmra.mrb[0].mxu0 %v10675
  %v10677 = vpop.f32.mrb[0].mxu0
  %v10678 = vadd.f32 %v10553, %v10677
  %v10679 = vpop.f32.mrb[0].mxu0
  %10680 = vdwg.mxu0
  %10681 = vmatprep.subr.mxu0 0.0
  %v10682 = vand.u32 %v9977, 4294901760
  %10683 = vmatpush1.msra.mxu0 %v10682
  %10684 = vmatprep.subr.mxu0 0.0
  %v10685 = vand.u32 %v9978, 4294901760
  %10686 = vmatpush1.msra.mxu0 %v10685
  %10687 = vmatprep.subr.mxu0 0.0
  %v10688 = vand.u32 %v9979, 4294901760
  %10689 = vmatpush1.msra.mxu0 %v10688
  %10690 = vmatprep.subr.mxu0 0.0
  %v10691 = vand.u32 %v9980, 4294901760
  %10692 = vmatpush1.msra.mxu0 %v10691
  %10693 = vmatprep.subr.mxu0 0.0
  %10694 = vmatpush1.msra.mxu0 0.0
  %10695 = vmatprep.subr.mxu0 0.0
  %10696 = vmatpush1.msra.mxu0 0.0
  %10697 = vmatprep.subr.mxu0 0.0
  %10698 = vmatpush1.msra.mxu0 0.0
  %10699 = vmatprep.subr.mxu0 0.0
  %10700 = vmatpush1.msra.mxu0 0.0
  %10701 = vmatprep.subr.mxu0 0.0
  %10702 = vmatpush1.msra.mxu0 0.0
  %10703 = vmatprep.subr.mxu0 0.0
  %10704 = vmatpush1.msra.mxu0 0.0
  %10705 = vmatprep.subr.mxu0 0.0
  %10706 = vmatpush1.msra.mxu0 0.0
  %10707 = vmatprep.subr.mxu0 0.0
  %10708 = vmatpush1.msra.mxu0 0.0
  %10709 = vmatprep.subr.mxu0 0.0
  %10710 = vmatpush1.msra.mxu0 0.0
  %10711 = vmatprep.subr.mxu0 0.0
  %10712 = vmatpush1.msra.mxu0 0.0
  %10713 = vmatprep.subr.mxu0 0.0
  %10714 = vmatpush1.msra.mxu0 0.0
  %10715 = vmatprep.subr.mxu0 0.0
  %10716 = vmatpush1.msra.mxu0 0.0
  %10717 = vmatprep.subr.mxu0 0.0
  %10718 = vmatpush1.msra.mxu0 0.0
  %10719 = vmatprep.subr.mxu0 0.0
  %10720 = vmatpush1.msra.mxu0 0.0
  %10721 = vmatprep.subr.mxu0 0.0
  %10722 = vmatpush1.msra.mxu0 0.0
  %10723 = vmatprep.subr.mxu0 0.0
  %10724 = vmatpush1.msra.mxu0 0.0
  %10725 = vmatprep.subr.mxu0 0.0
  %10726 = vmatpush1.msra.mxu0 0.0
  %10727 = vmatprep.subr.mxu0 0.0
  %10728 = vmatpush1.msra.mxu0 0.0
  %10729 = vmatprep.subr.mxu0 0.0
  %10730 = vmatpush1.msra.mxu0 0.0
  %10731 = vmatprep.subr.mxu0 0.0
  %10732 = vmatpush1.msra.mxu0 0.0
  %10733 = vmatprep.subr.mxu0 0.0
  %10734 = vmatpush1.msra.mxu0 0.0
  %10735 = vmatprep.subr.mxu0 0.0
  %10736 = vmatpush1.msra.mxu0 0.0
  %10737 = vmatprep.subr.mxu0 0.0
  %10738 = vmatpush1.msra.mxu0 0.0
  %10739 = vmatprep.subr.mxu0 0.0
  %10740 = vmatpush1.msra.mxu0 0.0
  %10741 = vmatprep.subr.mxu0 0.0
  %10742 = vmatpush1.msra.mxu0 0.0
  %10743 = vmatprep.subr.mxu0 0.0
  %10744 = vmatpush1.msra.mxu0 0.0
  %10745 = vmatprep.subr.mxu0 0.0
  %10746 = vmatpush1.msra.mxu0 0.0
  %10747 = vmatprep.subr.mxu0 0.0
  %10748 = vmatpush1.msra.mxu0 0.0
  %10749 = vmatprep.mubr.f32.mxu0 0.0
  %v10750 = vand.u32 %v9989, 4294901760
  %10751 = vmatmul.mubr.f32.gmra.mrb[0].mxu0 %v10750
  %v10752 = vpop.f32.mrb[0].mxu0
  %v10753 = vadd.f32 %v10636, %v10752
  %v10754 = vpop.f32.mrb[0].mxu0
  %10755 = vmatprep.mubr.f32.mxu0 0.0
  %v10756 = vand.u32 %v9992, 4294901760
  %10757 = vmatmul.mubr.f32.gmra.mrb[0].mxu0 %v10756
  %v10758 = vpop.f32.mrb[0].mxu0
  %v10759 = vadd.f32 %v10642, %v10758
  %v10760 = vpop.f32.mrb[0].mxu0
  %10761 = vmatprep.mubr.f32.mxu0 0.0
  %v10762 = vand.u32 %v9995, 4294901760
  %10763 = vmatmul.mubr.f32.gmra.mrb[0].mxu0 %v10762
  %v10764 = vpop.f32.mrb[0].mxu0
  %v10765 = vadd.f32 %v10648, %v10764
  %v10766 = vpop.f32.mrb[0].mxu0
  %10767 = vmatprep.mubr.f32.mxu0 0.0
  %v10768 = vand.u32 %v9998, 4294901760
  %10769 = vmatmul.mubr.f32.gmra.mrb[0].mxu0 %v10768
  %v10770 = vpop.f32.mrb[0].mxu0
  %v10771 = vadd.f32 %v10654, %v10770
  %v10772 = vpop.f32.mrb[0].mxu0
  %10773 = vmatprep.mubr.f32.mxu0 0.0
  %v10774 = vand.u32 %v10001, 4294901760
  %10775 = vmatmul.mubr.f32.gmra.mrb[0].mxu0 %v10774
  %v10776 = vpop.f32.mrb[0].mxu0
  %v10777 = vadd.f32 %v10660, %v10776
  %v10778 = vpop.f32.mrb[0].mxu0
  %10779 = vmatprep.mubr.f32.mxu0 0.0
  %v10780 = vand.u32 %v10004, 4294901760
  %10781 = vmatmul.mubr.f32.gmra.mrb[0].mxu0 %v10780
  %v10782 = vpop.f32.mrb[0].mxu0
  %v10783 = vadd.f32 %v10666, %v10782
  %v10784 = vpop.f32.mrb[0].mxu0
  %10785 = vmatprep.mubr.f32.mxu0 0.0
  %v10786 = vand.u32 %v10007, 4294901760
  %10787 = vmatmul.mubr.f32.gmra.mrb[0].mxu0 %v10786
  %v10788 = vpop.f32.mrb[0].mxu0
  %v10789 = vadd.f32 %v10672, %v10788
  %v10790 = vpop.f32.mrb[0].mxu0
  %10791 = vmatprep.mubr.f32.mxu0 0.0
  %v10792 = vand.u32 %v10010, 4294901760
  %10793 = vmatmul.mubr.f32.gmra.mrb[0].mxu0 %v10792
  %v10794 = vpop.f32.mrb[0].mxu0
  %v10795 = vadd.f32 %v10678, %v10794
  %v10796 = vpop.f32.mrb[0].mxu0
  %10797 = vdwg.mxu0
  %10798 = vst [vmem:[%s11] sm:$0xff] %v10753
  %10799 = vst [vmem:[%s11 + $0x8] sm:$0xff] %v10759
  %10800 = vst [vmem:[%s11 + $0x10] sm:$0xff] %v10765
  %10801 = vst [vmem:[%s11 + $0x18] sm:$0xff] %v10771
  %10802 = vst [vmem:[%s11 + $0x20] sm:$0xff] %v10777
  %10803 = vst [vmem:[%s11 + $0x28] sm:$0xff] %v10783
  %10804 = vst [vmem:[%s11 + $0x30] sm:$0xff] %v10789
  %10805 = vst [vmem:[%s11 + $0x38] sm:$0xff] %v10795
  // Predicated region
  $region46: #{lstm_model_forward.1} parent=0 // pred_check
    _
  $region47: #{lstm_model_forward.1} parent=0 // pred_check_branch
    %10807 = sbr.rel (0) target = $region49
  $region48: #{lstm_model_forward.1} parent=0 // pred_region
    _
  $region49: #{lstm_model_forward.1} parent=0 // pred_fallthru
    _
  // Predicated region
  $region50: #{lstm_model_forward.1} parent=0 // pred_check
    _
  $region51: #{lstm_model_forward.1} parent=0 // pred_check_branch
    %10809 = sbr.rel (0) target = $region53
  $region52: #{lstm_model_forward.1} parent=0 // pred_region
    _
  $region53: #{lstm_model_forward.1} parent=0 // pred_fallthru
    _
  // Predicated region
  $region54: #{lstm_model_forward.1} parent=0 // pred_check
    _
  $region55: #{lstm_model_forward.1} parent=0 // pred_check_branch
    %10811 = sbr.rel (0) target = $region57
  $region56: #{lstm_model_forward.1} parent=0 // pred_region
    _
  $region57: #{lstm_model_forward.1} parent=0 // pred_fallthru
    _
  // Predicated region
  $region58: #{lstm_model_forward.1} parent=0 // pred_check
    _
  $region59: #{lstm_model_forward.1} parent=0 // pred_check_branch
    %10813 = sbr.rel (0) target = $region61
  $region60: #{lstm_model_forward.1} parent=0 // pred_region
    _
  $region61: #{lstm_model_forward.1} parent=0 // pred_fallthru
    _
  // Predicated region
  $region62: #{lstm_model_forward.1} parent=0 // pred_check
    _
  $region63: #{lstm_model_forward.1} parent=0 // pred_check_branch
    %10815 = sbr.rel (0) target = $region65
  $region64: #{lstm_model_forward.1} parent=0 // pred_region
    _
  $region65: #{lstm_model_forward.1} parent=0 // pred_fallthru
    _
  // Predicated region
  $region66: #{lstm_model_forward.1} parent=0 // pred_check
    _
  $region67: #{lstm_model_forward.1} parent=0 // pred_check_branch
    %10817 = sbr.rel (0) target = $region69
  $region68: #{lstm_model_forward.1} parent=0 // pred_region
    _
  $region69: #{lstm_model_forward.1} parent=0 // pred_fallthru
    _

</llo_original>
